<compile_context>
chip_gen: v6e
topology: v6e:2x2x1
jax: 0.10.0
libtpu: 0.0.40
codegen_flags: <defaults>
</compile_context>

<pallas_src>
import jax
import jax.numpy as jnp
from jax.experimental import pallas as pl
from jax.experimental.pallas import tpu as pltpu

LN_EPS = 1e-5
_INV_SQRT2 = 0.7071067811865476


def _erf(x):
    # Abramowitz & Stegun 7.1.26 polynomial, |err| <= 1.5e-7 (~f32 precision).
    # Uses only exp/mul/add/where so it lowers cleanly through Mosaic (no lax.erf dependency).
    p = 0.3275911
    a1, a2, a3, a4, a5 = (0.254829592, -0.284496736, 1.421413741,
                          -1.453152027, 1.061405429)
    ax = jnp.abs(x)
    t = 1.0 / (1.0 + p * ax)
    poly = ((((a5 * t + a4) * t + a3) * t + a2) * t + a1) * t
    y = 1.0 - poly * jnp.exp(-ax * ax)
    return jnp.where(x >= 0.0, y, -y)


def _gelu(x):
    # torch.nn.GELU() default: 0.5 * x * (1 + erf(x / sqrt(2)))
    return 0.5 * x * (1.0 + _erf(x * _INV_SQRT2))


# ============================ fused MixFFN_skip kernel ============================
def _mixffn_kernel(x_ref, w1_ref, b1_ref, dww_ref, dwb_ref, g_ref, be_ref,
                   w2_ref, b2_ref, o_ref, pad_ref):
    Hp, Wp, C2 = pad_ref.shape
    H, W = Hp - 2, Wp - 2

    x = x_ref[0].astype(jnp.float32)                              # (N, C1)

    # ---- fc1 : (N, C1) @ (C1, C2) + b1 ----
    y = jnp.dot(x, w1_ref[...], preferred_element_type=jnp.float32) + b1_ref[...]

    # ---- depthwise 3x3, stride 1, padding 1 (halo via zero-filled VMEM scratch) ----
    pad_ref[...] = jnp.zeros_like(pad_ref)
    pad_ref[1:H + 1, 1:W + 1, :] = y.reshape(H, W, C2)
    acc = jnp.zeros((H, W, C2), jnp.float32)
    for ky in range(3):                                           # unrolled 9 VPU taps
        for kx in range(3):
            wk = dww_ref[ky:ky + 1, kx:kx + 1, :]                 # (1, 1, C2)
            acc = acc + pad_ref[ky:ky + H, kx:kx + W, :] * wk
    d = acc.reshape(H * W, C2) + dwb_ref[...]                     # (N, C2)

    # ---- skip + LayerNorm(c2)  (norm1) ----
    z = d + y
    mu = jnp.mean(z, axis=-1, keepdims=True)
    zc = z - mu
    var = jnp.mean(zc * zc, axis=-1, keepdims=True)
    zn = zc * jax.lax.rsqrt(var + LN_EPS) * g_ref[...] + be_ref[...]

    # ---- GELU + fc2 : (N, C2) @ (C2, C1) + b2 ----
    a = _gelu(zn)
    out = jnp.dot(a, w2_ref[...], preferred_element_type=jnp.float32) + b2_ref[...]
    o_ref[0] = out.astype(o_ref.dtype)


def mixffn_skip(params, x, H, W):
    B, N, C1 = x.shape
    C2 = params["w1"].shape[1]
    assert N == H * W

    b1 = params["b1"].reshape(1, C2)
    dwb = params["dw_b"].reshape(1, C2)
    g = params["ln_g"].reshape(1, C2)
    be = params["ln_b"].reshape(1, C2)
    b2 = params["b2"].reshape(1, C1)

    return pl.pallas_call(
        _mixffn_kernel,
        out_shape=jax.ShapeDtypeStruct((B, N, C1), x.dtype),
        grid=(B,),
        in_specs=[
            pl.BlockSpec((1, N, C1), lambda b: (b, 0, 0)),        # x tokens, per batch
            pl.BlockSpec((C1, C2), lambda b: (0, 0)),             # fc1 weight (grid-invariant)
            pl.BlockSpec((1, C2), lambda b: (0, 0)),              # fc1 bias
            pl.BlockSpec((3, 3, C2), lambda b: (0, 0, 0)),        # depthwise weight
            pl.BlockSpec((1, C2), lambda b: (0, 0)),              # depthwise bias
            pl.BlockSpec((1, C2), lambda b: (0, 0)),              # LN gamma
            pl.BlockSpec((1, C2), lambda b: (0, 0)),              # LN beta
            pl.BlockSpec((C2, C1), lambda b: (0, 0)),             # fc2 weight
            pl.BlockSpec((1, C1), lambda b: (0, 0)),              # fc2 bias
        ],
        out_specs=pl.BlockSpec((1, N, C1), lambda b: (b, 0, 0)),
        scratch_shapes=[pltpu.VMEM((H + 2, W + 2, C2), jnp.float32)],
        compiler_params=pltpu.CompilerParams(
            dimension_semantics=("parallel",)),                   # batch items independent
    )(x, params["w1"], b1, params["dw_w"], dwb, g, be, params["w2"], b2)


# ============================ pure-JAX reference ============================
def mixffn_skip_ref(params, x, H, W):
    B, N, C1 = x.shape
    C2 = params["w1"].shape[1]
    hi = jax.lax.Precision.HIGHEST
    y = jnp.dot(x, params["w1"], precision=hi) + params["b1"]
    y_nchw = jnp.transpose(y.reshape(B, H, W, C2), (0, 3, 1, 2))
    w = jnp.transpose(params["dw_w"], (2, 0, 1))[:, None, :, :]   # (C2, 1, 3, 3) OIHW
    d = jax.lax.conv_general_dilated(
        y_nchw, w, window_strides=(1, 1), padding=((1, 1), (1, 1)),
        dimension_numbers=("NCHW", "OIHW", "NCHW"),
        feature_group_count=C2, precision=hi)
    d = d + params["dw_b"][None, :, None, None]
    d = jnp.transpose(d.reshape(B, C2, N), (0, 2, 1))
    z = d + y
    mu = jnp.mean(z, axis=-1, keepdims=True)
    var = jnp.mean((z - mu) ** 2, axis=-1, keepdims=True)
    zn = (z - mu) / jnp.sqrt(var + LN_EPS) * params["ln_g"] + params["ln_b"]
    a = jax.nn.gelu(zn, approximate=False)
    return jnp.dot(a, params["w2"], precision=hi) + params["b2"]


# ============================ params & driver ============================
def init_params(key, c1, c2):
    ks = jax.random.split(key, 6)

    def u(k, shape, bound):
        return jax.random.uniform(k, shape, jnp.float32, -bound, bound)

    p = {}
    p["w1"] = u(ks[0], (c1, c2), 1.0 / (c1 ** 0.5))   # torch Linear init range
    p["b1"] = u(ks[1], (c2,), 1.0 / (c1 ** 0.5))
    p["dw_w"] = u(ks[2], (3, 3, c2), 1.0 / 3.0)       # depthwise fan_in = 9
    p["dw_b"] = u(ks[3], (c2,), 1.0 / 3.0)
    p["ln_g"] = jnp.ones((c2,), jnp.float32)          # torch LayerNorm init
    p["ln_b"] = jnp.zeros((c2,), jnp.float32)
    p["w2"] = u(ks[4], (c2, c1), 1.0 / (c2 ** 0.5))
    p["b2"] = u(ks[5], (c1,), 1.0 / (c2 ** 0.5))
    return p


if __name__ == "__main__":
    B, H, W = 2, 16, 16
    C1, C2 = 64, 256        # c2 multiple of 128 -> lane-dense hidden dim
    N = H * W

    key = jax.random.PRNGKey(0)
    kx, kp = jax.random.split(key)
    x = jax.random.normal(kx, (B, N, C1), dtype=jnp.float32)
    params = init_params(kp, C1, C2)

    out = jax.block_until_ready(mixffn_skip(params, x, H, W))
    assert out.shape == (B, N, C1)
    assert bool(jnp.all(jnp.isfinite(out)))

    ref = jax.block_until_ready(mixffn_skip_ref(params, x, H, W))
    err = float(jnp.max(jnp.abs(out - ref)))
    assert err < 5e-2, f"max abs err vs reference: {err}"

    print("KERNEL_OK")
</pallas_src>

<mosaic_0001>
module attributes {stable_mosaic.version = 11 : i64} {
  func.func @_mixffn_kernel(%arg0: i32, %arg1: memref<1x256x64xf32, #tpu.memory_space<vmem>>, %arg2: memref<64x256xf32, #tpu.memory_space<vmem>>, %arg3: memref<1x256xf32, #tpu.memory_space<vmem>>, %arg4: memref<3x3x256xf32, #tpu.memory_space<vmem>>, %arg5: memref<1x256xf32, #tpu.memory_space<vmem>>, %arg6: memref<1x256xf32, #tpu.memory_space<vmem>>, %arg7: memref<1x256xf32, #tpu.memory_space<vmem>>, %arg8: memref<256x64xf32, #tpu.memory_space<vmem>>, %arg9: memref<1x64xf32, #tpu.memory_space<vmem>>, %arg10: memref<1x256x64xf32, #tpu.memory_space<vmem>>, %arg11: memref<18x18x256xf32, #tpu.memory_space<vmem>>) attributes {dimension_semantics = [#tpu.dimension_semantics<parallel>], iteration_bounds = array<i64: 2>, scalar_prefetch = 0 : i64, scratch_operands = 1 : i64, tpu.core_type = #tpu.core_type<tc>, window_params = [{transform_indices = @transform_0, window_bounds = array<i64: 1, 256, 64>}, {pipeline_mode = #tpu.pipeline_mode<synchronous>, transform_indices = @transform_1, window_bounds = array<i64: 64, 256>}, {pipeline_mode = #tpu.pipeline_mode<synchronous>, transform_indices = @transform_2, window_bounds = array<i64: 1, 256>}, {pipeline_mode = #tpu.pipeline_mode<synchronous>, transform_indices = @transform_3, window_bounds = array<i64: 3, 3, 256>}, {pipeline_mode = #tpu.pipeline_mode<synchronous>, transform_indices = @transform_4, window_bounds = array<i64: 1, 256>}, {pipeline_mode = #tpu.pipeline_mode<synchronous>, transform_indices = @transform_5, window_bounds = array<i64: 1, 256>}, {pipeline_mode = #tpu.pipeline_mode<synchronous>, transform_indices = @transform_6, window_bounds = array<i64: 1, 256>}, {pipeline_mode = #tpu.pipeline_mode<synchronous>, transform_indices = @transform_7, window_bounds = array<i64: 256, 64>}, {pipeline_mode = #tpu.pipeline_mode<synchronous>, transform_indices = @transform_8, window_bounds = array<i64: 1, 64>}, {transform_indices = @transform_9, window_bounds = array<i64: 1, 256, 64>}]} {
    %c0 = arith.constant 0 : index
    %c0_0 = arith.constant 0 : index
    %c0_1 = arith.constant 0 : index
    %0 = vector.load %arg1[%c0, %c0_0, %c0_1] : memref<1x256x64xf32, #tpu.memory_space<vmem>>, vector<1x256x64xf32>
    %1 = vector.shape_cast %0 : vector<1x256x64xf32> to vector<256x64xf32>
    %c0_2 = arith.constant 0 : index
    %c0_3 = arith.constant 0 : index
    %2 = vector.load %arg2[%c0_2, %c0_3] : memref<64x256xf32, #tpu.memory_space<vmem>>, vector<64x256xf32>
    %cst = arith.constant dense<0.000000e+00> : vector<256x256xf32>
    %3 = tpu.matmul %1, %2, %cst {dimension_numbers = #tpu.dot_dimension_numbers<[1], [0], [0], [1], [0, 0, 1, 1], [], []>} : vector<256x64xf32>, vector<64x256xf32>, vector<256x256xf32> -> vector<256x256xf32>
    %c0_4 = arith.constant 0 : index
    %c0_5 = arith.constant 0 : index
    %4 = vector.load %arg3[%c0_4, %c0_5] : memref<1x256xf32, #tpu.memory_space<vmem>>, vector<1x256xf32>
    %5 = vector.broadcast %4 : vector<1x256xf32> to vector<256x256xf32>
    %6 = arith.addf %3, %5 : vector<256x256xf32>
    %cst_6 = arith.constant 0.000000e+00 : f32
    %7 = vector.broadcast %cst_6 : f32 to vector<18x18x256xf32>
    %c0_7 = arith.constant 0 : index
    %c0_8 = arith.constant 0 : index
    %c0_9 = arith.constant 0 : index
    %8 = vector.load %arg11[%c0_7, %c0_8, %c0_9] : memref<18x18x256xf32, #tpu.memory_space<vmem>>, vector<18x18x256xf32>
    tpu.vector_store %arg11[%c0_7, %c0_8, %c0_9], %7 {strides = array<i32>} : memref<18x18x256xf32, #tpu.memory_space<vmem>>, vector<18x18x256xf32>,
    %9 = vector.shape_cast %6 : vector<256x256xf32> to vector<16x16x256xf32>
    %c1 = arith.constant 1 : index
    %c1_10 = arith.constant 1 : index
    %c0_11 = arith.constant 0 : index
    %10 = vector.load %arg11[%c1, %c1_10, %c0_11] : memref<18x18x256xf32, #tpu.memory_space<vmem>>, vector<16x16x256xf32>
    tpu.vector_store %arg11[%c1, %c1_10, %c0_11], %9 {strides = array<i32>} : memref<18x18x256xf32, #tpu.memory_space<vmem>>, vector<16x16x256xf32>,
    %cst_12 = arith.constant 0.000000e+00 : f32
    %11 = vector.broadcast %cst_12 : f32 to vector<16x16x256xf32>
    %c0_13 = arith.constant 0 : index
    %c0_14 = arith.constant 0 : index
    %c0_15 = arith.constant 0 : index
    %12 = vector.load %arg4[%c0_13, %c0_14, %c0_15] : memref<3x3x256xf32, #tpu.memory_space<vmem>>, vector<1x1x256xf32>
    %c0_16 = arith.constant 0 : index
    %c0_17 = arith.constant 0 : index
    %c0_18 = arith.constant 0 : index
    %13 = vector.load %arg11[%c0_16, %c0_17, %c0_18] : memref<18x18x256xf32, #tpu.memory_space<vmem>>, vector<16x16x256xf32>
    %14 = vector.broadcast %12 : vector<1x1x256xf32> to vector<16x16x256xf32>
    %15 = arith.mulf %13, %14 : vector<16x16x256xf32>
    %16 = arith.addf %11, %15 : vector<16x16x256xf32>
    %c0_19 = arith.constant 0 : index
    %c1_20 = arith.constant 1 : index
    %c0_21 = arith.constant 0 : index
    %17 = vector.load %arg4[%c0_19, %c1_20, %c0_21] : memref<3x3x256xf32, #tpu.memory_space<vmem>>, vector<1x1x256xf32>
    %c0_22 = arith.constant 0 : index
    %c1_23 = arith.constant 1 : index
    %c0_24 = arith.constant 0 : index
    %18 = vector.load %arg11[%c0_22, %c1_23, %c0_24] : memref<18x18x256xf32, #tpu.memory_space<vmem>>, vector<16x16x256xf32>
    %19 = vector.broadcast %17 : vector<1x1x256xf32> to vector<16x16x256xf32>
    %20 = arith.mulf %18, %19 : vector<16x16x256xf32>
    %21 = arith.addf %16, %20 : vector<16x16x256xf32>
    %c0_25 = arith.constant 0 : index
    %c2 = arith.constant 2 : index
    %c0_26 = arith.constant 0 : index
    %22 = vector.load %arg4[%c0_25, %c2, %c0_26] : memref<3x3x256xf32, #tpu.memory_space<vmem>>, vector<1x1x256xf32>
    %c0_27 = arith.constant 0 : index
    %c2_28 = arith.constant 2 : index
    %c0_29 = arith.constant 0 : index
    %23 = vector.load %arg11[%c0_27, %c2_28, %c0_29] : memref<18x18x256xf32, #tpu.memory_space<vmem>>, vector<16x16x256xf32>
    %24 = vector.broadcast %22 : vector<1x1x256xf32> to vector<16x16x256xf32>
    %25 = arith.mulf %23, %24 : vector<16x16x256xf32>
    %26 = arith.addf %21, %25 : vector<16x16x256xf32>
    %c1_30 = arith.constant 1 : index
    %c0_31 = arith.constant 0 : index
    %c0_32 = arith.constant 0 : index
    %27 = vector.load %arg4[%c1_30, %c0_31, %c0_32] : memref<3x3x256xf32, #tpu.memory_space<vmem>>, vector<1x1x256xf32>
    %c1_33 = arith.constant 1 : index
    %c0_34 = arith.constant 0 : index
    %c0_35 = arith.constant 0 : index
    %28 = vector.load %arg11[%c1_33, %c0_34, %c0_35] : memref<18x18x256xf32, #tpu.memory_space<vmem>>, vector<16x16x256xf32>
    %29 = vector.broadcast %27 : vector<1x1x256xf32> to vector<16x16x256xf32>
    %30 = arith.mulf %28, %29 : vector<16x16x256xf32>
    %31 = arith.addf %26, %30 : vector<16x16x256xf32>
    %c1_36 = arith.constant 1 : index
    %c1_37 = arith.constant 1 : index
    %c0_38 = arith.constant 0 : index
    %32 = vector.load %arg4[%c1_36, %c1_37, %c0_38] : memref<3x3x256xf32, #tpu.memory_space<vmem>>, vector<1x1x256xf32>
    %c1_39 = arith.constant 1 : index
    %c1_40 = arith.constant 1 : index
    %c0_41 = arith.constant 0 : index
    %33 = vector.load %arg11[%c1_39, %c1_40, %c0_41] : memref<18x18x256xf32, #tpu.memory_space<vmem>>, vector<16x16x256xf32>
    %34 = vector.broadcast %32 : vector<1x1x256xf32> to vector<16x16x256xf32>
    %35 = arith.mulf %33, %34 : vector<16x16x256xf32>
    %36 = arith.addf %31, %35 : vector<16x16x256xf32>
    %c1_42 = arith.constant 1 : index
    %c2_43 = arith.constant 2 : index
    %c0_44 = arith.constant 0 : index
    %37 = vector.load %arg4[%c1_42, %c2_43, %c0_44] : memref<3x3x256xf32, #tpu.memory_space<vmem>>, vector<1x1x256xf32>
    %c1_45 = arith.constant 1 : index
    %c2_46 = arith.constant 2 : index
    %c0_47 = arith.constant 0 : index
    %38 = vector.load %arg11[%c1_45, %c2_46, %c0_47] : memref<18x18x256xf32, #tpu.memory_space<vmem>>, vector<16x16x256xf32>
    %39 = vector.broadcast %37 : vector<1x1x256xf32> to vector<16x16x256xf32>
    %40 = arith.mulf %38, %39 : vector<16x16x256xf32>
    %41 = arith.addf %36, %40 : vector<16x16x256xf32>
    %c2_48 = arith.constant 2 : index
    %c0_49 = arith.constant 0 : index
    %c0_50 = arith.constant 0 : index
    %42 = vector.load %arg4[%c2_48, %c0_49, %c0_50] : memref<3x3x256xf32, #tpu.memory_space<vmem>>, vector<1x1x256xf32>
    %c2_51 = arith.constant 2 : index
    %c0_52 = arith.constant 0 : index
    %c0_53 = arith.constant 0 : index
    %43 = vector.load %arg11[%c2_51, %c0_52, %c0_53] : memref<18x18x256xf32, #tpu.memory_space<vmem>>, vector<16x16x256xf32>
    %44 = vector.broadcast %42 : vector<1x1x256xf32> to vector<16x16x256xf32>
    %45 = arith.mulf %43, %44 : vector<16x16x256xf32>
    %46 = arith.addf %41, %45 : vector<16x16x256xf32>
    %c2_54 = arith.constant 2 : index
    %c1_55 = arith.constant 1 : index
    %c0_56 = arith.constant 0 : index
    %47 = vector.load %arg4[%c2_54, %c1_55, %c0_56] : memref<3x3x256xf32, #tpu.memory_space<vmem>>, vector<1x1x256xf32>
    %c2_57 = arith.constant 2 : index
    %c1_58 = arith.constant 1 : index
    %c0_59 = arith.constant 0 : index
    %48 = vector.load %arg11[%c2_57, %c1_58, %c0_59] : memref<18x18x256xf32, #tpu.memory_space<vmem>>, vector<16x16x256xf32>
    %49 = vector.broadcast %47 : vector<1x1x256xf32> to vector<16x16x256xf32>
    %50 = arith.mulf %48, %49 : vector<16x16x256xf32>
    %51 = arith.addf %46, %50 : vector<16x16x256xf32>
    %c2_60 = arith.constant 2 : index
    %c2_61 = arith.constant 2 : index
    %c0_62 = arith.constant 0 : index
    %52 = vector.load %arg4[%c2_60, %c2_61, %c0_62] : memref<3x3x256xf32, #tpu.memory_space<vmem>>, vector<1x1x256xf32>
    %c2_63 = arith.constant 2 : index
    %c2_64 = arith.constant 2 : index
    %c0_65 = arith.constant 0 : index
    %53 = vector.load %arg11[%c2_63, %c2_64, %c0_65] : memref<18x18x256xf32, #tpu.memory_space<vmem>>, vector<16x16x256xf32>
    %54 = vector.broadcast %52 : vector<1x1x256xf32> to vector<16x16x256xf32>
    %55 = arith.mulf %53, %54 : vector<16x16x256xf32>
    %56 = arith.addf %51, %55 : vector<16x16x256xf32>
    %57 = vector.shape_cast %56 : vector<16x16x256xf32> to vector<256x256xf32>
    %c0_66 = arith.constant 0 : index
    %c0_67 = arith.constant 0 : index
    %58 = vector.load %arg5[%c0_66, %c0_67] : memref<1x256xf32, #tpu.memory_space<vmem>>, vector<1x256xf32>
    %59 = vector.broadcast %58 : vector<1x256xf32> to vector<256x256xf32>
    %60 = arith.addf %57, %59 : vector<256x256xf32>
    %61 = arith.addf %60, %6 : vector<256x256xf32>
    %cst_68 = arith.constant dense<0.000000e+00> : vector<256xf32>
    %62 = vector.multi_reduction <add>, %61, %cst_68 [1] : vector<256x256xf32> to vector<256xf32>
    %63 = vector.shape_cast %62 : vector<256xf32> to vector<256x1xf32>
    %cst_69 = arith.constant 2.560000e+02 : f32
    %64 = vector.broadcast %cst_69 : f32 to vector<256x1xf32>
    %65 = arith.divf %63, %64 : vector<256x1xf32>
    %66 = vector.broadcast %65 : vector<256x1xf32> to vector<256x256xf32>
    %67 = arith.subf %61, %66 : vector<256x256xf32>
    %68 = arith.mulf %67, %67 : vector<256x256xf32>
    %cst_70 = arith.constant dense<0.000000e+00> : vector<256xf32>
    %69 = vector.multi_reduction <add>, %68, %cst_70 [1] : vector<256x256xf32> to vector<256xf32>
    %70 = vector.shape_cast %69 : vector<256xf32> to vector<256x1xf32>
    %cst_71 = arith.constant 2.560000e+02 : f32
    %71 = vector.broadcast %cst_71 : f32 to vector<256x1xf32>
    %72 = arith.divf %70, %71 : vector<256x1xf32>
    %cst_72 = arith.constant 9.99999974E-6 : f32
    %73 = vector.broadcast %cst_72 : f32 to vector<256x1xf32>
    %74 = arith.addf %72, %73 : vector<256x1xf32>
    %75 = math.rsqrt %74 : vector<256x1xf32>
    %76 = vector.broadcast %75 : vector<256x1xf32> to vector<256x256xf32>
    %77 = arith.mulf %67, %76 : vector<256x256xf32>
    %c0_73 = arith.constant 0 : index
    %c0_74 = arith.constant 0 : index
    %78 = vector.load %arg6[%c0_73, %c0_74] : memref<1x256xf32, #tpu.memory_space<vmem>>, vector<1x256xf32>
    %79 = vector.broadcast %78 : vector<1x256xf32> to vector<256x256xf32>
    %80 = arith.mulf %77, %79 : vector<256x256xf32>
    %c0_75 = arith.constant 0 : index
    %c0_76 = arith.constant 0 : index
    %81 = vector.load %arg7[%c0_75, %c0_76] : memref<1x256xf32, #tpu.memory_space<vmem>>, vector<1x256xf32>
    %82 = vector.broadcast %81 : vector<1x256xf32> to vector<256x256xf32>
    %83 = arith.addf %80, %82 : vector<256x256xf32>
    %cst_77 = arith.constant 5.000000e-01 : f32
    %84 = vector.broadcast %cst_77 : f32 to vector<256x256xf32>
    %85 = arith.mulf %84, %83 : vector<256x256xf32>
    %cst_78 = arith.constant 0.707106769 : f32
    %86 = vector.broadcast %cst_78 : f32 to vector<256x256xf32>
    %87 = arith.mulf %83, %86 : vector<256x256xf32>
    %88 = math.absf %87 : vector<256x256xf32>
    %cst_79 = arith.constant 0.327591091 : f32
    %89 = vector.broadcast %cst_79 : f32 to vector<256x256xf32>
    %90 = arith.mulf %89, %88 : vector<256x256xf32>
    %cst_80 = arith.constant 1.000000e+00 : f32
    %91 = vector.broadcast %cst_80 : f32 to vector<256x256xf32>
    %92 = arith.addf %91, %90 : vector<256x256xf32>
    %cst_81 = arith.constant 1.000000e+00 : f32
    %93 = vector.broadcast %cst_81 : f32 to vector<256x256xf32>
    %94 = arith.divf %93, %92 : vector<256x256xf32>
    %cst_82 = arith.constant 1.06140542 : f32
    %95 = vector.broadcast %cst_82 : f32 to vector<256x256xf32>
    %96 = arith.mulf %95, %94 : vector<256x256xf32>
    %cst_83 = arith.constant -1.45315206 : f32
    %97 = vector.broadcast %cst_83 : f32 to vector<256x256xf32>
    %98 = arith.addf %96, %97 : vector<256x256xf32>
    %99 = arith.mulf %98, %94 : vector<256x256xf32>
    %cst_84 = arith.constant 1.42141378 : f32
    %100 = vector.broadcast %cst_84 : f32 to vector<256x256xf32>
    %101 = arith.addf %99, %100 : vector<256x256xf32>
    %102 = arith.mulf %101, %94 : vector<256x256xf32>
    %cst_85 = arith.constant -0.284496725 : f32
    %103 = vector.broadcast %cst_85 : f32 to vector<256x256xf32>
    %104 = arith.addf %102, %103 : vector<256x256xf32>
    %105 = arith.mulf %104, %94 : vector<256x256xf32>
    %cst_86 = arith.constant 0.254829586 : f32
    %106 = vector.broadcast %cst_86 : f32 to vector<256x256xf32>
    %107 = arith.addf %105, %106 : vector<256x256xf32>
    %108 = arith.mulf %107, %94 : vector<256x256xf32>
    %cst_87 = arith.constant 0.000000e+00 : f32
    %109 = vector.broadcast %cst_87 : f32 to vector<256x256xf32>
    %110 = arith.subf %109, %88 : vector<256x256xf32>
    %111 = arith.mulf %110, %88 : vector<256x256xf32>
    %112 = math.exp %111 : vector<256x256xf32>
    %113 = arith.mulf %108, %112 : vector<256x256xf32>
    %cst_88 = arith.constant 1.000000e+00 : f32
    %114 = vector.broadcast %cst_88 : f32 to vector<256x256xf32>
    %115 = arith.subf %114, %113 : vector<256x256xf32>
    %cst_89 = arith.constant 0.000000e+00 : f32
    %116 = vector.broadcast %cst_89 : f32 to vector<256x256xf32>
    %117 = arith.cmpf oge, %87, %116 : vector<256x256xf32>
    %cst_90 = arith.constant 0.000000e+00 : f32
    %118 = vector.broadcast %cst_90 : f32 to vector<256x256xf32>
    %119 = arith.subf %118, %115 : vector<256x256xf32>
    %120 = arith.select %117, %115, %119 : vector<256x256xi1>, vector<256x256xf32>
    %cst_91 = arith.constant 1.000000e+00 : f32
    %121 = vector.broadcast %cst_91 : f32 to vector<256x256xf32>
    %122 = arith.addf %121, %120 : vector<256x256xf32>
    %123 = arith.mulf %85, %122 : vector<256x256xf32>
    %c0_92 = arith.constant 0 : index
    %c0_93 = arith.constant 0 : index
    %124 = vector.load %arg8[%c0_92, %c0_93] : memref<256x64xf32, #tpu.memory_space<vmem>>, vector<256x64xf32>
    %cst_94 = arith.constant dense<0.000000e+00> : vector<256x64xf32>
    %125 = tpu.matmul %123, %124, %cst_94 {dimension_numbers = #tpu.dot_dimension_numbers<[1], [0], [0], [1], [0, 0, 1, 1], [], []>} : vector<256x256xf32>, vector<256x64xf32>, vector<256x64xf32> -> vector<256x64xf32>
    %c0_95 = arith.constant 0 : index
    %c0_96 = arith.constant 0 : index
    %126 = vector.load %arg9[%c0_95, %c0_96] : memref<1x64xf32, #tpu.memory_space<vmem>>, vector<1x64xf32>
    %127 = vector.broadcast %126 : vector<1x64xf32> to vector<256x64xf32>
    %128 = arith.addf %125, %127 : vector<256x64xf32>
    %c0_97 = arith.constant 0 : index
    %c0_98 = arith.constant 0 : index
    %c0_99 = arith.constant 0 : index
    %129 = vector.load %arg10[%c0_97, %c0_98, %c0_99] : memref<1x256x64xf32, #tpu.memory_space<vmem>>, vector<1x256x64xf32>
    %130 = vector.shape_cast %129 : vector<1x256x64xf32> to vector<256x64xf32>
    %131 = vector.shape_cast %128 : vector<256x64xf32> to vector<1x256x64xf32>
    tpu.vector_store %arg10[%c0_97, %c0_98, %c0_99], %131 {strides = array<i32>} : memref<1x256x64xf32, #tpu.memory_space<vmem>>, vector<1x256x64xf32>,
    return
  }
  func.func @transform_0(%arg0: i32) -> (i32, i32, i32) {
    %c0_i32 = arith.constant 0 : i32
    %c0_i32_0 = arith.constant 0 : i32
    %c0_i32_1 = arith.constant 0 : i32
    return %arg0, %c0_i32, %c0_i32_0 : i32, i32, i32
  }
  func.func @transform_1(%arg0: i32) -> (i32, i32) {
    %c0_i32 = arith.constant 0 : i32
    %c0_i32_0 = arith.constant 0 : i32
    %c0_i32_1 = arith.constant 0 : i32
    return %c0_i32, %c0_i32_0 : i32, i32
  }
  func.func @transform_2(%arg0: i32) -> (i32, i32) {
    %c0_i32 = arith.constant 0 : i32
    %c0_i32_0 = arith.constant 0 : i32
    %c0_i32_1 = arith.constant 0 : i32
    return %c0_i32, %c0_i32_0 : i32, i32
  }
  func.func @transform_3(%arg0: i32) -> (i32, i32, i32) {
    %c0_i32 = arith.constant 0 : i32
    %c0_i32_0 = arith.constant 0 : i32
    %c0_i32_1 = arith.constant 0 : i32
    %c0_i32_2 = arith.constant 0 : i32
    return %c0_i32, %c0_i32_0, %c0_i32_1 : i32, i32, i32
  }
  func.func @transform_4(%arg0: i32) -> (i32, i32) {
    %c0_i32 = arith.constant 0 : i32
    %c0_i32_0 = arith.constant 0 : i32
    %c0_i32_1 = arith.constant 0 : i32
    return %c0_i32, %c0_i32_0 : i32, i32
  }
  func.func @transform_5(%arg0: i32) -> (i32, i32) {
    %c0_i32 = arith.constant 0 : i32
    %c0_i32_0 = arith.constant 0 : i32
    %c0_i32_1 = arith.constant 0 : i32
    return %c0_i32, %c0_i32_0 : i32, i32
  }
  func.func @transform_6(%arg0: i32) -> (i32, i32) {
    %c0_i32 = arith.constant 0 : i32
    %c0_i32_0 = arith.constant 0 : i32
    %c0_i32_1 = arith.constant 0 : i32
    return %c0_i32, %c0_i32_0 : i32, i32
  }
  func.func @transform_7(%arg0: i32) -> (i32, i32) {
    %c0_i32 = arith.constant 0 : i32
    %c0_i32_0 = arith.constant 0 : i32
    %c0_i32_1 = arith.constant 0 : i32
    return %c0_i32, %c0_i32_0 : i32, i32
  }
  func.func @transform_8(%arg0: i32) -> (i32, i32) {
    %c0_i32 = arith.constant 0 : i32
    %c0_i32_0 = arith.constant 0 : i32
    %c0_i32_1 = arith.constant 0 : i32
    return %c0_i32, %c0_i32_0 : i32, i32
  }
  func.func @transform_9(%arg0: i32) -> (i32, i32, i32) {
    %c0_i32 = arith.constant 0 : i32
    %c0_i32_0 = arith.constant 0 : i32
    %c0_i32_1 = arith.constant 0 : i32
    return %arg0, %c0_i32, %c0_i32_0 : i32, i32, i32
  }
}

</mosaic_0001>

<llo_original>
// kernel: tpu_custom_call.1
$region0: #{tpu_custom_call.1}
  #allocation0 [shape = 'u32[]', space=smem, size = 0x4, offset = 0x4, fixed_abs, tag = 'smem constant byte address 0x4 - core index']
  #allocation1 [shape = 'u32[144,128]{1,0:T(1,128)}', space=vmem, size = 0x12000, scoped, tag = 'internal scratch']
  #allocation2 [shape = 'f32[18,18,256]{2,1,0:T(8,128)}', space=vmem, size = 0x6c000, scoped, tag = 'scratch operand']
  %s0 = inlined_call_operand.vmem [shape: f32[2,256,64], index: 0, kind: input, shape index: {}]
  %s1 = inlined_call_operand.vmem [shape: f32[64,256], index: 1, kind: input, shape index: {}]
  %s2 = inlined_call_operand.vmem [shape: f32[1,256], index: 2, kind: input, shape index: {}]
  %s3 = inlined_call_operand.vmem [shape: f32[3,3,256], index: 3, kind: input, shape index: {}]
  %s4 = inlined_call_operand.vmem [shape: f32[1,256], index: 4, kind: input, shape index: {}]
  %s5 = inlined_call_operand.vmem [shape: f32[1,256], index: 5, kind: input, shape index: {}]
  %s6 = inlined_call_operand.vmem [shape: f32[1,256], index: 6, kind: input, shape index: {}]
  %s7 = inlined_call_operand.vmem [shape: f32[256,64], index: 7, kind: input, shape index: {}]
  %s8 = inlined_call_operand.vmem [shape: f32[1,64], index: 8, kind: input, shape index: {}]
  %s9 = inlined_call_operand.vmem [shape: f32[2,256,64], index: 9, kind: output, shape index: {}]
  %s10 = sld [smem:[#allocation0]]
  $region69: #{tpu_custom_call.1} parent=0
    _
  %s12 = ssub.s32 1, %s10
  %s13 = scalar_select 0, %s12, %s10
  loop: start=0, step=1, limit=4
  $region2: #{tpu_custom_call.1} parent=0 // loop_pre_header
    _
  $region3: #{tpu_custom_call.1} parent=0 // loop_header
    %s15 = sphi 0, %s19
    %p16 = scmp.ge.s32.totalorder %s15, 4
    %s25 = sphi 0, %s27
    %s28 = sphi 0, %s25
    %s29 = sphi 0, %s28
    %s45 = sphi 0, %s29
    %s49 = sphi 0, %s49
    %s51 = sphi 0, %s49
    %s52 = sphi 0, %s51
    %s66 = sphi 0, %s52
    %s70 = sphi 0, %s70
    %s72 = sphi 0, %s70
    %s73 = sphi 0, %s72
    %s87 = sphi 0, %s73
    %s91 = sphi 0, %s91
    %s93 = sphi 0, %s91
    %s94 = sphi 0, %s93
    %s108 = sphi 0, %s94
    %s112 = sphi 0, %s112
    %s114 = sphi 0, %s112
    %s115 = sphi 0, %s114
    %s129 = sphi 0, %s115
    %s133 = sphi 0, %s133
    %s135 = sphi 0, %s133
    %s136 = sphi 0, %s135
    %s150 = sphi 0, %s136
    %s154 = sphi 0, %s154
    %s156 = sphi 0, %s154
    %s157 = sphi 0, %s156
    %s171 = sphi 0, %s157
    %s175 = sphi 0, %s175
    %s177 = sphi 0, %s175
    %s178 = sphi 0, %s177
    %s192 = sphi 0, %s178
    %s196 = sphi 0, %s196
    %s198 = sphi 0, %s196
    %s199 = sphi 0, %s198
    %s213 = sphi 0, %s199
    %s219 = sphi 0, %s221
    %s222 = sphi 0, %s219
    %s223 = sphi 0, %s222
    %s239 = sphi 0, %s223
  $region4: #{tpu_custom_call.1} parent=0 // loop_header_branch
    %18 = sbr.rel (%p16) target = $region8
  $region5: #{tpu_custom_call.1} parent=0 // loop_body
    %s20 = ssub.s32 %s15, 1
    %s21 = ssub.s32 %s15, 2
    %s22 = sadd.s32 %s15, 1
    %s23 = ssub.s32 %s15, %s22
    %p24 = scmp.eq.s32.totalorder %s23, 0
    %s26 = sadd.s32 %s25, 1
    %s27 = scalar_select %p24, %s25, %s26
    %p30 = pneg %p24
    %p31 = scmp.eq.s32.totalorder %s15, 1
    %p32 = por %p30, %p31
    %p33 = scmp.ne.s32.totalorder %s25, %s28
    %p34 = scmp.eq.s32.totalorder %s15, 0
    %p35 = por %p33, %p34
    %p36 = scmp.ne.s32.totalorder %s25, %s28
    %p37 = scmp.eq.s32.totalorder %s20, 1
    %p38 = por %p36, %p37
    %p39 = scmp.ne.s32.totalorder %s28, %s29
    %p40 = scmp.eq.s32.totalorder %s20, 0
    %p41 = por %p39, %p40
    %p42 = scmp.ne.s32.totalorder %s28, %s29
    %p43 = scmp.eq.s32.totalorder %s21, 1
    %p44 = por %p42, %p43
    %p46 = scmp.ne.s32.totalorder %s29, %s45
    %p47 = scmp.eq.s32.totalorder %s21, 0
    %p48 = por %p46, %p47
    %s50 = sadd.s32 %s49, 1
    %p53 = scmp.eq.s32.totalorder %s15, 1
    %p54 = scmp.ne.s32.totalorder %s49, %s51
    %p55 = scmp.eq.s32.totalorder %s15, 0
    %p56 = por %p54, %p55
    %p57 = scmp.ne.s32.totalorder %s49, %s51
    %p58 = scmp.eq.s32.totalorder %s20, 1
    %p59 = por %p57, %p58
    %p60 = scmp.ne.s32.totalorder %s51, %s52
    %p61 = scmp.eq.s32.totalorder %s20, 0
    %p62 = por %p60, %p61
    %p63 = scmp.ne.s32.totalorder %s51, %s52
    %p64 = scmp.eq.s32.totalorder %s21, 1
    %p65 = por %p63, %p64
    %p67 = scmp.ne.s32.totalorder %s52, %s66
    %p68 = scmp.eq.s32.totalorder %s21, 0
    %p69 = por %p67, %p68
    %s71 = sadd.s32 %s70, 1
    %p74 = scmp.eq.s32.totalorder %s15, 1
    %p75 = scmp.ne.s32.totalorder %s70, %s72
    %p76 = scmp.eq.s32.totalorder %s15, 0
    %p77 = por %p75, %p76
    %p78 = scmp.ne.s32.totalorder %s70, %s72
    %p79 = scmp.eq.s32.totalorder %s20, 1
    %p80 = por %p78, %p79
    %p81 = scmp.ne.s32.totalorder %s72, %s73
    %p82 = scmp.eq.s32.totalorder %s20, 0
    %p83 = por %p81, %p82
    %p84 = scmp.ne.s32.totalorder %s72, %s73
    %p85 = scmp.eq.s32.totalorder %s21, 1
    %p86 = por %p84, %p85
    %p88 = scmp.ne.s32.totalorder %s73, %s87
    %p89 = scmp.eq.s32.totalorder %s21, 0
    %p90 = por %p88, %p89
    %s92 = sadd.s32 %s91, 1
    %p95 = scmp.eq.s32.totalorder %s15, 1
    %p96 = scmp.ne.s32.totalorder %s91, %s93
    %p97 = scmp.eq.s32.totalorder %s15, 0
    %p98 = por %p96, %p97
    %p99 = scmp.ne.s32.totalorder %s91, %s93
    %p100 = scmp.eq.s32.totalorder %s20, 1
    %p101 = por %p99, %p100
    %p102 = scmp.ne.s32.totalorder %s93, %s94
    %p103 = scmp.eq.s32.totalorder %s20, 0
    %p104 = por %p102, %p103
    %p105 = scmp.ne.s32.totalorder %s93, %s94
    %p106 = scmp.eq.s32.totalorder %s21, 1
    %p107 = por %p105, %p106
    %p109 = scmp.ne.s32.totalorder %s94, %s108
    %p110 = scmp.eq.s32.totalorder %s21, 0
    %p111 = por %p109, %p110
    %s113 = sadd.s32 %s112, 1
    %p116 = scmp.eq.s32.totalorder %s15, 1
    %p117 = scmp.ne.s32.totalorder %s112, %s114
    %p118 = scmp.eq.s32.totalorder %s15, 0
    %p119 = por %p117, %p118
    %p120 = scmp.ne.s32.totalorder %s112, %s114
    %p121 = scmp.eq.s32.totalorder %s20, 1
    %p122 = por %p120, %p121
    %p123 = scmp.ne.s32.totalorder %s114, %s115
    %p124 = scmp.eq.s32.totalorder %s20, 0
    %p125 = por %p123, %p124
    %p126 = scmp.ne.s32.totalorder %s114, %s115
    %p127 = scmp.eq.s32.totalorder %s21, 1
    %p128 = por %p126, %p127
    %p130 = scmp.ne.s32.totalorder %s115, %s129
    %p131 = scmp.eq.s32.totalorder %s21, 0
    %p132 = por %p130, %p131
    %s134 = sadd.s32 %s133, 1
    %p137 = scmp.eq.s32.totalorder %s15, 1
    %p138 = scmp.ne.s32.totalorder %s133, %s135
    %p139 = scmp.eq.s32.totalorder %s15, 0
    %p140 = por %p138, %p139
    %p141 = scmp.ne.s32.totalorder %s133, %s135
    %p142 = scmp.eq.s32.totalorder %s20, 1
    %p143 = por %p141, %p142
    %p144 = scmp.ne.s32.totalorder %s135, %s136
    %p145 = scmp.eq.s32.totalorder %s20, 0
    %p146 = por %p144, %p145
    %p147 = scmp.ne.s32.totalorder %s135, %s136
    %p148 = scmp.eq.s32.totalorder %s21, 1
    %p149 = por %p147, %p148
    %p151 = scmp.ne.s32.totalorder %s136, %s150
    %p152 = scmp.eq.s32.totalorder %s21, 0
    %p153 = por %p151, %p152
    %s155 = sadd.s32 %s154, 1
    %p158 = scmp.eq.s32.totalorder %s15, 1
    %p159 = scmp.ne.s32.totalorder %s154, %s156
    %p160 = scmp.eq.s32.totalorder %s15, 0
    %p161 = por %p159, %p160
    %p162 = scmp.ne.s32.totalorder %s154, %s156
    %p163 = scmp.eq.s32.totalorder %s20, 1
    %p164 = por %p162, %p163
    %p165 = scmp.ne.s32.totalorder %s156, %s157
    %p166 = scmp.eq.s32.totalorder %s20, 0
    %p167 = por %p165, %p166
    %p168 = scmp.ne.s32.totalorder %s156, %s157
    %p169 = scmp.eq.s32.totalorder %s21, 1
    %p170 = por %p168, %p169
    %p172 = scmp.ne.s32.totalorder %s157, %s171
    %p173 = scmp.eq.s32.totalorder %s21, 0
    %p174 = por %p172, %p173
    %s176 = sadd.s32 %s175, 1
    %p179 = scmp.eq.s32.totalorder %s15, 1
    %p180 = scmp.ne.s32.totalorder %s175, %s177
    %p181 = scmp.eq.s32.totalorder %s15, 0
    %p182 = por %p180, %p181
    %p183 = scmp.ne.s32.totalorder %s175, %s177
    %p184 = scmp.eq.s32.totalorder %s20, 1
    %p185 = por %p183, %p184
    %p186 = scmp.ne.s32.totalorder %s177, %s178
    %p187 = scmp.eq.s32.totalorder %s20, 0
    %p188 = por %p186, %p187
    %p189 = scmp.ne.s32.totalorder %s177, %s178
    %p190 = scmp.eq.s32.totalorder %s21, 1
    %p191 = por %p189, %p190
    %p193 = scmp.ne.s32.totalorder %s178, %s192
    %p194 = scmp.eq.s32.totalorder %s21, 0
    %p195 = por %p193, %p194
    %s197 = sadd.s32 %s196, 1
    %p200 = scmp.eq.s32.totalorder %s15, 1
    %p201 = scmp.ne.s32.totalorder %s196, %s198
    %p202 = scmp.eq.s32.totalorder %s15, 0
    %p203 = por %p201, %p202
    %p204 = scmp.ne.s32.totalorder %s196, %s198
    %p205 = scmp.eq.s32.totalorder %s20, 1
    %p206 = por %p204, %p205
    %p207 = scmp.ne.s32.totalorder %s198, %s199
    %p208 = scmp.eq.s32.totalorder %s20, 0
    %p209 = por %p207, %p208
    %p210 = scmp.ne.s32.totalorder %s198, %s199
    %p211 = scmp.eq.s32.totalorder %s21, 1
    %p212 = por %p210, %p211
    %p214 = scmp.ne.s32.totalorder %s199, %s213
    %p215 = scmp.eq.s32.totalorder %s21, 0
    %p216 = por %p214, %p215
    %s217 = ssub.s32 %s15, %s22
    %p218 = scmp.eq.s32.totalorder %s217, 0
    %s220 = sadd.s32 %s219, 1
    %s221 = scalar_select %p218, %s219, %s220
    %p224 = pneg %p218
    %p225 = scmp.eq.s32.totalorder %s15, 1
    %p226 = por %p224, %p225
    %p227 = scmp.ne.s32.totalorder %s219, %s222
    %p228 = scmp.eq.s32.totalorder %s15, 0
    %p229 = por %p227, %p228
    %p230 = scmp.ne.s32.totalorder %s219, %s222
    %p231 = scmp.eq.s32.totalorder %s20, 1
    %p232 = por %p230, %p231
    %p233 = scmp.ne.s32.totalorder %s222, %s223
    %p234 = scmp.eq.s32.totalorder %s20, 0
    %p235 = por %p233, %p234
    %p236 = scmp.ne.s32.totalorder %s222, %s223
    %p237 = scmp.eq.s32.totalorder %s21, 1
    %p238 = por %p236, %p237
    %p240 = scmp.ne.s32.totalorder %s223, %s239
    %p241 = scmp.eq.s32.totalorder %s21, 0
    %p242 = por %p240, %p241
    %p243 = scmp.le.s32.totalorder 1, %s15
    %p244 = scmp.lt.s32.totalorder %s15, 3
    %p245 = pnand %p243, %p244
    %p246 = pneg %p245
    // Predicated region
    $region9: #{tpu_custom_call.1} parent=5 // pred_check
      _
    $region10: #{tpu_custom_call.1} parent=5 // pred_check_branch
      %248 = sbr.rel (%p245) target = $region12
    $region11: #{tpu_custom_call.1} parent=5 // pred_region
      %s249 = ssub.s32 %s15, 1
      // Predicated region
      $region13: #{tpu_custom_call.1} parent=11 // pred_check
        %p250 = pneg %p62
      $region14: #{tpu_custom_call.1} parent=11 // pred_check_branch
        %252 = sbr.rel (%p250) target = $region16
      $region15: #{tpu_custom_call.1} parent=11 // pred_region
        _
      $region16: #{tpu_custom_call.1} parent=11 // pred_fallthru
        _
      // Predicated region
      $region17: #{tpu_custom_call.1} parent=11 // pred_check
        %p253 = pneg %p83
      $region18: #{tpu_custom_call.1} parent=11 // pred_check_branch
        %255 = sbr.rel (%p253) target = $region20
      $region19: #{tpu_custom_call.1} parent=11 // pred_region
        _
      $region20: #{tpu_custom_call.1} parent=11 // pred_fallthru
        _
      // Predicated region
      $region21: #{tpu_custom_call.1} parent=11 // pred_check
        %p256 = pneg %p104
      $region22: #{tpu_custom_call.1} parent=11 // pred_check_branch
        %258 = sbr.rel (%p256) target = $region24
      $region23: #{tpu_custom_call.1} parent=11 // pred_region
        _
      $region24: #{tpu_custom_call.1} parent=11 // pred_fallthru
        _
      // Predicated region
      $region25: #{tpu_custom_call.1} parent=11 // pred_check
        %p259 = pneg %p125
      $region26: #{tpu_custom_call.1} parent=11 // pred_check_branch
        %261 = sbr.rel (%p259) target = $region28
      $region27: #{tpu_custom_call.1} parent=11 // pred_region
        _
      $region28: #{tpu_custom_call.1} parent=11 // pred_fallthru
        _
      // Predicated region
      $region29: #{tpu_custom_call.1} parent=11 // pred_check
        %p262 = pneg %p146
      $region30: #{tpu_custom_call.1} parent=11 // pred_check_branch
        %264 = sbr.rel (%p262) target = $region32
      $region31: #{tpu_custom_call.1} parent=11 // pred_region
        _
      $region32: #{tpu_custom_call.1} parent=11 // pred_fallthru
        _
      // Predicated region
      $region33: #{tpu_custom_call.1} parent=11 // pred_check
        %p265 = pneg %p167
      $region34: #{tpu_custom_call.1} parent=11 // pred_check_branch
        %267 = sbr.rel (%p265) target = $region36
      $region35: #{tpu_custom_call.1} parent=11 // pred_region
        _
      $region36: #{tpu_custom_call.1} parent=11 // pred_fallthru
        _
      // Predicated region
      $region37: #{tpu_custom_call.1} parent=11 // pred_check
        %p268 = pneg %p188
      $region38: #{tpu_custom_call.1} parent=11 // pred_check_branch
        %270 = sbr.rel (%p268) target = $region40
      $region39: #{tpu_custom_call.1} parent=11 // pred_region
        _
      $region40: #{tpu_custom_call.1} parent=11 // pred_fallthru
        _
      // Predicated region
      $region41: #{tpu_custom_call.1} parent=11 // pred_check
        %p271 = pneg %p209
      $region42: #{tpu_custom_call.1} parent=11 // pred_check_branch
        %273 = sbr.rel (%p271) target = $region44
      $region43: #{tpu_custom_call.1} parent=11 // pred_region
        _
      $region44: #{tpu_custom_call.1} parent=11 // pred_fallthru
        _
    $region12: #{tpu_custom_call.1} parent=5 // pred_fallthru
      _
    %p274 = scmp.lt.s32.totalorder %s15, 2
    // Predicated region
    $region45: #{tpu_custom_call.1} parent=5 // pred_check
      %p275 = pneg %p274
    $region46: #{tpu_custom_call.1} parent=5 // pred_check_branch
      %277 = sbr.rel (%p275) target = $region48
    $region47: #{tpu_custom_call.1} parent=5 // pred_region
      // Predicated region
      $region49: #{tpu_custom_call.1} parent=47 // pred_check
        %p278 = pneg %p35
      $region50: #{tpu_custom_call.1} parent=47 // pred_check_branch
        %280 = sbr.rel (%p278) target = $region52
      $region51: #{tpu_custom_call.1} parent=47 // pred_region
        %p281 = scmp.lt.s32.totalorder %s15, 1
        %s282 = scalar_select %p281, %s15, 1
        %s283 = smul.addr %s282, 32
        %s284 = smul.addr %s283, 8
        %s285 = scalar_lea.vmem %s0, %s284
      $region52: #{tpu_custom_call.1} parent=47 // pred_fallthru
        _
    $region48: #{tpu_custom_call.1} parent=5 // pred_fallthru
      _
    %p286 = scmp.le.s32.totalorder 1, %s15
    %p287 = scmp.lt.s32.totalorder %s15, 3
    %p288 = pnand %p286, %p287
    %p289 = pneg %p288
    // Predicated region
    $region53: #{tpu_custom_call.1} parent=5 // pred_check
      _
    $region54: #{tpu_custom_call.1} parent=5 // pred_check_branch
      %291 = sbr.rel (%p288) target = $region56
    $region55: #{tpu_custom_call.1} parent=5 // pred_region
      %s292 = ssub.s32 %s15, 1
      %p293 = scmp.lt.s32.totalorder %s20, 1
      %s294 = scalar_select %p293, %s20, 1
      %s295 = smul.addr %s294, 32
      %s296 = smul.addr %s295, 8
      %s297 = scalar_lea.vmem %s0, %s296
      %p298 = pneg %p41
      %p299 = pneg %p38
      %p300 = pneg %p62
      %p301 = pneg %p59
      %p302 = pneg %p83
      %p303 = pneg %p80
      %p304 = pneg %p104
      %p305 = pneg %p101
      %p306 = pneg %p125
      %p307 = pneg %p122
      %p308 = pneg %p146
      %p309 = pneg %p143
      %p310 = pneg %p167
      %p311 = pneg %p164
      %p312 = pneg %p188
      %p313 = pneg %p185
      %p314 = pneg %p209
      %p315 = pneg %p206
      %p316 = pneg %p235
      %p317 = pneg %p232
      %p318 = scmp.lt.s32.totalorder %s20, 1
      %s319 = scalar_select %p318, %s20, 1
      %s320 = smul.addr %s319, 32
      %s321 = smul.addr %s320, 8
      %s322 = scalar_lea.vmem %s9, %s321
      %p323 = scmp.lt.s32.totalorder %s20, 1
      %s324 = scalar_select %p323, %s20, 1
      %s325 = smul.addr %s324, 32
      %s326 = smul.addr %s325, 8
      %s327 = scalar_lea.vmem %s0, %s326
      %p328 = scmp.lt.s32.totalorder %s20, 1
      %s329 = scalar_select %p328, %s20, 1
      %s330 = smul.addr %s329, 32
      %s331 = smul.addr %s330, 8
      %s332 = scalar_lea.vmem %s9, %s331
      %v333 = vld [vmem:[%s327] sm:$0xff]
      %v334 = vld [vmem:[%s327 + $0x8] sm:$0xff]
      %v335 = vld [vmem:[%s327 + $0x10] sm:$0xff]
      %v336 = vld [vmem:[%s327 + $0x18] sm:$0xff]
      %v337 = vld [vmem:[%s327 + $0x20] sm:$0xff]
      %v338 = vld [vmem:[%s327 + $0x28] sm:$0xff]
      %v339 = vld [vmem:[%s327 + $0x30] sm:$0xff]
      %v340 = vld [vmem:[%s327 + $0x38] sm:$0xff]
      %v341 = vld [vmem:[%s327 + $0x40] sm:$0xff]
      %v342 = vld [vmem:[%s327 + $0x48] sm:$0xff]
      %v343 = vld [vmem:[%s327 + $0x50] sm:$0xff]
      %v344 = vld [vmem:[%s327 + $0x58] sm:$0xff]
      %v345 = vld [vmem:[%s327 + $0x60] sm:$0xff]
      %v346 = vld [vmem:[%s327 + $0x68] sm:$0xff]
      %v347 = vld [vmem:[%s327 + $0x70] sm:$0xff]
      %v348 = vld [vmem:[%s327 + $0x78] sm:$0xff]
      %v349 = vld [vmem:[%s327 + $0x80] sm:$0xff]
      %v350 = vld [vmem:[%s327 + $0x88] sm:$0xff]
      %v351 = vld [vmem:[%s327 + $0x90] sm:$0xff]
      %v352 = vld [vmem:[%s327 + $0x98] sm:$0xff]
      %v353 = vld [vmem:[%s327 + $0xa0] sm:$0xff]
      %v354 = vld [vmem:[%s327 + $0xa8] sm:$0xff]
      %v355 = vld [vmem:[%s327 + $0xb0] sm:$0xff]
      %v356 = vld [vmem:[%s327 + $0xb8] sm:$0xff]
      %v357 = vld [vmem:[%s327 + $0xc0] sm:$0xff]
      %v358 = vld [vmem:[%s327 + $0xc8] sm:$0xff]
      %v359 = vld [vmem:[%s327 + $0xd0] sm:$0xff]
      %v360 = vld [vmem:[%s327 + $0xd8] sm:$0xff]
      %v361 = vld [vmem:[%s327 + $0xe0] sm:$0xff]
      %v362 = vld [vmem:[%s327 + $0xe8] sm:$0xff]
      %v363 = vld [vmem:[%s327 + $0xf0] sm:$0xff]
      %v364 = vld [vmem:[%s327 + $0xf8] sm:$0xff]
      %v365 = vld [vmem:[%s1] sm:$0xff]
      %v366 = vld [vmem:[%s1 + $0x8] sm:$0xff]
      %v367 = vld [vmem:[%s1 + $0x10] sm:$0xff]
      %v368 = vld [vmem:[%s1 + $0x18] sm:$0xff]
      %v369 = vld [vmem:[%s1 + $0x20] sm:$0xff]
      %v370 = vld [vmem:[%s1 + $0x28] sm:$0xff]
      %v371 = vld [vmem:[%s1 + $0x30] sm:$0xff]
      %v372 = vld [vmem:[%s1 + $0x38] sm:$0xff]
      %v373 = vld [vmem:[%s1 + $0x40] sm:$0xff]
      %v374 = vld [vmem:[%s1 + $0x48] sm:$0xff]
      %v375 = vld [vmem:[%s1 + $0x50] sm:$0xff]
      %v376 = vld [vmem:[%s1 + $0x58] sm:$0xff]
      %v377 = vld [vmem:[%s1 + $0x60] sm:$0xff]
      %v378 = vld [vmem:[%s1 + $0x68] sm:$0xff]
      %v379 = vld [vmem:[%s1 + $0x70] sm:$0xff]
      %v380 = vld [vmem:[%s1 + $0x78] sm:$0xff]
      %v381 = vld [vmem:[%s2] sm:$0x3]
      %v383 = vlaneseq
      %v384 = vshrl.u32 %v383, 7
      %v385 = vsub.s32 0, %v384
      %v386 = vrot.slane %v381, %v385
      %v387 = vlaneseq
      %v388 = vshrl.u32 %v387, 7
      %v389 = vsub.s32 1, %v388
      %v390 = vrot.slane %v381, %v389
      %vm393 = vcmask 523264
      %v395 = vsel %vm393, %v333, 0
      %v398 = vsel %vm393, %v334, 0
      %v401 = vsel %vm393, %v335, 0
      %v404 = vsel %vm393, %v336, 0
      %v407 = vsel %vm393, %v337, 0
      %v410 = vsel %vm393, %v338, 0
      %v413 = vsel %vm393, %v339, 0
      %v416 = vsel %vm393, %v340, 0
      %v419 = vsel %vm393, %v341, 0
      %v422 = vsel %vm393, %v342, 0
      %v425 = vsel %vm393, %v343, 0
      %v428 = vsel %vm393, %v344, 0
      %v431 = vsel %vm393, %v345, 0
      %v434 = vsel %vm393, %v346, 0
      %v437 = vsel %vm393, %v347, 0
      %v440 = vsel %vm393, %v348, 0
      %v443 = vsel %vm393, %v349, 0
      %v446 = vsel %vm393, %v350, 0
      %v449 = vsel %vm393, %v351, 0
      %v452 = vsel %vm393, %v352, 0
      %v455 = vsel %vm393, %v353, 0
      %v458 = vsel %vm393, %v354, 0
      %v461 = vsel %vm393, %v355, 0
      %v464 = vsel %vm393, %v356, 0
      %v467 = vsel %vm393, %v357, 0
      %v470 = vsel %vm393, %v358, 0
      %v473 = vsel %vm393, %v359, 0
      %v476 = vsel %vm393, %v360, 0
      %v479 = vsel %vm393, %v361, 0
      %v482 = vsel %vm393, %v362, 0
      %v485 = vsel %vm393, %v363, 0
      %v488 = vsel %vm393, %v364, 0
      %490 = vmatprep.subr.mxu0 0.0
      %491 = vmatpush1.msra.mxu0 0.0
      %492 = vmatprep.subr.mxu0 0.0
      %493 = vmatpush1.msra.mxu0 0.0
      %494 = vmatprep.subr.mxu0 0.0
      %495 = vmatpush1.msra.mxu0 0.0
      %496 = vmatprep.subr.mxu0 0.0
      %497 = vmatpush1.msra.mxu0 0.0
      %498 = vmatprep.subr.mxu0 0.0
      %499 = vmatpush1.msra.mxu0 0.0
      %500 = vmatprep.subr.mxu0 0.0
      %501 = vmatpush1.msra.mxu0 0.0
      %502 = vmatprep.subr.mxu0 0.0
      %503 = vmatpush1.msra.mxu0 0.0
      %504 = vmatprep.subr.mxu0 0.0
      %505 = vmatpush1.msra.mxu0 0.0
      %506 = vmatprep.subr.mxu0 %v380
      %507 = vmatpush1.msra.mxu0 %v379
      %508 = vmatprep.subr.mxu0 %v378
      %509 = vmatpush1.msra.mxu0 %v377
      %510 = vmatprep.subr.mxu0 %v376
      %511 = vmatpush1.msra.mxu0 %v375
      %512 = vmatprep.subr.mxu0 %v374
      %513 = vmatpush1.msra.mxu0 %v373
      %514 = vmatprep.subr.mxu0 %v372
      %515 = vmatpush1.msra.mxu0 %v371
      %516 = vmatprep.subr.mxu0 %v370
      %517 = vmatpush1.msra.mxu0 %v369
      %518 = vmatprep.subr.mxu0 %v368
      %519 = vmatpush1.msra.mxu0 %v367
      %520 = vmatprep.subr.mxu0 %v366
      %521 = vmatpush1.msra.mxu0 %v365
      %522 = vmatprep.subr.mxu0 0.0
      %523 = vmatpush2.msra.mxu0 0.0
      %524 = vmatprep.subr.mxu0 0.0
      %525 = vmatpush2.msra.mxu0 0.0
      %526 = vmatprep.subr.mxu0 0.0
      %527 = vmatpush2.msra.mxu0 0.0
      %528 = vmatprep.subr.mxu0 0.0
      %529 = vmatpush2.msra.mxu0 0.0
      %530 = vmatprep.subr.mxu0 0.0
      %531 = vmatpush2.msra.mxu0 0.0
      %532 = vmatprep.subr.mxu0 0.0
      %533 = vmatpush2.msra.mxu0 0.0
      %534 = vmatprep.subr.mxu0 0.0
      %535 = vmatpush2.msra.mxu0 0.0
      %536 = vmatprep.subr.mxu0 0.0
      %537 = vmatpush2.msra.mxu0 0.0
      %538 = vmatprep.subr.mxu0 0.0
      %539 = vmatpush2.msra.mxu0 0.0
      %540 = vmatprep.subr.mxu0 0.0
      %541 = vmatpush2.msra.mxu0 0.0
      %542 = vmatprep.subr.mxu0 0.0
      %543 = vmatpush2.msra.mxu0 0.0
      %544 = vmatprep.subr.mxu0 0.0
      %545 = vmatpush2.msra.mxu0 0.0
      %546 = vmatprep.subr.mxu0 0.0
      %547 = vmatpush2.msra.mxu0 0.0
      %548 = vmatprep.subr.mxu0 0.0
      %549 = vmatpush2.msra.mxu0 0.0
      %550 = vmatprep.subr.mxu0 0.0
      %551 = vmatpush2.msra.mxu0 0.0
      %552 = vmatprep.subr.mxu0 0.0
      %553 = vmatpush2.msra.mxu0 0.0
      %554 = vmatprep.mubr.f32.mxu0 0.0
      %555 = vmatmul.mubr.f32.gmra.mxu0 %v395
      %v556 = vpop.f32.mrf.mxu0
      %v557 = vadd.f32 %v386, %v556
      %v558 = vpop.f32.mrf.mxu0
      %v559 = vadd.f32 %v390, %v558
      %560 = vmatprep.mubr.f32.mxu0 0.0
      %561 = vmatmul.mubr.f32.gmra.mxu0 %v398
      %v562 = vpop.f32.mrf.mxu0
      %v563 = vadd.f32 %v386, %v562
      %v564 = vpop.f32.mrf.mxu0
      %v565 = vadd.f32 %v390, %v564
      %566 = vmatprep.mubr.f32.mxu0 0.0
      %567 = vmatmul.mubr.f32.gmra.mxu0 %v401
      %v568 = vpop.f32.mrf.mxu0
      %v569 = vadd.f32 %v386, %v568
      %v570 = vpop.f32.mrf.mxu0
      %v571 = vadd.f32 %v390, %v570
      %572 = vmatprep.mubr.f32.mxu0 0.0
      %573 = vmatmul.mubr.f32.gmra.mxu0 %v404
      %v574 = vpop.f32.mrf.mxu0
      %v575 = vadd.f32 %v386, %v574
      %v576 = vpop.f32.mrf.mxu0
      %v577 = vadd.f32 %v390, %v576
      %578 = vmatprep.mubr.f32.mxu0 0.0
      %579 = vmatmul.mubr.f32.gmra.mxu0 %v407
      %v580 = vpop.f32.mrf.mxu0
      %v581 = vadd.f32 %v386, %v580
      %v582 = vpop.f32.mrf.mxu0
      %v583 = vadd.f32 %v390, %v582
      %584 = vmatprep.mubr.f32.mxu0 0.0
      %585 = vmatmul.mubr.f32.gmra.mxu0 %v410
      %v586 = vpop.f32.mrf.mxu0
      %v587 = vadd.f32 %v386, %v586
      %v588 = vpop.f32.mrf.mxu0
      %v589 = vadd.f32 %v390, %v588
      %590 = vmatprep.mubr.f32.mxu0 0.0
      %591 = vmatmul.mubr.f32.gmra.mxu0 %v413
      %v592 = vpop.f32.mrf.mxu0
      %v593 = vadd.f32 %v386, %v592
      %v594 = vpop.f32.mrf.mxu0
      %v595 = vadd.f32 %v390, %v594
      %596 = vmatprep.mubr.f32.mxu0 0.0
      %597 = vmatmul.mubr.f32.gmra.mxu0 %v416
      %v598 = vpop.f32.mrf.mxu0
      %v599 = vadd.f32 %v386, %v598
      %v600 = vpop.f32.mrf.mxu0
      %v601 = vadd.f32 %v390, %v600
      %602 = vmatprep.mubr.f32.mxu0 0.0
      %603 = vmatmul.mubr.f32.gmra.mxu0 %v419
      %v604 = vpop.f32.mrf.mxu0
      %v605 = vadd.f32 %v386, %v604
      %v606 = vpop.f32.mrf.mxu0
      %v607 = vadd.f32 %v390, %v606
      %608 = vmatprep.mubr.f32.mxu0 0.0
      %609 = vmatmul.mubr.f32.gmra.mxu0 %v422
      %v610 = vpop.f32.mrf.mxu0
      %v611 = vadd.f32 %v386, %v610
      %v612 = vpop.f32.mrf.mxu0
      %v613 = vadd.f32 %v390, %v612
      %614 = vmatprep.mubr.f32.mxu0 0.0
      %615 = vmatmul.mubr.f32.gmra.mxu0 %v425
      %v616 = vpop.f32.mrf.mxu0
      %v617 = vadd.f32 %v386, %v616
      %v618 = vpop.f32.mrf.mxu0
      %v619 = vadd.f32 %v390, %v618
      %620 = vmatprep.mubr.f32.mxu0 0.0
      %621 = vmatmul.mubr.f32.gmra.mxu0 %v428
      %v622 = vpop.f32.mrf.mxu0
      %v623 = vadd.f32 %v386, %v622
      %v624 = vpop.f32.mrf.mxu0
      %v625 = vadd.f32 %v390, %v624
      %626 = vmatprep.mubr.f32.mxu0 0.0
      %627 = vmatmul.mubr.f32.gmra.mxu0 %v431
      %v628 = vpop.f32.mrf.mxu0
      %v629 = vadd.f32 %v386, %v628
      %v630 = vpop.f32.mrf.mxu0
      %v631 = vadd.f32 %v390, %v630
      %632 = vmatprep.mubr.f32.mxu0 0.0
      %633 = vmatmul.mubr.f32.gmra.mxu0 %v434
      %v634 = vpop.f32.mrf.mxu0
      %v635 = vadd.f32 %v386, %v634
      %v636 = vpop.f32.mrf.mxu0
      %v637 = vadd.f32 %v390, %v636
      %638 = vmatprep.mubr.f32.mxu0 0.0
      %639 = vmatmul.mubr.f32.gmra.mxu0 %v437
      %v640 = vpop.f32.mrf.mxu0
      %v641 = vadd.f32 %v386, %v640
      %v642 = vpop.f32.mrf.mxu0
      %v643 = vadd.f32 %v390, %v642
      %644 = vmatprep.mubr.f32.mxu0 0.0
      %645 = vmatmul.mubr.f32.gmra.mxu0 %v440
      %v646 = vpop.f32.mrf.mxu0
      %v647 = vadd.f32 %v386, %v646
      %v648 = vpop.f32.mrf.mxu0
      %v649 = vadd.f32 %v390, %v648
      %650 = vmatprep.mubr.f32.mxu0 0.0
      %651 = vmatmul.mubr.f32.gmra.mxu0 %v443
      %v652 = vpop.f32.mrf.mxu0
      %v653 = vadd.f32 %v386, %v652
      %v654 = vpop.f32.mrf.mxu0
      %v655 = vadd.f32 %v390, %v654
      %656 = vmatprep.mubr.f32.mxu0 0.0
      %657 = vmatmul.mubr.f32.gmra.mxu0 %v446
      %v658 = vpop.f32.mrf.mxu0
      %v659 = vadd.f32 %v386, %v658
      %v660 = vpop.f32.mrf.mxu0
      %v661 = vadd.f32 %v390, %v660
      %662 = vmatprep.mubr.f32.mxu0 0.0
      %663 = vmatmul.mubr.f32.gmra.mxu0 %v449
      %v664 = vpop.f32.mrf.mxu0
      %v665 = vadd.f32 %v386, %v664
      %v666 = vpop.f32.mrf.mxu0
      %v667 = vadd.f32 %v390, %v666
      %668 = vmatprep.mubr.f32.mxu0 0.0
      %669 = vmatmul.mubr.f32.gmra.mxu0 %v452
      %v670 = vpop.f32.mrf.mxu0
      %v671 = vadd.f32 %v386, %v670
      %v672 = vpop.f32.mrf.mxu0
      %v673 = vadd.f32 %v390, %v672
      %674 = vmatprep.mubr.f32.mxu0 0.0
      %675 = vmatmul.mubr.f32.gmra.mxu0 %v455
      %v676 = vpop.f32.mrf.mxu0
      %v677 = vadd.f32 %v386, %v676
      %v678 = vpop.f32.mrf.mxu0
      %v679 = vadd.f32 %v390, %v678
      %680 = vmatprep.mubr.f32.mxu0 0.0
      %681 = vmatmul.mubr.f32.gmra.mxu0 %v458
      %v682 = vpop.f32.mrf.mxu0
      %v683 = vadd.f32 %v386, %v682
      %v684 = vpop.f32.mrf.mxu0
      %v685 = vadd.f32 %v390, %v684
      %686 = vmatprep.mubr.f32.mxu0 0.0
      %687 = vmatmul.mubr.f32.gmra.mxu0 %v461
      %v688 = vpop.f32.mrf.mxu0
      %v689 = vadd.f32 %v386, %v688
      %v690 = vpop.f32.mrf.mxu0
      %v691 = vadd.f32 %v390, %v690
      %692 = vmatprep.mubr.f32.mxu0 0.0
      %693 = vmatmul.mubr.f32.gmra.mxu0 %v464
      %v694 = vpop.f32.mrf.mxu0
      %v695 = vadd.f32 %v386, %v694
      %v696 = vpop.f32.mrf.mxu0
      %v697 = vadd.f32 %v390, %v696
      %698 = vmatprep.mubr.f32.mxu0 0.0
      %699 = vmatmul.mubr.f32.gmra.mxu0 %v467
      %v700 = vpop.f32.mrf.mxu0
      %v701 = vadd.f32 %v386, %v700
      %v702 = vpop.f32.mrf.mxu0
      %v703 = vadd.f32 %v390, %v702
      %704 = vmatprep.mubr.f32.mxu0 0.0
      %705 = vmatmul.mubr.f32.gmra.mxu0 %v470
      %v706 = vpop.f32.mrf.mxu0
      %v707 = vadd.f32 %v386, %v706
      %v708 = vpop.f32.mrf.mxu0
      %v709 = vadd.f32 %v390, %v708
      %710 = vmatprep.mubr.f32.mxu0 0.0
      %711 = vmatmul.mubr.f32.gmra.mxu0 %v473
      %v712 = vpop.f32.mrf.mxu0
      %v713 = vadd.f32 %v386, %v712
      %v714 = vpop.f32.mrf.mxu0
      %v715 = vadd.f32 %v390, %v714
      %716 = vmatprep.mubr.f32.mxu0 0.0
      %717 = vmatmul.mubr.f32.gmra.mxu0 %v476
      %v718 = vpop.f32.mrf.mxu0
      %v719 = vadd.f32 %v386, %v718
      %v720 = vpop.f32.mrf.mxu0
      %v721 = vadd.f32 %v390, %v720
      %722 = vmatprep.mubr.f32.mxu0 0.0
      %723 = vmatmul.mubr.f32.gmra.mxu0 %v479
      %v724 = vpop.f32.mrf.mxu0
      %v725 = vadd.f32 %v386, %v724
      %v726 = vpop.f32.mrf.mxu0
      %v727 = vadd.f32 %v390, %v726
      %728 = vmatprep.mubr.f32.mxu0 0.0
      %729 = vmatmul.mubr.f32.gmra.mxu0 %v482
      %v730 = vpop.f32.mrf.mxu0
      %v731 = vadd.f32 %v386, %v730
      %v732 = vpop.f32.mrf.mxu0
      %v733 = vadd.f32 %v390, %v732
      %734 = vmatprep.mubr.f32.mxu0 0.0
      %735 = vmatmul.mubr.f32.gmra.mxu0 %v485
      %v736 = vpop.f32.mrf.mxu0
      %v737 = vadd.f32 %v386, %v736
      %v738 = vpop.f32.mrf.mxu0
      %v739 = vadd.f32 %v390, %v738
      %740 = vmatprep.mubr.f32.mxu0 0.0
      %741 = vmatmul.mubr.f32.gmra.mxu0 %v488
      %v742 = vpop.f32.mrf.mxu0
      %v743 = vadd.f32 %v386, %v742
      %v744 = vpop.f32.mrf.mxu0
      %v745 = vadd.f32 %v390, %v744
      %746 = vdwg.mxu0
      %747 = vst [vmem:[#allocation2] sm:$0xff] 0.0
      %748 = vst [vmem:[#allocation2 + $0x8] sm:$0xff] 0.0
      %749 = vst [vmem:[#allocation2 + $0x10] sm:$0xff] 0.0
      %750 = vst [vmem:[#allocation2 + $0x18] sm:$0xff] 0.0
      %751 = vst [vmem:[#allocation2 + $0x20] sm:$0x3] 0.0
      %752 = vst [vmem:[#allocation2 + $0x28] sm:$0x3] 0.0
      %753 = vst [vmem:[#allocation2 + $0x30] sm:$0xff] 0.0
      %754 = vst [vmem:[#allocation2 + $0x38] sm:$0xff] 0.0
      %755 = vst [vmem:[#allocation2 + $0x40] sm:$0xff] 0.0
      %756 = vst [vmem:[#allocation2 + $0x48] sm:$0xff] 0.0
      %757 = vst [vmem:[#allocation2 + $0x50] sm:$0x3] 0.0
      %758 = vst [vmem:[#allocation2 + $0x58] sm:$0x3] 0.0
      %759 = vst [vmem:[#allocation2 + $0x60] sm:$0xff] 0.0
      %760 = vst [vmem:[#allocation2 + $0x68] sm:$0xff] 0.0
      %761 = vst [vmem:[#allocation2 + $0x70] sm:$0xff] 0.0
      %762 = vst [vmem:[#allocation2 + $0x78] sm:$0xff] 0.0
      %763 = vst [vmem:[#allocation2 + $0x80] sm:$0x3] 0.0
      %764 = vst [vmem:[#allocation2 + $0x88] sm:$0x3] 0.0
      %765 = vst [vmem:[#allocation2 + $0x90] sm:$0xff] 0.0
      %766 = vst [vmem:[#allocation2 + $0x98] sm:$0xff] 0.0
      %767 = vst [vmem:[#allocation2 + $0xa0] sm:$0xff] 0.0
      %768 = vst [vmem:[#allocation2 + $0xa8] sm:$0xff] 0.0
      %769 = vst [vmem:[#allocation2 + $0xb0] sm:$0x3] 0.0
      %770 = vst [vmem:[#allocation2 + $0xb8] sm:$0x3] 0.0
      %771 = vst [vmem:[#allocation2 + $0xc0] sm:$0xff] 0.0
      %772 = vst [vmem:[#allocation2 + $0xc8] sm:$0xff] 0.0
      %773 = vst [vmem:[#allocation2 + $0xd0] sm:$0xff] 0.0
      %774 = vst [vmem:[#allocation2 + $0xd8] sm:$0xff] 0.0
      %775 = vst [vmem:[#allocation2 + $0xe0] sm:$0x3] 0.0
      %776 = vst [vmem:[#allocation2 + $0xe8] sm:$0x3] 0.0
      %777 = vst [vmem:[#allocation2 + $0xf0] sm:$0xff] 0.0
      %778 = vst [vmem:[#allocation2 + $0xf8] sm:$0xff] 0.0
      %779 = vst [vmem:[#allocation2 + $0x100] sm:$0xff] 0.0
      %780 = vst [vmem:[#allocation2 + $0x108] sm:$0xff] 0.0
      %781 = vst [vmem:[#allocation2 + $0x110] sm:$0x3] 0.0
      %782 = vst [vmem:[#allocation2 + $0x118] sm:$0x3] 0.0
      %783 = vst [vmem:[#allocation2 + $0x120] sm:$0xff] 0.0
      %784 = vst [vmem:[#allocation2 + $0x128] sm:$0xff] 0.0
      %785 = vst [vmem:[#allocation2 + $0x130] sm:$0xff] 0.0
      %786 = vst [vmem:[#allocation2 + $0x138] sm:$0xff] 0.0
      %787 = vst [vmem:[#allocation2 + $0x140] sm:$0x3] 0.0
      %788 = vst [vmem:[#allocation2 + $0x148] sm:$0x3] 0.0
      %789 = vst [vmem:[#allocation2 + $0x150] sm:$0xff] 0.0
      %790 = vst [vmem:[#allocation2 + $0x158] sm:$0xff] 0.0
      %791 = vst [vmem:[#allocation2 + $0x160] sm:$0xff] 0.0
      %792 = vst [vmem:[#allocation2 + $0x168] sm:$0xff] 0.0
      %793 = vst [vmem:[#allocation2 + $0x170] sm:$0x3] 0.0
      %794 = vst [vmem:[#allocation2 + $0x178] sm:$0x3] 0.0
      %795 = vst [vmem:[#allocation2 + $0x180] sm:$0xff] 0.0
      %796 = vst [vmem:[#allocation2 + $0x188] sm:$0xff] 0.0
      %797 = vst [vmem:[#allocation2 + $0x190] sm:$0xff] 0.0
      %798 = vst [vmem:[#allocation2 + $0x198] sm:$0xff] 0.0
      %799 = vst [vmem:[#allocation2 + $0x1a0] sm:$0x3] 0.0
      %800 = vst [vmem:[#allocation2 + $0x1a8] sm:$0x3] 0.0
      %801 = vst [vmem:[#allocation2 + $0x1b0] sm:$0xff] 0.0
      %802 = vst [vmem:[#allocation2 + $0x1b8] sm:$0xff] 0.0
      %803 = vst [vmem:[#allocation2 + $0x1c0] sm:$0xff] 0.0
      %804 = vst [vmem:[#allocation2 + $0x1c8] sm:$0xff] 0.0
      %805 = vst [vmem:[#allocation2 + $0x1d0] sm:$0x3] 0.0
      %806 = vst [vmem:[#allocation2 + $0x1d8] sm:$0x3] 0.0
      %807 = vst [vmem:[#allocation2 + $0x1e0] sm:$0xff] 0.0
      %808 = vst [vmem:[#allocation2 + $0x1e8] sm:$0xff] 0.0
      %809 = vst [vmem:[#allocation2 + $0x1f0] sm:$0xff] 0.0
      %810 = vst [vmem:[#allocation2 + $0x1f8] sm:$0xff] 0.0
      %811 = vst [vmem:[#allocation2 + $0x200] sm:$0x3] 0.0
      %812 = vst [vmem:[#allocation2 + $0x208] sm:$0x3] 0.0
      %813 = vst [vmem:[#allocation2 + $0x210] sm:$0xff] 0.0
      %814 = vst [vmem:[#allocation2 + $0x218] sm:$0xff] 0.0
      %815 = vst [vmem:[#allocation2 + $0x220] sm:$0xff] 0.0
      %816 = vst [vmem:[#allocation2 + $0x228] sm:$0xff] 0.0
      %817 = vst [vmem:[#allocation2 + $0x230] sm:$0x3] 0.0
      %818 = vst [vmem:[#allocation2 + $0x238] sm:$0x3] 0.0
      %819 = vst [vmem:[#allocation2 + $0x240] sm:$0xff] 0.0
      %820 = vst [vmem:[#allocation2 + $0x248] sm:$0xff] 0.0
      %821 = vst [vmem:[#allocation2 + $0x250] sm:$0xff] 0.0
      %822 = vst [vmem:[#allocation2 + $0x258] sm:$0xff] 0.0
      %823 = vst [vmem:[#allocation2 + $0x260] sm:$0x3] 0.0
      %824 = vst [vmem:[#allocation2 + $0x268] sm:$0x3] 0.0
      %825 = vst [vmem:[#allocation2 + $0x270] sm:$0xff] 0.0
      %826 = vst [vmem:[#allocation2 + $0x278] sm:$0xff] 0.0
      %827 = vst [vmem:[#allocation2 + $0x280] sm:$0xff] 0.0
      %828 = vst [vmem:[#allocation2 + $0x288] sm:$0xff] 0.0
      %829 = vst [vmem:[#allocation2 + $0x290] sm:$0x3] 0.0
      %830 = vst [vmem:[#allocation2 + $0x298] sm:$0x3] 0.0
      %831 = vst [vmem:[#allocation2 + $0x2a0] sm:$0xff] 0.0
      %832 = vst [vmem:[#allocation2 + $0x2a8] sm:$0xff] 0.0
      %833 = vst [vmem:[#allocation2 + $0x2b0] sm:$0xff] 0.0
      %834 = vst [vmem:[#allocation2 + $0x2b8] sm:$0xff] 0.0
      %835 = vst [vmem:[#allocation2 + $0x2c0] sm:$0x3] 0.0
      %836 = vst [vmem:[#allocation2 + $0x2c8] sm:$0x3] 0.0
      %837 = vst [vmem:[#allocation2 + $0x2d0] sm:$0xff] 0.0
      %838 = vst [vmem:[#allocation2 + $0x2d8] sm:$0xff] 0.0
      %839 = vst [vmem:[#allocation2 + $0x2e0] sm:$0xff] 0.0
      %840 = vst [vmem:[#allocation2 + $0x2e8] sm:$0xff] 0.0
      %841 = vst [vmem:[#allocation2 + $0x2f0] sm:$0x3] 0.0
      %842 = vst [vmem:[#allocation2 + $0x2f8] sm:$0x3] 0.0
      %843 = vst [vmem:[#allocation2 + $0x300] sm:$0xff] 0.0
      %844 = vst [vmem:[#allocation2 + $0x308] sm:$0xff] 0.0
      %845 = vst [vmem:[#allocation2 + $0x310] sm:$0xff] 0.0
      %846 = vst [vmem:[#allocation2 + $0x318] sm:$0xff] 0.0
      %847 = vst [vmem:[#allocation2 + $0x320] sm:$0x3] 0.0
      %848 = vst [vmem:[#allocation2 + $0x328] sm:$0x3] 0.0
      %849 = vst [vmem:[#allocation2 + $0x330] sm:$0xff] 0.0
      %850 = vst [vmem:[#allocation2 + $0x338] sm:$0xff] 0.0
      %851 = vst [vmem:[#allocation2 + $0x340] sm:$0xff] 0.0
      %852 = vst [vmem:[#allocation2 + $0x348] sm:$0xff] 0.0
      %853 = vst [vmem:[#allocation2 + $0x350] sm:$0x3] 0.0
      %854 = vst [vmem:[#allocation2 + $0x358] sm:$0x3] 0.0
      %vm919 = vcmask 1040384
      %v920 = vrot.slane %v557, 7
      %v921 = vrot.slane %v559, 7
      %v922 = vrot.slane %v563, 7
      %v923 = vsel %vm919, %v920, %v922
      %v924 = vrot.slane %v565, 7
      %v925 = vsel %vm919, %v921, %v924
      %v926 = vrot.slane %v569, 7
      %v927 = vrot.slane %v571, 7
      %v928 = vrot.slane %v575, 7
      %v929 = vsel %vm919, %v926, %v928
      %v930 = vrot.slane %v577, 7
      %v931 = vsel %vm919, %v927, %v930
      %v932 = vrot.slane %v581, 7
      %v933 = vrot.slane %v583, 7
      %v934 = vrot.slane %v587, 7
      %v935 = vsel %vm919, %v932, %v934
      %v936 = vrot.slane %v589, 7
      %v937 = vsel %vm919, %v933, %v936
      %v938 = vrot.slane %v593, 7
      %v939 = vrot.slane %v595, 7
      %v940 = vrot.slane %v599, 7
      %v941 = vsel %vm919, %v938, %v940
      %v942 = vrot.slane %v601, 7
      %v943 = vsel %vm919, %v939, %v942
      %v944 = vrot.slane %v605, 7
      %v945 = vrot.slane %v607, 7
      %v946 = vrot.slane %v611, 7
      %v947 = vsel %vm919, %v944, %v946
      %v948 = vrot.slane %v613, 7
      %v949 = vsel %vm919, %v945, %v948
      %v950 = vrot.slane %v617, 7
      %v951 = vrot.slane %v619, 7
      %v952 = vrot.slane %v623, 7
      %v953 = vsel %vm919, %v950, %v952
      %v954 = vrot.slane %v625, 7
      %v955 = vsel %vm919, %v951, %v954
      %v956 = vrot.slane %v629, 7
      %v957 = vrot.slane %v631, 7
      %v958 = vrot.slane %v635, 7
      %v959 = vsel %vm919, %v956, %v958
      %v960 = vrot.slane %v637, 7
      %v961 = vsel %vm919, %v957, %v960
      %v962 = vrot.slane %v641, 7
      %v963 = vrot.slane %v643, 7
      %v964 = vrot.slane %v647, 7
      %v965 = vsel %vm919, %v962, %v964
      %v966 = vrot.slane %v649, 7
      %v967 = vsel %vm919, %v963, %v966
      %v968 = vrot.slane %v653, 7
      %v969 = vrot.slane %v655, 7
      %v970 = vrot.slane %v659, 7
      %v971 = vsel %vm919, %v968, %v970
      %v972 = vrot.slane %v661, 7
      %v973 = vsel %vm919, %v969, %v972
      %v974 = vrot.slane %v665, 7
      %v975 = vrot.slane %v667, 7
      %v976 = vrot.slane %v671, 7
      %v977 = vsel %vm919, %v974, %v976
      %v978 = vrot.slane %v673, 7
      %v979 = vsel %vm919, %v975, %v978
      %v980 = vrot.slane %v677, 7
      %v981 = vrot.slane %v679, 7
      %v982 = vrot.slane %v683, 7
      %v983 = vsel %vm919, %v980, %v982
      %v984 = vrot.slane %v685, 7
      %v985 = vsel %vm919, %v981, %v984
      %v986 = vrot.slane %v689, 7
      %v987 = vrot.slane %v691, 7
      %v988 = vrot.slane %v695, 7
      %v989 = vsel %vm919, %v986, %v988
      %v990 = vrot.slane %v697, 7
      %v991 = vsel %vm919, %v987, %v990
      %v992 = vrot.slane %v701, 7
      %v993 = vrot.slane %v703, 7
      %v994 = vrot.slane %v707, 7
      %v995 = vsel %vm919, %v992, %v994
      %v996 = vrot.slane %v709, 7
      %v997 = vsel %vm919, %v993, %v996
      %v998 = vrot.slane %v713, 7
      %v999 = vrot.slane %v715, 7
      %v1000 = vrot.slane %v719, 7
      %v1001 = vsel %vm919, %v998, %v1000
      %v1002 = vrot.slane %v721, 7
      %v1003 = vsel %vm919, %v999, %v1002
      %v1004 = vrot.slane %v725, 7
      %v1005 = vrot.slane %v727, 7
      %v1006 = vrot.slane %v731, 7
      %v1007 = vsel %vm919, %v1004, %v1006
      %v1008 = vrot.slane %v733, 7
      %v1009 = vsel %vm919, %v1005, %v1008
      %v1010 = vrot.slane %v737, 7
      %v1011 = vrot.slane %v739, 7
      %v1012 = vrot.slane %v743, 7
      %v1013 = vsel %vm919, %v1010, %v1012
      %v1014 = vrot.slane %v745, 7
      %v1015 = vsel %vm919, %v1011, %v1014
      %s1112 = scalar_lea.vmem [#allocation2], 48
      %1113 = vst [vmem:[%s1112] sm:$0xfe] %v920
      %1114 = vst [vmem:[%s1112 + $0x8] sm:$0xfe] %v921
      %1115 = vst [vmem:[%s1112 + $0x10] sm:$0xff] %v923
      %1116 = vst [vmem:[%s1112 + $0x18] sm:$0xff] %v925
      %1117 = vst [vmem:[%s1112 + $0x20] sm:$0x1] %v922
      %1118 = vst [vmem:[%s1112 + $0x28] sm:$0x1] %v924
      %1119 = vst [vmem:[%s1112 + $0x30] sm:$0xfe] %v926
      %1120 = vst [vmem:[%s1112 + $0x38] sm:$0xfe] %v927
      %1121 = vst [vmem:[%s1112 + $0x40] sm:$0xff] %v929
      %1122 = vst [vmem:[%s1112 + $0x48] sm:$0xff] %v931
      %1123 = vst [vmem:[%s1112 + $0x50] sm:$0x1] %v928
      %1124 = vst [vmem:[%s1112 + $0x58] sm:$0x1] %v930
      %1125 = vst [vmem:[%s1112 + $0x60] sm:$0xfe] %v932
      %1126 = vst [vmem:[%s1112 + $0x68] sm:$0xfe] %v933
      %1127 = vst [vmem:[%s1112 + $0x70] sm:$0xff] %v935
      %1128 = vst [vmem:[%s1112 + $0x78] sm:$0xff] %v937
      %1129 = vst [vmem:[%s1112 + $0x80] sm:$0x1] %v934
      %1130 = vst [vmem:[%s1112 + $0x88] sm:$0x1] %v936
      %1131 = vst [vmem:[%s1112 + $0x90] sm:$0xfe] %v938
      %1132 = vst [vmem:[%s1112 + $0x98] sm:$0xfe] %v939
      %1133 = vst [vmem:[%s1112 + $0xa0] sm:$0xff] %v941
      %1134 = vst [vmem:[%s1112 + $0xa8] sm:$0xff] %v943
      %1135 = vst [vmem:[%s1112 + $0xb0] sm:$0x1] %v940
      %1136 = vst [vmem:[%s1112 + $0xb8] sm:$0x1] %v942
      %1137 = vst [vmem:[%s1112 + $0xc0] sm:$0xfe] %v944
      %1138 = vst [vmem:[%s1112 + $0xc8] sm:$0xfe] %v945
      %1139 = vst [vmem:[%s1112 + $0xd0] sm:$0xff] %v947
      %1140 = vst [vmem:[%s1112 + $0xd8] sm:$0xff] %v949
      %1141 = vst [vmem:[%s1112 + $0xe0] sm:$0x1] %v946
      %1142 = vst [vmem:[%s1112 + $0xe8] sm:$0x1] %v948
      %1143 = vst [vmem:[%s1112 + $0xf0] sm:$0xfe] %v950
      %1144 = vst [vmem:[%s1112 + $0xf8] sm:$0xfe] %v951
      %1145 = vst [vmem:[%s1112 + $0x100] sm:$0xff] %v953
      %1146 = vst [vmem:[%s1112 + $0x108] sm:$0xff] %v955
      %1147 = vst [vmem:[%s1112 + $0x110] sm:$0x1] %v952
      %1148 = vst [vmem:[%s1112 + $0x118] sm:$0x1] %v954
      %1149 = vst [vmem:[%s1112 + $0x120] sm:$0xfe] %v956
      %1150 = vst [vmem:[%s1112 + $0x128] sm:$0xfe] %v957
      %1151 = vst [vmem:[%s1112 + $0x130] sm:$0xff] %v959
      %1152 = vst [vmem:[%s1112 + $0x138] sm:$0xff] %v961
      %1153 = vst [vmem:[%s1112 + $0x140] sm:$0x1] %v958
      %1154 = vst [vmem:[%s1112 + $0x148] sm:$0x1] %v960
      %1155 = vst [vmem:[%s1112 + $0x150] sm:$0xfe] %v962
      %1156 = vst [vmem:[%s1112 + $0x158] sm:$0xfe] %v963
      %1157 = vst [vmem:[%s1112 + $0x160] sm:$0xff] %v965
      %1158 = vst [vmem:[%s1112 + $0x168] sm:$0xff] %v967
      %1159 = vst [vmem:[%s1112 + $0x170] sm:$0x1] %v964
      %1160 = vst [vmem:[%s1112 + $0x178] sm:$0x1] %v966
      %1161 = vst [vmem:[%s1112 + $0x180] sm:$0xfe] %v968
      %1162 = vst [vmem:[%s1112 + $0x188] sm:$0xfe] %v969
      %1163 = vst [vmem:[%s1112 + $0x190] sm:$0xff] %v971
      %1164 = vst [vmem:[%s1112 + $0x198] sm:$0xff] %v973
      %1165 = vst [vmem:[%s1112 + $0x1a0] sm:$0x1] %v970
      %1166 = vst [vmem:[%s1112 + $0x1a8] sm:$0x1] %v972
      %1167 = vst [vmem:[%s1112 + $0x1b0] sm:$0xfe] %v974
      %1168 = vst [vmem:[%s1112 + $0x1b8] sm:$0xfe] %v975
      %1169 = vst [vmem:[%s1112 + $0x1c0] sm:$0xff] %v977
      %1170 = vst [vmem:[%s1112 + $0x1c8] sm:$0xff] %v979
      %1171 = vst [vmem:[%s1112 + $0x1d0] sm:$0x1] %v976
      %1172 = vst [vmem:[%s1112 + $0x1d8] sm:$0x1] %v978
      %1173 = vst [vmem:[%s1112 + $0x1e0] sm:$0xfe] %v980
      %1174 = vst [vmem:[%s1112 + $0x1e8] sm:$0xfe] %v981
      %1175 = vst [vmem:[%s1112 + $0x1f0] sm:$0xff] %v983
      %1176 = vst [vmem:[%s1112 + $0x1f8] sm:$0xff] %v985
      %1177 = vst [vmem:[%s1112 + $0x200] sm:$0x1] %v982
      %1178 = vst [vmem:[%s1112 + $0x208] sm:$0x1] %v984
      %1179 = vst [vmem:[%s1112 + $0x210] sm:$0xfe] %v986
      %1180 = vst [vmem:[%s1112 + $0x218] sm:$0xfe] %v987
      %1181 = vst [vmem:[%s1112 + $0x220] sm:$0xff] %v989
      %1182 = vst [vmem:[%s1112 + $0x228] sm:$0xff] %v991
      %1183 = vst [vmem:[%s1112 + $0x230] sm:$0x1] %v988
      %1184 = vst [vmem:[%s1112 + $0x238] sm:$0x1] %v990
      %1185 = vst [vmem:[%s1112 + $0x240] sm:$0xfe] %v992
      %1186 = vst [vmem:[%s1112 + $0x248] sm:$0xfe] %v993
      %1187 = vst [vmem:[%s1112 + $0x250] sm:$0xff] %v995
      %1188 = vst [vmem:[%s1112 + $0x258] sm:$0xff] %v997
      %1189 = vst [vmem:[%s1112 + $0x260] sm:$0x1] %v994
      %1190 = vst [vmem:[%s1112 + $0x268] sm:$0x1] %v996
      %1191 = vst [vmem:[%s1112 + $0x270] sm:$0xfe] %v998
      %1192 = vst [vmem:[%s1112 + $0x278] sm:$0xfe] %v999
      %1193 = vst [vmem:[%s1112 + $0x280] sm:$0xff] %v1001
      %1194 = vst [vmem:[%s1112 + $0x288] sm:$0xff] %v1003
      %1195 = vst [vmem:[%s1112 + $0x290] sm:$0x1] %v1000
      %1196 = vst [vmem:[%s1112 + $0x298] sm:$0x1] %v1002
      %1197 = vst [vmem:[%s1112 + $0x2a0] sm:$0xfe] %v1004
      %1198 = vst [vmem:[%s1112 + $0x2a8] sm:$0xfe] %v1005
      %1199 = vst [vmem:[%s1112 + $0x2b0] sm:$0xff] %v1007
      %1200 = vst [vmem:[%s1112 + $0x2b8] sm:$0xff] %v1009
      %1201 = vst [vmem:[%s1112 + $0x2c0] sm:$0x1] %v1006
      %1202 = vst [vmem:[%s1112 + $0x2c8] sm:$0x1] %v1008
      %1203 = vst [vmem:[%s1112 + $0x2d0] sm:$0xfe] %v1010
      %1204 = vst [vmem:[%s1112 + $0x2d8] sm:$0xfe] %v1011
      %1205 = vst [vmem:[%s1112 + $0x2e0] sm:$0xff] %v1013
      %1206 = vst [vmem:[%s1112 + $0x2e8] sm:$0xff] %v1015
      %1207 = vst [vmem:[%s1112 + $0x2f0] sm:$0x1] %v1012
      %1208 = vst [vmem:[%s1112 + $0x2f8] sm:$0x1] %v1014
      %v1209 = vld [vmem:[%s3] ss:$4 sm:$0x3]
      %v1210 = vld [vmem:[#allocation2] sm:$0xff]
      %v1211 = vld [vmem:[#allocation2 + $0x8] sm:$0xff]
      %v1212 = vld [vmem:[#allocation2 + $0x10] sm:$0xff]
      %v1213 = vld [vmem:[#allocation2 + $0x18] sm:$0xff]
      %v1214 = vld [vmem:[#allocation2 + $0x30] sm:$0xff]
      %v1215 = vld [vmem:[#allocation2 + $0x38] sm:$0xff]
      %v1216 = vld [vmem:[#allocation2 + $0x40] sm:$0xff]
      %v1217 = vld [vmem:[#allocation2 + $0x48] sm:$0xff]
      %v1218 = vld [vmem:[#allocation2 + $0x60] sm:$0xff]
      %v1219 = vld [vmem:[#allocation2 + $0x68] sm:$0xff]
      %v1220 = vld [vmem:[#allocation2 + $0x70] sm:$0xff]
      %v1221 = vld [vmem:[#allocation2 + $0x78] sm:$0xff]
      %v1222 = vld [vmem:[#allocation2 + $0x90] sm:$0xff]
      %v1223 = vld [vmem:[#allocation2 + $0x98] sm:$0xff]
      %v1224 = vld [vmem:[#allocation2 + $0xa0] sm:$0xff]
      %v1225 = vld [vmem:[#allocation2 + $0xa8] sm:$0xff]
      %v1226 = vld [vmem:[#allocation2 + $0xc0] sm:$0xff]
      %v1227 = vld [vmem:[#allocation2 + $0xc8] sm:$0xff]
      %v1228 = vld [vmem:[#allocation2 + $0xd0] sm:$0xff]
      %v1229 = vld [vmem:[#allocation2 + $0xd8] sm:$0xff]
      %v1230 = vld [vmem:[#allocation2 + $0xf0] sm:$0xff]
      %v1231 = vld [vmem:[#allocation2 + $0xf8] sm:$0xff]
      %v1232 = vld [vmem:[#allocation2 + $0x100] sm:$0xff]
      %v1233 = vld [vmem:[#allocation2 + $0x108] sm:$0xff]
      %v1234 = vld [vmem:[#allocation2 + $0x120] sm:$0xff]
      %v1235 = vld [vmem:[#allocation2 + $0x128] sm:$0xff]
      %v1236 = vld [vmem:[#allocation2 + $0x130] sm:$0xff]
      %v1237 = vld [vmem:[#allocation2 + $0x138] sm:$0xff]
      %v1238 = vld [vmem:[#allocation2 + $0x150] sm:$0xff]
      %v1239 = vld [vmem:[#allocation2 + $0x158] sm:$0xff]
      %v1240 = vld [vmem:[#allocation2 + $0x160] sm:$0xff]
      %v1241 = vld [vmem:[#allocation2 + $0x168] sm:$0xff]
      %v1242 = vld [vmem:[#allocation2 + $0x180] sm:$0xff]
      %v1243 = vld [vmem:[#allocation2 + $0x188] sm:$0xff]
      %v1244 = vld [vmem:[#allocation2 + $0x190] sm:$0xff]
      %v1245 = vld [vmem:[#allocation2 + $0x198] sm:$0xff]
      %v1246 = vld [vmem:[#allocation2 + $0x1b0] sm:$0xff]
      %v1247 = vld [vmem:[#allocation2 + $0x1b8] sm:$0xff]
      %v1248 = vld [vmem:[#allocation2 + $0x1c0] sm:$0xff]
      %v1249 = vld [vmem:[#allocation2 + $0x1c8] sm:$0xff]
      %v1250 = vld [vmem:[#allocation2 + $0x1e0] sm:$0xff]
      %v1251 = vld [vmem:[#allocation2 + $0x1e8] sm:$0xff]
      %v1252 = vld [vmem:[#allocation2 + $0x1f0] sm:$0xff]
      %v1253 = vld [vmem:[#allocation2 + $0x1f8] sm:$0xff]
      %v1254 = vld [vmem:[#allocation2 + $0x210] sm:$0xff]
      %v1255 = vld [vmem:[#allocation2 + $0x218] sm:$0xff]
      %v1256 = vld [vmem:[#allocation2 + $0x220] sm:$0xff]
      %v1257 = vld [vmem:[#allocation2 + $0x228] sm:$0xff]
      %v1258 = vld [vmem:[#allocation2 + $0x240] sm:$0xff]
      %v1259 = vld [vmem:[#allocation2 + $0x248] sm:$0xff]
      %v1260 = vld [vmem:[#allocation2 + $0x250] sm:$0xff]
      %v1261 = vld [vmem:[#allocation2 + $0x258] sm:$0xff]
      %v1262 = vld [vmem:[#allocation2 + $0x270] sm:$0xff]
      %v1263 = vld [vmem:[#allocation2 + $0x278] sm:$0xff]
      %v1264 = vld [vmem:[#allocation2 + $0x280] sm:$0xff]
      %v1265 = vld [vmem:[#allocation2 + $0x288] sm:$0xff]
      %v1266 = vld [vmem:[#allocation2 + $0x2a0] sm:$0xff]
      %v1267 = vld [vmem:[#allocation2 + $0x2a8] sm:$0xff]
      %v1268 = vld [vmem:[#allocation2 + $0x2b0] sm:$0xff]
      %v1269 = vld [vmem:[#allocation2 + $0x2b8] sm:$0xff]
      %v1270 = vld [vmem:[#allocation2 + $0x2d0] sm:$0xff]
      %v1271 = vld [vmem:[#allocation2 + $0x2d8] sm:$0xff]
      %v1272 = vld [vmem:[#allocation2 + $0x2e0] sm:$0xff]
      %v1273 = vld [vmem:[#allocation2 + $0x2e8] sm:$0xff]
      %v1275 = vlaneseq
      %v1276 = vshrl.u32 %v1275, 7
      %v1277 = vsub.s32 0, %v1276
      %v1278 = vrot.slane %v1209, %v1277
      %v1279 = vlaneseq
      %v1280 = vshrl.u32 %v1279, 7
      %v1281 = vsub.s32 1, %v1280
      %v1282 = vrot.slane %v1209, %v1281
      %v1285 = vmul.f32 %v1210, %v1278
      %v1286 = vmul.f32 %v1211, %v1282
      %v1287 = vmul.f32 %v1212, %v1278
      %v1288 = vmul.f32 %v1213, %v1282
      %v1289 = vmul.f32 %v1214, %v1278
      %v1290 = vmul.f32 %v1215, %v1282
      %v1291 = vmul.f32 %v1216, %v1278
      %v1292 = vmul.f32 %v1217, %v1282
      %v1293 = vmul.f32 %v1218, %v1278
      %v1294 = vmul.f32 %v1219, %v1282
      %v1295 = vmul.f32 %v1220, %v1278
      %v1296 = vmul.f32 %v1221, %v1282
      %v1297 = vmul.f32 %v1222, %v1278
      %v1298 = vmul.f32 %v1223, %v1282
      %v1299 = vmul.f32 %v1224, %v1278
      %v1300 = vmul.f32 %v1225, %v1282
      %v1301 = vmul.f32 %v1226, %v1278
      %v1302 = vmul.f32 %v1227, %v1282
      %v1303 = vmul.f32 %v1228, %v1278
      %v1304 = vmul.f32 %v1229, %v1282
      %v1305 = vmul.f32 %v1230, %v1278
      %v1306 = vmul.f32 %v1231, %v1282
      %v1307 = vmul.f32 %v1232, %v1278
      %v1308 = vmul.f32 %v1233, %v1282
      %v1309 = vmul.f32 %v1234, %v1278
      %v1310 = vmul.f32 %v1235, %v1282
      %v1311 = vmul.f32 %v1236, %v1278
      %v1312 = vmul.f32 %v1237, %v1282
      %v1313 = vmul.f32 %v1238, %v1278
      %v1314 = vmul.f32 %v1239, %v1282
      %v1315 = vmul.f32 %v1240, %v1278
      %v1316 = vmul.f32 %v1241, %v1282
      %v1317 = vmul.f32 %v1242, %v1278
      %v1318 = vmul.f32 %v1243, %v1282
      %v1319 = vmul.f32 %v1244, %v1278
      %v1320 = vmul.f32 %v1245, %v1282
      %v1321 = vmul.f32 %v1246, %v1278
      %v1322 = vmul.f32 %v1247, %v1282
      %v1323 = vmul.f32 %v1248, %v1278
      %v1324 = vmul.f32 %v1249, %v1282
      %v1325 = vmul.f32 %v1250, %v1278
      %v1326 = vmul.f32 %v1251, %v1282
      %v1327 = vmul.f32 %v1252, %v1278
      %v1328 = vmul.f32 %v1253, %v1282
      %v1329 = vmul.f32 %v1254, %v1278
      %v1330 = vmul.f32 %v1255, %v1282
      %v1331 = vmul.f32 %v1256, %v1278
      %v1332 = vmul.f32 %v1257, %v1282
      %v1333 = vmul.f32 %v1258, %v1278
      %v1334 = vmul.f32 %v1259, %v1282
      %v1335 = vmul.f32 %v1260, %v1278
      %v1336 = vmul.f32 %v1261, %v1282
      %v1337 = vmul.f32 %v1262, %v1278
      %v1338 = vmul.f32 %v1263, %v1282
      %v1339 = vmul.f32 %v1264, %v1278
      %v1340 = vmul.f32 %v1265, %v1282
      %v1341 = vmul.f32 %v1266, %v1278
      %v1342 = vmul.f32 %v1267, %v1282
      %v1343 = vmul.f32 %v1268, %v1278
      %v1344 = vmul.f32 %v1269, %v1282
      %v1345 = vmul.f32 %v1270, %v1278
      %v1346 = vmul.f32 %v1271, %v1282
      %v1347 = vmul.f32 %v1272, %v1278
      %v1348 = vmul.f32 %v1273, %v1282
      %v1349 = vadd.f32 %v1285, 0.0
      %v1350 = vadd.f32 %v1286, 0.0
      %v1351 = vadd.f32 %v1287, 0.0
      %v1352 = vadd.f32 %v1288, 0.0
      %v1353 = vadd.f32 %v1289, 0.0
      %v1354 = vadd.f32 %v1290, 0.0
      %v1355 = vadd.f32 %v1291, 0.0
      %v1356 = vadd.f32 %v1292, 0.0
      %v1357 = vadd.f32 %v1293, 0.0
      %v1358 = vadd.f32 %v1294, 0.0
      %v1359 = vadd.f32 %v1295, 0.0
      %v1360 = vadd.f32 %v1296, 0.0
      %v1361 = vadd.f32 %v1297, 0.0
      %v1362 = vadd.f32 %v1298, 0.0
      %v1363 = vadd.f32 %v1299, 0.0
      %v1364 = vadd.f32 %v1300, 0.0
      %v1365 = vadd.f32 %v1301, 0.0
      %v1366 = vadd.f32 %v1302, 0.0
      %v1367 = vadd.f32 %v1303, 0.0
      %v1368 = vadd.f32 %v1304, 0.0
      %v1369 = vadd.f32 %v1305, 0.0
      %v1370 = vadd.f32 %v1306, 0.0
      %v1371 = vadd.f32 %v1307, 0.0
      %v1372 = vadd.f32 %v1308, 0.0
      %v1373 = vadd.f32 %v1309, 0.0
      %v1374 = vadd.f32 %v1310, 0.0
      %v1375 = vadd.f32 %v1311, 0.0
      %v1376 = vadd.f32 %v1312, 0.0
      %v1377 = vadd.f32 %v1313, 0.0
      %v1378 = vadd.f32 %v1314, 0.0
      %v1379 = vadd.f32 %v1315, 0.0
      %v1380 = vadd.f32 %v1316, 0.0
      %v1381 = vadd.f32 %v1317, 0.0
      %v1382 = vadd.f32 %v1318, 0.0
      %v1383 = vadd.f32 %v1319, 0.0
      %v1384 = vadd.f32 %v1320, 0.0
      %v1385 = vadd.f32 %v1321, 0.0
      %v1386 = vadd.f32 %v1322, 0.0
      %v1387 = vadd.f32 %v1323, 0.0
      %v1388 = vadd.f32 %v1324, 0.0
      %v1389 = vadd.f32 %v1325, 0.0
      %v1390 = vadd.f32 %v1326, 0.0
      %v1391 = vadd.f32 %v1327, 0.0
      %v1392 = vadd.f32 %v1328, 0.0
      %v1393 = vadd.f32 %v1329, 0.0
      %v1394 = vadd.f32 %v1330, 0.0
      %v1395 = vadd.f32 %v1331, 0.0
      %v1396 = vadd.f32 %v1332, 0.0
      %v1397 = vadd.f32 %v1333, 0.0
      %v1398 = vadd.f32 %v1334, 0.0
      %v1399 = vadd.f32 %v1335, 0.0
      %v1400 = vadd.f32 %v1336, 0.0
      %v1401 = vadd.f32 %v1337, 0.0
      %v1402 = vadd.f32 %v1338, 0.0
      %v1403 = vadd.f32 %v1339, 0.0
      %v1404 = vadd.f32 %v1340, 0.0
      %v1405 = vadd.f32 %v1341, 0.0
      %v1406 = vadd.f32 %v1342, 0.0
      %v1407 = vadd.f32 %v1343, 0.0
      %v1408 = vadd.f32 %v1344, 0.0
      %v1409 = vadd.f32 %v1345, 0.0
      %v1410 = vadd.f32 %v1346, 0.0
      %v1411 = vadd.f32 %v1347, 0.0
      %v1412 = vadd.f32 %v1348, 0.0
      %s1413 = scalar_lea.vmem %s3, 1
      %v1414 = vld [vmem:[%s1413] ss:$4 sm:$0x3]
      %v1415 = vld [vmem:[#allocation2] sm:$0xfe]
      %v1416 = vld [vmem:[#allocation2 + $0x8] sm:$0xfe]
      %v1417 = vld [vmem:[#allocation2 + $0x20] sm:$0x1]
      %v1418 = vld [vmem:[#allocation2 + $0x28] sm:$0x1]
      %v1419 = vld [vmem:[#allocation2 + $0x30] sm:$0xfe]
      %v1420 = vld [vmem:[#allocation2 + $0x38] sm:$0xfe]
      %v1421 = vld [vmem:[#allocation2 + $0x50] sm:$0x1]
      %v1422 = vld [vmem:[#allocation2 + $0x58] sm:$0x1]
      %v1423 = vld [vmem:[#allocation2 + $0x60] sm:$0xfe]
      %v1424 = vld [vmem:[#allocation2 + $0x68] sm:$0xfe]
      %v1425 = vld [vmem:[#allocation2 + $0x80] sm:$0x1]
      %v1426 = vld [vmem:[#allocation2 + $0x88] sm:$0x1]
      %v1427 = vld [vmem:[#allocation2 + $0x90] sm:$0xfe]
      %v1428 = vld [vmem:[#allocation2 + $0x98] sm:$0xfe]
      %v1429 = vld [vmem:[#allocation2 + $0xb0] sm:$0x1]
      %v1430 = vld [vmem:[#allocation2 + $0xb8] sm:$0x1]
      %v1431 = vld [vmem:[#allocation2 + $0xc0] sm:$0xfe]
      %v1432 = vld [vmem:[#allocation2 + $0xc8] sm:$0xfe]
      %v1433 = vld [vmem:[#allocation2 + $0xe0] sm:$0x1]
      %v1434 = vld [vmem:[#allocation2 + $0xe8] sm:$0x1]
      %v1435 = vld [vmem:[#allocation2 + $0xf0] sm:$0xfe]
      %v1436 = vld [vmem:[#allocation2 + $0xf8] sm:$0xfe]
      %v1437 = vld [vmem:[#allocation2 + $0x110] sm:$0x1]
      %v1438 = vld [vmem:[#allocation2 + $0x118] sm:$0x1]
      %v1439 = vld [vmem:[#allocation2 + $0x120] sm:$0xfe]
      %v1440 = vld [vmem:[#allocation2 + $0x128] sm:$0xfe]
      %v1441 = vld [vmem:[#allocation2 + $0x140] sm:$0x1]
      %v1442 = vld [vmem:[#allocation2 + $0x148] sm:$0x1]
      %v1443 = vld [vmem:[#allocation2 + $0x150] sm:$0xfe]
      %v1444 = vld [vmem:[#allocation2 + $0x158] sm:$0xfe]
      %v1445 = vld [vmem:[#allocation2 + $0x170] sm:$0x1]
      %v1446 = vld [vmem:[#allocation2 + $0x178] sm:$0x1]
      %v1447 = vld [vmem:[#allocation2 + $0x180] sm:$0xfe]
      %v1448 = vld [vmem:[#allocation2 + $0x188] sm:$0xfe]
      %v1449 = vld [vmem:[#allocation2 + $0x1a0] sm:$0x1]
      %v1450 = vld [vmem:[#allocation2 + $0x1a8] sm:$0x1]
      %v1451 = vld [vmem:[#allocation2 + $0x1b0] sm:$0xfe]
      %v1452 = vld [vmem:[#allocation2 + $0x1b8] sm:$0xfe]
      %v1453 = vld [vmem:[#allocation2 + $0x1d0] sm:$0x1]
      %v1454 = vld [vmem:[#allocation2 + $0x1d8] sm:$0x1]
      %v1455 = vld [vmem:[#allocation2 + $0x1e0] sm:$0xfe]
      %v1456 = vld [vmem:[#allocation2 + $0x1e8] sm:$0xfe]
      %v1457 = vld [vmem:[#allocation2 + $0x200] sm:$0x1]
      %v1458 = vld [vmem:[#allocation2 + $0x208] sm:$0x1]
      %v1459 = vld [vmem:[#allocation2 + $0x210] sm:$0xfe]
      %v1460 = vld [vmem:[#allocation2 + $0x218] sm:$0xfe]
      %v1461 = vld [vmem:[#allocation2 + $0x230] sm:$0x1]
      %v1462 = vld [vmem:[#allocation2 + $0x238] sm:$0x1]
      %v1463 = vld [vmem:[#allocation2 + $0x240] sm:$0xfe]
      %v1464 = vld [vmem:[#allocation2 + $0x248] sm:$0xfe]
      %v1465 = vld [vmem:[#allocation2 + $0x260] sm:$0x1]
      %v1466 = vld [vmem:[#allocation2 + $0x268] sm:$0x1]
      %v1467 = vld [vmem:[#allocation2 + $0x270] sm:$0xfe]
      %v1468 = vld [vmem:[#allocation2 + $0x278] sm:$0xfe]
      %v1469 = vld [vmem:[#allocation2 + $0x290] sm:$0x1]
      %v1470 = vld [vmem:[#allocation2 + $0x298] sm:$0x1]
      %v1471 = vld [vmem:[#allocation2 + $0x2a0] sm:$0xfe]
      %v1472 = vld [vmem:[#allocation2 + $0x2a8] sm:$0xfe]
      %v1473 = vld [vmem:[#allocation2 + $0x2c0] sm:$0x1]
      %v1474 = vld [vmem:[#allocation2 + $0x2c8] sm:$0x1]
      %v1475 = vld [vmem:[#allocation2 + $0x2d0] sm:$0xfe]
      %v1476 = vld [vmem:[#allocation2 + $0x2d8] sm:$0xfe]
      %v1477 = vld [vmem:[#allocation2 + $0x2f0] sm:$0x1]
      %v1478 = vld [vmem:[#allocation2 + $0x2f8] sm:$0x1]
      %v1480 = vlaneseq
      %v1481 = vshrl.u32 %v1480, 7
      %v1482 = vsub.s32 0, %v1481
      %v1483 = vrot.slane %v1414, %v1482
      %v1484 = vlaneseq
      %v1485 = vshrl.u32 %v1484, 7
      %v1486 = vsub.s32 1, %v1485
      %v1487 = vrot.slane %v1414, %v1486
      %v1490 = vmul.f32 %v1415, %v1483
      %v1491 = vmul.f32 %v1416, %v1487
      %v1492 = vmul.f32 %v1212, %v1483
      %v1493 = vmul.f32 %v1213, %v1487
      %v1494 = vmul.f32 %v1417, %v1483
      %v1495 = vmul.f32 %v1418, %v1487
      %v1496 = vmul.f32 %v1419, %v1483
      %v1497 = vmul.f32 %v1420, %v1487
      %v1498 = vmul.f32 %v1216, %v1483
      %v1499 = vmul.f32 %v1217, %v1487
      %v1500 = vmul.f32 %v1421, %v1483
      %v1501 = vmul.f32 %v1422, %v1487
      %v1502 = vmul.f32 %v1423, %v1483
      %v1503 = vmul.f32 %v1424, %v1487
      %v1504 = vmul.f32 %v1220, %v1483
      %v1505 = vmul.f32 %v1221, %v1487
      %v1506 = vmul.f32 %v1425, %v1483
      %v1507 = vmul.f32 %v1426, %v1487
      %v1508 = vmul.f32 %v1427, %v1483
      %v1509 = vmul.f32 %v1428, %v1487
      %v1510 = vmul.f32 %v1224, %v1483
      %v1511 = vmul.f32 %v1225, %v1487
      %v1512 = vmul.f32 %v1429, %v1483
      %v1513 = vmul.f32 %v1430, %v1487
      %v1514 = vmul.f32 %v1431, %v1483
      %v1515 = vmul.f32 %v1432, %v1487
      %v1516 = vmul.f32 %v1228, %v1483
      %v1517 = vmul.f32 %v1229, %v1487
      %v1518 = vmul.f32 %v1433, %v1483
      %v1519 = vmul.f32 %v1434, %v1487
      %v1520 = vmul.f32 %v1435, %v1483
      %v1521 = vmul.f32 %v1436, %v1487
      %v1522 = vmul.f32 %v1232, %v1483
      %v1523 = vmul.f32 %v1233, %v1487
      %v1524 = vmul.f32 %v1437, %v1483
      %v1525 = vmul.f32 %v1438, %v1487
      %v1526 = vmul.f32 %v1439, %v1483
      %v1527 = vmul.f32 %v1440, %v1487
      %v1528 = vmul.f32 %v1236, %v1483
      %v1529 = vmul.f32 %v1237, %v1487
      %v1530 = vmul.f32 %v1441, %v1483
      %v1531 = vmul.f32 %v1442, %v1487
      %v1532 = vmul.f32 %v1443, %v1483
      %v1533 = vmul.f32 %v1444, %v1487
      %v1534 = vmul.f32 %v1240, %v1483
      %v1535 = vmul.f32 %v1241, %v1487
      %v1536 = vmul.f32 %v1445, %v1483
      %v1537 = vmul.f32 %v1446, %v1487
      %v1538 = vmul.f32 %v1447, %v1483
      %v1539 = vmul.f32 %v1448, %v1487
      %v1540 = vmul.f32 %v1244, %v1483
      %v1541 = vmul.f32 %v1245, %v1487
      %v1542 = vmul.f32 %v1449, %v1483
      %v1543 = vmul.f32 %v1450, %v1487
      %v1544 = vmul.f32 %v1451, %v1483
      %v1545 = vmul.f32 %v1452, %v1487
      %v1546 = vmul.f32 %v1248, %v1483
      %v1547 = vmul.f32 %v1249, %v1487
      %v1548 = vmul.f32 %v1453, %v1483
      %v1549 = vmul.f32 %v1454, %v1487
      %v1550 = vmul.f32 %v1455, %v1483
      %v1551 = vmul.f32 %v1456, %v1487
      %v1552 = vmul.f32 %v1252, %v1483
      %v1553 = vmul.f32 %v1253, %v1487
      %v1554 = vmul.f32 %v1457, %v1483
      %v1555 = vmul.f32 %v1458, %v1487
      %v1556 = vmul.f32 %v1459, %v1483
      %v1557 = vmul.f32 %v1460, %v1487
      %v1558 = vmul.f32 %v1256, %v1483
      %v1559 = vmul.f32 %v1257, %v1487
      %v1560 = vmul.f32 %v1461, %v1483
      %v1561 = vmul.f32 %v1462, %v1487
      %v1562 = vmul.f32 %v1463, %v1483
      %v1563 = vmul.f32 %v1464, %v1487
      %v1564 = vmul.f32 %v1260, %v1483
      %v1565 = vmul.f32 %v1261, %v1487
      %v1566 = vmul.f32 %v1465, %v1483
      %v1567 = vmul.f32 %v1466, %v1487
      %v1568 = vmul.f32 %v1467, %v1483
      %v1569 = vmul.f32 %v1468, %v1487
      %v1570 = vmul.f32 %v1264, %v1483
      %v1571 = vmul.f32 %v1265, %v1487
      %v1572 = vmul.f32 %v1469, %v1483
      %v1573 = vmul.f32 %v1470, %v1487
      %v1574 = vmul.f32 %v1471, %v1483
      %v1575 = vmul.f32 %v1472, %v1487
      %v1576 = vmul.f32 %v1268, %v1483
      %v1577 = vmul.f32 %v1269, %v1487
      %v1578 = vmul.f32 %v1473, %v1483
      %v1579 = vmul.f32 %v1474, %v1487
      %v1580 = vmul.f32 %v1475, %v1483
      %v1581 = vmul.f32 %v1476, %v1487
      %v1582 = vmul.f32 %v1272, %v1483
      %v1583 = vmul.f32 %v1273, %v1487
      %v1584 = vmul.f32 %v1477, %v1483
      %v1585 = vmul.f32 %v1478, %v1487
      %vm1682 = vcmask 1046528
      %v1683 = vrot.slane %v1490, 1
      %v1684 = vrot.slane %v1492, 1
      %v1685 = vsel %vm1682, %v1683, %v1684
      %v1686 = vrot.slane %v1491, 1
      %v1687 = vrot.slane %v1493, 1
      %v1688 = vsel %vm1682, %v1686, %v1687
      %v1689 = vrot.slane %v1494, 1
      %v1690 = vsel %vm1682, %v1684, %v1689
      %v1691 = vrot.slane %v1495, 1
      %v1692 = vsel %vm1682, %v1687, %v1691
      %v1693 = vrot.slane %v1496, 1
      %v1694 = vrot.slane %v1498, 1
      %v1695 = vsel %vm1682, %v1693, %v1694
      %v1696 = vrot.slane %v1497, 1
      %v1697 = vrot.slane %v1499, 1
      %v1698 = vsel %vm1682, %v1696, %v1697
      %v1699 = vrot.slane %v1500, 1
      %v1700 = vsel %vm1682, %v1694, %v1699
      %v1701 = vrot.slane %v1501, 1
      %v1702 = vsel %vm1682, %v1697, %v1701
      %v1703 = vrot.slane %v1502, 1
      %v1704 = vrot.slane %v1504, 1
      %v1705 = vsel %vm1682, %v1703, %v1704
      %v1706 = vrot.slane %v1503, 1
      %v1707 = vrot.slane %v1505, 1
      %v1708 = vsel %vm1682, %v1706, %v1707
      %v1709 = vrot.slane %v1506, 1
      %v1710 = vsel %vm1682, %v1704, %v1709
      %v1711 = vrot.slane %v1507, 1
      %v1712 = vsel %vm1682, %v1707, %v1711
      %v1713 = vrot.slane %v1508, 1
      %v1714 = vrot.slane %v1510, 1
      %v1715 = vsel %vm1682, %v1713, %v1714
      %v1716 = vrot.slane %v1509, 1
      %v1717 = vrot.slane %v1511, 1
      %v1718 = vsel %vm1682, %v1716, %v1717
      %v1719 = vrot.slane %v1512, 1
      %v1720 = vsel %vm1682, %v1714, %v1719
      %v1721 = vrot.slane %v1513, 1
      %v1722 = vsel %vm1682, %v1717, %v1721
      %v1723 = vrot.slane %v1514, 1
      %v1724 = vrot.slane %v1516, 1
      %v1725 = vsel %vm1682, %v1723, %v1724
      %v1726 = vrot.slane %v1515, 1
      %v1727 = vrot.slane %v1517, 1
      %v1728 = vsel %vm1682, %v1726, %v1727
      %v1729 = vrot.slane %v1518, 1
      %v1730 = vsel %vm1682, %v1724, %v1729
      %v1731 = vrot.slane %v1519, 1
      %v1732 = vsel %vm1682, %v1727, %v1731
      %v1733 = vrot.slane %v1520, 1
      %v1734 = vrot.slane %v1522, 1
      %v1735 = vsel %vm1682, %v1733, %v1734
      %v1736 = vrot.slane %v1521, 1
      %v1737 = vrot.slane %v1523, 1
      %v1738 = vsel %vm1682, %v1736, %v1737
      %v1739 = vrot.slane %v1524, 1
      %v1740 = vsel %vm1682, %v1734, %v1739
      %v1741 = vrot.slane %v1525, 1
      %v1742 = vsel %vm1682, %v1737, %v1741
      %v1743 = vrot.slane %v1526, 1
      %v1744 = vrot.slane %v1528, 1
      %v1745 = vsel %vm1682, %v1743, %v1744
      %v1746 = vrot.slane %v1527, 1
      %v1747 = vrot.slane %v1529, 1
      %v1748 = vsel %vm1682, %v1746, %v1747
      %v1749 = vrot.slane %v1530, 1
      %v1750 = vsel %vm1682, %v1744, %v1749
      %v1751 = vrot.slane %v1531, 1
      %v1752 = vsel %vm1682, %v1747, %v1751
      %v1753 = vrot.slane %v1532, 1
      %v1754 = vrot.slane %v1534, 1
      %v1755 = vsel %vm1682, %v1753, %v1754
      %v1756 = vrot.slane %v1533, 1
      %v1757 = vrot.slane %v1535, 1
      %v1758 = vsel %vm1682, %v1756, %v1757
      %v1759 = vrot.slane %v1536, 1
      %v1760 = vsel %vm1682, %v1754, %v1759
      %v1761 = vrot.slane %v1537, 1
      %v1762 = vsel %vm1682, %v1757, %v1761
      %v1763 = vrot.slane %v1538, 1
      %v1764 = vrot.slane %v1540, 1
      %v1765 = vsel %vm1682, %v1763, %v1764
      %v1766 = vrot.slane %v1539, 1
      %v1767 = vrot.slane %v1541, 1
      %v1768 = vsel %vm1682, %v1766, %v1767
      %v1769 = vrot.slane %v1542, 1
      %v1770 = vsel %vm1682, %v1764, %v1769
      %v1771 = vrot.slane %v1543, 1
      %v1772 = vsel %vm1682, %v1767, %v1771
      %v1773 = vrot.slane %v1544, 1
      %v1774 = vrot.slane %v1546, 1
      %v1775 = vsel %vm1682, %v1773, %v1774
      %v1776 = vrot.slane %v1545, 1
      %v1777 = vrot.slane %v1547, 1
      %v1778 = vsel %vm1682, %v1776, %v1777
      %v1779 = vrot.slane %v1548, 1
      %v1780 = vsel %vm1682, %v1774, %v1779
      %v1781 = vrot.slane %v1549, 1
      %v1782 = vsel %vm1682, %v1777, %v1781
      %v1783 = vrot.slane %v1550, 1
      %v1784 = vrot.slane %v1552, 1
      %v1785 = vsel %vm1682, %v1783, %v1784
      %v1786 = vrot.slane %v1551, 1
      %v1787 = vrot.slane %v1553, 1
      %v1788 = vsel %vm1682, %v1786, %v1787
      %v1789 = vrot.slane %v1554, 1
      %v1790 = vsel %vm1682, %v1784, %v1789
      %v1791 = vrot.slane %v1555, 1
      %v1792 = vsel %vm1682, %v1787, %v1791
      %v1793 = vrot.slane %v1556, 1
      %v1794 = vrot.slane %v1558, 1
      %v1795 = vsel %vm1682, %v1793, %v1794
      %v1796 = vrot.slane %v1557, 1
      %v1797 = vrot.slane %v1559, 1
      %v1798 = vsel %vm1682, %v1796, %v1797
      %v1799 = vrot.slane %v1560, 1
      %v1800 = vsel %vm1682, %v1794, %v1799
      %v1801 = vrot.slane %v1561, 1
      %v1802 = vsel %vm1682, %v1797, %v1801
      %v1803 = vrot.slane %v1562, 1
      %v1804 = vrot.slane %v1564, 1
      %v1805 = vsel %vm1682, %v1803, %v1804
      %v1806 = vrot.slane %v1563, 1
      %v1807 = vrot.slane %v1565, 1
      %v1808 = vsel %vm1682, %v1806, %v1807
      %v1809 = vrot.slane %v1566, 1
      %v1810 = vsel %vm1682, %v1804, %v1809
      %v1811 = vrot.slane %v1567, 1
      %v1812 = vsel %vm1682, %v1807, %v1811
      %v1813 = vrot.slane %v1568, 1
      %v1814 = vrot.slane %v1570, 1
      %v1815 = vsel %vm1682, %v1813, %v1814
      %v1816 = vrot.slane %v1569, 1
      %v1817 = vrot.slane %v1571, 1
      %v1818 = vsel %vm1682, %v1816, %v1817
      %v1819 = vrot.slane %v1572, 1
      %v1820 = vsel %vm1682, %v1814, %v1819
      %v1821 = vrot.slane %v1573, 1
      %v1822 = vsel %vm1682, %v1817, %v1821
      %v1823 = vrot.slane %v1574, 1
      %v1824 = vrot.slane %v1576, 1
      %v1825 = vsel %vm1682, %v1823, %v1824
      %v1826 = vrot.slane %v1575, 1
      %v1827 = vrot.slane %v1577, 1
      %v1828 = vsel %vm1682, %v1826, %v1827
      %v1829 = vrot.slane %v1578, 1
      %v1830 = vsel %vm1682, %v1824, %v1829
      %v1831 = vrot.slane %v1579, 1
      %v1832 = vsel %vm1682, %v1827, %v1831
      %v1833 = vrot.slane %v1580, 1
      %v1834 = vrot.slane %v1582, 1
      %v1835 = vsel %vm1682, %v1833, %v1834
      %v1836 = vrot.slane %v1581, 1
      %v1837 = vrot.slane %v1583, 1
      %v1838 = vsel %vm1682, %v1836, %v1837
      %v1839 = vrot.slane %v1584, 1
      %v1840 = vsel %vm1682, %v1834, %v1839
      %v1841 = vrot.slane %v1585, 1
      %v1842 = vsel %vm1682, %v1837, %v1841
      %v1907 = vadd.f32 %v1349, %v1685
      %v1908 = vadd.f32 %v1350, %v1688
      %v1909 = vadd.f32 %v1351, %v1690
      %v1910 = vadd.f32 %v1352, %v1692
      %v1911 = vadd.f32 %v1353, %v1695
      %v1912 = vadd.f32 %v1354, %v1698
      %v1913 = vadd.f32 %v1355, %v1700
      %v1914 = vadd.f32 %v1356, %v1702
      %v1915 = vadd.f32 %v1357, %v1705
      %v1916 = vadd.f32 %v1358, %v1708
      %v1917 = vadd.f32 %v1359, %v1710
      %v1918 = vadd.f32 %v1360, %v1712
      %v1919 = vadd.f32 %v1361, %v1715
      %v1920 = vadd.f32 %v1362, %v1718
      %v1921 = vadd.f32 %v1363, %v1720
      %v1922 = vadd.f32 %v1364, %v1722
      %v1923 = vadd.f32 %v1365, %v1725
      %v1924 = vadd.f32 %v1366, %v1728
      %v1925 = vadd.f32 %v1367, %v1730
      %v1926 = vadd.f32 %v1368, %v1732
      %v1927 = vadd.f32 %v1369, %v1735
      %v1928 = vadd.f32 %v1370, %v1738
      %v1929 = vadd.f32 %v1371, %v1740
      %v1930 = vadd.f32 %v1372, %v1742
      %v1931 = vadd.f32 %v1373, %v1745
      %v1932 = vadd.f32 %v1374, %v1748
      %v1933 = vadd.f32 %v1375, %v1750
      %v1934 = vadd.f32 %v1376, %v1752
      %v1935 = vadd.f32 %v1377, %v1755
      %v1936 = vadd.f32 %v1378, %v1758
      %v1937 = vadd.f32 %v1379, %v1760
      %v1938 = vadd.f32 %v1380, %v1762
      %v1939 = vadd.f32 %v1381, %v1765
      %v1940 = vadd.f32 %v1382, %v1768
      %v1941 = vadd.f32 %v1383, %v1770
      %v1942 = vadd.f32 %v1384, %v1772
      %v1943 = vadd.f32 %v1385, %v1775
      %v1944 = vadd.f32 %v1386, %v1778
      %v1945 = vadd.f32 %v1387, %v1780
      %v1946 = vadd.f32 %v1388, %v1782
      %v1947 = vadd.f32 %v1389, %v1785
      %v1948 = vadd.f32 %v1390, %v1788
      %v1949 = vadd.f32 %v1391, %v1790
      %v1950 = vadd.f32 %v1392, %v1792
      %v1951 = vadd.f32 %v1393, %v1795
      %v1952 = vadd.f32 %v1394, %v1798
      %v1953 = vadd.f32 %v1395, %v1800
      %v1954 = vadd.f32 %v1396, %v1802
      %v1955 = vadd.f32 %v1397, %v1805
      %v1956 = vadd.f32 %v1398, %v1808
      %v1957 = vadd.f32 %v1399, %v1810
      %v1958 = vadd.f32 %v1400, %v1812
      %v1959 = vadd.f32 %v1401, %v1815
      %v1960 = vadd.f32 %v1402, %v1818
      %v1961 = vadd.f32 %v1403, %v1820
      %v1962 = vadd.f32 %v1404, %v1822
      %v1963 = vadd.f32 %v1405, %v1825
      %v1964 = vadd.f32 %v1406, %v1828
      %v1965 = vadd.f32 %v1407, %v1830
      %v1966 = vadd.f32 %v1408, %v1832
      %v1967 = vadd.f32 %v1409, %v1835
      %v1968 = vadd.f32 %v1410, %v1838
      %v1969 = vadd.f32 %v1411, %v1840
      %v1970 = vadd.f32 %v1412, %v1842
      %s1971 = scalar_lea.vmem %s3, 2
      %v1972 = vld [vmem:[%s1971] ss:$4 sm:$0x3]
      %v1973 = vld [vmem:[#allocation2] sm:$0xfc]
      %v1974 = vld [vmem:[#allocation2 + $0x8] sm:$0xfc]
      %v1975 = vld [vmem:[#allocation2 + $0x20] sm:$0x3]
      %v1976 = vld [vmem:[#allocation2 + $0x28] sm:$0x3]
      %v1977 = vld [vmem:[#allocation2 + $0x30] sm:$0xfc]
      %v1978 = vld [vmem:[#allocation2 + $0x38] sm:$0xfc]
      %v1979 = vld [vmem:[#allocation2 + $0x50] sm:$0x3]
      %v1980 = vld [vmem:[#allocation2 + $0x58] sm:$0x3]
      %v1981 = vld [vmem:[#allocation2 + $0x60] sm:$0xfc]
      %v1982 = vld [vmem:[#allocation2 + $0x68] sm:$0xfc]
      %v1983 = vld [vmem:[#allocation2 + $0x80] sm:$0x3]
      %v1984 = vld [vmem:[#allocation2 + $0x88] sm:$0x3]
      %v1985 = vld [vmem:[#allocation2 + $0x90] sm:$0xfc]
      %v1986 = vld [vmem:[#allocation2 + $0x98] sm:$0xfc]
      %v1987 = vld [vmem:[#allocation2 + $0xb0] sm:$0x3]
      %v1988 = vld [vmem:[#allocation2 + $0xb8] sm:$0x3]
      %v1989 = vld [vmem:[#allocation2 + $0xc0] sm:$0xfc]
      %v1990 = vld [vmem:[#allocation2 + $0xc8] sm:$0xfc]
      %v1991 = vld [vmem:[#allocation2 + $0xe0] sm:$0x3]
      %v1992 = vld [vmem:[#allocation2 + $0xe8] sm:$0x3]
      %v1993 = vld [vmem:[#allocation2 + $0xf0] sm:$0xfc]
      %v1994 = vld [vmem:[#allocation2 + $0xf8] sm:$0xfc]
      %v1995 = vld [vmem:[#allocation2 + $0x110] sm:$0x3]
      %v1996 = vld [vmem:[#allocation2 + $0x118] sm:$0x3]
      %v1997 = vld [vmem:[#allocation2 + $0x120] sm:$0xfc]
      %v1998 = vld [vmem:[#allocation2 + $0x128] sm:$0xfc]
      %v1999 = vld [vmem:[#allocation2 + $0x140] sm:$0x3]
      %v2000 = vld [vmem:[#allocation2 + $0x148] sm:$0x3]
      %v2001 = vld [vmem:[#allocation2 + $0x150] sm:$0xfc]
      %v2002 = vld [vmem:[#allocation2 + $0x158] sm:$0xfc]
      %v2003 = vld [vmem:[#allocation2 + $0x170] sm:$0x3]
      %v2004 = vld [vmem:[#allocation2 + $0x178] sm:$0x3]
      %v2005 = vld [vmem:[#allocation2 + $0x180] sm:$0xfc]
      %v2006 = vld [vmem:[#allocation2 + $0x188] sm:$0xfc]
      %v2007 = vld [vmem:[#allocation2 + $0x1a0] sm:$0x3]
      %v2008 = vld [vmem:[#allocation2 + $0x1a8] sm:$0x3]
      %v2009 = vld [vmem:[#allocation2 + $0x1b0] sm:$0xfc]
      %v2010 = vld [vmem:[#allocation2 + $0x1b8] sm:$0xfc]
      %v2011 = vld [vmem:[#allocation2 + $0x1d0] sm:$0x3]
      %v2012 = vld [vmem:[#allocation2 + $0x1d8] sm:$0x3]
      %v2013 = vld [vmem:[#allocation2 + $0x1e0] sm:$0xfc]
      %v2014 = vld [vmem:[#allocation2 + $0x1e8] sm:$0xfc]
      %v2015 = vld [vmem:[#allocation2 + $0x200] sm:$0x3]
      %v2016 = vld [vmem:[#allocation2 + $0x208] sm:$0x3]
      %v2017 = vld [vmem:[#allocation2 + $0x210] sm:$0xfc]
      %v2018 = vld [vmem:[#allocation2 + $0x218] sm:$0xfc]
      %v2019 = vld [vmem:[#allocation2 + $0x230] sm:$0x3]
      %v2020 = vld [vmem:[#allocation2 + $0x238] sm:$0x3]
      %v2021 = vld [vmem:[#allocation2 + $0x240] sm:$0xfc]
      %v2022 = vld [vmem:[#allocation2 + $0x248] sm:$0xfc]
      %v2023 = vld [vmem:[#allocation2 + $0x260] sm:$0x3]
      %v2024 = vld [vmem:[#allocation2 + $0x268] sm:$0x3]
      %v2025 = vld [vmem:[#allocation2 + $0x270] sm:$0xfc]
      %v2026 = vld [vmem:[#allocation2 + $0x278] sm:$0xfc]
      %v2027 = vld [vmem:[#allocation2 + $0x290] sm:$0x3]
      %v2028 = vld [vmem:[#allocation2 + $0x298] sm:$0x3]
      %v2029 = vld [vmem:[#allocation2 + $0x2a0] sm:$0xfc]
      %v2030 = vld [vmem:[#allocation2 + $0x2a8] sm:$0xfc]
      %v2031 = vld [vmem:[#allocation2 + $0x2c0] sm:$0x3]
      %v2032 = vld [vmem:[#allocation2 + $0x2c8] sm:$0x3]
      %v2033 = vld [vmem:[#allocation2 + $0x2d0] sm:$0xfc]
      %v2034 = vld [vmem:[#allocation2 + $0x2d8] sm:$0xfc]
      %v2035 = vld [vmem:[#allocation2 + $0x2f0] sm:$0x3]
      %v2036 = vld [vmem:[#allocation2 + $0x2f8] sm:$0x3]
      %v2038 = vlaneseq
      %v2039 = vshrl.u32 %v2038, 7
      %v2040 = vsub.s32 0, %v2039
      %v2041 = vrot.slane %v1972, %v2040
      %v2042 = vlaneseq
      %v2043 = vshrl.u32 %v2042, 7
      %v2044 = vsub.s32 1, %v2043
      %v2045 = vrot.slane %v1972, %v2044
      %v2048 = vmul.f32 %v1973, %v2041
      %v2049 = vmul.f32 %v1974, %v2045
      %v2050 = vmul.f32 %v1212, %v2041
      %v2051 = vmul.f32 %v1213, %v2045
      %v2052 = vmul.f32 %v1975, %v2041
      %v2053 = vmul.f32 %v1976, %v2045
      %v2054 = vmul.f32 %v1977, %v2041
      %v2055 = vmul.f32 %v1978, %v2045
      %v2056 = vmul.f32 %v1216, %v2041
      %v2057 = vmul.f32 %v1217, %v2045
      %v2058 = vmul.f32 %v1979, %v2041
      %v2059 = vmul.f32 %v1980, %v2045
      %v2060 = vmul.f32 %v1981, %v2041
      %v2061 = vmul.f32 %v1982, %v2045
      %v2062 = vmul.f32 %v1220, %v2041
      %v2063 = vmul.f32 %v1221, %v2045
      %v2064 = vmul.f32 %v1983, %v2041
      %v2065 = vmul.f32 %v1984, %v2045
      %v2066 = vmul.f32 %v1985, %v2041
      %v2067 = vmul.f32 %v1986, %v2045
      %v2068 = vmul.f32 %v1224, %v2041
      %v2069 = vmul.f32 %v1225, %v2045
      %v2070 = vmul.f32 %v1987, %v2041
      %v2071 = vmul.f32 %v1988, %v2045
      %v2072 = vmul.f32 %v1989, %v2041
      %v2073 = vmul.f32 %v1990, %v2045
      %v2074 = vmul.f32 %v1228, %v2041
      %v2075 = vmul.f32 %v1229, %v2045
      %v2076 = vmul.f32 %v1991, %v2041
      %v2077 = vmul.f32 %v1992, %v2045
      %v2078 = vmul.f32 %v1993, %v2041
      %v2079 = vmul.f32 %v1994, %v2045
      %v2080 = vmul.f32 %v1232, %v2041
      %v2081 = vmul.f32 %v1233, %v2045
      %v2082 = vmul.f32 %v1995, %v2041
      %v2083 = vmul.f32 %v1996, %v2045
      %v2084 = vmul.f32 %v1997, %v2041
      %v2085 = vmul.f32 %v1998, %v2045
      %v2086 = vmul.f32 %v1236, %v2041
      %v2087 = vmul.f32 %v1237, %v2045
      %v2088 = vmul.f32 %v1999, %v2041
      %v2089 = vmul.f32 %v2000, %v2045
      %v2090 = vmul.f32 %v2001, %v2041
      %v2091 = vmul.f32 %v2002, %v2045
      %v2092 = vmul.f32 %v1240, %v2041
      %v2093 = vmul.f32 %v1241, %v2045
      %v2094 = vmul.f32 %v2003, %v2041
      %v2095 = vmul.f32 %v2004, %v2045
      %v2096 = vmul.f32 %v2005, %v2041
      %v2097 = vmul.f32 %v2006, %v2045
      %v2098 = vmul.f32 %v1244, %v2041
      %v2099 = vmul.f32 %v1245, %v2045
      %v2100 = vmul.f32 %v2007, %v2041
      %v2101 = vmul.f32 %v2008, %v2045
      %v2102 = vmul.f32 %v2009, %v2041
      %v2103 = vmul.f32 %v2010, %v2045
      %v2104 = vmul.f32 %v1248, %v2041
      %v2105 = vmul.f32 %v1249, %v2045
      %v2106 = vmul.f32 %v2011, %v2041
      %v2107 = vmul.f32 %v2012, %v2045
      %v2108 = vmul.f32 %v2013, %v2041
      %v2109 = vmul.f32 %v2014, %v2045
      %v2110 = vmul.f32 %v1252, %v2041
      %v2111 = vmul.f32 %v1253, %v2045
      %v2112 = vmul.f32 %v2015, %v2041
      %v2113 = vmul.f32 %v2016, %v2045
      %v2114 = vmul.f32 %v2017, %v2041
      %v2115 = vmul.f32 %v2018, %v2045
      %v2116 = vmul.f32 %v1256, %v2041
      %v2117 = vmul.f32 %v1257, %v2045
      %v2118 = vmul.f32 %v2019, %v2041
      %v2119 = vmul.f32 %v2020, %v2045
      %v2120 = vmul.f32 %v2021, %v2041
      %v2121 = vmul.f32 %v2022, %v2045
      %v2122 = vmul.f32 %v1260, %v2041
      %v2123 = vmul.f32 %v1261, %v2045
      %v2124 = vmul.f32 %v2023, %v2041
      %v2125 = vmul.f32 %v2024, %v2045
      %v2126 = vmul.f32 %v2025, %v2041
      %v2127 = vmul.f32 %v2026, %v2045
      %v2128 = vmul.f32 %v1264, %v2041
      %v2129 = vmul.f32 %v1265, %v2045
      %v2130 = vmul.f32 %v2027, %v2041
      %v2131 = vmul.f32 %v2028, %v2045
      %v2132 = vmul.f32 %v2029, %v2041
      %v2133 = vmul.f32 %v2030, %v2045
      %v2134 = vmul.f32 %v1268, %v2041
      %v2135 = vmul.f32 %v1269, %v2045
      %v2136 = vmul.f32 %v2031, %v2041
      %v2137 = vmul.f32 %v2032, %v2045
      %v2138 = vmul.f32 %v2033, %v2041
      %v2139 = vmul.f32 %v2034, %v2045
      %v2140 = vmul.f32 %v1272, %v2041
      %v2141 = vmul.f32 %v1273, %v2045
      %v2142 = vmul.f32 %v2035, %v2041
      %v2143 = vmul.f32 %v2036, %v2045
      %vm2240 = vcmask 1045504
      %v2241 = vrot.slane %v2048, 2
      %v2242 = vrot.slane %v2050, 2
      %v2243 = vsel %vm2240, %v2241, %v2242
      %v2244 = vrot.slane %v2049, 2
      %v2245 = vrot.slane %v2051, 2
      %v2246 = vsel %vm2240, %v2244, %v2245
      %v2247 = vrot.slane %v2052, 2
      %v2248 = vsel %vm2240, %v2242, %v2247
      %v2249 = vrot.slane %v2053, 2
      %v2250 = vsel %vm2240, %v2245, %v2249
      %v2251 = vrot.slane %v2054, 2
      %v2252 = vrot.slane %v2056, 2
      %v2253 = vsel %vm2240, %v2251, %v2252
      %v2254 = vrot.slane %v2055, 2
      %v2255 = vrot.slane %v2057, 2
      %v2256 = vsel %vm2240, %v2254, %v2255
      %v2257 = vrot.slane %v2058, 2
      %v2258 = vsel %vm2240, %v2252, %v2257
      %v2259 = vrot.slane %v2059, 2
      %v2260 = vsel %vm2240, %v2255, %v2259
      %v2261 = vrot.slane %v2060, 2
      %v2262 = vrot.slane %v2062, 2
      %v2263 = vsel %vm2240, %v2261, %v2262
      %v2264 = vrot.slane %v2061, 2
      %v2265 = vrot.slane %v2063, 2
      %v2266 = vsel %vm2240, %v2264, %v2265
      %v2267 = vrot.slane %v2064, 2
      %v2268 = vsel %vm2240, %v2262, %v2267
      %v2269 = vrot.slane %v2065, 2
      %v2270 = vsel %vm2240, %v2265, %v2269
      %v2271 = vrot.slane %v2066, 2
      %v2272 = vrot.slane %v2068, 2
      %v2273 = vsel %vm2240, %v2271, %v2272
      %v2274 = vrot.slane %v2067, 2
      %v2275 = vrot.slane %v2069, 2
      %v2276 = vsel %vm2240, %v2274, %v2275
      %v2277 = vrot.slane %v2070, 2
      %v2278 = vsel %vm2240, %v2272, %v2277
      %v2279 = vrot.slane %v2071, 2
      %v2280 = vsel %vm2240, %v2275, %v2279
      %v2281 = vrot.slane %v2072, 2
      %v2282 = vrot.slane %v2074, 2
      %v2283 = vsel %vm2240, %v2281, %v2282
      %v2284 = vrot.slane %v2073, 2
      %v2285 = vrot.slane %v2075, 2
      %v2286 = vsel %vm2240, %v2284, %v2285
      %v2287 = vrot.slane %v2076, 2
      %v2288 = vsel %vm2240, %v2282, %v2287
      %v2289 = vrot.slane %v2077, 2
      %v2290 = vsel %vm2240, %v2285, %v2289
      %v2291 = vrot.slane %v2078, 2
      %v2292 = vrot.slane %v2080, 2
      %v2293 = vsel %vm2240, %v2291, %v2292
      %v2294 = vrot.slane %v2079, 2
      %v2295 = vrot.slane %v2081, 2
      %v2296 = vsel %vm2240, %v2294, %v2295
      %v2297 = vrot.slane %v2082, 2
      %v2298 = vsel %vm2240, %v2292, %v2297
      %v2299 = vrot.slane %v2083, 2
      %v2300 = vsel %vm2240, %v2295, %v2299
      %v2301 = vrot.slane %v2084, 2
      %v2302 = vrot.slane %v2086, 2
      %v2303 = vsel %vm2240, %v2301, %v2302
      %v2304 = vrot.slane %v2085, 2
      %v2305 = vrot.slane %v2087, 2
      %v2306 = vsel %vm2240, %v2304, %v2305
      %v2307 = vrot.slane %v2088, 2
      %v2308 = vsel %vm2240, %v2302, %v2307
      %v2309 = vrot.slane %v2089, 2
      %v2310 = vsel %vm2240, %v2305, %v2309
      %v2311 = vrot.slane %v2090, 2
      %v2312 = vrot.slane %v2092, 2
      %v2313 = vsel %vm2240, %v2311, %v2312
      %v2314 = vrot.slane %v2091, 2
      %v2315 = vrot.slane %v2093, 2
      %v2316 = vsel %vm2240, %v2314, %v2315
      %v2317 = vrot.slane %v2094, 2
      %v2318 = vsel %vm2240, %v2312, %v2317
      %v2319 = vrot.slane %v2095, 2
      %v2320 = vsel %vm2240, %v2315, %v2319
      %v2321 = vrot.slane %v2096, 2
      %v2322 = vrot.slane %v2098, 2
      %v2323 = vsel %vm2240, %v2321, %v2322
      %v2324 = vrot.slane %v2097, 2
      %v2325 = vrot.slane %v2099, 2
      %v2326 = vsel %vm2240, %v2324, %v2325
      %v2327 = vrot.slane %v2100, 2
      %v2328 = vsel %vm2240, %v2322, %v2327
      %v2329 = vrot.slane %v2101, 2
      %v2330 = vsel %vm2240, %v2325, %v2329
      %v2331 = vrot.slane %v2102, 2
      %v2332 = vrot.slane %v2104, 2
      %v2333 = vsel %vm2240, %v2331, %v2332
      %v2334 = vrot.slane %v2103, 2
      %v2335 = vrot.slane %v2105, 2
      %v2336 = vsel %vm2240, %v2334, %v2335
      %v2337 = vrot.slane %v2106, 2
      %v2338 = vsel %vm2240, %v2332, %v2337
      %v2339 = vrot.slane %v2107, 2
      %v2340 = vsel %vm2240, %v2335, %v2339
      %v2341 = vrot.slane %v2108, 2
      %v2342 = vrot.slane %v2110, 2
      %v2343 = vsel %vm2240, %v2341, %v2342
      %v2344 = vrot.slane %v2109, 2
      %v2345 = vrot.slane %v2111, 2
      %v2346 = vsel %vm2240, %v2344, %v2345
      %v2347 = vrot.slane %v2112, 2
      %v2348 = vsel %vm2240, %v2342, %v2347
      %v2349 = vrot.slane %v2113, 2
      %v2350 = vsel %vm2240, %v2345, %v2349
      %v2351 = vrot.slane %v2114, 2
      %v2352 = vrot.slane %v2116, 2
      %v2353 = vsel %vm2240, %v2351, %v2352
      %v2354 = vrot.slane %v2115, 2
      %v2355 = vrot.slane %v2117, 2
      %v2356 = vsel %vm2240, %v2354, %v2355
      %v2357 = vrot.slane %v2118, 2
      %v2358 = vsel %vm2240, %v2352, %v2357
      %v2359 = vrot.slane %v2119, 2
      %v2360 = vsel %vm2240, %v2355, %v2359
      %v2361 = vrot.slane %v2120, 2
      %v2362 = vrot.slane %v2122, 2
      %v2363 = vsel %vm2240, %v2361, %v2362
      %v2364 = vrot.slane %v2121, 2
      %v2365 = vrot.slane %v2123, 2
      %v2366 = vsel %vm2240, %v2364, %v2365
      %v2367 = vrot.slane %v2124, 2
      %v2368 = vsel %vm2240, %v2362, %v2367
      %v2369 = vrot.slane %v2125, 2
      %v2370 = vsel %vm2240, %v2365, %v2369
      %v2371 = vrot.slane %v2126, 2
      %v2372 = vrot.slane %v2128, 2
      %v2373 = vsel %vm2240, %v2371, %v2372
      %v2374 = vrot.slane %v2127, 2
      %v2375 = vrot.slane %v2129, 2
      %v2376 = vsel %vm2240, %v2374, %v2375
      %v2377 = vrot.slane %v2130, 2
      %v2378 = vsel %vm2240, %v2372, %v2377
      %v2379 = vrot.slane %v2131, 2
      %v2380 = vsel %vm2240, %v2375, %v2379
      %v2381 = vrot.slane %v2132, 2
      %v2382 = vrot.slane %v2134, 2
      %v2383 = vsel %vm2240, %v2381, %v2382
      %v2384 = vrot.slane %v2133, 2
      %v2385 = vrot.slane %v2135, 2
      %v2386 = vsel %vm2240, %v2384, %v2385
      %v2387 = vrot.slane %v2136, 2
      %v2388 = vsel %vm2240, %v2382, %v2387
      %v2389 = vrot.slane %v2137, 2
      %v2390 = vsel %vm2240, %v2385, %v2389
      %v2391 = vrot.slane %v2138, 2
      %v2392 = vrot.slane %v2140, 2
      %v2393 = vsel %vm2240, %v2391, %v2392
      %v2394 = vrot.slane %v2139, 2
      %v2395 = vrot.slane %v2141, 2
      %v2396 = vsel %vm2240, %v2394, %v2395
      %v2397 = vrot.slane %v2142, 2
      %v2398 = vsel %vm2240, %v2392, %v2397
      %v2399 = vrot.slane %v2143, 2
      %v2400 = vsel %vm2240, %v2395, %v2399
      %v2465 = vadd.f32 %v1907, %v2243
      %v2466 = vadd.f32 %v1908, %v2246
      %v2467 = vadd.f32 %v1909, %v2248
      %v2468 = vadd.f32 %v1910, %v2250
      %v2469 = vadd.f32 %v1911, %v2253
      %v2470 = vadd.f32 %v1912, %v2256
      %v2471 = vadd.f32 %v1913, %v2258
      %v2472 = vadd.f32 %v1914, %v2260
      %v2473 = vadd.f32 %v1915, %v2263
      %v2474 = vadd.f32 %v1916, %v2266
      %v2475 = vadd.f32 %v1917, %v2268
      %v2476 = vadd.f32 %v1918, %v2270
      %v2477 = vadd.f32 %v1919, %v2273
      %v2478 = vadd.f32 %v1920, %v2276
      %v2479 = vadd.f32 %v1921, %v2278
      %v2480 = vadd.f32 %v1922, %v2280
      %v2481 = vadd.f32 %v1923, %v2283
      %v2482 = vadd.f32 %v1924, %v2286
      %v2483 = vadd.f32 %v1925, %v2288
      %v2484 = vadd.f32 %v1926, %v2290
      %v2485 = vadd.f32 %v1927, %v2293
      %v2486 = vadd.f32 %v1928, %v2296
      %v2487 = vadd.f32 %v1929, %v2298
      %v2488 = vadd.f32 %v1930, %v2300
      %v2489 = vadd.f32 %v1931, %v2303
      %v2490 = vadd.f32 %v1932, %v2306
      %v2491 = vadd.f32 %v1933, %v2308
      %v2492 = vadd.f32 %v1934, %v2310
      %v2493 = vadd.f32 %v1935, %v2313
      %v2494 = vadd.f32 %v1936, %v2316
      %v2495 = vadd.f32 %v1937, %v2318
      %v2496 = vadd.f32 %v1938, %v2320
      %v2497 = vadd.f32 %v1939, %v2323
      %v2498 = vadd.f32 %v1940, %v2326
      %v2499 = vadd.f32 %v1941, %v2328
      %v2500 = vadd.f32 %v1942, %v2330
      %v2501 = vadd.f32 %v1943, %v2333
      %v2502 = vadd.f32 %v1944, %v2336
      %v2503 = vadd.f32 %v1945, %v2338
      %v2504 = vadd.f32 %v1946, %v2340
      %v2505 = vadd.f32 %v1947, %v2343
      %v2506 = vadd.f32 %v1948, %v2346
      %v2507 = vadd.f32 %v1949, %v2348
      %v2508 = vadd.f32 %v1950, %v2350
      %v2509 = vadd.f32 %v1951, %v2353
      %v2510 = vadd.f32 %v1952, %v2356
      %v2511 = vadd.f32 %v1953, %v2358
      %v2512 = vadd.f32 %v1954, %v2360
      %v2513 = vadd.f32 %v1955, %v2363
      %v2514 = vadd.f32 %v1956, %v2366
      %v2515 = vadd.f32 %v1957, %v2368
      %v2516 = vadd.f32 %v1958, %v2370
      %v2517 = vadd.f32 %v1959, %v2373
      %v2518 = vadd.f32 %v1960, %v2376
      %v2519 = vadd.f32 %v1961, %v2378
      %v2520 = vadd.f32 %v1962, %v2380
      %v2521 = vadd.f32 %v1963, %v2383
      %v2522 = vadd.f32 %v1964, %v2386
      %v2523 = vadd.f32 %v1965, %v2388
      %v2524 = vadd.f32 %v1966, %v2390
      %v2525 = vadd.f32 %v1967, %v2393
      %v2526 = vadd.f32 %v1968, %v2396
      %v2527 = vadd.f32 %v1969, %v2398
      %v2528 = vadd.f32 %v1970, %v2400
      %s2529 = scalar_lea.vmem %s3, 8
      %v2530 = vld [vmem:[%s2529] ss:$4 sm:$0x3]
      %v2531 = vld [vmem:[%s1112] sm:$0xff]
      %v2532 = vld [vmem:[%s1112 + $0x8] sm:$0xff]
      %v2533 = vld [vmem:[%s1112 + $0x10] sm:$0xff]
      %v2534 = vld [vmem:[%s1112 + $0x18] sm:$0xff]
      %v2535 = vld [vmem:[%s1112 + $0x30] sm:$0xff]
      %v2536 = vld [vmem:[%s1112 + $0x38] sm:$0xff]
      %v2537 = vld [vmem:[%s1112 + $0x40] sm:$0xff]
      %v2538 = vld [vmem:[%s1112 + $0x48] sm:$0xff]
      %v2539 = vld [vmem:[%s1112 + $0x60] sm:$0xff]
      %v2540 = vld [vmem:[%s1112 + $0x68] sm:$0xff]
      %v2541 = vld [vmem:[%s1112 + $0x70] sm:$0xff]
      %v2542 = vld [vmem:[%s1112 + $0x78] sm:$0xff]
      %v2543 = vld [vmem:[%s1112 + $0x90] sm:$0xff]
      %v2544 = vld [vmem:[%s1112 + $0x98] sm:$0xff]
      %v2545 = vld [vmem:[%s1112 + $0xa0] sm:$0xff]
      %v2546 = vld [vmem:[%s1112 + $0xa8] sm:$0xff]
      %v2547 = vld [vmem:[%s1112 + $0xc0] sm:$0xff]
      %v2548 = vld [vmem:[%s1112 + $0xc8] sm:$0xff]
      %v2549 = vld [vmem:[%s1112 + $0xd0] sm:$0xff]
      %v2550 = vld [vmem:[%s1112 + $0xd8] sm:$0xff]
      %v2551 = vld [vmem:[%s1112 + $0xf0] sm:$0xff]
      %v2552 = vld [vmem:[%s1112 + $0xf8] sm:$0xff]
      %v2553 = vld [vmem:[%s1112 + $0x100] sm:$0xff]
      %v2554 = vld [vmem:[%s1112 + $0x108] sm:$0xff]
      %v2555 = vld [vmem:[%s1112 + $0x120] sm:$0xff]
      %v2556 = vld [vmem:[%s1112 + $0x128] sm:$0xff]
      %v2557 = vld [vmem:[%s1112 + $0x130] sm:$0xff]
      %v2558 = vld [vmem:[%s1112 + $0x138] sm:$0xff]
      %v2559 = vld [vmem:[%s1112 + $0x150] sm:$0xff]
      %v2560 = vld [vmem:[%s1112 + $0x158] sm:$0xff]
      %v2561 = vld [vmem:[%s1112 + $0x160] sm:$0xff]
      %v2562 = vld [vmem:[%s1112 + $0x168] sm:$0xff]
      %v2563 = vld [vmem:[%s1112 + $0x180] sm:$0xff]
      %v2564 = vld [vmem:[%s1112 + $0x188] sm:$0xff]
      %v2565 = vld [vmem:[%s1112 + $0x190] sm:$0xff]
      %v2566 = vld [vmem:[%s1112 + $0x198] sm:$0xff]
      %v2567 = vld [vmem:[%s1112 + $0x1b0] sm:$0xff]
      %v2568 = vld [vmem:[%s1112 + $0x1b8] sm:$0xff]
      %v2569 = vld [vmem:[%s1112 + $0x1c0] sm:$0xff]
      %v2570 = vld [vmem:[%s1112 + $0x1c8] sm:$0xff]
      %v2571 = vld [vmem:[%s1112 + $0x1e0] sm:$0xff]
      %v2572 = vld [vmem:[%s1112 + $0x1e8] sm:$0xff]
      %v2573 = vld [vmem:[%s1112 + $0x1f0] sm:$0xff]
      %v2574 = vld [vmem:[%s1112 + $0x1f8] sm:$0xff]
      %v2575 = vld [vmem:[%s1112 + $0x210] sm:$0xff]
      %v2576 = vld [vmem:[%s1112 + $0x218] sm:$0xff]
      %v2577 = vld [vmem:[%s1112 + $0x220] sm:$0xff]
      %v2578 = vld [vmem:[%s1112 + $0x228] sm:$0xff]
      %v2579 = vld [vmem:[%s1112 + $0x240] sm:$0xff]
      %v2580 = vld [vmem:[%s1112 + $0x248] sm:$0xff]
      %v2581 = vld [vmem:[%s1112 + $0x250] sm:$0xff]
      %v2582 = vld [vmem:[%s1112 + $0x258] sm:$0xff]
      %v2583 = vld [vmem:[%s1112 + $0x270] sm:$0xff]
      %v2584 = vld [vmem:[%s1112 + $0x278] sm:$0xff]
      %v2585 = vld [vmem:[%s1112 + $0x280] sm:$0xff]
      %v2586 = vld [vmem:[%s1112 + $0x288] sm:$0xff]
      %v2587 = vld [vmem:[%s1112 + $0x2a0] sm:$0xff]
      %v2588 = vld [vmem:[%s1112 + $0x2a8] sm:$0xff]
      %v2589 = vld [vmem:[%s1112 + $0x2b0] sm:$0xff]
      %v2590 = vld [vmem:[%s1112 + $0x2b8] sm:$0xff]
      %v2591 = vld [vmem:[%s1112 + $0x2d0] sm:$0xff]
      %v2592 = vld [vmem:[%s1112 + $0x2d8] sm:$0xff]
      %v2593 = vld [vmem:[%s1112 + $0x2e0] sm:$0xff]
      %v2594 = vld [vmem:[%s1112 + $0x2e8] sm:$0xff]
      %v2596 = vlaneseq
      %v2597 = vshrl.u32 %v2596, 7
      %v2598 = vsub.s32 0, %v2597
      %v2599 = vrot.slane %v2530, %v2598
      %v2600 = vlaneseq
      %v2601 = vshrl.u32 %v2600, 7
      %v2602 = vsub.s32 1, %v2601
      %v2603 = vrot.slane %v2530, %v2602
      %v2606 = vmul.f32 %v2531, %v2599
      %v2607 = vmul.f32 %v2532, %v2603
      %v2608 = vmul.f32 %v2533, %v2599
      %v2609 = vmul.f32 %v2534, %v2603
      %v2610 = vmul.f32 %v2535, %v2599
      %v2611 = vmul.f32 %v2536, %v2603
      %v2612 = vmul.f32 %v2537, %v2599
      %v2613 = vmul.f32 %v2538, %v2603
      %v2614 = vmul.f32 %v2539, %v2599
      %v2615 = vmul.f32 %v2540, %v2603
      %v2616 = vmul.f32 %v2541, %v2599
      %v2617 = vmul.f32 %v2542, %v2603
      %v2618 = vmul.f32 %v2543, %v2599
      %v2619 = vmul.f32 %v2544, %v2603
      %v2620 = vmul.f32 %v2545, %v2599
      %v2621 = vmul.f32 %v2546, %v2603
      %v2622 = vmul.f32 %v2547, %v2599
      %v2623 = vmul.f32 %v2548, %v2603
      %v2624 = vmul.f32 %v2549, %v2599
      %v2625 = vmul.f32 %v2550, %v2603
      %v2626 = vmul.f32 %v2551, %v2599
      %v2627 = vmul.f32 %v2552, %v2603
      %v2628 = vmul.f32 %v2553, %v2599
      %v2629 = vmul.f32 %v2554, %v2603
      %v2630 = vmul.f32 %v2555, %v2599
      %v2631 = vmul.f32 %v2556, %v2603
      %v2632 = vmul.f32 %v2557, %v2599
      %v2633 = vmul.f32 %v2558, %v2603
      %v2634 = vmul.f32 %v2559, %v2599
      %v2635 = vmul.f32 %v2560, %v2603
      %v2636 = vmul.f32 %v2561, %v2599
      %v2637 = vmul.f32 %v2562, %v2603
      %v2638 = vmul.f32 %v2563, %v2599
      %v2639 = vmul.f32 %v2564, %v2603
      %v2640 = vmul.f32 %v2565, %v2599
      %v2641 = vmul.f32 %v2566, %v2603
      %v2642 = vmul.f32 %v2567, %v2599
      %v2643 = vmul.f32 %v2568, %v2603
      %v2644 = vmul.f32 %v2569, %v2599
      %v2645 = vmul.f32 %v2570, %v2603
      %v2646 = vmul.f32 %v2571, %v2599
      %v2647 = vmul.f32 %v2572, %v2603
      %v2648 = vmul.f32 %v2573, %v2599
      %v2649 = vmul.f32 %v2574, %v2603
      %v2650 = vmul.f32 %v2575, %v2599
      %v2651 = vmul.f32 %v2576, %v2603
      %v2652 = vmul.f32 %v2577, %v2599
      %v2653 = vmul.f32 %v2578, %v2603
      %v2654 = vmul.f32 %v2579, %v2599
      %v2655 = vmul.f32 %v2580, %v2603
      %v2656 = vmul.f32 %v2581, %v2599
      %v2657 = vmul.f32 %v2582, %v2603
      %v2658 = vmul.f32 %v2583, %v2599
      %v2659 = vmul.f32 %v2584, %v2603
      %v2660 = vmul.f32 %v2585, %v2599
      %v2661 = vmul.f32 %v2586, %v2603
      %v2662 = vmul.f32 %v2587, %v2599
      %v2663 = vmul.f32 %v2588, %v2603
      %v2664 = vmul.f32 %v2589, %v2599
      %v2665 = vmul.f32 %v2590, %v2603
      %v2666 = vmul.f32 %v2591, %v2599
      %v2667 = vmul.f32 %v2592, %v2603
      %v2668 = vmul.f32 %v2593, %v2599
      %v2669 = vmul.f32 %v2594, %v2603
      %v2670 = vadd.f32 %v2465, %v2606
      %v2671 = vadd.f32 %v2466, %v2607
      %v2672 = vadd.f32 %v2467, %v2608
      %v2673 = vadd.f32 %v2468, %v2609
      %v2674 = vadd.f32 %v2469, %v2610
      %v2675 = vadd.f32 %v2470, %v2611
      %v2676 = vadd.f32 %v2471, %v2612
      %v2677 = vadd.f32 %v2472, %v2613
      %v2678 = vadd.f32 %v2473, %v2614
      %v2679 = vadd.f32 %v2474, %v2615
      %v2680 = vadd.f32 %v2475, %v2616
      %v2681 = vadd.f32 %v2476, %v2617
      %v2682 = vadd.f32 %v2477, %v2618
      %v2683 = vadd.f32 %v2478, %v2619
      %v2684 = vadd.f32 %v2479, %v2620
      %v2685 = vadd.f32 %v2480, %v2621
      %v2686 = vadd.f32 %v2481, %v2622
      %v2687 = vadd.f32 %v2482, %v2623
      %v2688 = vadd.f32 %v2483, %v2624
      %v2689 = vadd.f32 %v2484, %v2625
      %v2690 = vadd.f32 %v2485, %v2626
      %v2691 = vadd.f32 %v2486, %v2627
      %v2692 = vadd.f32 %v2487, %v2628
      %v2693 = vadd.f32 %v2488, %v2629
      %v2694 = vadd.f32 %v2489, %v2630
      %v2695 = vadd.f32 %v2490, %v2631
      %v2696 = vadd.f32 %v2491, %v2632
      %v2697 = vadd.f32 %v2492, %v2633
      %v2698 = vadd.f32 %v2493, %v2634
      %v2699 = vadd.f32 %v2494, %v2635
      %v2700 = vadd.f32 %v2495, %v2636
      %v2701 = vadd.f32 %v2496, %v2637
      %v2702 = vadd.f32 %v2497, %v2638
      %v2703 = vadd.f32 %v2498, %v2639
      %v2704 = vadd.f32 %v2499, %v2640
      %v2705 = vadd.f32 %v2500, %v2641
      %v2706 = vadd.f32 %v2501, %v2642
      %v2707 = vadd.f32 %v2502, %v2643
      %v2708 = vadd.f32 %v2503, %v2644
      %v2709 = vadd.f32 %v2504, %v2645
      %v2710 = vadd.f32 %v2505, %v2646
      %v2711 = vadd.f32 %v2506, %v2647
      %v2712 = vadd.f32 %v2507, %v2648
      %v2713 = vadd.f32 %v2508, %v2649
      %v2714 = vadd.f32 %v2509, %v2650
      %v2715 = vadd.f32 %v2510, %v2651
      %v2716 = vadd.f32 %v2511, %v2652
      %v2717 = vadd.f32 %v2512, %v2653
      %v2718 = vadd.f32 %v2513, %v2654
      %v2719 = vadd.f32 %v2514, %v2655
      %v2720 = vadd.f32 %v2515, %v2656
      %v2721 = vadd.f32 %v2516, %v2657
      %v2722 = vadd.f32 %v2517, %v2658
      %v2723 = vadd.f32 %v2518, %v2659
      %v2724 = vadd.f32 %v2519, %v2660
      %v2725 = vadd.f32 %v2520, %v2661
      %v2726 = vadd.f32 %v2521, %v2662
      %v2727 = vadd.f32 %v2522, %v2663
      %v2728 = vadd.f32 %v2523, %v2664
      %v2729 = vadd.f32 %v2524, %v2665
      %v2730 = vadd.f32 %v2525, %v2666
      %v2731 = vadd.f32 %v2526, %v2667
      %v2732 = vadd.f32 %v2527, %v2668
      %v2733 = vadd.f32 %v2528, %v2669
      %s2734 = scalar_lea.vmem %s2529, 1
      %v2735 = vld [vmem:[%s2734] ss:$4 sm:$0x3]
      %v2736 = vld [vmem:[%s1112] sm:$0xfe]
      %v2737 = vld [vmem:[%s1112 + $0x8] sm:$0xfe]
      %v2738 = vld [vmem:[%s1112 + $0x20] sm:$0x1]
      %v2739 = vld [vmem:[%s1112 + $0x28] sm:$0x1]
      %v2740 = vld [vmem:[%s1112 + $0x30] sm:$0xfe]
      %v2741 = vld [vmem:[%s1112 + $0x38] sm:$0xfe]
      %v2742 = vld [vmem:[%s1112 + $0x50] sm:$0x1]
      %v2743 = vld [vmem:[%s1112 + $0x58] sm:$0x1]
      %v2744 = vld [vmem:[%s1112 + $0x60] sm:$0xfe]
      %v2745 = vld [vmem:[%s1112 + $0x68] sm:$0xfe]
      %v2746 = vld [vmem:[%s1112 + $0x80] sm:$0x1]
      %v2747 = vld [vmem:[%s1112 + $0x88] sm:$0x1]
      %v2748 = vld [vmem:[%s1112 + $0x90] sm:$0xfe]
      %v2749 = vld [vmem:[%s1112 + $0x98] sm:$0xfe]
      %v2750 = vld [vmem:[%s1112 + $0xb0] sm:$0x1]
      %v2751 = vld [vmem:[%s1112 + $0xb8] sm:$0x1]
      %v2752 = vld [vmem:[%s1112 + $0xc0] sm:$0xfe]
      %v2753 = vld [vmem:[%s1112 + $0xc8] sm:$0xfe]
      %v2754 = vld [vmem:[%s1112 + $0xe0] sm:$0x1]
      %v2755 = vld [vmem:[%s1112 + $0xe8] sm:$0x1]
      %v2756 = vld [vmem:[%s1112 + $0xf0] sm:$0xfe]
      %v2757 = vld [vmem:[%s1112 + $0xf8] sm:$0xfe]
      %v2758 = vld [vmem:[%s1112 + $0x110] sm:$0x1]
      %v2759 = vld [vmem:[%s1112 + $0x118] sm:$0x1]
      %v2760 = vld [vmem:[%s1112 + $0x120] sm:$0xfe]
      %v2761 = vld [vmem:[%s1112 + $0x128] sm:$0xfe]
      %v2762 = vld [vmem:[%s1112 + $0x140] sm:$0x1]
      %v2763 = vld [vmem:[%s1112 + $0x148] sm:$0x1]
      %v2764 = vld [vmem:[%s1112 + $0x150] sm:$0xfe]
      %v2765 = vld [vmem:[%s1112 + $0x158] sm:$0xfe]
      %v2766 = vld [vmem:[%s1112 + $0x170] sm:$0x1]
      %v2767 = vld [vmem:[%s1112 + $0x178] sm:$0x1]
      %v2768 = vld [vmem:[%s1112 + $0x180] sm:$0xfe]
      %v2769 = vld [vmem:[%s1112 + $0x188] sm:$0xfe]
      %v2770 = vld [vmem:[%s1112 + $0x1a0] sm:$0x1]
      %v2771 = vld [vmem:[%s1112 + $0x1a8] sm:$0x1]
      %v2772 = vld [vmem:[%s1112 + $0x1b0] sm:$0xfe]
      %v2773 = vld [vmem:[%s1112 + $0x1b8] sm:$0xfe]
      %v2774 = vld [vmem:[%s1112 + $0x1d0] sm:$0x1]
      %v2775 = vld [vmem:[%s1112 + $0x1d8] sm:$0x1]
      %v2776 = vld [vmem:[%s1112 + $0x1e0] sm:$0xfe]
      %v2777 = vld [vmem:[%s1112 + $0x1e8] sm:$0xfe]
      %v2778 = vld [vmem:[%s1112 + $0x200] sm:$0x1]
      %v2779 = vld [vmem:[%s1112 + $0x208] sm:$0x1]
      %v2780 = vld [vmem:[%s1112 + $0x210] sm:$0xfe]
      %v2781 = vld [vmem:[%s1112 + $0x218] sm:$0xfe]
      %v2782 = vld [vmem:[%s1112 + $0x230] sm:$0x1]
      %v2783 = vld [vmem:[%s1112 + $0x238] sm:$0x1]
      %v2784 = vld [vmem:[%s1112 + $0x240] sm:$0xfe]
      %v2785 = vld [vmem:[%s1112 + $0x248] sm:$0xfe]
      %v2786 = vld [vmem:[%s1112 + $0x260] sm:$0x1]
      %v2787 = vld [vmem:[%s1112 + $0x268] sm:$0x1]
      %v2788 = vld [vmem:[%s1112 + $0x270] sm:$0xfe]
      %v2789 = vld [vmem:[%s1112 + $0x278] sm:$0xfe]
      %v2790 = vld [vmem:[%s1112 + $0x290] sm:$0x1]
      %v2791 = vld [vmem:[%s1112 + $0x298] sm:$0x1]
      %v2792 = vld [vmem:[%s1112 + $0x2a0] sm:$0xfe]
      %v2793 = vld [vmem:[%s1112 + $0x2a8] sm:$0xfe]
      %v2794 = vld [vmem:[%s1112 + $0x2c0] sm:$0x1]
      %v2795 = vld [vmem:[%s1112 + $0x2c8] sm:$0x1]
      %v2796 = vld [vmem:[%s1112 + $0x2d0] sm:$0xfe]
      %v2797 = vld [vmem:[%s1112 + $0x2d8] sm:$0xfe]
      %v2798 = vld [vmem:[%s1112 + $0x2f0] sm:$0x1]
      %v2799 = vld [vmem:[%s1112 + $0x2f8] sm:$0x1]
      %v2801 = vlaneseq
      %v2802 = vshrl.u32 %v2801, 7
      %v2803 = vsub.s32 0, %v2802
      %v2804 = vrot.slane %v2735, %v2803
      %v2805 = vlaneseq
      %v2806 = vshrl.u32 %v2805, 7
      %v2807 = vsub.s32 1, %v2806
      %v2808 = vrot.slane %v2735, %v2807
      %v2811 = vmul.f32 %v2736, %v2804
      %v2812 = vmul.f32 %v2737, %v2808
      %v2813 = vmul.f32 %v2533, %v2804
      %v2814 = vmul.f32 %v2534, %v2808
      %v2815 = vmul.f32 %v2738, %v2804
      %v2816 = vmul.f32 %v2739, %v2808
      %v2817 = vmul.f32 %v2740, %v2804
      %v2818 = vmul.f32 %v2741, %v2808
      %v2819 = vmul.f32 %v2537, %v2804
      %v2820 = vmul.f32 %v2538, %v2808
      %v2821 = vmul.f32 %v2742, %v2804
      %v2822 = vmul.f32 %v2743, %v2808
      %v2823 = vmul.f32 %v2744, %v2804
      %v2824 = vmul.f32 %v2745, %v2808
      %v2825 = vmul.f32 %v2541, %v2804
      %v2826 = vmul.f32 %v2542, %v2808
      %v2827 = vmul.f32 %v2746, %v2804
      %v2828 = vmul.f32 %v2747, %v2808
      %v2829 = vmul.f32 %v2748, %v2804
      %v2830 = vmul.f32 %v2749, %v2808
      %v2831 = vmul.f32 %v2545, %v2804
      %v2832 = vmul.f32 %v2546, %v2808
      %v2833 = vmul.f32 %v2750, %v2804
      %v2834 = vmul.f32 %v2751, %v2808
      %v2835 = vmul.f32 %v2752, %v2804
      %v2836 = vmul.f32 %v2753, %v2808
      %v2837 = vmul.f32 %v2549, %v2804
      %v2838 = vmul.f32 %v2550, %v2808
      %v2839 = vmul.f32 %v2754, %v2804
      %v2840 = vmul.f32 %v2755, %v2808
      %v2841 = vmul.f32 %v2756, %v2804
      %v2842 = vmul.f32 %v2757, %v2808
      %v2843 = vmul.f32 %v2553, %v2804
      %v2844 = vmul.f32 %v2554, %v2808
      %v2845 = vmul.f32 %v2758, %v2804
      %v2846 = vmul.f32 %v2759, %v2808
      %v2847 = vmul.f32 %v2760, %v2804
      %v2848 = vmul.f32 %v2761, %v2808
      %v2849 = vmul.f32 %v2557, %v2804
      %v2850 = vmul.f32 %v2558, %v2808
      %v2851 = vmul.f32 %v2762, %v2804
      %v2852 = vmul.f32 %v2763, %v2808
      %v2853 = vmul.f32 %v2764, %v2804
      %v2854 = vmul.f32 %v2765, %v2808
      %v2855 = vmul.f32 %v2561, %v2804
      %v2856 = vmul.f32 %v2562, %v2808
      %v2857 = vmul.f32 %v2766, %v2804
      %v2858 = vmul.f32 %v2767, %v2808
      %v2859 = vmul.f32 %v2768, %v2804
      %v2860 = vmul.f32 %v2769, %v2808
      %v2861 = vmul.f32 %v2565, %v2804
      %v2862 = vmul.f32 %v2566, %v2808
      %v2863 = vmul.f32 %v2770, %v2804
      %v2864 = vmul.f32 %v2771, %v2808
      %v2865 = vmul.f32 %v2772, %v2804
      %v2866 = vmul.f32 %v2773, %v2808
      %v2867 = vmul.f32 %v2569, %v2804
      %v2868 = vmul.f32 %v2570, %v2808
      %v2869 = vmul.f32 %v2774, %v2804
      %v2870 = vmul.f32 %v2775, %v2808
      %v2871 = vmul.f32 %v2776, %v2804
      %v2872 = vmul.f32 %v2777, %v2808
      %v2873 = vmul.f32 %v2573, %v2804
      %v2874 = vmul.f32 %v2574, %v2808
      %v2875 = vmul.f32 %v2778, %v2804
      %v2876 = vmul.f32 %v2779, %v2808
      %v2877 = vmul.f32 %v2780, %v2804
      %v2878 = vmul.f32 %v2781, %v2808
      %v2879 = vmul.f32 %v2577, %v2804
      %v2880 = vmul.f32 %v2578, %v2808
      %v2881 = vmul.f32 %v2782, %v2804
      %v2882 = vmul.f32 %v2783, %v2808
      %v2883 = vmul.f32 %v2784, %v2804
      %v2884 = vmul.f32 %v2785, %v2808
      %v2885 = vmul.f32 %v2581, %v2804
      %v2886 = vmul.f32 %v2582, %v2808
      %v2887 = vmul.f32 %v2786, %v2804
      %v2888 = vmul.f32 %v2787, %v2808
      %v2889 = vmul.f32 %v2788, %v2804
      %v2890 = vmul.f32 %v2789, %v2808
      %v2891 = vmul.f32 %v2585, %v2804
      %v2892 = vmul.f32 %v2586, %v2808
      %v2893 = vmul.f32 %v2790, %v2804
      %v2894 = vmul.f32 %v2791, %v2808
      %v2895 = vmul.f32 %v2792, %v2804
      %v2896 = vmul.f32 %v2793, %v2808
      %v2897 = vmul.f32 %v2589, %v2804
      %v2898 = vmul.f32 %v2590, %v2808
      %v2899 = vmul.f32 %v2794, %v2804
      %v2900 = vmul.f32 %v2795, %v2808
      %v2901 = vmul.f32 %v2796, %v2804
      %v2902 = vmul.f32 %v2797, %v2808
      %v2903 = vmul.f32 %v2593, %v2804
      %v2904 = vmul.f32 %v2594, %v2808
      %v2905 = vmul.f32 %v2798, %v2804
      %v2906 = vmul.f32 %v2799, %v2808
      %v3003 = vrot.slane %v2811, 1
      %v3004 = vrot.slane %v2813, 1
      %v3005 = vsel %vm1682, %v3003, %v3004
      %v3006 = vrot.slane %v2812, 1
      %v3007 = vrot.slane %v2814, 1
      %v3008 = vsel %vm1682, %v3006, %v3007
      %v3009 = vrot.slane %v2815, 1
      %v3010 = vsel %vm1682, %v3004, %v3009
      %v3011 = vrot.slane %v2816, 1
      %v3012 = vsel %vm1682, %v3007, %v3011
      %v3013 = vrot.slane %v2817, 1
      %v3014 = vrot.slane %v2819, 1
      %v3015 = vsel %vm1682, %v3013, %v3014
      %v3016 = vrot.slane %v2818, 1
      %v3017 = vrot.slane %v2820, 1
      %v3018 = vsel %vm1682, %v3016, %v3017
      %v3019 = vrot.slane %v2821, 1
      %v3020 = vsel %vm1682, %v3014, %v3019
      %v3021 = vrot.slane %v2822, 1
      %v3022 = vsel %vm1682, %v3017, %v3021
      %v3023 = vrot.slane %v2823, 1
      %v3024 = vrot.slane %v2825, 1
      %v3025 = vsel %vm1682, %v3023, %v3024
      %v3026 = vrot.slane %v2824, 1
      %v3027 = vrot.slane %v2826, 1
      %v3028 = vsel %vm1682, %v3026, %v3027
      %v3029 = vrot.slane %v2827, 1
      %v3030 = vsel %vm1682, %v3024, %v3029
      %v3031 = vrot.slane %v2828, 1
      %v3032 = vsel %vm1682, %v3027, %v3031
      %v3033 = vrot.slane %v2829, 1
      %v3034 = vrot.slane %v2831, 1
      %v3035 = vsel %vm1682, %v3033, %v3034
      %v3036 = vrot.slane %v2830, 1
      %v3037 = vrot.slane %v2832, 1
      %v3038 = vsel %vm1682, %v3036, %v3037
      %v3039 = vrot.slane %v2833, 1
      %v3040 = vsel %vm1682, %v3034, %v3039
      %v3041 = vrot.slane %v2834, 1
      %v3042 = vsel %vm1682, %v3037, %v3041
      %v3043 = vrot.slane %v2835, 1
      %v3044 = vrot.slane %v2837, 1
      %v3045 = vsel %vm1682, %v3043, %v3044
      %v3046 = vrot.slane %v2836, 1
      %v3047 = vrot.slane %v2838, 1
      %v3048 = vsel %vm1682, %v3046, %v3047
      %v3049 = vrot.slane %v2839, 1
      %v3050 = vsel %vm1682, %v3044, %v3049
      %v3051 = vrot.slane %v2840, 1
      %v3052 = vsel %vm1682, %v3047, %v3051
      %v3053 = vrot.slane %v2841, 1
      %v3054 = vrot.slane %v2843, 1
      %v3055 = vsel %vm1682, %v3053, %v3054
      %v3056 = vrot.slane %v2842, 1
      %v3057 = vrot.slane %v2844, 1
      %v3058 = vsel %vm1682, %v3056, %v3057
      %v3059 = vrot.slane %v2845, 1
      %v3060 = vsel %vm1682, %v3054, %v3059
      %v3061 = vrot.slane %v2846, 1
      %v3062 = vsel %vm1682, %v3057, %v3061
      %v3063 = vrot.slane %v2847, 1
      %v3064 = vrot.slane %v2849, 1
      %v3065 = vsel %vm1682, %v3063, %v3064
      %v3066 = vrot.slane %v2848, 1
      %v3067 = vrot.slane %v2850, 1
      %v3068 = vsel %vm1682, %v3066, %v3067
      %v3069 = vrot.slane %v2851, 1
      %v3070 = vsel %vm1682, %v3064, %v3069
      %v3071 = vrot.slane %v2852, 1
      %v3072 = vsel %vm1682, %v3067, %v3071
      %v3073 = vrot.slane %v2853, 1
      %v3074 = vrot.slane %v2855, 1
      %v3075 = vsel %vm1682, %v3073, %v3074
      %v3076 = vrot.slane %v2854, 1
      %v3077 = vrot.slane %v2856, 1
      %v3078 = vsel %vm1682, %v3076, %v3077
      %v3079 = vrot.slane %v2857, 1
      %v3080 = vsel %vm1682, %v3074, %v3079
      %v3081 = vrot.slane %v2858, 1
      %v3082 = vsel %vm1682, %v3077, %v3081
      %v3083 = vrot.slane %v2859, 1
      %v3084 = vrot.slane %v2861, 1
      %v3085 = vsel %vm1682, %v3083, %v3084
      %v3086 = vrot.slane %v2860, 1
      %v3087 = vrot.slane %v2862, 1
      %v3088 = vsel %vm1682, %v3086, %v3087
      %v3089 = vrot.slane %v2863, 1
      %v3090 = vsel %vm1682, %v3084, %v3089
      %v3091 = vrot.slane %v2864, 1
      %v3092 = vsel %vm1682, %v3087, %v3091
      %v3093 = vrot.slane %v2865, 1
      %v3094 = vrot.slane %v2867, 1
      %v3095 = vsel %vm1682, %v3093, %v3094
      %v3096 = vrot.slane %v2866, 1
      %v3097 = vrot.slane %v2868, 1
      %v3098 = vsel %vm1682, %v3096, %v3097
      %v3099 = vrot.slane %v2869, 1
      %v3100 = vsel %vm1682, %v3094, %v3099
      %v3101 = vrot.slane %v2870, 1
      %v3102 = vsel %vm1682, %v3097, %v3101
      %v3103 = vrot.slane %v2871, 1
      %v3104 = vrot.slane %v2873, 1
      %v3105 = vsel %vm1682, %v3103, %v3104
      %v3106 = vrot.slane %v2872, 1
      %v3107 = vrot.slane %v2874, 1
      %v3108 = vsel %vm1682, %v3106, %v3107
      %v3109 = vrot.slane %v2875, 1
      %v3110 = vsel %vm1682, %v3104, %v3109
      %v3111 = vrot.slane %v2876, 1
      %v3112 = vsel %vm1682, %v3107, %v3111
      %v3113 = vrot.slane %v2877, 1
      %v3114 = vrot.slane %v2879, 1
      %v3115 = vsel %vm1682, %v3113, %v3114
      %v3116 = vrot.slane %v2878, 1
      %v3117 = vrot.slane %v2880, 1
      %v3118 = vsel %vm1682, %v3116, %v3117
      %v3119 = vrot.slane %v2881, 1
      %v3120 = vsel %vm1682, %v3114, %v3119
      %v3121 = vrot.slane %v2882, 1
      %v3122 = vsel %vm1682, %v3117, %v3121
      %v3123 = vrot.slane %v2883, 1
      %v3124 = vrot.slane %v2885, 1
      %v3125 = vsel %vm1682, %v3123, %v3124
      %v3126 = vrot.slane %v2884, 1
      %v3127 = vrot.slane %v2886, 1
      %v3128 = vsel %vm1682, %v3126, %v3127
      %v3129 = vrot.slane %v2887, 1
      %v3130 = vsel %vm1682, %v3124, %v3129
      %v3131 = vrot.slane %v2888, 1
      %v3132 = vsel %vm1682, %v3127, %v3131
      %v3133 = vrot.slane %v2889, 1
      %v3134 = vrot.slane %v2891, 1
      %v3135 = vsel %vm1682, %v3133, %v3134
      %v3136 = vrot.slane %v2890, 1
      %v3137 = vrot.slane %v2892, 1
      %v3138 = vsel %vm1682, %v3136, %v3137
      %v3139 = vrot.slane %v2893, 1
      %v3140 = vsel %vm1682, %v3134, %v3139
      %v3141 = vrot.slane %v2894, 1
      %v3142 = vsel %vm1682, %v3137, %v3141
      %v3143 = vrot.slane %v2895, 1
      %v3144 = vrot.slane %v2897, 1
      %v3145 = vsel %vm1682, %v3143, %v3144
      %v3146 = vrot.slane %v2896, 1
      %v3147 = vrot.slane %v2898, 1
      %v3148 = vsel %vm1682, %v3146, %v3147
      %v3149 = vrot.slane %v2899, 1
      %v3150 = vsel %vm1682, %v3144, %v3149
      %v3151 = vrot.slane %v2900, 1
      %v3152 = vsel %vm1682, %v3147, %v3151
      %v3153 = vrot.slane %v2901, 1
      %v3154 = vrot.slane %v2903, 1
      %v3155 = vsel %vm1682, %v3153, %v3154
      %v3156 = vrot.slane %v2902, 1
      %v3157 = vrot.slane %v2904, 1
      %v3158 = vsel %vm1682, %v3156, %v3157
      %v3159 = vrot.slane %v2905, 1
      %v3160 = vsel %vm1682, %v3154, %v3159
      %v3161 = vrot.slane %v2906, 1
      %v3162 = vsel %vm1682, %v3157, %v3161
      %v3227 = vadd.f32 %v2670, %v3005
      %v3228 = vadd.f32 %v2671, %v3008
      %v3229 = vadd.f32 %v2672, %v3010
      %v3230 = vadd.f32 %v2673, %v3012
      %v3231 = vadd.f32 %v2674, %v3015
      %v3232 = vadd.f32 %v2675, %v3018
      %v3233 = vadd.f32 %v2676, %v3020
      %v3234 = vadd.f32 %v2677, %v3022
      %v3235 = vadd.f32 %v2678, %v3025
      %v3236 = vadd.f32 %v2679, %v3028
      %v3237 = vadd.f32 %v2680, %v3030
      %v3238 = vadd.f32 %v2681, %v3032
      %v3239 = vadd.f32 %v2682, %v3035
      %v3240 = vadd.f32 %v2683, %v3038
      %v3241 = vadd.f32 %v2684, %v3040
      %v3242 = vadd.f32 %v2685, %v3042
      %v3243 = vadd.f32 %v2686, %v3045
      %v3244 = vadd.f32 %v2687, %v3048
      %v3245 = vadd.f32 %v2688, %v3050
      %v3246 = vadd.f32 %v2689, %v3052
      %v3247 = vadd.f32 %v2690, %v3055
      %v3248 = vadd.f32 %v2691, %v3058
      %v3249 = vadd.f32 %v2692, %v3060
      %v3250 = vadd.f32 %v2693, %v3062
      %v3251 = vadd.f32 %v2694, %v3065
      %v3252 = vadd.f32 %v2695, %v3068
      %v3253 = vadd.f32 %v2696, %v3070
      %v3254 = vadd.f32 %v2697, %v3072
      %v3255 = vadd.f32 %v2698, %v3075
      %v3256 = vadd.f32 %v2699, %v3078
      %v3257 = vadd.f32 %v2700, %v3080
      %v3258 = vadd.f32 %v2701, %v3082
      %v3259 = vadd.f32 %v2702, %v3085
      %v3260 = vadd.f32 %v2703, %v3088
      %v3261 = vadd.f32 %v2704, %v3090
      %v3262 = vadd.f32 %v2705, %v3092
      %v3263 = vadd.f32 %v2706, %v3095
      %v3264 = vadd.f32 %v2707, %v3098
      %v3265 = vadd.f32 %v2708, %v3100
      %v3266 = vadd.f32 %v2709, %v3102
      %v3267 = vadd.f32 %v2710, %v3105
      %v3268 = vadd.f32 %v2711, %v3108
      %v3269 = vadd.f32 %v2712, %v3110
      %v3270 = vadd.f32 %v2713, %v3112
      %v3271 = vadd.f32 %v2714, %v3115
      %v3272 = vadd.f32 %v2715, %v3118
      %v3273 = vadd.f32 %v2716, %v3120
      %v3274 = vadd.f32 %v2717, %v3122
      %v3275 = vadd.f32 %v2718, %v3125
      %v3276 = vadd.f32 %v2719, %v3128
      %v3277 = vadd.f32 %v2720, %v3130
      %v3278 = vadd.f32 %v2721, %v3132
      %v3279 = vadd.f32 %v2722, %v3135
      %v3280 = vadd.f32 %v2723, %v3138
      %v3281 = vadd.f32 %v2724, %v3140
      %v3282 = vadd.f32 %v2725, %v3142
      %v3283 = vadd.f32 %v2726, %v3145
      %v3284 = vadd.f32 %v2727, %v3148
      %v3285 = vadd.f32 %v2728, %v3150
      %v3286 = vadd.f32 %v2729, %v3152
      %v3287 = vadd.f32 %v2730, %v3155
      %v3288 = vadd.f32 %v2731, %v3158
      %v3289 = vadd.f32 %v2732, %v3160
      %v3290 = vadd.f32 %v2733, %v3162
      %s3291 = scalar_lea.vmem %s2529, 2
      %v3292 = vld [vmem:[%s3291] ss:$4 sm:$0x3]
      %v3293 = vld [vmem:[%s1112] sm:$0xfc]
      %v3294 = vld [vmem:[%s1112 + $0x8] sm:$0xfc]
      %v3295 = vld [vmem:[%s1112 + $0x20] sm:$0x3]
      %v3296 = vld [vmem:[%s1112 + $0x28] sm:$0x3]
      %v3297 = vld [vmem:[%s1112 + $0x30] sm:$0xfc]
      %v3298 = vld [vmem:[%s1112 + $0x38] sm:$0xfc]
      %v3299 = vld [vmem:[%s1112 + $0x50] sm:$0x3]
      %v3300 = vld [vmem:[%s1112 + $0x58] sm:$0x3]
      %v3301 = vld [vmem:[%s1112 + $0x60] sm:$0xfc]
      %v3302 = vld [vmem:[%s1112 + $0x68] sm:$0xfc]
      %v3303 = vld [vmem:[%s1112 + $0x80] sm:$0x3]
      %v3304 = vld [vmem:[%s1112 + $0x88] sm:$0x3]
      %v3305 = vld [vmem:[%s1112 + $0x90] sm:$0xfc]
      %v3306 = vld [vmem:[%s1112 + $0x98] sm:$0xfc]
      %v3307 = vld [vmem:[%s1112 + $0xb0] sm:$0x3]
      %v3308 = vld [vmem:[%s1112 + $0xb8] sm:$0x3]
      %v3309 = vld [vmem:[%s1112 + $0xc0] sm:$0xfc]
      %v3310 = vld [vmem:[%s1112 + $0xc8] sm:$0xfc]
      %v3311 = vld [vmem:[%s1112 + $0xe0] sm:$0x3]
      %v3312 = vld [vmem:[%s1112 + $0xe8] sm:$0x3]
      %v3313 = vld [vmem:[%s1112 + $0xf0] sm:$0xfc]
      %v3314 = vld [vmem:[%s1112 + $0xf8] sm:$0xfc]
      %v3315 = vld [vmem:[%s1112 + $0x110] sm:$0x3]
      %v3316 = vld [vmem:[%s1112 + $0x118] sm:$0x3]
      %v3317 = vld [vmem:[%s1112 + $0x120] sm:$0xfc]
      %v3318 = vld [vmem:[%s1112 + $0x128] sm:$0xfc]
      %v3319 = vld [vmem:[%s1112 + $0x140] sm:$0x3]
      %v3320 = vld [vmem:[%s1112 + $0x148] sm:$0x3]
      %v3321 = vld [vmem:[%s1112 + $0x150] sm:$0xfc]
      %v3322 = vld [vmem:[%s1112 + $0x158] sm:$0xfc]
      %v3323 = vld [vmem:[%s1112 + $0x170] sm:$0x3]
      %v3324 = vld [vmem:[%s1112 + $0x178] sm:$0x3]
      %v3325 = vld [vmem:[%s1112 + $0x180] sm:$0xfc]
      %v3326 = vld [vmem:[%s1112 + $0x188] sm:$0xfc]
      %v3327 = vld [vmem:[%s1112 + $0x1a0] sm:$0x3]
      %v3328 = vld [vmem:[%s1112 + $0x1a8] sm:$0x3]
      %v3329 = vld [vmem:[%s1112 + $0x1b0] sm:$0xfc]
      %v3330 = vld [vmem:[%s1112 + $0x1b8] sm:$0xfc]
      %v3331 = vld [vmem:[%s1112 + $0x1d0] sm:$0x3]
      %v3332 = vld [vmem:[%s1112 + $0x1d8] sm:$0x3]
      %v3333 = vld [vmem:[%s1112 + $0x1e0] sm:$0xfc]
      %v3334 = vld [vmem:[%s1112 + $0x1e8] sm:$0xfc]
      %v3335 = vld [vmem:[%s1112 + $0x200] sm:$0x3]
      %v3336 = vld [vmem:[%s1112 + $0x208] sm:$0x3]
      %v3337 = vld [vmem:[%s1112 + $0x210] sm:$0xfc]
      %v3338 = vld [vmem:[%s1112 + $0x218] sm:$0xfc]
      %v3339 = vld [vmem:[%s1112 + $0x230] sm:$0x3]
      %v3340 = vld [vmem:[%s1112 + $0x238] sm:$0x3]
      %v3341 = vld [vmem:[%s1112 + $0x240] sm:$0xfc]
      %v3342 = vld [vmem:[%s1112 + $0x248] sm:$0xfc]
      %v3343 = vld [vmem:[%s1112 + $0x260] sm:$0x3]
      %v3344 = vld [vmem:[%s1112 + $0x268] sm:$0x3]
      %v3345 = vld [vmem:[%s1112 + $0x270] sm:$0xfc]
      %v3346 = vld [vmem:[%s1112 + $0x278] sm:$0xfc]
      %v3347 = vld [vmem:[%s1112 + $0x290] sm:$0x3]
      %v3348 = vld [vmem:[%s1112 + $0x298] sm:$0x3]
      %v3349 = vld [vmem:[%s1112 + $0x2a0] sm:$0xfc]
      %v3350 = vld [vmem:[%s1112 + $0x2a8] sm:$0xfc]
      %v3351 = vld [vmem:[%s1112 + $0x2c0] sm:$0x3]
      %v3352 = vld [vmem:[%s1112 + $0x2c8] sm:$0x3]
      %v3353 = vld [vmem:[%s1112 + $0x2d0] sm:$0xfc]
      %v3354 = vld [vmem:[%s1112 + $0x2d8] sm:$0xfc]
      %v3355 = vld [vmem:[%s1112 + $0x2f0] sm:$0x3]
      %v3356 = vld [vmem:[%s1112 + $0x2f8] sm:$0x3]
      %v3358 = vlaneseq
      %v3359 = vshrl.u32 %v3358, 7
      %v3360 = vsub.s32 0, %v3359
      %v3361 = vrot.slane %v3292, %v3360
      %v3362 = vlaneseq
      %v3363 = vshrl.u32 %v3362, 7
      %v3364 = vsub.s32 1, %v3363
      %v3365 = vrot.slane %v3292, %v3364
      %v3368 = vmul.f32 %v3293, %v3361
      %v3369 = vmul.f32 %v3294, %v3365
      %v3370 = vmul.f32 %v2533, %v3361
      %v3371 = vmul.f32 %v2534, %v3365
      %v3372 = vmul.f32 %v3295, %v3361
      %v3373 = vmul.f32 %v3296, %v3365
      %v3374 = vmul.f32 %v3297, %v3361
      %v3375 = vmul.f32 %v3298, %v3365
      %v3376 = vmul.f32 %v2537, %v3361
      %v3377 = vmul.f32 %v2538, %v3365
      %v3378 = vmul.f32 %v3299, %v3361
      %v3379 = vmul.f32 %v3300, %v3365
      %v3380 = vmul.f32 %v3301, %v3361
      %v3381 = vmul.f32 %v3302, %v3365
      %v3382 = vmul.f32 %v2541, %v3361
      %v3383 = vmul.f32 %v2542, %v3365
      %v3384 = vmul.f32 %v3303, %v3361
      %v3385 = vmul.f32 %v3304, %v3365
      %v3386 = vmul.f32 %v3305, %v3361
      %v3387 = vmul.f32 %v3306, %v3365
      %v3388 = vmul.f32 %v2545, %v3361
      %v3389 = vmul.f32 %v2546, %v3365
      %v3390 = vmul.f32 %v3307, %v3361
      %v3391 = vmul.f32 %v3308, %v3365
      %v3392 = vmul.f32 %v3309, %v3361
      %v3393 = vmul.f32 %v3310, %v3365
      %v3394 = vmul.f32 %v2549, %v3361
      %v3395 = vmul.f32 %v2550, %v3365
      %v3396 = vmul.f32 %v3311, %v3361
      %v3397 = vmul.f32 %v3312, %v3365
      %v3398 = vmul.f32 %v3313, %v3361
      %v3399 = vmul.f32 %v3314, %v3365
      %v3400 = vmul.f32 %v2553, %v3361
      %v3401 = vmul.f32 %v2554, %v3365
      %v3402 = vmul.f32 %v3315, %v3361
      %v3403 = vmul.f32 %v3316, %v3365
      %v3404 = vmul.f32 %v3317, %v3361
      %v3405 = vmul.f32 %v3318, %v3365
      %v3406 = vmul.f32 %v2557, %v3361
      %v3407 = vmul.f32 %v2558, %v3365
      %v3408 = vmul.f32 %v3319, %v3361
      %v3409 = vmul.f32 %v3320, %v3365
      %v3410 = vmul.f32 %v3321, %v3361
      %v3411 = vmul.f32 %v3322, %v3365
      %v3412 = vmul.f32 %v2561, %v3361
      %v3413 = vmul.f32 %v2562, %v3365
      %v3414 = vmul.f32 %v3323, %v3361
      %v3415 = vmul.f32 %v3324, %v3365
      %v3416 = vmul.f32 %v3325, %v3361
      %v3417 = vmul.f32 %v3326, %v3365
      %v3418 = vmul.f32 %v2565, %v3361
      %v3419 = vmul.f32 %v2566, %v3365
      %v3420 = vmul.f32 %v3327, %v3361
      %v3421 = vmul.f32 %v3328, %v3365
      %v3422 = vmul.f32 %v3329, %v3361
      %v3423 = vmul.f32 %v3330, %v3365
      %v3424 = vmul.f32 %v2569, %v3361
      %v3425 = vmul.f32 %v2570, %v3365
      %v3426 = vmul.f32 %v3331, %v3361
      %v3427 = vmul.f32 %v3332, %v3365
      %v3428 = vmul.f32 %v3333, %v3361
      %v3429 = vmul.f32 %v3334, %v3365
      %v3430 = vmul.f32 %v2573, %v3361
      %v3431 = vmul.f32 %v2574, %v3365
      %v3432 = vmul.f32 %v3335, %v3361
      %v3433 = vmul.f32 %v3336, %v3365
      %v3434 = vmul.f32 %v3337, %v3361
      %v3435 = vmul.f32 %v3338, %v3365
      %v3436 = vmul.f32 %v2577, %v3361
      %v3437 = vmul.f32 %v2578, %v3365
      %v3438 = vmul.f32 %v3339, %v3361
      %v3439 = vmul.f32 %v3340, %v3365
      %v3440 = vmul.f32 %v3341, %v3361
      %v3441 = vmul.f32 %v3342, %v3365
      %v3442 = vmul.f32 %v2581, %v3361
      %v3443 = vmul.f32 %v2582, %v3365
      %v3444 = vmul.f32 %v3343, %v3361
      %v3445 = vmul.f32 %v3344, %v3365
      %v3446 = vmul.f32 %v3345, %v3361
      %v3447 = vmul.f32 %v3346, %v3365
      %v3448 = vmul.f32 %v2585, %v3361
      %v3449 = vmul.f32 %v2586, %v3365
      %v3450 = vmul.f32 %v3347, %v3361
      %v3451 = vmul.f32 %v3348, %v3365
      %v3452 = vmul.f32 %v3349, %v3361
      %v3453 = vmul.f32 %v3350, %v3365
      %v3454 = vmul.f32 %v2589, %v3361
      %v3455 = vmul.f32 %v2590, %v3365
      %v3456 = vmul.f32 %v3351, %v3361
      %v3457 = vmul.f32 %v3352, %v3365
      %v3458 = vmul.f32 %v3353, %v3361
      %v3459 = vmul.f32 %v3354, %v3365
      %v3460 = vmul.f32 %v2593, %v3361
      %v3461 = vmul.f32 %v2594, %v3365
      %v3462 = vmul.f32 %v3355, %v3361
      %v3463 = vmul.f32 %v3356, %v3365
      %v3560 = vrot.slane %v3368, 2
      %v3561 = vrot.slane %v3370, 2
      %v3562 = vsel %vm2240, %v3560, %v3561
      %v3563 = vrot.slane %v3369, 2
      %v3564 = vrot.slane %v3371, 2
      %v3565 = vsel %vm2240, %v3563, %v3564
      %v3566 = vrot.slane %v3372, 2
      %v3567 = vsel %vm2240, %v3561, %v3566
      %v3568 = vrot.slane %v3373, 2
      %v3569 = vsel %vm2240, %v3564, %v3568
      %v3570 = vrot.slane %v3374, 2
      %v3571 = vrot.slane %v3376, 2
      %v3572 = vsel %vm2240, %v3570, %v3571
      %v3573 = vrot.slane %v3375, 2
      %v3574 = vrot.slane %v3377, 2
      %v3575 = vsel %vm2240, %v3573, %v3574
      %v3576 = vrot.slane %v3378, 2
      %v3577 = vsel %vm2240, %v3571, %v3576
      %v3578 = vrot.slane %v3379, 2
      %v3579 = vsel %vm2240, %v3574, %v3578
      %v3580 = vrot.slane %v3380, 2
      %v3581 = vrot.slane %v3382, 2
      %v3582 = vsel %vm2240, %v3580, %v3581
      %v3583 = vrot.slane %v3381, 2
      %v3584 = vrot.slane %v3383, 2
      %v3585 = vsel %vm2240, %v3583, %v3584
      %v3586 = vrot.slane %v3384, 2
      %v3587 = vsel %vm2240, %v3581, %v3586
      %v3588 = vrot.slane %v3385, 2
      %v3589 = vsel %vm2240, %v3584, %v3588
      %v3590 = vrot.slane %v3386, 2
      %v3591 = vrot.slane %v3388, 2
      %v3592 = vsel %vm2240, %v3590, %v3591
      %v3593 = vrot.slane %v3387, 2
      %v3594 = vrot.slane %v3389, 2
      %v3595 = vsel %vm2240, %v3593, %v3594
      %v3596 = vrot.slane %v3390, 2
      %v3597 = vsel %vm2240, %v3591, %v3596
      %v3598 = vrot.slane %v3391, 2
      %v3599 = vsel %vm2240, %v3594, %v3598
      %v3600 = vrot.slane %v3392, 2
      %v3601 = vrot.slane %v3394, 2
      %v3602 = vsel %vm2240, %v3600, %v3601
      %v3603 = vrot.slane %v3393, 2
      %v3604 = vrot.slane %v3395, 2
      %v3605 = vsel %vm2240, %v3603, %v3604
      %v3606 = vrot.slane %v3396, 2
      %v3607 = vsel %vm2240, %v3601, %v3606
      %v3608 = vrot.slane %v3397, 2
      %v3609 = vsel %vm2240, %v3604, %v3608
      %v3610 = vrot.slane %v3398, 2
      %v3611 = vrot.slane %v3400, 2
      %v3612 = vsel %vm2240, %v3610, %v3611
      %v3613 = vrot.slane %v3399, 2
      %v3614 = vrot.slane %v3401, 2
      %v3615 = vsel %vm2240, %v3613, %v3614
      %v3616 = vrot.slane %v3402, 2
      %v3617 = vsel %vm2240, %v3611, %v3616
      %v3618 = vrot.slane %v3403, 2
      %v3619 = vsel %vm2240, %v3614, %v3618
      %v3620 = vrot.slane %v3404, 2
      %v3621 = vrot.slane %v3406, 2
      %v3622 = vsel %vm2240, %v3620, %v3621
      %v3623 = vrot.slane %v3405, 2
      %v3624 = vrot.slane %v3407, 2
      %v3625 = vsel %vm2240, %v3623, %v3624
      %v3626 = vrot.slane %v3408, 2
      %v3627 = vsel %vm2240, %v3621, %v3626
      %v3628 = vrot.slane %v3409, 2
      %v3629 = vsel %vm2240, %v3624, %v3628
      %v3630 = vrot.slane %v3410, 2
      %v3631 = vrot.slane %v3412, 2
      %v3632 = vsel %vm2240, %v3630, %v3631
      %v3633 = vrot.slane %v3411, 2
      %v3634 = vrot.slane %v3413, 2
      %v3635 = vsel %vm2240, %v3633, %v3634
      %v3636 = vrot.slane %v3414, 2
      %v3637 = vsel %vm2240, %v3631, %v3636
      %v3638 = vrot.slane %v3415, 2
      %v3639 = vsel %vm2240, %v3634, %v3638
      %v3640 = vrot.slane %v3416, 2
      %v3641 = vrot.slane %v3418, 2
      %v3642 = vsel %vm2240, %v3640, %v3641
      %v3643 = vrot.slane %v3417, 2
      %v3644 = vrot.slane %v3419, 2
      %v3645 = vsel %vm2240, %v3643, %v3644
      %v3646 = vrot.slane %v3420, 2
      %v3647 = vsel %vm2240, %v3641, %v3646
      %v3648 = vrot.slane %v3421, 2
      %v3649 = vsel %vm2240, %v3644, %v3648
      %v3650 = vrot.slane %v3422, 2
      %v3651 = vrot.slane %v3424, 2
      %v3652 = vsel %vm2240, %v3650, %v3651
      %v3653 = vrot.slane %v3423, 2
      %v3654 = vrot.slane %v3425, 2
      %v3655 = vsel %vm2240, %v3653, %v3654
      %v3656 = vrot.slane %v3426, 2
      %v3657 = vsel %vm2240, %v3651, %v3656
      %v3658 = vrot.slane %v3427, 2
      %v3659 = vsel %vm2240, %v3654, %v3658
      %v3660 = vrot.slane %v3428, 2
      %v3661 = vrot.slane %v3430, 2
      %v3662 = vsel %vm2240, %v3660, %v3661
      %v3663 = vrot.slane %v3429, 2
      %v3664 = vrot.slane %v3431, 2
      %v3665 = vsel %vm2240, %v3663, %v3664
      %v3666 = vrot.slane %v3432, 2
      %v3667 = vsel %vm2240, %v3661, %v3666
      %v3668 = vrot.slane %v3433, 2
      %v3669 = vsel %vm2240, %v3664, %v3668
      %v3670 = vrot.slane %v3434, 2
      %v3671 = vrot.slane %v3436, 2
      %v3672 = vsel %vm2240, %v3670, %v3671
      %v3673 = vrot.slane %v3435, 2
      %v3674 = vrot.slane %v3437, 2
      %v3675 = vsel %vm2240, %v3673, %v3674
      %v3676 = vrot.slane %v3438, 2
      %v3677 = vsel %vm2240, %v3671, %v3676
      %v3678 = vrot.slane %v3439, 2
      %v3679 = vsel %vm2240, %v3674, %v3678
      %v3680 = vrot.slane %v3440, 2
      %v3681 = vrot.slane %v3442, 2
      %v3682 = vsel %vm2240, %v3680, %v3681
      %v3683 = vrot.slane %v3441, 2
      %v3684 = vrot.slane %v3443, 2
      %v3685 = vsel %vm2240, %v3683, %v3684
      %v3686 = vrot.slane %v3444, 2
      %v3687 = vsel %vm2240, %v3681, %v3686
      %v3688 = vrot.slane %v3445, 2
      %v3689 = vsel %vm2240, %v3684, %v3688
      %v3690 = vrot.slane %v3446, 2
      %v3691 = vrot.slane %v3448, 2
      %v3692 = vsel %vm2240, %v3690, %v3691
      %v3693 = vrot.slane %v3447, 2
      %v3694 = vrot.slane %v3449, 2
      %v3695 = vsel %vm2240, %v3693, %v3694
      %v3696 = vrot.slane %v3450, 2
      %v3697 = vsel %vm2240, %v3691, %v3696
      %v3698 = vrot.slane %v3451, 2
      %v3699 = vsel %vm2240, %v3694, %v3698
      %v3700 = vrot.slane %v3452, 2
      %v3701 = vrot.slane %v3454, 2
      %v3702 = vsel %vm2240, %v3700, %v3701
      %v3703 = vrot.slane %v3453, 2
      %v3704 = vrot.slane %v3455, 2
      %v3705 = vsel %vm2240, %v3703, %v3704
      %v3706 = vrot.slane %v3456, 2
      %v3707 = vsel %vm2240, %v3701, %v3706
      %v3708 = vrot.slane %v3457, 2
      %v3709 = vsel %vm2240, %v3704, %v3708
      %v3710 = vrot.slane %v3458, 2
      %v3711 = vrot.slane %v3460, 2
      %v3712 = vsel %vm2240, %v3710, %v3711
      %v3713 = vrot.slane %v3459, 2
      %v3714 = vrot.slane %v3461, 2
      %v3715 = vsel %vm2240, %v3713, %v3714
      %v3716 = vrot.slane %v3462, 2
      %v3717 = vsel %vm2240, %v3711, %v3716
      %v3718 = vrot.slane %v3463, 2
      %v3719 = vsel %vm2240, %v3714, %v3718
      %v3784 = vadd.f32 %v3227, %v3562
      %v3785 = vadd.f32 %v3228, %v3565
      %v3786 = vadd.f32 %v3229, %v3567
      %v3787 = vadd.f32 %v3230, %v3569
      %v3788 = vadd.f32 %v3231, %v3572
      %v3789 = vadd.f32 %v3232, %v3575
      %v3790 = vadd.f32 %v3233, %v3577
      %v3791 = vadd.f32 %v3234, %v3579
      %v3792 = vadd.f32 %v3235, %v3582
      %v3793 = vadd.f32 %v3236, %v3585
      %v3794 = vadd.f32 %v3237, %v3587
      %v3795 = vadd.f32 %v3238, %v3589
      %v3796 = vadd.f32 %v3239, %v3592
      %v3797 = vadd.f32 %v3240, %v3595
      %v3798 = vadd.f32 %v3241, %v3597
      %v3799 = vadd.f32 %v3242, %v3599
      %v3800 = vadd.f32 %v3243, %v3602
      %v3801 = vadd.f32 %v3244, %v3605
      %v3802 = vadd.f32 %v3245, %v3607
      %v3803 = vadd.f32 %v3246, %v3609
      %v3804 = vadd.f32 %v3247, %v3612
      %v3805 = vadd.f32 %v3248, %v3615
      %v3806 = vadd.f32 %v3249, %v3617
      %v3807 = vadd.f32 %v3250, %v3619
      %v3808 = vadd.f32 %v3251, %v3622
      %v3809 = vadd.f32 %v3252, %v3625
      %v3810 = vadd.f32 %v3253, %v3627
      %v3811 = vadd.f32 %v3254, %v3629
      %v3812 = vadd.f32 %v3255, %v3632
      %v3813 = vadd.f32 %v3256, %v3635
      %v3814 = vadd.f32 %v3257, %v3637
      %v3815 = vadd.f32 %v3258, %v3639
      %v3816 = vadd.f32 %v3259, %v3642
      %v3817 = vadd.f32 %v3260, %v3645
      %v3818 = vadd.f32 %v3261, %v3647
      %v3819 = vadd.f32 %v3262, %v3649
      %v3820 = vadd.f32 %v3263, %v3652
      %v3821 = vadd.f32 %v3264, %v3655
      %v3822 = vadd.f32 %v3265, %v3657
      %v3823 = vadd.f32 %v3266, %v3659
      %v3824 = vadd.f32 %v3267, %v3662
      %v3825 = vadd.f32 %v3268, %v3665
      %v3826 = vadd.f32 %v3269, %v3667
      %v3827 = vadd.f32 %v3270, %v3669
      %v3828 = vadd.f32 %v3271, %v3672
      %v3829 = vadd.f32 %v3272, %v3675
      %v3830 = vadd.f32 %v3273, %v3677
      %v3831 = vadd.f32 %v3274, %v3679
      %v3832 = vadd.f32 %v3275, %v3682
      %v3833 = vadd.f32 %v3276, %v3685
      %v3834 = vadd.f32 %v3277, %v3687
      %v3835 = vadd.f32 %v3278, %v3689
      %v3836 = vadd.f32 %v3279, %v3692
      %v3837 = vadd.f32 %v3280, %v3695
      %v3838 = vadd.f32 %v3281, %v3697
      %v3839 = vadd.f32 %v3282, %v3699
      %v3840 = vadd.f32 %v3283, %v3702
      %v3841 = vadd.f32 %v3284, %v3705
      %v3842 = vadd.f32 %v3285, %v3707
      %v3843 = vadd.f32 %v3286, %v3709
      %v3844 = vadd.f32 %v3287, %v3712
      %v3845 = vadd.f32 %v3288, %v3715
      %v3846 = vadd.f32 %v3289, %v3717
      %v3847 = vadd.f32 %v3290, %v3719
      %s3848 = scalar_lea.vmem %s3, 16
      %v3849 = vld [vmem:[%s3848] ss:$4 sm:$0x3]
      %s3850 = scalar_lea.vmem [#allocation2], 96
      %v3851 = vld [vmem:[%s3850] sm:$0xff]
      %v3852 = vld [vmem:[%s3850 + $0x8] sm:$0xff]
      %v3853 = vld [vmem:[%s3850 + $0x10] sm:$0xff]
      %v3854 = vld [vmem:[%s3850 + $0x18] sm:$0xff]
      %v3855 = vld [vmem:[%s3850 + $0x30] sm:$0xff]
      %v3856 = vld [vmem:[%s3850 + $0x38] sm:$0xff]
      %v3857 = vld [vmem:[%s3850 + $0x40] sm:$0xff]
      %v3858 = vld [vmem:[%s3850 + $0x48] sm:$0xff]
      %v3859 = vld [vmem:[%s3850 + $0x60] sm:$0xff]
      %v3860 = vld [vmem:[%s3850 + $0x68] sm:$0xff]
      %v3861 = vld [vmem:[%s3850 + $0x70] sm:$0xff]
      %v3862 = vld [vmem:[%s3850 + $0x78] sm:$0xff]
      %v3863 = vld [vmem:[%s3850 + $0x90] sm:$0xff]
      %v3864 = vld [vmem:[%s3850 + $0x98] sm:$0xff]
      %v3865 = vld [vmem:[%s3850 + $0xa0] sm:$0xff]
      %v3866 = vld [vmem:[%s3850 + $0xa8] sm:$0xff]
      %v3867 = vld [vmem:[%s3850 + $0xc0] sm:$0xff]
      %v3868 = vld [vmem:[%s3850 + $0xc8] sm:$0xff]
      %v3869 = vld [vmem:[%s3850 + $0xd0] sm:$0xff]
      %v3870 = vld [vmem:[%s3850 + $0xd8] sm:$0xff]
      %v3871 = vld [vmem:[%s3850 + $0xf0] sm:$0xff]
      %v3872 = vld [vmem:[%s3850 + $0xf8] sm:$0xff]
      %v3873 = vld [vmem:[%s3850 + $0x100] sm:$0xff]
      %v3874 = vld [vmem:[%s3850 + $0x108] sm:$0xff]
      %v3875 = vld [vmem:[%s3850 + $0x120] sm:$0xff]
      %v3876 = vld [vmem:[%s3850 + $0x128] sm:$0xff]
      %v3877 = vld [vmem:[%s3850 + $0x130] sm:$0xff]
      %v3878 = vld [vmem:[%s3850 + $0x138] sm:$0xff]
      %v3879 = vld [vmem:[%s3850 + $0x150] sm:$0xff]
      %v3880 = vld [vmem:[%s3850 + $0x158] sm:$0xff]
      %v3881 = vld [vmem:[%s3850 + $0x160] sm:$0xff]
      %v3882 = vld [vmem:[%s3850 + $0x168] sm:$0xff]
      %v3883 = vld [vmem:[%s3850 + $0x180] sm:$0xff]
      %v3884 = vld [vmem:[%s3850 + $0x188] sm:$0xff]
      %v3885 = vld [vmem:[%s3850 + $0x190] sm:$0xff]
      %v3886 = vld [vmem:[%s3850 + $0x198] sm:$0xff]
      %v3887 = vld [vmem:[%s3850 + $0x1b0] sm:$0xff]
      %v3888 = vld [vmem:[%s3850 + $0x1b8] sm:$0xff]
      %v3889 = vld [vmem:[%s3850 + $0x1c0] sm:$0xff]
      %v3890 = vld [vmem:[%s3850 + $0x1c8] sm:$0xff]
      %v3891 = vld [vmem:[%s3850 + $0x1e0] sm:$0xff]
      %v3892 = vld [vmem:[%s3850 + $0x1e8] sm:$0xff]
      %v3893 = vld [vmem:[%s3850 + $0x1f0] sm:$0xff]
      %v3894 = vld [vmem:[%s3850 + $0x1f8] sm:$0xff]
      %v3895 = vld [vmem:[%s3850 + $0x210] sm:$0xff]
      %v3896 = vld [vmem:[%s3850 + $0x218] sm:$0xff]
      %v3897 = vld [vmem:[%s3850 + $0x220] sm:$0xff]
      %v3898 = vld [vmem:[%s3850 + $0x228] sm:$0xff]
      %v3899 = vld [vmem:[%s3850 + $0x240] sm:$0xff]
      %v3900 = vld [vmem:[%s3850 + $0x248] sm:$0xff]
      %v3901 = vld [vmem:[%s3850 + $0x250] sm:$0xff]
      %v3902 = vld [vmem:[%s3850 + $0x258] sm:$0xff]
      %v3903 = vld [vmem:[%s3850 + $0x270] sm:$0xff]
      %v3904 = vld [vmem:[%s3850 + $0x278] sm:$0xff]
      %v3905 = vld [vmem:[%s3850 + $0x280] sm:$0xff]
      %v3906 = vld [vmem:[%s3850 + $0x288] sm:$0xff]
      %v3907 = vld [vmem:[%s3850 + $0x2a0] sm:$0xff]
      %v3908 = vld [vmem:[%s3850 + $0x2a8] sm:$0xff]
      %v3909 = vld [vmem:[%s3850 + $0x2b0] sm:$0xff]
      %v3910 = vld [vmem:[%s3850 + $0x2b8] sm:$0xff]
      %v3911 = vld [vmem:[%s3850 + $0x2d0] sm:$0xff]
      %v3912 = vld [vmem:[%s3850 + $0x2d8] sm:$0xff]
      %v3913 = vld [vmem:[%s3850 + $0x2e0] sm:$0xff]
      %v3914 = vld [vmem:[%s3850 + $0x2e8] sm:$0xff]
      %v3916 = vlaneseq
      %v3917 = vshrl.u32 %v3916, 7
      %v3918 = vsub.s32 0, %v3917
      %v3919 = vrot.slane %v3849, %v3918
      %v3920 = vlaneseq
      %v3921 = vshrl.u32 %v3920, 7
      %v3922 = vsub.s32 1, %v3921
      %v3923 = vrot.slane %v3849, %v3922
      %v3926 = vmul.f32 %v3851, %v3919
      %v3927 = vmul.f32 %v3852, %v3923
      %v3928 = vmul.f32 %v3853, %v3919
      %v3929 = vmul.f32 %v3854, %v3923
      %v3930 = vmul.f32 %v3855, %v3919
      %v3931 = vmul.f32 %v3856, %v3923
      %v3932 = vmul.f32 %v3857, %v3919
      %v3933 = vmul.f32 %v3858, %v3923
      %v3934 = vmul.f32 %v3859, %v3919
      %v3935 = vmul.f32 %v3860, %v3923
      %v3936 = vmul.f32 %v3861, %v3919
      %v3937 = vmul.f32 %v3862, %v3923
      %v3938 = vmul.f32 %v3863, %v3919
      %v3939 = vmul.f32 %v3864, %v3923
      %v3940 = vmul.f32 %v3865, %v3919
      %v3941 = vmul.f32 %v3866, %v3923
      %v3942 = vmul.f32 %v3867, %v3919
      %v3943 = vmul.f32 %v3868, %v3923
      %v3944 = vmul.f32 %v3869, %v3919
      %v3945 = vmul.f32 %v3870, %v3923
      %v3946 = vmul.f32 %v3871, %v3919
      %v3947 = vmul.f32 %v3872, %v3923
      %v3948 = vmul.f32 %v3873, %v3919
      %v3949 = vmul.f32 %v3874, %v3923
      %v3950 = vmul.f32 %v3875, %v3919
      %v3951 = vmul.f32 %v3876, %v3923
      %v3952 = vmul.f32 %v3877, %v3919
      %v3953 = vmul.f32 %v3878, %v3923
      %v3954 = vmul.f32 %v3879, %v3919
      %v3955 = vmul.f32 %v3880, %v3923
      %v3956 = vmul.f32 %v3881, %v3919
      %v3957 = vmul.f32 %v3882, %v3923
      %v3958 = vmul.f32 %v3883, %v3919
      %v3959 = vmul.f32 %v3884, %v3923
      %v3960 = vmul.f32 %v3885, %v3919
      %v3961 = vmul.f32 %v3886, %v3923
      %v3962 = vmul.f32 %v3887, %v3919
      %v3963 = vmul.f32 %v3888, %v3923
      %v3964 = vmul.f32 %v3889, %v3919
      %v3965 = vmul.f32 %v3890, %v3923
      %v3966 = vmul.f32 %v3891, %v3919
      %v3967 = vmul.f32 %v3892, %v3923
      %v3968 = vmul.f32 %v3893, %v3919
      %v3969 = vmul.f32 %v3894, %v3923
      %v3970 = vmul.f32 %v3895, %v3919
      %v3971 = vmul.f32 %v3896, %v3923
      %v3972 = vmul.f32 %v3897, %v3919
      %v3973 = vmul.f32 %v3898, %v3923
      %v3974 = vmul.f32 %v3899, %v3919
      %v3975 = vmul.f32 %v3900, %v3923
      %v3976 = vmul.f32 %v3901, %v3919
      %v3977 = vmul.f32 %v3902, %v3923
      %v3978 = vmul.f32 %v3903, %v3919
      %v3979 = vmul.f32 %v3904, %v3923
      %v3980 = vmul.f32 %v3905, %v3919
      %v3981 = vmul.f32 %v3906, %v3923
      %v3982 = vmul.f32 %v3907, %v3919
      %v3983 = vmul.f32 %v3908, %v3923
      %v3984 = vmul.f32 %v3909, %v3919
      %v3985 = vmul.f32 %v3910, %v3923
      %v3986 = vmul.f32 %v3911, %v3919
      %v3987 = vmul.f32 %v3912, %v3923
      %v3988 = vmul.f32 %v3913, %v3919
      %v3989 = vmul.f32 %v3914, %v3923
      %v3990 = vadd.f32 %v3784, %v3926
      %v3991 = vadd.f32 %v3785, %v3927
      %v3992 = vadd.f32 %v3786, %v3928
      %v3993 = vadd.f32 %v3787, %v3929
      %v3994 = vadd.f32 %v3788, %v3930
      %v3995 = vadd.f32 %v3789, %v3931
      %v3996 = vadd.f32 %v3790, %v3932
      %v3997 = vadd.f32 %v3791, %v3933
      %v3998 = vadd.f32 %v3792, %v3934
      %v3999 = vadd.f32 %v3793, %v3935
      %v4000 = vadd.f32 %v3794, %v3936
      %v4001 = vadd.f32 %v3795, %v3937
      %v4002 = vadd.f32 %v3796, %v3938
      %v4003 = vadd.f32 %v3797, %v3939
      %v4004 = vadd.f32 %v3798, %v3940
      %v4005 = vadd.f32 %v3799, %v3941
      %v4006 = vadd.f32 %v3800, %v3942
      %v4007 = vadd.f32 %v3801, %v3943
      %v4008 = vadd.f32 %v3802, %v3944
      %v4009 = vadd.f32 %v3803, %v3945
      %v4010 = vadd.f32 %v3804, %v3946
      %v4011 = vadd.f32 %v3805, %v3947
      %v4012 = vadd.f32 %v3806, %v3948
      %v4013 = vadd.f32 %v3807, %v3949
      %v4014 = vadd.f32 %v3808, %v3950
      %v4015 = vadd.f32 %v3809, %v3951
      %v4016 = vadd.f32 %v3810, %v3952
      %v4017 = vadd.f32 %v3811, %v3953
      %v4018 = vadd.f32 %v3812, %v3954
      %v4019 = vadd.f32 %v3813, %v3955
      %v4020 = vadd.f32 %v3814, %v3956
      %v4021 = vadd.f32 %v3815, %v3957
      %v4022 = vadd.f32 %v3816, %v3958
      %v4023 = vadd.f32 %v3817, %v3959
      %v4024 = vadd.f32 %v3818, %v3960
      %v4025 = vadd.f32 %v3819, %v3961
      %v4026 = vadd.f32 %v3820, %v3962
      %v4027 = vadd.f32 %v3821, %v3963
      %v4028 = vadd.f32 %v3822, %v3964
      %v4029 = vadd.f32 %v3823, %v3965
      %v4030 = vadd.f32 %v3824, %v3966
      %v4031 = vadd.f32 %v3825, %v3967
      %v4032 = vadd.f32 %v3826, %v3968
      %v4033 = vadd.f32 %v3827, %v3969
      %v4034 = vadd.f32 %v3828, %v3970
      %v4035 = vadd.f32 %v3829, %v3971
      %v4036 = vadd.f32 %v3830, %v3972
      %v4037 = vadd.f32 %v3831, %v3973
      %v4038 = vadd.f32 %v3832, %v3974
      %v4039 = vadd.f32 %v3833, %v3975
      %v4040 = vadd.f32 %v3834, %v3976
      %v4041 = vadd.f32 %v3835, %v3977
      %v4042 = vadd.f32 %v3836, %v3978
      %v4043 = vadd.f32 %v3837, %v3979
      %v4044 = vadd.f32 %v3838, %v3980
      %v4045 = vadd.f32 %v3839, %v3981
      %v4046 = vadd.f32 %v3840, %v3982
      %v4047 = vadd.f32 %v3841, %v3983
      %v4048 = vadd.f32 %v3842, %v3984
      %v4049 = vadd.f32 %v3843, %v3985
      %v4050 = vadd.f32 %v3844, %v3986
      %v4051 = vadd.f32 %v3845, %v3987
      %v4052 = vadd.f32 %v3846, %v3988
      %v4053 = vadd.f32 %v3847, %v3989
      %s4054 = scalar_lea.vmem %s3848, 1
      %v4055 = vld [vmem:[%s4054] ss:$4 sm:$0x3]
      %v4056 = vld [vmem:[%s3850] sm:$0xfe]
      %v4057 = vld [vmem:[%s3850 + $0x8] sm:$0xfe]
      %v4058 = vld [vmem:[%s3850 + $0x20] sm:$0x1]
      %v4059 = vld [vmem:[%s3850 + $0x28] sm:$0x1]
      %v4060 = vld [vmem:[%s3850 + $0x30] sm:$0xfe]
      %v4061 = vld [vmem:[%s3850 + $0x38] sm:$0xfe]
      %v4062 = vld [vmem:[%s3850 + $0x50] sm:$0x1]
      %v4063 = vld [vmem:[%s3850 + $0x58] sm:$0x1]
      %v4064 = vld [vmem:[%s3850 + $0x60] sm:$0xfe]
      %v4065 = vld [vmem:[%s3850 + $0x68] sm:$0xfe]
      %v4066 = vld [vmem:[%s3850 + $0x80] sm:$0x1]
      %v4067 = vld [vmem:[%s3850 + $0x88] sm:$0x1]
      %v4068 = vld [vmem:[%s3850 + $0x90] sm:$0xfe]
      %v4069 = vld [vmem:[%s3850 + $0x98] sm:$0xfe]
      %v4070 = vld [vmem:[%s3850 + $0xb0] sm:$0x1]
      %v4071 = vld [vmem:[%s3850 + $0xb8] sm:$0x1]
      %v4072 = vld [vmem:[%s3850 + $0xc0] sm:$0xfe]
      %v4073 = vld [vmem:[%s3850 + $0xc8] sm:$0xfe]
      %v4074 = vld [vmem:[%s3850 + $0xe0] sm:$0x1]
      %v4075 = vld [vmem:[%s3850 + $0xe8] sm:$0x1]
      %v4076 = vld [vmem:[%s3850 + $0xf0] sm:$0xfe]
      %v4077 = vld [vmem:[%s3850 + $0xf8] sm:$0xfe]
      %v4078 = vld [vmem:[%s3850 + $0x110] sm:$0x1]
      %v4079 = vld [vmem:[%s3850 + $0x118] sm:$0x1]
      %v4080 = vld [vmem:[%s3850 + $0x120] sm:$0xfe]
      %v4081 = vld [vmem:[%s3850 + $0x128] sm:$0xfe]
      %v4082 = vld [vmem:[%s3850 + $0x140] sm:$0x1]
      %v4083 = vld [vmem:[%s3850 + $0x148] sm:$0x1]
      %v4084 = vld [vmem:[%s3850 + $0x150] sm:$0xfe]
      %v4085 = vld [vmem:[%s3850 + $0x158] sm:$0xfe]
      %v4086 = vld [vmem:[%s3850 + $0x170] sm:$0x1]
      %v4087 = vld [vmem:[%s3850 + $0x178] sm:$0x1]
      %v4088 = vld [vmem:[%s3850 + $0x180] sm:$0xfe]
      %v4089 = vld [vmem:[%s3850 + $0x188] sm:$0xfe]
      %v4090 = vld [vmem:[%s3850 + $0x1a0] sm:$0x1]
      %v4091 = vld [vmem:[%s3850 + $0x1a8] sm:$0x1]
      %v4092 = vld [vmem:[%s3850 + $0x1b0] sm:$0xfe]
      %v4093 = vld [vmem:[%s3850 + $0x1b8] sm:$0xfe]
      %v4094 = vld [vmem:[%s3850 + $0x1d0] sm:$0x1]
      %v4095 = vld [vmem:[%s3850 + $0x1d8] sm:$0x1]
      %v4096 = vld [vmem:[%s3850 + $0x1e0] sm:$0xfe]
      %v4097 = vld [vmem:[%s3850 + $0x1e8] sm:$0xfe]
      %v4098 = vld [vmem:[%s3850 + $0x200] sm:$0x1]
      %v4099 = vld [vmem:[%s3850 + $0x208] sm:$0x1]
      %v4100 = vld [vmem:[%s3850 + $0x210] sm:$0xfe]
      %v4101 = vld [vmem:[%s3850 + $0x218] sm:$0xfe]
      %v4102 = vld [vmem:[%s3850 + $0x230] sm:$0x1]
      %v4103 = vld [vmem:[%s3850 + $0x238] sm:$0x1]
      %v4104 = vld [vmem:[%s3850 + $0x240] sm:$0xfe]
      %v4105 = vld [vmem:[%s3850 + $0x248] sm:$0xfe]
      %v4106 = vld [vmem:[%s3850 + $0x260] sm:$0x1]
      %v4107 = vld [vmem:[%s3850 + $0x268] sm:$0x1]
      %v4108 = vld [vmem:[%s3850 + $0x270] sm:$0xfe]
      %v4109 = vld [vmem:[%s3850 + $0x278] sm:$0xfe]
      %v4110 = vld [vmem:[%s3850 + $0x290] sm:$0x1]
      %v4111 = vld [vmem:[%s3850 + $0x298] sm:$0x1]
      %v4112 = vld [vmem:[%s3850 + $0x2a0] sm:$0xfe]
      %v4113 = vld [vmem:[%s3850 + $0x2a8] sm:$0xfe]
      %v4114 = vld [vmem:[%s3850 + $0x2c0] sm:$0x1]
      %v4115 = vld [vmem:[%s3850 + $0x2c8] sm:$0x1]
      %v4116 = vld [vmem:[%s3850 + $0x2d0] sm:$0xfe]
      %v4117 = vld [vmem:[%s3850 + $0x2d8] sm:$0xfe]
      %v4118 = vld [vmem:[%s3850 + $0x2f0] sm:$0x1]
      %v4119 = vld [vmem:[%s3850 + $0x2f8] sm:$0x1]
      %v4121 = vlaneseq
      %v4122 = vshrl.u32 %v4121, 7
      %v4123 = vsub.s32 0, %v4122
      %v4124 = vrot.slane %v4055, %v4123
      %v4125 = vlaneseq
      %v4126 = vshrl.u32 %v4125, 7
      %v4127 = vsub.s32 1, %v4126
      %v4128 = vrot.slane %v4055, %v4127
      %v4131 = vmul.f32 %v4056, %v4124
      %v4132 = vmul.f32 %v4057, %v4128
      %v4133 = vmul.f32 %v3853, %v4124
      %v4134 = vmul.f32 %v3854, %v4128
      %v4135 = vmul.f32 %v4058, %v4124
      %v4136 = vmul.f32 %v4059, %v4128
      %v4137 = vmul.f32 %v4060, %v4124
      %v4138 = vmul.f32 %v4061, %v4128
      %v4139 = vmul.f32 %v3857, %v4124
      %v4140 = vmul.f32 %v3858, %v4128
      %v4141 = vmul.f32 %v4062, %v4124
      %v4142 = vmul.f32 %v4063, %v4128
      %v4143 = vmul.f32 %v4064, %v4124
      %v4144 = vmul.f32 %v4065, %v4128
      %v4145 = vmul.f32 %v3861, %v4124
      %v4146 = vmul.f32 %v3862, %v4128
      %v4147 = vmul.f32 %v4066, %v4124
      %v4148 = vmul.f32 %v4067, %v4128
      %v4149 = vmul.f32 %v4068, %v4124
      %v4150 = vmul.f32 %v4069, %v4128
      %v4151 = vmul.f32 %v3865, %v4124
      %v4152 = vmul.f32 %v3866, %v4128
      %v4153 = vmul.f32 %v4070, %v4124
      %v4154 = vmul.f32 %v4071, %v4128
      %v4155 = vmul.f32 %v4072, %v4124
      %v4156 = vmul.f32 %v4073, %v4128
      %v4157 = vmul.f32 %v3869, %v4124
      %v4158 = vmul.f32 %v3870, %v4128
      %v4159 = vmul.f32 %v4074, %v4124
      %v4160 = vmul.f32 %v4075, %v4128
      %v4161 = vmul.f32 %v4076, %v4124
      %v4162 = vmul.f32 %v4077, %v4128
      %v4163 = vmul.f32 %v3873, %v4124
      %v4164 = vmul.f32 %v3874, %v4128
      %v4165 = vmul.f32 %v4078, %v4124
      %v4166 = vmul.f32 %v4079, %v4128
      %v4167 = vmul.f32 %v4080, %v4124
      %v4168 = vmul.f32 %v4081, %v4128
      %v4169 = vmul.f32 %v3877, %v4124
      %v4170 = vmul.f32 %v3878, %v4128
      %v4171 = vmul.f32 %v4082, %v4124
      %v4172 = vmul.f32 %v4083, %v4128
      %v4173 = vmul.f32 %v4084, %v4124
      %v4174 = vmul.f32 %v4085, %v4128
      %v4175 = vmul.f32 %v3881, %v4124
      %v4176 = vmul.f32 %v3882, %v4128
      %v4177 = vmul.f32 %v4086, %v4124
      %v4178 = vmul.f32 %v4087, %v4128
      %v4179 = vmul.f32 %v4088, %v4124
      %v4180 = vmul.f32 %v4089, %v4128
      %v4181 = vmul.f32 %v3885, %v4124
      %v4182 = vmul.f32 %v3886, %v4128
      %v4183 = vmul.f32 %v4090, %v4124
      %v4184 = vmul.f32 %v4091, %v4128
      %v4185 = vmul.f32 %v4092, %v4124
      %v4186 = vmul.f32 %v4093, %v4128
      %v4187 = vmul.f32 %v3889, %v4124
      %v4188 = vmul.f32 %v3890, %v4128
      %v4189 = vmul.f32 %v4094, %v4124
      %v4190 = vmul.f32 %v4095, %v4128
      %v4191 = vmul.f32 %v4096, %v4124
      %v4192 = vmul.f32 %v4097, %v4128
      %v4193 = vmul.f32 %v3893, %v4124
      %v4194 = vmul.f32 %v3894, %v4128
      %v4195 = vmul.f32 %v4098, %v4124
      %v4196 = vmul.f32 %v4099, %v4128
      %v4197 = vmul.f32 %v4100, %v4124
      %v4198 = vmul.f32 %v4101, %v4128
      %v4199 = vmul.f32 %v3897, %v4124
      %v4200 = vmul.f32 %v3898, %v4128
      %v4201 = vmul.f32 %v4102, %v4124
      %v4202 = vmul.f32 %v4103, %v4128
      %v4203 = vmul.f32 %v4104, %v4124
      %v4204 = vmul.f32 %v4105, %v4128
      %v4205 = vmul.f32 %v3901, %v4124
      %v4206 = vmul.f32 %v3902, %v4128
      %v4207 = vmul.f32 %v4106, %v4124
      %v4208 = vmul.f32 %v4107, %v4128
      %v4209 = vmul.f32 %v4108, %v4124
      %v4210 = vmul.f32 %v4109, %v4128
      %v4211 = vmul.f32 %v3905, %v4124
      %v4212 = vmul.f32 %v3906, %v4128
      %v4213 = vmul.f32 %v4110, %v4124
      %v4214 = vmul.f32 %v4111, %v4128
      %v4215 = vmul.f32 %v4112, %v4124
      %v4216 = vmul.f32 %v4113, %v4128
      %v4217 = vmul.f32 %v3909, %v4124
      %v4218 = vmul.f32 %v3910, %v4128
      %v4219 = vmul.f32 %v4114, %v4124
      %v4220 = vmul.f32 %v4115, %v4128
      %v4221 = vmul.f32 %v4116, %v4124
      %v4222 = vmul.f32 %v4117, %v4128
      %v4223 = vmul.f32 %v3913, %v4124
      %v4224 = vmul.f32 %v3914, %v4128
      %v4225 = vmul.f32 %v4118, %v4124
      %v4226 = vmul.f32 %v4119, %v4128
      %v4323 = vrot.slane %v4131, 1
      %v4324 = vrot.slane %v4133, 1
      %v4325 = vsel %vm1682, %v4323, %v4324
      %v4326 = vrot.slane %v4132, 1
      %v4327 = vrot.slane %v4134, 1
      %v4328 = vsel %vm1682, %v4326, %v4327
      %v4329 = vrot.slane %v4135, 1
      %v4330 = vsel %vm1682, %v4324, %v4329
      %v4331 = vrot.slane %v4136, 1
      %v4332 = vsel %vm1682, %v4327, %v4331
      %v4333 = vrot.slane %v4137, 1
      %v4334 = vrot.slane %v4139, 1
      %v4335 = vsel %vm1682, %v4333, %v4334
      %v4336 = vrot.slane %v4138, 1
      %v4337 = vrot.slane %v4140, 1
      %v4338 = vsel %vm1682, %v4336, %v4337
      %v4339 = vrot.slane %v4141, 1
      %v4340 = vsel %vm1682, %v4334, %v4339
      %v4341 = vrot.slane %v4142, 1
      %v4342 = vsel %vm1682, %v4337, %v4341
      %v4343 = vrot.slane %v4143, 1
      %v4344 = vrot.slane %v4145, 1
      %v4345 = vsel %vm1682, %v4343, %v4344
      %v4346 = vrot.slane %v4144, 1
      %v4347 = vrot.slane %v4146, 1
      %v4348 = vsel %vm1682, %v4346, %v4347
      %v4349 = vrot.slane %v4147, 1
      %v4350 = vsel %vm1682, %v4344, %v4349
      %v4351 = vrot.slane %v4148, 1
      %v4352 = vsel %vm1682, %v4347, %v4351
      %v4353 = vrot.slane %v4149, 1
      %v4354 = vrot.slane %v4151, 1
      %v4355 = vsel %vm1682, %v4353, %v4354
      %v4356 = vrot.slane %v4150, 1
      %v4357 = vrot.slane %v4152, 1
      %v4358 = vsel %vm1682, %v4356, %v4357
      %v4359 = vrot.slane %v4153, 1
      %v4360 = vsel %vm1682, %v4354, %v4359
      %v4361 = vrot.slane %v4154, 1
      %v4362 = vsel %vm1682, %v4357, %v4361
      %v4363 = vrot.slane %v4155, 1
      %v4364 = vrot.slane %v4157, 1
      %v4365 = vsel %vm1682, %v4363, %v4364
      %v4366 = vrot.slane %v4156, 1
      %v4367 = vrot.slane %v4158, 1
      %v4368 = vsel %vm1682, %v4366, %v4367
      %v4369 = vrot.slane %v4159, 1
      %v4370 = vsel %vm1682, %v4364, %v4369
      %v4371 = vrot.slane %v4160, 1
      %v4372 = vsel %vm1682, %v4367, %v4371
      %v4373 = vrot.slane %v4161, 1
      %v4374 = vrot.slane %v4163, 1
      %v4375 = vsel %vm1682, %v4373, %v4374
      %v4376 = vrot.slane %v4162, 1
      %v4377 = vrot.slane %v4164, 1
      %v4378 = vsel %vm1682, %v4376, %v4377
      %v4379 = vrot.slane %v4165, 1
      %v4380 = vsel %vm1682, %v4374, %v4379
      %v4381 = vrot.slane %v4166, 1
      %v4382 = vsel %vm1682, %v4377, %v4381
      %v4383 = vrot.slane %v4167, 1
      %v4384 = vrot.slane %v4169, 1
      %v4385 = vsel %vm1682, %v4383, %v4384
      %v4386 = vrot.slane %v4168, 1
      %v4387 = vrot.slane %v4170, 1
      %v4388 = vsel %vm1682, %v4386, %v4387
      %v4389 = vrot.slane %v4171, 1
      %v4390 = vsel %vm1682, %v4384, %v4389
      %v4391 = vrot.slane %v4172, 1
      %v4392 = vsel %vm1682, %v4387, %v4391
      %v4393 = vrot.slane %v4173, 1
      %v4394 = vrot.slane %v4175, 1
      %v4395 = vsel %vm1682, %v4393, %v4394
      %v4396 = vrot.slane %v4174, 1
      %v4397 = vrot.slane %v4176, 1
      %v4398 = vsel %vm1682, %v4396, %v4397
      %v4399 = vrot.slane %v4177, 1
      %v4400 = vsel %vm1682, %v4394, %v4399
      %v4401 = vrot.slane %v4178, 1
      %v4402 = vsel %vm1682, %v4397, %v4401
      %v4403 = vrot.slane %v4179, 1
      %v4404 = vrot.slane %v4181, 1
      %v4405 = vsel %vm1682, %v4403, %v4404
      %v4406 = vrot.slane %v4180, 1
      %v4407 = vrot.slane %v4182, 1
      %v4408 = vsel %vm1682, %v4406, %v4407
      %v4409 = vrot.slane %v4183, 1
      %v4410 = vsel %vm1682, %v4404, %v4409
      %v4411 = vrot.slane %v4184, 1
      %v4412 = vsel %vm1682, %v4407, %v4411
      %v4413 = vrot.slane %v4185, 1
      %v4414 = vrot.slane %v4187, 1
      %v4415 = vsel %vm1682, %v4413, %v4414
      %v4416 = vrot.slane %v4186, 1
      %v4417 = vrot.slane %v4188, 1
      %v4418 = vsel %vm1682, %v4416, %v4417
      %v4419 = vrot.slane %v4189, 1
      %v4420 = vsel %vm1682, %v4414, %v4419
      %v4421 = vrot.slane %v4190, 1
      %v4422 = vsel %vm1682, %v4417, %v4421
      %v4423 = vrot.slane %v4191, 1
      %v4424 = vrot.slane %v4193, 1
      %v4425 = vsel %vm1682, %v4423, %v4424
      %v4426 = vrot.slane %v4192, 1
      %v4427 = vrot.slane %v4194, 1
      %v4428 = vsel %vm1682, %v4426, %v4427
      %v4429 = vrot.slane %v4195, 1
      %v4430 = vsel %vm1682, %v4424, %v4429
      %v4431 = vrot.slane %v4196, 1
      %v4432 = vsel %vm1682, %v4427, %v4431
      %v4433 = vrot.slane %v4197, 1
      %v4434 = vrot.slane %v4199, 1
      %v4435 = vsel %vm1682, %v4433, %v4434
      %v4436 = vrot.slane %v4198, 1
      %v4437 = vrot.slane %v4200, 1
      %v4438 = vsel %vm1682, %v4436, %v4437
      %v4439 = vrot.slane %v4201, 1
      %v4440 = vsel %vm1682, %v4434, %v4439
      %v4441 = vrot.slane %v4202, 1
      %v4442 = vsel %vm1682, %v4437, %v4441
      %v4443 = vrot.slane %v4203, 1
      %v4444 = vrot.slane %v4205, 1
      %v4445 = vsel %vm1682, %v4443, %v4444
      %v4446 = vrot.slane %v4204, 1
      %v4447 = vrot.slane %v4206, 1
      %v4448 = vsel %vm1682, %v4446, %v4447
      %v4449 = vrot.slane %v4207, 1
      %v4450 = vsel %vm1682, %v4444, %v4449
      %v4451 = vrot.slane %v4208, 1
      %v4452 = vsel %vm1682, %v4447, %v4451
      %v4453 = vrot.slane %v4209, 1
      %v4454 = vrot.slane %v4211, 1
      %v4455 = vsel %vm1682, %v4453, %v4454
      %v4456 = vrot.slane %v4210, 1
      %v4457 = vrot.slane %v4212, 1
      %v4458 = vsel %vm1682, %v4456, %v4457
      %v4459 = vrot.slane %v4213, 1
      %v4460 = vsel %vm1682, %v4454, %v4459
      %v4461 = vrot.slane %v4214, 1
      %v4462 = vsel %vm1682, %v4457, %v4461
      %v4463 = vrot.slane %v4215, 1
      %v4464 = vrot.slane %v4217, 1
      %v4465 = vsel %vm1682, %v4463, %v4464
      %v4466 = vrot.slane %v4216, 1
      %v4467 = vrot.slane %v4218, 1
      %v4468 = vsel %vm1682, %v4466, %v4467
      %v4469 = vrot.slane %v4219, 1
      %v4470 = vsel %vm1682, %v4464, %v4469
      %v4471 = vrot.slane %v4220, 1
      %v4472 = vsel %vm1682, %v4467, %v4471
      %v4473 = vrot.slane %v4221, 1
      %v4474 = vrot.slane %v4223, 1
      %v4475 = vsel %vm1682, %v4473, %v4474
      %v4476 = vrot.slane %v4222, 1
      %v4477 = vrot.slane %v4224, 1
      %v4478 = vsel %vm1682, %v4476, %v4477
      %v4479 = vrot.slane %v4225, 1
      %v4480 = vsel %vm1682, %v4474, %v4479
      %v4481 = vrot.slane %v4226, 1
      %v4482 = vsel %vm1682, %v4477, %v4481
      %v4547 = vadd.f32 %v3990, %v4325
      %v4548 = vadd.f32 %v3991, %v4328
      %v4549 = vadd.f32 %v3992, %v4330
      %v4550 = vadd.f32 %v3993, %v4332
      %v4551 = vadd.f32 %v3994, %v4335
      %v4552 = vadd.f32 %v3995, %v4338
      %v4553 = vadd.f32 %v3996, %v4340
      %v4554 = vadd.f32 %v3997, %v4342
      %v4555 = vadd.f32 %v3998, %v4345
      %v4556 = vadd.f32 %v3999, %v4348
      %v4557 = vadd.f32 %v4000, %v4350
      %v4558 = vadd.f32 %v4001, %v4352
      %v4559 = vadd.f32 %v4002, %v4355
      %v4560 = vadd.f32 %v4003, %v4358
      %v4561 = vadd.f32 %v4004, %v4360
      %v4562 = vadd.f32 %v4005, %v4362
      %v4563 = vadd.f32 %v4006, %v4365
      %v4564 = vadd.f32 %v4007, %v4368
      %v4565 = vadd.f32 %v4008, %v4370
      %v4566 = vadd.f32 %v4009, %v4372
      %v4567 = vadd.f32 %v4010, %v4375
      %v4568 = vadd.f32 %v4011, %v4378
      %v4569 = vadd.f32 %v4012, %v4380
      %v4570 = vadd.f32 %v4013, %v4382
      %v4571 = vadd.f32 %v4014, %v4385
      %v4572 = vadd.f32 %v4015, %v4388
      %v4573 = vadd.f32 %v4016, %v4390
      %v4574 = vadd.f32 %v4017, %v4392
      %v4575 = vadd.f32 %v4018, %v4395
      %v4576 = vadd.f32 %v4019, %v4398
      %v4577 = vadd.f32 %v4020, %v4400
      %v4578 = vadd.f32 %v4021, %v4402
      %v4579 = vadd.f32 %v4022, %v4405
      %v4580 = vadd.f32 %v4023, %v4408
      %v4581 = vadd.f32 %v4024, %v4410
      %v4582 = vadd.f32 %v4025, %v4412
      %v4583 = vadd.f32 %v4026, %v4415
      %v4584 = vadd.f32 %v4027, %v4418
      %v4585 = vadd.f32 %v4028, %v4420
      %v4586 = vadd.f32 %v4029, %v4422
      %v4587 = vadd.f32 %v4030, %v4425
      %v4588 = vadd.f32 %v4031, %v4428
      %v4589 = vadd.f32 %v4032, %v4430
      %v4590 = vadd.f32 %v4033, %v4432
      %v4591 = vadd.f32 %v4034, %v4435
      %v4592 = vadd.f32 %v4035, %v4438
      %v4593 = vadd.f32 %v4036, %v4440
      %v4594 = vadd.f32 %v4037, %v4442
      %v4595 = vadd.f32 %v4038, %v4445
      %v4596 = vadd.f32 %v4039, %v4448
      %v4597 = vadd.f32 %v4040, %v4450
      %v4598 = vadd.f32 %v4041, %v4452
      %v4599 = vadd.f32 %v4042, %v4455
      %v4600 = vadd.f32 %v4043, %v4458
      %v4601 = vadd.f32 %v4044, %v4460
      %v4602 = vadd.f32 %v4045, %v4462
      %v4603 = vadd.f32 %v4046, %v4465
      %v4604 = vadd.f32 %v4047, %v4468
      %v4605 = vadd.f32 %v4048, %v4470
      %v4606 = vadd.f32 %v4049, %v4472
      %v4607 = vadd.f32 %v4050, %v4475
      %v4608 = vadd.f32 %v4051, %v4478
      %v4609 = vadd.f32 %v4052, %v4480
      %v4610 = vadd.f32 %v4053, %v4482
      %s4611 = scalar_lea.vmem %s3848, 2
      %v4612 = vld [vmem:[%s4611] ss:$4 sm:$0x3]
      %v4613 = vld [vmem:[%s3850] sm:$0xfc]
      %v4614 = vld [vmem:[%s3850 + $0x8] sm:$0xfc]
      %v4615 = vld [vmem:[%s3850 + $0x20] sm:$0x3]
      %v4616 = vld [vmem:[%s3850 + $0x28] sm:$0x3]
      %v4617 = vld [vmem:[%s3850 + $0x30] sm:$0xfc]
      %v4618 = vld [vmem:[%s3850 + $0x38] sm:$0xfc]
      %v4619 = vld [vmem:[%s3850 + $0x50] sm:$0x3]
      %v4620 = vld [vmem:[%s3850 + $0x58] sm:$0x3]
      %v4621 = vld [vmem:[%s3850 + $0x60] sm:$0xfc]
      %v4622 = vld [vmem:[%s3850 + $0x68] sm:$0xfc]
      %v4623 = vld [vmem:[%s3850 + $0x80] sm:$0x3]
      %v4624 = vld [vmem:[%s3850 + $0x88] sm:$0x3]
      %v4625 = vld [vmem:[%s3850 + $0x90] sm:$0xfc]
      %v4626 = vld [vmem:[%s3850 + $0x98] sm:$0xfc]
      %v4627 = vld [vmem:[%s3850 + $0xb0] sm:$0x3]
      %v4628 = vld [vmem:[%s3850 + $0xb8] sm:$0x3]
      %v4629 = vld [vmem:[%s3850 + $0xc0] sm:$0xfc]
      %v4630 = vld [vmem:[%s3850 + $0xc8] sm:$0xfc]
      %v4631 = vld [vmem:[%s3850 + $0xe0] sm:$0x3]
      %v4632 = vld [vmem:[%s3850 + $0xe8] sm:$0x3]
      %v4633 = vld [vmem:[%s3850 + $0xf0] sm:$0xfc]
      %v4634 = vld [vmem:[%s3850 + $0xf8] sm:$0xfc]
      %v4635 = vld [vmem:[%s3850 + $0x110] sm:$0x3]
      %v4636 = vld [vmem:[%s3850 + $0x118] sm:$0x3]
      %v4637 = vld [vmem:[%s3850 + $0x120] sm:$0xfc]
      %v4638 = vld [vmem:[%s3850 + $0x128] sm:$0xfc]
      %v4639 = vld [vmem:[%s3850 + $0x140] sm:$0x3]
      %v4640 = vld [vmem:[%s3850 + $0x148] sm:$0x3]
      %v4641 = vld [vmem:[%s3850 + $0x150] sm:$0xfc]
      %v4642 = vld [vmem:[%s3850 + $0x158] sm:$0xfc]
      %v4643 = vld [vmem:[%s3850 + $0x170] sm:$0x3]
      %v4644 = vld [vmem:[%s3850 + $0x178] sm:$0x3]
      %v4645 = vld [vmem:[%s3850 + $0x180] sm:$0xfc]
      %v4646 = vld [vmem:[%s3850 + $0x188] sm:$0xfc]
      %v4647 = vld [vmem:[%s3850 + $0x1a0] sm:$0x3]
      %v4648 = vld [vmem:[%s3850 + $0x1a8] sm:$0x3]
      %v4649 = vld [vmem:[%s3850 + $0x1b0] sm:$0xfc]
      %v4650 = vld [vmem:[%s3850 + $0x1b8] sm:$0xfc]
      %v4651 = vld [vmem:[%s3850 + $0x1d0] sm:$0x3]
      %v4652 = vld [vmem:[%s3850 + $0x1d8] sm:$0x3]
      %v4653 = vld [vmem:[%s3850 + $0x1e0] sm:$0xfc]
      %v4654 = vld [vmem:[%s3850 + $0x1e8] sm:$0xfc]
      %v4655 = vld [vmem:[%s3850 + $0x200] sm:$0x3]
      %v4656 = vld [vmem:[%s3850 + $0x208] sm:$0x3]
      %v4657 = vld [vmem:[%s3850 + $0x210] sm:$0xfc]
      %v4658 = vld [vmem:[%s3850 + $0x218] sm:$0xfc]
      %v4659 = vld [vmem:[%s3850 + $0x230] sm:$0x3]
      %v4660 = vld [vmem:[%s3850 + $0x238] sm:$0x3]
      %v4661 = vld [vmem:[%s3850 + $0x240] sm:$0xfc]
      %v4662 = vld [vmem:[%s3850 + $0x248] sm:$0xfc]
      %v4663 = vld [vmem:[%s3850 + $0x260] sm:$0x3]
      %v4664 = vld [vmem:[%s3850 + $0x268] sm:$0x3]
      %v4665 = vld [vmem:[%s3850 + $0x270] sm:$0xfc]
      %v4666 = vld [vmem:[%s3850 + $0x278] sm:$0xfc]
      %v4667 = vld [vmem:[%s3850 + $0x290] sm:$0x3]
      %v4668 = vld [vmem:[%s3850 + $0x298] sm:$0x3]
      %v4669 = vld [vmem:[%s3850 + $0x2a0] sm:$0xfc]
      %v4670 = vld [vmem:[%s3850 + $0x2a8] sm:$0xfc]
      %v4671 = vld [vmem:[%s3850 + $0x2c0] sm:$0x3]
      %v4672 = vld [vmem:[%s3850 + $0x2c8] sm:$0x3]
      %v4673 = vld [vmem:[%s3850 + $0x2d0] sm:$0xfc]
      %v4674 = vld [vmem:[%s3850 + $0x2d8] sm:$0xfc]
      %v4675 = vld [vmem:[%s3850 + $0x2f0] sm:$0x3]
      %v4676 = vld [vmem:[%s3850 + $0x2f8] sm:$0x3]
      %v4678 = vlaneseq
      %v4679 = vshrl.u32 %v4678, 7
      %v4680 = vsub.s32 0, %v4679
      %v4681 = vrot.slane %v4612, %v4680
      %v4682 = vlaneseq
      %v4683 = vshrl.u32 %v4682, 7
      %v4684 = vsub.s32 1, %v4683
      %v4685 = vrot.slane %v4612, %v4684
      %v4688 = vmul.f32 %v4613, %v4681
      %v4689 = vmul.f32 %v4614, %v4685
      %v4690 = vmul.f32 %v3853, %v4681
      %v4691 = vmul.f32 %v3854, %v4685
      %v4692 = vmul.f32 %v4615, %v4681
      %v4693 = vmul.f32 %v4616, %v4685
      %v4694 = vmul.f32 %v4617, %v4681
      %v4695 = vmul.f32 %v4618, %v4685
      %v4696 = vmul.f32 %v3857, %v4681
      %v4697 = vmul.f32 %v3858, %v4685
      %v4698 = vmul.f32 %v4619, %v4681
      %v4699 = vmul.f32 %v4620, %v4685
      %v4700 = vmul.f32 %v4621, %v4681
      %v4701 = vmul.f32 %v4622, %v4685
      %v4702 = vmul.f32 %v3861, %v4681
      %v4703 = vmul.f32 %v3862, %v4685
      %v4704 = vmul.f32 %v4623, %v4681
      %v4705 = vmul.f32 %v4624, %v4685
      %v4706 = vmul.f32 %v4625, %v4681
      %v4707 = vmul.f32 %v4626, %v4685
      %v4708 = vmul.f32 %v3865, %v4681
      %v4709 = vmul.f32 %v3866, %v4685
      %v4710 = vmul.f32 %v4627, %v4681
      %v4711 = vmul.f32 %v4628, %v4685
      %v4712 = vmul.f32 %v4629, %v4681
      %v4713 = vmul.f32 %v4630, %v4685
      %v4714 = vmul.f32 %v3869, %v4681
      %v4715 = vmul.f32 %v3870, %v4685
      %v4716 = vmul.f32 %v4631, %v4681
      %v4717 = vmul.f32 %v4632, %v4685
      %v4718 = vmul.f32 %v4633, %v4681
      %v4719 = vmul.f32 %v4634, %v4685
      %v4720 = vmul.f32 %v3873, %v4681
      %v4721 = vmul.f32 %v3874, %v4685
      %v4722 = vmul.f32 %v4635, %v4681
      %v4723 = vmul.f32 %v4636, %v4685
      %v4724 = vmul.f32 %v4637, %v4681
      %v4725 = vmul.f32 %v4638, %v4685
      %v4726 = vmul.f32 %v3877, %v4681
      %v4727 = vmul.f32 %v3878, %v4685
      %v4728 = vmul.f32 %v4639, %v4681
      %v4729 = vmul.f32 %v4640, %v4685
      %v4730 = vmul.f32 %v4641, %v4681
      %v4731 = vmul.f32 %v4642, %v4685
      %v4732 = vmul.f32 %v3881, %v4681
      %v4733 = vmul.f32 %v3882, %v4685
      %v4734 = vmul.f32 %v4643, %v4681
      %v4735 = vmul.f32 %v4644, %v4685
      %v4736 = vmul.f32 %v4645, %v4681
      %v4737 = vmul.f32 %v4646, %v4685
      %v4738 = vmul.f32 %v3885, %v4681
      %v4739 = vmul.f32 %v3886, %v4685
      %v4740 = vmul.f32 %v4647, %v4681
      %v4741 = vmul.f32 %v4648, %v4685
      %v4742 = vmul.f32 %v4649, %v4681
      %v4743 = vmul.f32 %v4650, %v4685
      %v4744 = vmul.f32 %v3889, %v4681
      %v4745 = vmul.f32 %v3890, %v4685
      %v4746 = vmul.f32 %v4651, %v4681
      %v4747 = vmul.f32 %v4652, %v4685
      %v4748 = vmul.f32 %v4653, %v4681
      %v4749 = vmul.f32 %v4654, %v4685
      %v4750 = vmul.f32 %v3893, %v4681
      %v4751 = vmul.f32 %v3894, %v4685
      %v4752 = vmul.f32 %v4655, %v4681
      %v4753 = vmul.f32 %v4656, %v4685
      %v4754 = vmul.f32 %v4657, %v4681
      %v4755 = vmul.f32 %v4658, %v4685
      %v4756 = vmul.f32 %v3897, %v4681
      %v4757 = vmul.f32 %v3898, %v4685
      %v4758 = vmul.f32 %v4659, %v4681
      %v4759 = vmul.f32 %v4660, %v4685
      %v4760 = vmul.f32 %v4661, %v4681
      %v4761 = vmul.f32 %v4662, %v4685
      %v4762 = vmul.f32 %v3901, %v4681
      %v4763 = vmul.f32 %v3902, %v4685
      %v4764 = vmul.f32 %v4663, %v4681
      %v4765 = vmul.f32 %v4664, %v4685
      %v4766 = vmul.f32 %v4665, %v4681
      %v4767 = vmul.f32 %v4666, %v4685
      %v4768 = vmul.f32 %v3905, %v4681
      %v4769 = vmul.f32 %v3906, %v4685
      %v4770 = vmul.f32 %v4667, %v4681
      %v4771 = vmul.f32 %v4668, %v4685
      %v4772 = vmul.f32 %v4669, %v4681
      %v4773 = vmul.f32 %v4670, %v4685
      %v4774 = vmul.f32 %v3909, %v4681
      %v4775 = vmul.f32 %v3910, %v4685
      %v4776 = vmul.f32 %v4671, %v4681
      %v4777 = vmul.f32 %v4672, %v4685
      %v4778 = vmul.f32 %v4673, %v4681
      %v4779 = vmul.f32 %v4674, %v4685
      %v4780 = vmul.f32 %v3913, %v4681
      %v4781 = vmul.f32 %v3914, %v4685
      %v4782 = vmul.f32 %v4675, %v4681
      %v4783 = vmul.f32 %v4676, %v4685
      %v4880 = vrot.slane %v4688, 2
      %v4881 = vrot.slane %v4690, 2
      %v4882 = vsel %vm2240, %v4880, %v4881
      %v4883 = vrot.slane %v4689, 2
      %v4884 = vrot.slane %v4691, 2
      %v4885 = vsel %vm2240, %v4883, %v4884
      %v4886 = vrot.slane %v4692, 2
      %v4887 = vsel %vm2240, %v4881, %v4886
      %v4888 = vrot.slane %v4693, 2
      %v4889 = vsel %vm2240, %v4884, %v4888
      %v4890 = vrot.slane %v4694, 2
      %v4891 = vrot.slane %v4696, 2
      %v4892 = vsel %vm2240, %v4890, %v4891
      %v4893 = vrot.slane %v4695, 2
      %v4894 = vrot.slane %v4697, 2
      %v4895 = vsel %vm2240, %v4893, %v4894
      %v4896 = vrot.slane %v4698, 2
      %v4897 = vsel %vm2240, %v4891, %v4896
      %v4898 = vrot.slane %v4699, 2
      %v4899 = vsel %vm2240, %v4894, %v4898
      %v4900 = vrot.slane %v4700, 2
      %v4901 = vrot.slane %v4702, 2
      %v4902 = vsel %vm2240, %v4900, %v4901
      %v4903 = vrot.slane %v4701, 2
      %v4904 = vrot.slane %v4703, 2
      %v4905 = vsel %vm2240, %v4903, %v4904
      %v4906 = vrot.slane %v4704, 2
      %v4907 = vsel %vm2240, %v4901, %v4906
      %v4908 = vrot.slane %v4705, 2
      %v4909 = vsel %vm2240, %v4904, %v4908
      %v4910 = vrot.slane %v4706, 2
      %v4911 = vrot.slane %v4708, 2
      %v4912 = vsel %vm2240, %v4910, %v4911
      %v4913 = vrot.slane %v4707, 2
      %v4914 = vrot.slane %v4709, 2
      %v4915 = vsel %vm2240, %v4913, %v4914
      %v4916 = vrot.slane %v4710, 2
      %v4917 = vsel %vm2240, %v4911, %v4916
      %v4918 = vrot.slane %v4711, 2
      %v4919 = vsel %vm2240, %v4914, %v4918
      %v4920 = vrot.slane %v4712, 2
      %v4921 = vrot.slane %v4714, 2
      %v4922 = vsel %vm2240, %v4920, %v4921
      %v4923 = vrot.slane %v4713, 2
      %v4924 = vrot.slane %v4715, 2
      %v4925 = vsel %vm2240, %v4923, %v4924
      %v4926 = vrot.slane %v4716, 2
      %v4927 = vsel %vm2240, %v4921, %v4926
      %v4928 = vrot.slane %v4717, 2
      %v4929 = vsel %vm2240, %v4924, %v4928
      %v4930 = vrot.slane %v4718, 2
      %v4931 = vrot.slane %v4720, 2
      %v4932 = vsel %vm2240, %v4930, %v4931
      %v4933 = vrot.slane %v4719, 2
      %v4934 = vrot.slane %v4721, 2
      %v4935 = vsel %vm2240, %v4933, %v4934
      %v4936 = vrot.slane %v4722, 2
      %v4937 = vsel %vm2240, %v4931, %v4936
      %v4938 = vrot.slane %v4723, 2
      %v4939 = vsel %vm2240, %v4934, %v4938
      %v4940 = vrot.slane %v4724, 2
      %v4941 = vrot.slane %v4726, 2
      %v4942 = vsel %vm2240, %v4940, %v4941
      %v4943 = vrot.slane %v4725, 2
      %v4944 = vrot.slane %v4727, 2
      %v4945 = vsel %vm2240, %v4943, %v4944
      %v4946 = vrot.slane %v4728, 2
      %v4947 = vsel %vm2240, %v4941, %v4946
      %v4948 = vrot.slane %v4729, 2
      %v4949 = vsel %vm2240, %v4944, %v4948
      %v4950 = vrot.slane %v4730, 2
      %v4951 = vrot.slane %v4732, 2
      %v4952 = vsel %vm2240, %v4950, %v4951
      %v4953 = vrot.slane %v4731, 2
      %v4954 = vrot.slane %v4733, 2
      %v4955 = vsel %vm2240, %v4953, %v4954
      %v4956 = vrot.slane %v4734, 2
      %v4957 = vsel %vm2240, %v4951, %v4956
      %v4958 = vrot.slane %v4735, 2
      %v4959 = vsel %vm2240, %v4954, %v4958
      %v4960 = vrot.slane %v4736, 2
      %v4961 = vrot.slane %v4738, 2
      %v4962 = vsel %vm2240, %v4960, %v4961
      %v4963 = vrot.slane %v4737, 2
      %v4964 = vrot.slane %v4739, 2
      %v4965 = vsel %vm2240, %v4963, %v4964
      %v4966 = vrot.slane %v4740, 2
      %v4967 = vsel %vm2240, %v4961, %v4966
      %v4968 = vrot.slane %v4741, 2
      %v4969 = vsel %vm2240, %v4964, %v4968
      %v4970 = vrot.slane %v4742, 2
      %v4971 = vrot.slane %v4744, 2
      %v4972 = vsel %vm2240, %v4970, %v4971
      %v4973 = vrot.slane %v4743, 2
      %v4974 = vrot.slane %v4745, 2
      %v4975 = vsel %vm2240, %v4973, %v4974
      %v4976 = vrot.slane %v4746, 2
      %v4977 = vsel %vm2240, %v4971, %v4976
      %v4978 = vrot.slane %v4747, 2
      %v4979 = vsel %vm2240, %v4974, %v4978
      %v4980 = vrot.slane %v4748, 2
      %v4981 = vrot.slane %v4750, 2
      %v4982 = vsel %vm2240, %v4980, %v4981
      %v4983 = vrot.slane %v4749, 2
      %v4984 = vrot.slane %v4751, 2
      %v4985 = vsel %vm2240, %v4983, %v4984
      %v4986 = vrot.slane %v4752, 2
      %v4987 = vsel %vm2240, %v4981, %v4986
      %v4988 = vrot.slane %v4753, 2
      %v4989 = vsel %vm2240, %v4984, %v4988
      %v4990 = vrot.slane %v4754, 2
      %v4991 = vrot.slane %v4756, 2
      %v4992 = vsel %vm2240, %v4990, %v4991
      %v4993 = vrot.slane %v4755, 2
      %v4994 = vrot.slane %v4757, 2
      %v4995 = vsel %vm2240, %v4993, %v4994
      %v4996 = vrot.slane %v4758, 2
      %v4997 = vsel %vm2240, %v4991, %v4996
      %v4998 = vrot.slane %v4759, 2
      %v4999 = vsel %vm2240, %v4994, %v4998
      %v5000 = vrot.slane %v4760, 2
      %v5001 = vrot.slane %v4762, 2
      %v5002 = vsel %vm2240, %v5000, %v5001
      %v5003 = vrot.slane %v4761, 2
      %v5004 = vrot.slane %v4763, 2
      %v5005 = vsel %vm2240, %v5003, %v5004
      %v5006 = vrot.slane %v4764, 2
      %v5007 = vsel %vm2240, %v5001, %v5006
      %v5008 = vrot.slane %v4765, 2
      %v5009 = vsel %vm2240, %v5004, %v5008
      %v5010 = vrot.slane %v4766, 2
      %v5011 = vrot.slane %v4768, 2
      %v5012 = vsel %vm2240, %v5010, %v5011
      %v5013 = vrot.slane %v4767, 2
      %v5014 = vrot.slane %v4769, 2
      %v5015 = vsel %vm2240, %v5013, %v5014
      %v5016 = vrot.slane %v4770, 2
      %v5017 = vsel %vm2240, %v5011, %v5016
      %v5018 = vrot.slane %v4771, 2
      %v5019 = vsel %vm2240, %v5014, %v5018
      %v5020 = vrot.slane %v4772, 2
      %v5021 = vrot.slane %v4774, 2
      %v5022 = vsel %vm2240, %v5020, %v5021
      %v5023 = vrot.slane %v4773, 2
      %v5024 = vrot.slane %v4775, 2
      %v5025 = vsel %vm2240, %v5023, %v5024
      %v5026 = vrot.slane %v4776, 2
      %v5027 = vsel %vm2240, %v5021, %v5026
      %v5028 = vrot.slane %v4777, 2
      %v5029 = vsel %vm2240, %v5024, %v5028
      %v5030 = vrot.slane %v4778, 2
      %v5031 = vrot.slane %v4780, 2
      %v5032 = vsel %vm2240, %v5030, %v5031
      %v5033 = vrot.slane %v4779, 2
      %v5034 = vrot.slane %v4781, 2
      %v5035 = vsel %vm2240, %v5033, %v5034
      %v5036 = vrot.slane %v4782, 2
      %v5037 = vsel %vm2240, %v5031, %v5036
      %v5038 = vrot.slane %v4783, 2
      %v5039 = vsel %vm2240, %v5034, %v5038
      %v5104 = vadd.f32 %v4547, %v4882
      %v5105 = vadd.f32 %v4548, %v4885
      %v5106 = vadd.f32 %v4549, %v4887
      %v5107 = vadd.f32 %v4550, %v4889
      %v5108 = vadd.f32 %v4551, %v4892
      %v5109 = vadd.f32 %v4552, %v4895
      %v5110 = vadd.f32 %v4553, %v4897
      %v5111 = vadd.f32 %v4554, %v4899
      %v5112 = vadd.f32 %v4555, %v4902
      %v5113 = vadd.f32 %v4556, %v4905
      %v5114 = vadd.f32 %v4557, %v4907
      %v5115 = vadd.f32 %v4558, %v4909
      %v5116 = vadd.f32 %v4559, %v4912
      %v5117 = vadd.f32 %v4560, %v4915
      %v5118 = vadd.f32 %v4561, %v4917
      %v5119 = vadd.f32 %v4562, %v4919
      %v5120 = vadd.f32 %v4563, %v4922
      %v5121 = vadd.f32 %v4564, %v4925
      %v5122 = vadd.f32 %v4565, %v4927
      %v5123 = vadd.f32 %v4566, %v4929
      %v5124 = vadd.f32 %v4567, %v4932
      %v5125 = vadd.f32 %v4568, %v4935
      %v5126 = vadd.f32 %v4569, %v4937
      %v5127 = vadd.f32 %v4570, %v4939
      %v5128 = vadd.f32 %v4571, %v4942
      %v5129 = vadd.f32 %v4572, %v4945
      %v5130 = vadd.f32 %v4573, %v4947
      %v5131 = vadd.f32 %v4574, %v4949
      %v5132 = vadd.f32 %v4575, %v4952
      %v5133 = vadd.f32 %v4576, %v4955
      %v5134 = vadd.f32 %v4577, %v4957
      %v5135 = vadd.f32 %v4578, %v4959
      %v5136 = vadd.f32 %v4579, %v4962
      %v5137 = vadd.f32 %v4580, %v4965
      %v5138 = vadd.f32 %v4581, %v4967
      %v5139 = vadd.f32 %v4582, %v4969
      %v5140 = vadd.f32 %v4583, %v4972
      %v5141 = vadd.f32 %v4584, %v4975
      %v5142 = vadd.f32 %v4585, %v4977
      %v5143 = vadd.f32 %v4586, %v4979
      %v5144 = vadd.f32 %v4587, %v4982
      %v5145 = vadd.f32 %v4588, %v4985
      %v5146 = vadd.f32 %v4589, %v4987
      %v5147 = vadd.f32 %v4590, %v4989
      %v5148 = vadd.f32 %v4591, %v4992
      %v5149 = vadd.f32 %v4592, %v4995
      %v5150 = vadd.f32 %v4593, %v4997
      %v5151 = vadd.f32 %v4594, %v4999
      %v5152 = vadd.f32 %v4595, %v5002
      %v5153 = vadd.f32 %v4596, %v5005
      %v5154 = vadd.f32 %v4597, %v5007
      %v5155 = vadd.f32 %v4598, %v5009
      %v5156 = vadd.f32 %v4599, %v5012
      %v5157 = vadd.f32 %v4600, %v5015
      %v5158 = vadd.f32 %v4601, %v5017
      %v5159 = vadd.f32 %v4602, %v5019
      %v5160 = vadd.f32 %v4603, %v5022
      %v5161 = vadd.f32 %v4604, %v5025
      %v5162 = vadd.f32 %v4605, %v5027
      %v5163 = vadd.f32 %v4606, %v5029
      %v5164 = vadd.f32 %v4607, %v5032
      %v5165 = vadd.f32 %v4608, %v5035
      %v5166 = vadd.f32 %v4609, %v5037
      %v5167 = vadd.f32 %v4610, %v5039
      %v5168 = vld [vmem:[%s4] sm:$0x3]
      %v5170 = vlaneseq
      %v5171 = vshrl.u32 %v5170, 7
      %v5172 = vsub.s32 0, %v5171
      %v5173 = vrot.slane %v5168, %v5172
      %v5174 = vlaneseq
      %v5175 = vshrl.u32 %v5174, 7
      %v5176 = vsub.s32 1, %v5175
      %v5177 = vrot.slane %v5168, %v5176
      %v5180 = vadd.f32 %v5104, %v5173
      %v5181 = vadd.f32 %v5105, %v5177
      %v5182 = vadd.f32 %v5106, %v5173
      %v5183 = vadd.f32 %v5107, %v5177
      %v5184 = vadd.f32 %v5108, %v5173
      %v5185 = vadd.f32 %v5109, %v5177
      %v5186 = vadd.f32 %v5110, %v5173
      %v5187 = vadd.f32 %v5111, %v5177
      %v5188 = vadd.f32 %v5112, %v5173
      %v5189 = vadd.f32 %v5113, %v5177
      %v5190 = vadd.f32 %v5114, %v5173
      %v5191 = vadd.f32 %v5115, %v5177
      %v5192 = vadd.f32 %v5116, %v5173
      %v5193 = vadd.f32 %v5117, %v5177
      %v5194 = vadd.f32 %v5118, %v5173
      %v5195 = vadd.f32 %v5119, %v5177
      %v5196 = vadd.f32 %v5120, %v5173
      %v5197 = vadd.f32 %v5121, %v5177
      %v5198 = vadd.f32 %v5122, %v5173
      %v5199 = vadd.f32 %v5123, %v5177
      %v5200 = vadd.f32 %v5124, %v5173
      %v5201 = vadd.f32 %v5125, %v5177
      %v5202 = vadd.f32 %v5126, %v5173
      %v5203 = vadd.f32 %v5127, %v5177
      %v5204 = vadd.f32 %v5128, %v5173
      %v5205 = vadd.f32 %v5129, %v5177
      %v5206 = vadd.f32 %v5130, %v5173
      %v5207 = vadd.f32 %v5131, %v5177
      %v5208 = vadd.f32 %v5132, %v5173
      %v5209 = vadd.f32 %v5133, %v5177
      %v5210 = vadd.f32 %v5134, %v5173
      %v5211 = vadd.f32 %v5135, %v5177
      %v5212 = vadd.f32 %v5136, %v5173
      %v5213 = vadd.f32 %v5137, %v5177
      %v5214 = vadd.f32 %v5138, %v5173
      %v5215 = vadd.f32 %v5139, %v5177
      %v5216 = vadd.f32 %v5140, %v5173
      %v5217 = vadd.f32 %v5141, %v5177
      %v5218 = vadd.f32 %v5142, %v5173
      %v5219 = vadd.f32 %v5143, %v5177
      %v5220 = vadd.f32 %v5144, %v5173
      %v5221 = vadd.f32 %v5145, %v5177
      %v5222 = vadd.f32 %v5146, %v5173
      %v5223 = vadd.f32 %v5147, %v5177
      %v5224 = vadd.f32 %v5148, %v5173
      %v5225 = vadd.f32 %v5149, %v5177
      %v5226 = vadd.f32 %v5150, %v5173
      %v5227 = vadd.f32 %v5151, %v5177
      %v5228 = vadd.f32 %v5152, %v5173
      %v5229 = vadd.f32 %v5153, %v5177
      %v5230 = vadd.f32 %v5154, %v5173
      %v5231 = vadd.f32 %v5155, %v5177
      %v5232 = vadd.f32 %v5156, %v5173
      %v5233 = vadd.f32 %v5157, %v5177
      %v5234 = vadd.f32 %v5158, %v5173
      %v5235 = vadd.f32 %v5159, %v5177
      %v5236 = vadd.f32 %v5160, %v5173
      %v5237 = vadd.f32 %v5161, %v5177
      %v5238 = vadd.f32 %v5162, %v5173
      %v5239 = vadd.f32 %v5163, %v5177
      %v5240 = vadd.f32 %v5164, %v5173
      %v5241 = vadd.f32 %v5165, %v5177
      %v5242 = vadd.f32 %v5166, %v5173
      %v5243 = vadd.f32 %v5167, %v5177
      %v5244 = vadd.f32 %v5180, %v557
      %v5245 = vadd.f32 %v5181, %v559
      %v5246 = vadd.f32 %v5182, %v563
      %v5247 = vadd.f32 %v5183, %v565
      %v5248 = vadd.f32 %v5184, %v569
      %v5249 = vadd.f32 %v5185, %v571
      %v5250 = vadd.f32 %v5186, %v575
      %v5251 = vadd.f32 %v5187, %v577
      %v5252 = vadd.f32 %v5188, %v581
      %v5253 = vadd.f32 %v5189, %v583
      %v5254 = vadd.f32 %v5190, %v587
      %v5255 = vadd.f32 %v5191, %v589
      %v5256 = vadd.f32 %v5192, %v593
      %v5257 = vadd.f32 %v5193, %v595
      %v5258 = vadd.f32 %v5194, %v599
      %v5259 = vadd.f32 %v5195, %v601
      %v5260 = vadd.f32 %v5196, %v605
      %v5261 = vadd.f32 %v5197, %v607
      %v5262 = vadd.f32 %v5198, %v611
      %v5263 = vadd.f32 %v5199, %v613
      %v5264 = vadd.f32 %v5200, %v617
      %v5265 = vadd.f32 %v5201, %v619
      %v5266 = vadd.f32 %v5202, %v623
      %v5267 = vadd.f32 %v5203, %v625
      %v5268 = vadd.f32 %v5204, %v629
      %v5269 = vadd.f32 %v5205, %v631
      %v5270 = vadd.f32 %v5206, %v635
      %v5271 = vadd.f32 %v5207, %v637
      %v5272 = vadd.f32 %v5208, %v641
      %v5273 = vadd.f32 %v5209, %v643
      %v5274 = vadd.f32 %v5210, %v647
      %v5275 = vadd.f32 %v5211, %v649
      %v5276 = vadd.f32 %v5212, %v653
      %v5277 = vadd.f32 %v5213, %v655
      %v5278 = vadd.f32 %v5214, %v659
      %v5279 = vadd.f32 %v5215, %v661
      %v5280 = vadd.f32 %v5216, %v665
      %v5281 = vadd.f32 %v5217, %v667
      %v5282 = vadd.f32 %v5218, %v671
      %v5283 = vadd.f32 %v5219, %v673
      %v5284 = vadd.f32 %v5220, %v677
      %v5285 = vadd.f32 %v5221, %v679
      %v5286 = vadd.f32 %v5222, %v683
      %v5287 = vadd.f32 %v5223, %v685
      %v5288 = vadd.f32 %v5224, %v689
      %v5289 = vadd.f32 %v5225, %v691
      %v5290 = vadd.f32 %v5226, %v695
      %v5291 = vadd.f32 %v5227, %v697
      %v5292 = vadd.f32 %v5228, %v701
      %v5293 = vadd.f32 %v5229, %v703
      %v5294 = vadd.f32 %v5230, %v707
      %v5295 = vadd.f32 %v5231, %v709
      %v5296 = vadd.f32 %v5232, %v713
      %v5297 = vadd.f32 %v5233, %v715
      %v5298 = vadd.f32 %v5234, %v719
      %v5299 = vadd.f32 %v5235, %v721
      %v5300 = vadd.f32 %v5236, %v725
      %v5301 = vadd.f32 %v5237, %v727
      %v5302 = vadd.f32 %v5238, %v731
      %v5303 = vadd.f32 %v5239, %v733
      %v5304 = vadd.f32 %v5240, %v737
      %v5305 = vadd.f32 %v5241, %v739
      %v5306 = vadd.f32 %v5242, %v743
      %v5307 = vadd.f32 %v5243, %v745
      %v5308 = vadd.f32 %v5244, %v5245
      %5309 = vadd.xlane.f32.xlu0 %v5308
      %v5310 = vpop.xlane.xlu0 %5309
      %v5311 = vadd.f32 %v5246, %v5247
      %5312 = vadd.xlane.f32.xlu0 %v5311
      %v5313 = vpop.xlane.xlu0 %5312
      %v5314 = vadd.f32 %v5248, %v5249
      %5315 = vadd.xlane.f32.xlu0 %v5314
      %v5316 = vpop.xlane.xlu0 %5315
      %v5317 = vadd.f32 %v5250, %v5251
      %5318 = vadd.xlane.f32.xlu0 %v5317
      %v5319 = vpop.xlane.xlu0 %5318
      %v5320 = vadd.f32 %v5252, %v5253
      %5321 = vadd.xlane.f32.xlu0 %v5320
      %v5322 = vpop.xlane.xlu0 %5321
      %v5323 = vadd.f32 %v5254, %v5255
      %5324 = vadd.xlane.f32.xlu0 %v5323
      %v5325 = vpop.xlane.xlu0 %5324
      %v5326 = vadd.f32 %v5256, %v5257
      %5327 = vadd.xlane.f32.xlu0 %v5326
      %v5328 = vpop.xlane.xlu0 %5327
      %v5329 = vadd.f32 %v5258, %v5259
      %5330 = vadd.xlane.f32.xlu0 %v5329
      %v5331 = vpop.xlane.xlu0 %5330
      %v5332 = vadd.f32 %v5260, %v5261
      %5333 = vadd.xlane.f32.xlu0 %v5332
      %v5334 = vpop.xlane.xlu0 %5333
      %v5335 = vadd.f32 %v5262, %v5263
      %5336 = vadd.xlane.f32.xlu0 %v5335
      %v5337 = vpop.xlane.xlu0 %5336
      %v5338 = vadd.f32 %v5264, %v5265
      %5339 = vadd.xlane.f32.xlu0 %v5338
      %v5340 = vpop.xlane.xlu0 %5339
      %v5341 = vadd.f32 %v5266, %v5267
      %5342 = vadd.xlane.f32.xlu0 %v5341
      %v5343 = vpop.xlane.xlu0 %5342
      %v5344 = vadd.f32 %v5268, %v5269
      %5345 = vadd.xlane.f32.xlu0 %v5344
      %v5346 = vpop.xlane.xlu0 %5345
      %v5347 = vadd.f32 %v5270, %v5271
      %5348 = vadd.xlane.f32.xlu0 %v5347
      %v5349 = vpop.xlane.xlu0 %5348
      %v5350 = vadd.f32 %v5272, %v5273
      %5351 = vadd.xlane.f32.xlu0 %v5350
      %v5352 = vpop.xlane.xlu0 %5351
      %v5353 = vadd.f32 %v5274, %v5275
      %5354 = vadd.xlane.f32.xlu0 %v5353
      %v5355 = vpop.xlane.xlu0 %5354
      %v5356 = vadd.f32 %v5276, %v5277
      %5357 = vadd.xlane.f32.xlu0 %v5356
      %v5358 = vpop.xlane.xlu0 %5357
      %v5359 = vadd.f32 %v5278, %v5279
      %5360 = vadd.xlane.f32.xlu0 %v5359
      %v5361 = vpop.xlane.xlu0 %5360
      %v5362 = vadd.f32 %v5280, %v5281
      %5363 = vadd.xlane.f32.xlu0 %v5362
      %v5364 = vpop.xlane.xlu0 %5363
      %v5365 = vadd.f32 %v5282, %v5283
      %5366 = vadd.xlane.f32.xlu0 %v5365
      %v5367 = vpop.xlane.xlu0 %5366
      %v5368 = vadd.f32 %v5284, %v5285
      %5369 = vadd.xlane.f32.xlu0 %v5368
      %v5370 = vpop.xlane.xlu0 %5369
      %v5371 = vadd.f32 %v5286, %v5287
      %5372 = vadd.xlane.f32.xlu0 %v5371
      %v5373 = vpop.xlane.xlu0 %5372
      %v5374 = vadd.f32 %v5288, %v5289
      %5375 = vadd.xlane.f32.xlu0 %v5374
      %v5376 = vpop.xlane.xlu0 %5375
      %v5377 = vadd.f32 %v5290, %v5291
      %5378 = vadd.xlane.f32.xlu0 %v5377
      %v5379 = vpop.xlane.xlu0 %5378
      %v5380 = vadd.f32 %v5292, %v5293
      %5381 = vadd.xlane.f32.xlu0 %v5380
      %v5382 = vpop.xlane.xlu0 %5381
      %v5383 = vadd.f32 %v5294, %v5295
      %5384 = vadd.xlane.f32.xlu0 %v5383
      %v5385 = vpop.xlane.xlu0 %5384
      %v5386 = vadd.f32 %v5296, %v5297
      %5387 = vadd.xlane.f32.xlu0 %v5386
      %v5388 = vpop.xlane.xlu0 %5387
      %v5389 = vadd.f32 %v5298, %v5299
      %5390 = vadd.xlane.f32.xlu0 %v5389
      %v5391 = vpop.xlane.xlu0 %5390
      %v5392 = vadd.f32 %v5300, %v5301
      %5393 = vadd.xlane.f32.xlu0 %v5392
      %v5394 = vpop.xlane.xlu0 %5393
      %v5395 = vadd.f32 %v5302, %v5303
      %5396 = vadd.xlane.f32.xlu0 %v5395
      %v5397 = vpop.xlane.xlu0 %5396
      %v5398 = vadd.f32 %v5304, %v5305
      %5399 = vadd.xlane.f32.xlu0 %v5398
      %v5400 = vpop.xlane.xlu0 %5399
      %v5401 = vadd.f32 %v5306, %v5307
      %5402 = vadd.xlane.f32.xlu0 %v5401
      %v5403 = vpop.xlane.xlu0 %5402
      %v5404 = vrcp.pop 256.0
      %v5405 = vmul.f32 %v5310, %v5404
      %v5406 = vmul.f32 %v5313, %v5404
      %v5407 = vmul.f32 %v5316, %v5404
      %v5408 = vmul.f32 %v5319, %v5404
      %v5409 = vmul.f32 %v5322, %v5404
      %v5410 = vmul.f32 %v5325, %v5404
      %v5411 = vmul.f32 %v5328, %v5404
      %v5412 = vmul.f32 %v5331, %v5404
      %v5413 = vmul.f32 %v5334, %v5404
      %v5414 = vmul.f32 %v5337, %v5404
      %v5415 = vmul.f32 %v5340, %v5404
      %v5416 = vmul.f32 %v5343, %v5404
      %v5417 = vmul.f32 %v5346, %v5404
      %v5418 = vmul.f32 %v5349, %v5404
      %v5419 = vmul.f32 %v5352, %v5404
      %v5420 = vmul.f32 %v5355, %v5404
      %v5421 = vmul.f32 %v5358, %v5404
      %v5422 = vmul.f32 %v5361, %v5404
      %v5423 = vmul.f32 %v5364, %v5404
      %v5424 = vmul.f32 %v5367, %v5404
      %v5425 = vmul.f32 %v5370, %v5404
      %v5426 = vmul.f32 %v5373, %v5404
      %v5427 = vmul.f32 %v5376, %v5404
      %v5428 = vmul.f32 %v5379, %v5404
      %v5429 = vmul.f32 %v5382, %v5404
      %v5430 = vmul.f32 %v5385, %v5404
      %v5431 = vmul.f32 %v5388, %v5404
      %v5432 = vmul.f32 %v5391, %v5404
      %v5433 = vmul.f32 %v5394, %v5404
      %v5434 = vmul.f32 %v5397, %v5404
      %v5435 = vmul.f32 %v5400, %v5404
      %v5436 = vmul.f32 %v5403, %v5404
      %v5437 = vsub.f32 %v5244, %v5405
      %v5438 = vsub.f32 %v5245, %v5405
      %v5439 = vsub.f32 %v5246, %v5406
      %v5440 = vsub.f32 %v5247, %v5406
      %v5441 = vsub.f32 %v5248, %v5407
      %v5442 = vsub.f32 %v5249, %v5407
      %v5443 = vsub.f32 %v5250, %v5408
      %v5444 = vsub.f32 %v5251, %v5408
      %v5445 = vsub.f32 %v5252, %v5409
      %v5446 = vsub.f32 %v5253, %v5409
      %v5447 = vsub.f32 %v5254, %v5410
      %v5448 = vsub.f32 %v5255, %v5410
      %v5449 = vsub.f32 %v5256, %v5411
      %v5450 = vsub.f32 %v5257, %v5411
      %v5451 = vsub.f32 %v5258, %v5412
      %v5452 = vsub.f32 %v5259, %v5412
      %v5453 = vsub.f32 %v5260, %v5413
      %v5454 = vsub.f32 %v5261, %v5413
      %v5455 = vsub.f32 %v5262, %v5414
      %v5456 = vsub.f32 %v5263, %v5414
      %v5457 = vsub.f32 %v5264, %v5415
      %v5458 = vsub.f32 %v5265, %v5415
      %v5459 = vsub.f32 %v5266, %v5416
      %v5460 = vsub.f32 %v5267, %v5416
      %v5461 = vsub.f32 %v5268, %v5417
      %v5462 = vsub.f32 %v5269, %v5417
      %v5463 = vsub.f32 %v5270, %v5418
      %v5464 = vsub.f32 %v5271, %v5418
      %v5465 = vsub.f32 %v5272, %v5419
      %v5466 = vsub.f32 %v5273, %v5419
      %v5467 = vsub.f32 %v5274, %v5420
      %v5468 = vsub.f32 %v5275, %v5420
      %v5469 = vsub.f32 %v5276, %v5421
      %v5470 = vsub.f32 %v5277, %v5421
      %v5471 = vsub.f32 %v5278, %v5422
      %v5472 = vsub.f32 %v5279, %v5422
      %v5473 = vsub.f32 %v5280, %v5423
      %v5474 = vsub.f32 %v5281, %v5423
      %v5475 = vsub.f32 %v5282, %v5424
      %v5476 = vsub.f32 %v5283, %v5424
      %v5477 = vsub.f32 %v5284, %v5425
      %v5478 = vsub.f32 %v5285, %v5425
      %v5479 = vsub.f32 %v5286, %v5426
      %v5480 = vsub.f32 %v5287, %v5426
      %v5481 = vsub.f32 %v5288, %v5427
      %v5482 = vsub.f32 %v5289, %v5427
      %v5483 = vsub.f32 %v5290, %v5428
      %v5484 = vsub.f32 %v5291, %v5428
      %v5485 = vsub.f32 %v5292, %v5429
      %v5486 = vsub.f32 %v5293, %v5429
      %v5487 = vsub.f32 %v5294, %v5430
      %v5488 = vsub.f32 %v5295, %v5430
      %v5489 = vsub.f32 %v5296, %v5431
      %v5490 = vsub.f32 %v5297, %v5431
      %v5491 = vsub.f32 %v5298, %v5432
      %v5492 = vsub.f32 %v5299, %v5432
      %v5493 = vsub.f32 %v5300, %v5433
      %v5494 = vsub.f32 %v5301, %v5433
      %v5495 = vsub.f32 %v5302, %v5434
      %v5496 = vsub.f32 %v5303, %v5434
      %v5497 = vsub.f32 %v5304, %v5435
      %v5498 = vsub.f32 %v5305, %v5435
      %v5499 = vsub.f32 %v5306, %v5436
      %v5500 = vsub.f32 %v5307, %v5436
      %v5501 = vmul.f32 %v5437, %v5437
      %v5502 = vmul.f32 %v5438, %v5438
      %v5503 = vmul.f32 %v5439, %v5439
      %v5504 = vmul.f32 %v5440, %v5440
      %v5505 = vmul.f32 %v5441, %v5441
      %v5506 = vmul.f32 %v5442, %v5442
      %v5507 = vmul.f32 %v5443, %v5443
      %v5508 = vmul.f32 %v5444, %v5444
      %v5509 = vmul.f32 %v5445, %v5445
      %v5510 = vmul.f32 %v5446, %v5446
      %v5511 = vmul.f32 %v5447, %v5447
      %v5512 = vmul.f32 %v5448, %v5448
      %v5513 = vmul.f32 %v5449, %v5449
      %v5514 = vmul.f32 %v5450, %v5450
      %v5515 = vmul.f32 %v5451, %v5451
      %v5516 = vmul.f32 %v5452, %v5452
      %v5517 = vmul.f32 %v5453, %v5453
      %v5518 = vmul.f32 %v5454, %v5454
      %v5519 = vmul.f32 %v5455, %v5455
      %v5520 = vmul.f32 %v5456, %v5456
      %v5521 = vmul.f32 %v5457, %v5457
      %v5522 = vmul.f32 %v5458, %v5458
      %v5523 = vmul.f32 %v5459, %v5459
      %v5524 = vmul.f32 %v5460, %v5460
      %v5525 = vmul.f32 %v5461, %v5461
      %v5526 = vmul.f32 %v5462, %v5462
      %v5527 = vmul.f32 %v5463, %v5463
      %v5528 = vmul.f32 %v5464, %v5464
      %v5529 = vmul.f32 %v5465, %v5465
      %v5530 = vmul.f32 %v5466, %v5466
      %v5531 = vmul.f32 %v5467, %v5467
      %v5532 = vmul.f32 %v5468, %v5468
      %v5533 = vmul.f32 %v5469, %v5469
      %v5534 = vmul.f32 %v5470, %v5470
      %v5535 = vmul.f32 %v5471, %v5471
      %v5536 = vmul.f32 %v5472, %v5472
      %v5537 = vmul.f32 %v5473, %v5473
      %v5538 = vmul.f32 %v5474, %v5474
      %v5539 = vmul.f32 %v5475, %v5475
      %v5540 = vmul.f32 %v5476, %v5476
      %v5541 = vmul.f32 %v5477, %v5477
      %v5542 = vmul.f32 %v5478, %v5478
      %v5543 = vmul.f32 %v5479, %v5479
      %v5544 = vmul.f32 %v5480, %v5480
      %v5545 = vmul.f32 %v5481, %v5481
      %v5546 = vmul.f32 %v5482, %v5482
      %v5547 = vmul.f32 %v5483, %v5483
      %v5548 = vmul.f32 %v5484, %v5484
      %v5549 = vmul.f32 %v5485, %v5485
      %v5550 = vmul.f32 %v5486, %v5486
      %v5551 = vmul.f32 %v5487, %v5487
      %v5552 = vmul.f32 %v5488, %v5488
      %v5553 = vmul.f32 %v5489, %v5489
      %v5554 = vmul.f32 %v5490, %v5490
      %v5555 = vmul.f32 %v5491, %v5491
      %v5556 = vmul.f32 %v5492, %v5492
      %v5557 = vmul.f32 %v5493, %v5493
      %v5558 = vmul.f32 %v5494, %v5494
      %v5559 = vmul.f32 %v5495, %v5495
      %v5560 = vmul.f32 %v5496, %v5496
      %v5561 = vmul.f32 %v5497, %v5497
      %v5562 = vmul.f32 %v5498, %v5498
      %v5563 = vmul.f32 %v5499, %v5499
      %v5564 = vmul.f32 %v5500, %v5500
      %v5565 = vadd.f32 %v5501, %v5502
      %5566 = vadd.xlane.f32.xlu0 %v5565
      %v5567 = vpop.xlane.xlu0 %5566
      %v5568 = vadd.f32 %v5503, %v5504
      %5569 = vadd.xlane.f32.xlu0 %v5568
      %v5570 = vpop.xlane.xlu0 %5569
      %v5571 = vadd.f32 %v5505, %v5506
      %5572 = vadd.xlane.f32.xlu0 %v5571
      %v5573 = vpop.xlane.xlu0 %5572
      %v5574 = vadd.f32 %v5507, %v5508
      %5575 = vadd.xlane.f32.xlu0 %v5574
      %v5576 = vpop.xlane.xlu0 %5575
      %v5577 = vadd.f32 %v5509, %v5510
      %5578 = vadd.xlane.f32.xlu0 %v5577
      %v5579 = vpop.xlane.xlu0 %5578
      %v5580 = vadd.f32 %v5511, %v5512
      %5581 = vadd.xlane.f32.xlu0 %v5580
      %v5582 = vpop.xlane.xlu0 %5581
      %v5583 = vadd.f32 %v5513, %v5514
      %5584 = vadd.xlane.f32.xlu0 %v5583
      %v5585 = vpop.xlane.xlu0 %5584
      %v5586 = vadd.f32 %v5515, %v5516
      %5587 = vadd.xlane.f32.xlu0 %v5586
      %v5588 = vpop.xlane.xlu0 %5587
      %v5589 = vadd.f32 %v5517, %v5518
      %5590 = vadd.xlane.f32.xlu0 %v5589
      %v5591 = vpop.xlane.xlu0 %5590
      %v5592 = vadd.f32 %v5519, %v5520
      %5593 = vadd.xlane.f32.xlu0 %v5592
      %v5594 = vpop.xlane.xlu0 %5593
      %v5595 = vadd.f32 %v5521, %v5522
      %5596 = vadd.xlane.f32.xlu0 %v5595
      %v5597 = vpop.xlane.xlu0 %5596
      %v5598 = vadd.f32 %v5523, %v5524
      %5599 = vadd.xlane.f32.xlu0 %v5598
      %v5600 = vpop.xlane.xlu0 %5599
      %v5601 = vadd.f32 %v5525, %v5526
      %5602 = vadd.xlane.f32.xlu0 %v5601
      %v5603 = vpop.xlane.xlu0 %5602
      %v5604 = vadd.f32 %v5527, %v5528
      %5605 = vadd.xlane.f32.xlu0 %v5604
      %v5606 = vpop.xlane.xlu0 %5605
      %v5607 = vadd.f32 %v5529, %v5530
      %5608 = vadd.xlane.f32.xlu0 %v5607
      %v5609 = vpop.xlane.xlu0 %5608
      %v5610 = vadd.f32 %v5531, %v5532
      %5611 = vadd.xlane.f32.xlu0 %v5610
      %v5612 = vpop.xlane.xlu0 %5611
      %v5613 = vadd.f32 %v5533, %v5534
      %5614 = vadd.xlane.f32.xlu0 %v5613
      %v5615 = vpop.xlane.xlu0 %5614
      %v5616 = vadd.f32 %v5535, %v5536
      %5617 = vadd.xlane.f32.xlu0 %v5616
      %v5618 = vpop.xlane.xlu0 %5617
      %v5619 = vadd.f32 %v5537, %v5538
      %5620 = vadd.xlane.f32.xlu0 %v5619
      %v5621 = vpop.xlane.xlu0 %5620
      %v5622 = vadd.f32 %v5539, %v5540
      %5623 = vadd.xlane.f32.xlu0 %v5622
      %v5624 = vpop.xlane.xlu0 %5623
      %v5625 = vadd.f32 %v5541, %v5542
      %5626 = vadd.xlane.f32.xlu0 %v5625
      %v5627 = vpop.xlane.xlu0 %5626
      %v5628 = vadd.f32 %v5543, %v5544
      %5629 = vadd.xlane.f32.xlu0 %v5628
      %v5630 = vpop.xlane.xlu0 %5629
      %v5631 = vadd.f32 %v5545, %v5546
      %5632 = vadd.xlane.f32.xlu0 %v5631
      %v5633 = vpop.xlane.xlu0 %5632
      %v5634 = vadd.f32 %v5547, %v5548
      %5635 = vadd.xlane.f32.xlu0 %v5634
      %v5636 = vpop.xlane.xlu0 %5635
      %v5637 = vadd.f32 %v5549, %v5550
      %5638 = vadd.xlane.f32.xlu0 %v5637
      %v5639 = vpop.xlane.xlu0 %5638
      %v5640 = vadd.f32 %v5551, %v5552
      %5641 = vadd.xlane.f32.xlu0 %v5640
      %v5642 = vpop.xlane.xlu0 %5641
      %v5643 = vadd.f32 %v5553, %v5554
      %5644 = vadd.xlane.f32.xlu0 %v5643
      %v5645 = vpop.xlane.xlu0 %5644
      %v5646 = vadd.f32 %v5555, %v5556
      %5647 = vadd.xlane.f32.xlu0 %v5646
      %v5648 = vpop.xlane.xlu0 %5647
      %v5649 = vadd.f32 %v5557, %v5558
      %5650 = vadd.xlane.f32.xlu0 %v5649
      %v5651 = vpop.xlane.xlu0 %5650
      %v5652 = vadd.f32 %v5559, %v5560
      %5653 = vadd.xlane.f32.xlu0 %v5652
      %v5654 = vpop.xlane.xlu0 %5653
      %v5655 = vadd.f32 %v5561, %v5562
      %5656 = vadd.xlane.f32.xlu0 %v5655
      %v5657 = vpop.xlane.xlu0 %5656
      %v5658 = vadd.f32 %v5563, %v5564
      %5659 = vadd.xlane.f32.xlu0 %v5658
      %v5660 = vpop.xlane.xlu0 %5659
      %v5661 = vmul.f32 %v5567, %v5404
      %v5662 = vmul.f32 %v5570, %v5404
      %v5663 = vmul.f32 %v5573, %v5404
      %v5664 = vmul.f32 %v5576, %v5404
      %v5665 = vmul.f32 %v5579, %v5404
      %v5666 = vmul.f32 %v5582, %v5404
      %v5667 = vmul.f32 %v5585, %v5404
      %v5668 = vmul.f32 %v5588, %v5404
      %v5669 = vmul.f32 %v5591, %v5404
      %v5670 = vmul.f32 %v5594, %v5404
      %v5671 = vmul.f32 %v5597, %v5404
      %v5672 = vmul.f32 %v5600, %v5404
      %v5673 = vmul.f32 %v5603, %v5404
      %v5674 = vmul.f32 %v5606, %v5404
      %v5675 = vmul.f32 %v5609, %v5404
      %v5676 = vmul.f32 %v5612, %v5404
      %v5677 = vmul.f32 %v5615, %v5404
      %v5678 = vmul.f32 %v5618, %v5404
      %v5679 = vmul.f32 %v5621, %v5404
      %v5680 = vmul.f32 %v5624, %v5404
      %v5681 = vmul.f32 %v5627, %v5404
      %v5682 = vmul.f32 %v5630, %v5404
      %v5683 = vmul.f32 %v5633, %v5404
      %v5684 = vmul.f32 %v5636, %v5404
      %v5685 = vmul.f32 %v5639, %v5404
      %v5686 = vmul.f32 %v5642, %v5404
      %v5687 = vmul.f32 %v5645, %v5404
      %v5688 = vmul.f32 %v5648, %v5404
      %v5689 = vmul.f32 %v5651, %v5404
      %v5690 = vmul.f32 %v5654, %v5404
      %v5691 = vmul.f32 %v5657, %v5404
      %v5692 = vmul.f32 %v5660, %v5404
      %v5693 = vadd.f32 %v5661, 1e-05
      %v5694 = vadd.f32 %v5662, 1e-05
      %v5695 = vadd.f32 %v5663, 1e-05
      %v5696 = vadd.f32 %v5664, 1e-05
      %v5697 = vadd.f32 %v5665, 1e-05
      %v5698 = vadd.f32 %v5666, 1e-05
      %v5699 = vadd.f32 %v5667, 1e-05
      %v5700 = vadd.f32 %v5668, 1e-05
      %v5701 = vadd.f32 %v5669, 1e-05
      %v5702 = vadd.f32 %v5670, 1e-05
      %v5703 = vadd.f32 %v5671, 1e-05
      %v5704 = vadd.f32 %v5672, 1e-05
      %v5705 = vadd.f32 %v5673, 1e-05
      %v5706 = vadd.f32 %v5674, 1e-05
      %v5707 = vadd.f32 %v5675, 1e-05
      %v5708 = vadd.f32 %v5676, 1e-05
      %v5709 = vadd.f32 %v5677, 1e-05
      %v5710 = vadd.f32 %v5678, 1e-05
      %v5711 = vadd.f32 %v5679, 1e-05
      %v5712 = vadd.f32 %v5680, 1e-05
      %v5713 = vadd.f32 %v5681, 1e-05
      %v5714 = vadd.f32 %v5682, 1e-05
      %v5715 = vadd.f32 %v5683, 1e-05
      %v5716 = vadd.f32 %v5684, 1e-05
      %v5717 = vadd.f32 %v5685, 1e-05
      %v5718 = vadd.f32 %v5686, 1e-05
      %v5719 = vadd.f32 %v5687, 1e-05
      %v5720 = vadd.f32 %v5688, 1e-05
      %v5721 = vadd.f32 %v5689, 1e-05
      %v5722 = vadd.f32 %v5690, 1e-05
      %v5723 = vadd.f32 %v5691, 1e-05
      %v5724 = vadd.f32 %v5692, 1e-05
      %v5725 = vrsqrt.pop %v5693
      %v5726 = vrsqrt.pop %v5694
      %v5727 = vrsqrt.pop %v5695
      %v5728 = vrsqrt.pop %v5696
      %v5729 = vrsqrt.pop %v5697
      %v5730 = vrsqrt.pop %v5698
      %v5731 = vrsqrt.pop %v5699
      %v5732 = vrsqrt.pop %v5700
      %v5733 = vrsqrt.pop %v5701
      %v5734 = vrsqrt.pop %v5702
      %v5735 = vrsqrt.pop %v5703
      %v5736 = vrsqrt.pop %v5704
      %v5737 = vrsqrt.pop %v5705
      %v5738 = vrsqrt.pop %v5706
      %v5739 = vrsqrt.pop %v5707
      %v5740 = vrsqrt.pop %v5708
      %v5741 = vrsqrt.pop %v5709
      %v5742 = vrsqrt.pop %v5710
      %v5743 = vrsqrt.pop %v5711
      %v5744 = vrsqrt.pop %v5712
      %v5745 = vrsqrt.pop %v5713
      %v5746 = vrsqrt.pop %v5714
      %v5747 = vrsqrt.pop %v5715
      %v5748 = vrsqrt.pop %v5716
      %v5749 = vrsqrt.pop %v5717
      %v5750 = vrsqrt.pop %v5718
      %v5751 = vrsqrt.pop %v5719
      %v5752 = vrsqrt.pop %v5720
      %v5753 = vrsqrt.pop %v5721
      %v5754 = vrsqrt.pop %v5722
      %v5755 = vrsqrt.pop %v5723
      %v5756 = vrsqrt.pop %v5724
      %v5757 = vmul.f32 %v5437, %v5725
      %v5758 = vmul.f32 %v5438, %v5725
      %v5759 = vmul.f32 %v5439, %v5726
      %v5760 = vmul.f32 %v5440, %v5726
      %v5761 = vmul.f32 %v5441, %v5727
      %v5762 = vmul.f32 %v5442, %v5727
      %v5763 = vmul.f32 %v5443, %v5728
      %v5764 = vmul.f32 %v5444, %v5728
      %v5765 = vmul.f32 %v5445, %v5729
      %v5766 = vmul.f32 %v5446, %v5729
      %v5767 = vmul.f32 %v5447, %v5730
      %v5768 = vmul.f32 %v5448, %v5730
      %v5769 = vmul.f32 %v5449, %v5731
      %v5770 = vmul.f32 %v5450, %v5731
      %v5771 = vmul.f32 %v5451, %v5732
      %v5772 = vmul.f32 %v5452, %v5732
      %v5773 = vmul.f32 %v5453, %v5733
      %v5774 = vmul.f32 %v5454, %v5733
      %v5775 = vmul.f32 %v5455, %v5734
      %v5776 = vmul.f32 %v5456, %v5734
      %v5777 = vmul.f32 %v5457, %v5735
      %v5778 = vmul.f32 %v5458, %v5735
      %v5779 = vmul.f32 %v5459, %v5736
      %v5780 = vmul.f32 %v5460, %v5736
      %v5781 = vmul.f32 %v5461, %v5737
      %v5782 = vmul.f32 %v5462, %v5737
      %v5783 = vmul.f32 %v5463, %v5738
      %v5784 = vmul.f32 %v5464, %v5738
      %v5785 = vmul.f32 %v5465, %v5739
      %v5786 = vmul.f32 %v5466, %v5739
      %v5787 = vmul.f32 %v5467, %v5740
      %v5788 = vmul.f32 %v5468, %v5740
      %v5789 = vmul.f32 %v5469, %v5741
      %v5790 = vmul.f32 %v5470, %v5741
      %v5791 = vmul.f32 %v5471, %v5742
      %v5792 = vmul.f32 %v5472, %v5742
      %v5793 = vmul.f32 %v5473, %v5743
      %v5794 = vmul.f32 %v5474, %v5743
      %v5795 = vmul.f32 %v5475, %v5744
      %v5796 = vmul.f32 %v5476, %v5744
      %v5797 = vmul.f32 %v5477, %v5745
      %v5798 = vmul.f32 %v5478, %v5745
      %v5799 = vmul.f32 %v5479, %v5746
      %v5800 = vmul.f32 %v5480, %v5746
      %v5801 = vmul.f32 %v5481, %v5747
      %v5802 = vmul.f32 %v5482, %v5747
      %v5803 = vmul.f32 %v5483, %v5748
      %v5804 = vmul.f32 %v5484, %v5748
      %v5805 = vmul.f32 %v5485, %v5749
      %v5806 = vmul.f32 %v5486, %v5749
      %v5807 = vmul.f32 %v5487, %v5750
      %v5808 = vmul.f32 %v5488, %v5750
      %v5809 = vmul.f32 %v5489, %v5751
      %v5810 = vmul.f32 %v5490, %v5751
      %v5811 = vmul.f32 %v5491, %v5752
      %v5812 = vmul.f32 %v5492, %v5752
      %v5813 = vmul.f32 %v5493, %v5753
      %v5814 = vmul.f32 %v5494, %v5753
      %v5815 = vmul.f32 %v5495, %v5754
      %v5816 = vmul.f32 %v5496, %v5754
      %v5817 = vmul.f32 %v5497, %v5755
      %v5818 = vmul.f32 %v5498, %v5755
      %v5819 = vmul.f32 %v5499, %v5756
      %v5820 = vmul.f32 %v5500, %v5756
      %v5821 = vld [vmem:[%s5] sm:$0x3]
      %v5823 = vlaneseq
      %v5824 = vshrl.u32 %v5823, 7
      %v5825 = vsub.s32 0, %v5824
      %v5826 = vrot.slane %v5821, %v5825
      %v5827 = vlaneseq
      %v5828 = vshrl.u32 %v5827, 7
      %v5829 = vsub.s32 1, %v5828
      %v5830 = vrot.slane %v5821, %v5829
      %v5833 = vmul.f32 %v5757, %v5826
      %v5834 = vmul.f32 %v5758, %v5830
      %v5835 = vmul.f32 %v5759, %v5826
      %v5836 = vmul.f32 %v5760, %v5830
      %v5837 = vmul.f32 %v5761, %v5826
      %v5838 = vmul.f32 %v5762, %v5830
      %v5839 = vmul.f32 %v5763, %v5826
      %v5840 = vmul.f32 %v5764, %v5830
      %v5841 = vmul.f32 %v5765, %v5826
      %v5842 = vmul.f32 %v5766, %v5830
      %v5843 = vmul.f32 %v5767, %v5826
      %v5844 = vmul.f32 %v5768, %v5830
      %v5845 = vmul.f32 %v5769, %v5826
      %v5846 = vmul.f32 %v5770, %v5830
      %v5847 = vmul.f32 %v5771, %v5826
      %v5848 = vmul.f32 %v5772, %v5830
      %v5849 = vmul.f32 %v5773, %v5826
      %v5850 = vmul.f32 %v5774, %v5830
      %v5851 = vmul.f32 %v5775, %v5826
      %v5852 = vmul.f32 %v5776, %v5830
      %v5853 = vmul.f32 %v5777, %v5826
      %v5854 = vmul.f32 %v5778, %v5830
      %v5855 = vmul.f32 %v5779, %v5826
      %v5856 = vmul.f32 %v5780, %v5830
      %v5857 = vmul.f32 %v5781, %v5826
      %v5858 = vmul.f32 %v5782, %v5830
      %v5859 = vmul.f32 %v5783, %v5826
      %v5860 = vmul.f32 %v5784, %v5830
      %v5861 = vmul.f32 %v5785, %v5826
      %v5862 = vmul.f32 %v5786, %v5830
      %v5863 = vmul.f32 %v5787, %v5826
      %v5864 = vmul.f32 %v5788, %v5830
      %v5865 = vmul.f32 %v5789, %v5826
      %v5866 = vmul.f32 %v5790, %v5830
      %v5867 = vmul.f32 %v5791, %v5826
      %v5868 = vmul.f32 %v5792, %v5830
      %v5869 = vmul.f32 %v5793, %v5826
      %v5870 = vmul.f32 %v5794, %v5830
      %v5871 = vmul.f32 %v5795, %v5826
      %v5872 = vmul.f32 %v5796, %v5830
      %v5873 = vmul.f32 %v5797, %v5826
      %v5874 = vmul.f32 %v5798, %v5830
      %v5875 = vmul.f32 %v5799, %v5826
      %v5876 = vmul.f32 %v5800, %v5830
      %v5877 = vmul.f32 %v5801, %v5826
      %v5878 = vmul.f32 %v5802, %v5830
      %v5879 = vmul.f32 %v5803, %v5826
      %v5880 = vmul.f32 %v5804, %v5830
      %v5881 = vmul.f32 %v5805, %v5826
      %v5882 = vmul.f32 %v5806, %v5830
      %v5883 = vmul.f32 %v5807, %v5826
      %v5884 = vmul.f32 %v5808, %v5830
      %v5885 = vmul.f32 %v5809, %v5826
      %v5886 = vmul.f32 %v5810, %v5830
      %v5887 = vmul.f32 %v5811, %v5826
      %v5888 = vmul.f32 %v5812, %v5830
      %v5889 = vmul.f32 %v5813, %v5826
      %v5890 = vmul.f32 %v5814, %v5830
      %v5891 = vmul.f32 %v5815, %v5826
      %v5892 = vmul.f32 %v5816, %v5830
      %v5893 = vmul.f32 %v5817, %v5826
      %v5894 = vmul.f32 %v5818, %v5830
      %v5895 = vmul.f32 %v5819, %v5826
      %v5896 = vmul.f32 %v5820, %v5830
      %v5897 = vld [vmem:[%s6] sm:$0x3]
      %v5899 = vlaneseq
      %v5900 = vshrl.u32 %v5899, 7
      %v5901 = vsub.s32 0, %v5900
      %v5902 = vrot.slane %v5897, %v5901
      %v5903 = vlaneseq
      %v5904 = vshrl.u32 %v5903, 7
      %v5905 = vsub.s32 1, %v5904
      %v5906 = vrot.slane %v5897, %v5905
      %v5909 = vadd.f32 %v5833, %v5902
      %v5910 = vadd.f32 %v5834, %v5906
      %v5911 = vadd.f32 %v5835, %v5902
      %v5912 = vadd.f32 %v5836, %v5906
      %v5913 = vadd.f32 %v5837, %v5902
      %v5914 = vadd.f32 %v5838, %v5906
      %v5915 = vadd.f32 %v5839, %v5902
      %v5916 = vadd.f32 %v5840, %v5906
      %v5917 = vadd.f32 %v5841, %v5902
      %v5918 = vadd.f32 %v5842, %v5906
      %v5919 = vadd.f32 %v5843, %v5902
      %v5920 = vadd.f32 %v5844, %v5906
      %v5921 = vadd.f32 %v5845, %v5902
      %v5922 = vadd.f32 %v5846, %v5906
      %v5923 = vadd.f32 %v5847, %v5902
      %v5924 = vadd.f32 %v5848, %v5906
      %v5925 = vadd.f32 %v5849, %v5902
      %v5926 = vadd.f32 %v5850, %v5906
      %v5927 = vadd.f32 %v5851, %v5902
      %v5928 = vadd.f32 %v5852, %v5906
      %v5929 = vadd.f32 %v5853, %v5902
      %v5930 = vadd.f32 %v5854, %v5906
      %v5931 = vadd.f32 %v5855, %v5902
      %v5932 = vadd.f32 %v5856, %v5906
      %v5933 = vadd.f32 %v5857, %v5902
      %v5934 = vadd.f32 %v5858, %v5906
      %v5935 = vadd.f32 %v5859, %v5902
      %v5936 = vadd.f32 %v5860, %v5906
      %v5937 = vadd.f32 %v5861, %v5902
      %v5938 = vadd.f32 %v5862, %v5906
      %v5939 = vadd.f32 %v5863, %v5902
      %v5940 = vadd.f32 %v5864, %v5906
      %v5941 = vadd.f32 %v5865, %v5902
      %v5942 = vadd.f32 %v5866, %v5906
      %v5943 = vadd.f32 %v5867, %v5902
      %v5944 = vadd.f32 %v5868, %v5906
      %v5945 = vadd.f32 %v5869, %v5902
      %v5946 = vadd.f32 %v5870, %v5906
      %v5947 = vadd.f32 %v5871, %v5902
      %v5948 = vadd.f32 %v5872, %v5906
      %v5949 = vadd.f32 %v5873, %v5902
      %v5950 = vadd.f32 %v5874, %v5906
      %v5951 = vadd.f32 %v5875, %v5902
      %v5952 = vadd.f32 %v5876, %v5906
      %v5953 = vadd.f32 %v5877, %v5902
      %v5954 = vadd.f32 %v5878, %v5906
      %v5955 = vadd.f32 %v5879, %v5902
      %v5956 = vadd.f32 %v5880, %v5906
      %v5957 = vadd.f32 %v5881, %v5902
      %v5958 = vadd.f32 %v5882, %v5906
      %v5959 = vadd.f32 %v5883, %v5902
      %v5960 = vadd.f32 %v5884, %v5906
      %v5961 = vadd.f32 %v5885, %v5902
      %v5962 = vadd.f32 %v5886, %v5906
      %v5963 = vadd.f32 %v5887, %v5902
      %v5964 = vadd.f32 %v5888, %v5906
      %v5965 = vadd.f32 %v5889, %v5902
      %v5966 = vadd.f32 %v5890, %v5906
      %v5967 = vadd.f32 %v5891, %v5902
      %v5968 = vadd.f32 %v5892, %v5906
      %v5969 = vadd.f32 %v5893, %v5902
      %v5970 = vadd.f32 %v5894, %v5906
      %v5971 = vadd.f32 %v5895, %v5902
      %v5972 = vadd.f32 %v5896, %v5906
      %v5973 = vmul.f32 %v5909, 0.5
      %v5974 = vmul.f32 %v5910, 0.5
      %v5975 = vmul.f32 %v5911, 0.5
      %v5976 = vmul.f32 %v5912, 0.5
      %v5977 = vmul.f32 %v5913, 0.5
      %v5978 = vmul.f32 %v5914, 0.5
      %v5979 = vmul.f32 %v5915, 0.5
      %v5980 = vmul.f32 %v5916, 0.5
      %v5981 = vmul.f32 %v5917, 0.5
      %v5982 = vmul.f32 %v5918, 0.5
      %v5983 = vmul.f32 %v5919, 0.5
      %v5984 = vmul.f32 %v5920, 0.5
      %v5985 = vmul.f32 %v5921, 0.5
      %v5986 = vmul.f32 %v5922, 0.5
      %v5987 = vmul.f32 %v5923, 0.5
      %v5988 = vmul.f32 %v5924, 0.5
      %v5989 = vmul.f32 %v5925, 0.5
      %v5990 = vmul.f32 %v5926, 0.5
      %v5991 = vmul.f32 %v5927, 0.5
      %v5992 = vmul.f32 %v5928, 0.5
      %v5993 = vmul.f32 %v5929, 0.5
      %v5994 = vmul.f32 %v5930, 0.5
      %v5995 = vmul.f32 %v5931, 0.5
      %v5996 = vmul.f32 %v5932, 0.5
      %v5997 = vmul.f32 %v5933, 0.5
      %v5998 = vmul.f32 %v5934, 0.5
      %v5999 = vmul.f32 %v5935, 0.5
      %v6000 = vmul.f32 %v5936, 0.5
      %v6001 = vmul.f32 %v5937, 0.5
      %v6002 = vmul.f32 %v5938, 0.5
      %v6003 = vmul.f32 %v5939, 0.5
      %v6004 = vmul.f32 %v5940, 0.5
      %v6005 = vmul.f32 %v5941, 0.5
      %v6006 = vmul.f32 %v5942, 0.5
      %v6007 = vmul.f32 %v5943, 0.5
      %v6008 = vmul.f32 %v5944, 0.5
      %v6009 = vmul.f32 %v5945, 0.5
      %v6010 = vmul.f32 %v5946, 0.5
      %v6011 = vmul.f32 %v5947, 0.5
      %v6012 = vmul.f32 %v5948, 0.5
      %v6013 = vmul.f32 %v5949, 0.5
      %v6014 = vmul.f32 %v5950, 0.5
      %v6015 = vmul.f32 %v5951, 0.5
      %v6016 = vmul.f32 %v5952, 0.5
      %v6017 = vmul.f32 %v5953, 0.5
      %v6018 = vmul.f32 %v5954, 0.5
      %v6019 = vmul.f32 %v5955, 0.5
      %v6020 = vmul.f32 %v5956, 0.5
      %v6021 = vmul.f32 %v5957, 0.5
      %v6022 = vmul.f32 %v5958, 0.5
      %v6023 = vmul.f32 %v5959, 0.5
      %v6024 = vmul.f32 %v5960, 0.5
      %v6025 = vmul.f32 %v5961, 0.5
      %v6026 = vmul.f32 %v5962, 0.5
      %v6027 = vmul.f32 %v5963, 0.5
      %v6028 = vmul.f32 %v5964, 0.5
      %v6029 = vmul.f32 %v5965, 0.5
      %v6030 = vmul.f32 %v5966, 0.5
      %v6031 = vmul.f32 %v5967, 0.5
      %v6032 = vmul.f32 %v5968, 0.5
      %v6033 = vmul.f32 %v5969, 0.5
      %v6034 = vmul.f32 %v5970, 0.5
      %v6035 = vmul.f32 %v5971, 0.5
      %v6036 = vmul.f32 %v5972, 0.5
      %v6037 = vmul.f32 %v5909, 0.70710677
      %v6038 = vmul.f32 %v5910, 0.70710677
      %v6039 = vmul.f32 %v5911, 0.70710677
      %v6040 = vmul.f32 %v5912, 0.70710677
      %v6041 = vmul.f32 %v5913, 0.70710677
      %v6042 = vmul.f32 %v5914, 0.70710677
      %v6043 = vmul.f32 %v5915, 0.70710677
      %v6044 = vmul.f32 %v5916, 0.70710677
      %v6045 = vmul.f32 %v5917, 0.70710677
      %v6046 = vmul.f32 %v5918, 0.70710677
      %v6047 = vmul.f32 %v5919, 0.70710677
      %v6048 = vmul.f32 %v5920, 0.70710677
      %v6049 = vmul.f32 %v5921, 0.70710677
      %v6050 = vmul.f32 %v5922, 0.70710677
      %v6051 = vmul.f32 %v5923, 0.70710677
      %v6052 = vmul.f32 %v5924, 0.70710677
      %v6053 = vmul.f32 %v5925, 0.70710677
      %v6054 = vmul.f32 %v5926, 0.70710677
      %v6055 = vmul.f32 %v5927, 0.70710677
      %v6056 = vmul.f32 %v5928, 0.70710677
      %v6057 = vmul.f32 %v5929, 0.70710677
      %v6058 = vmul.f32 %v5930, 0.70710677
      %v6059 = vmul.f32 %v5931, 0.70710677
      %v6060 = vmul.f32 %v5932, 0.70710677
      %v6061 = vmul.f32 %v5933, 0.70710677
      %v6062 = vmul.f32 %v5934, 0.70710677
      %v6063 = vmul.f32 %v5935, 0.70710677
      %v6064 = vmul.f32 %v5936, 0.70710677
      %v6065 = vmul.f32 %v5937, 0.70710677
      %v6066 = vmul.f32 %v5938, 0.70710677
      %v6067 = vmul.f32 %v5939, 0.70710677
      %v6068 = vmul.f32 %v5940, 0.70710677
      %v6069 = vmul.f32 %v5941, 0.70710677
      %v6070 = vmul.f32 %v5942, 0.70710677
      %v6071 = vmul.f32 %v5943, 0.70710677
      %v6072 = vmul.f32 %v5944, 0.70710677
      %v6073 = vmul.f32 %v5945, 0.70710677
      %v6074 = vmul.f32 %v5946, 0.70710677
      %v6075 = vmul.f32 %v5947, 0.70710677
      %v6076 = vmul.f32 %v5948, 0.70710677
      %v6077 = vmul.f32 %v5949, 0.70710677
      %v6078 = vmul.f32 %v5950, 0.70710677
      %v6079 = vmul.f32 %v5951, 0.70710677
      %v6080 = vmul.f32 %v5952, 0.70710677
      %v6081 = vmul.f32 %v5953, 0.70710677
      %v6082 = vmul.f32 %v5954, 0.70710677
      %v6083 = vmul.f32 %v5955, 0.70710677
      %v6084 = vmul.f32 %v5956, 0.70710677
      %v6085 = vmul.f32 %v5957, 0.70710677
      %v6086 = vmul.f32 %v5958, 0.70710677
      %v6087 = vmul.f32 %v5959, 0.70710677
      %v6088 = vmul.f32 %v5960, 0.70710677
      %v6089 = vmul.f32 %v5961, 0.70710677
      %v6090 = vmul.f32 %v5962, 0.70710677
      %v6091 = vmul.f32 %v5963, 0.70710677
      %v6092 = vmul.f32 %v5964, 0.70710677
      %v6093 = vmul.f32 %v5965, 0.70710677
      %v6094 = vmul.f32 %v5966, 0.70710677
      %v6095 = vmul.f32 %v5967, 0.70710677
      %v6096 = vmul.f32 %v5968, 0.70710677
      %v6097 = vmul.f32 %v5969, 0.70710677
      %v6098 = vmul.f32 %v5970, 0.70710677
      %v6099 = vmul.f32 %v5971, 0.70710677
      %v6100 = vmul.f32 %v5972, 0.70710677
      %v6101 = vand.u32 2147483647, %v6037
      %v6102 = vand.u32 2147483647, %v6038
      %v6103 = vand.u32 2147483647, %v6039
      %v6104 = vand.u32 2147483647, %v6040
      %v6105 = vand.u32 2147483647, %v6041
      %v6106 = vand.u32 2147483647, %v6042
      %v6107 = vand.u32 2147483647, %v6043
      %v6108 = vand.u32 2147483647, %v6044
      %v6109 = vand.u32 2147483647, %v6045
      %v6110 = vand.u32 2147483647, %v6046
      %v6111 = vand.u32 2147483647, %v6047
      %v6112 = vand.u32 2147483647, %v6048
      %v6113 = vand.u32 2147483647, %v6049
      %v6114 = vand.u32 2147483647, %v6050
      %v6115 = vand.u32 2147483647, %v6051
      %v6116 = vand.u32 2147483647, %v6052
      %v6117 = vand.u32 2147483647, %v6053
      %v6118 = vand.u32 2147483647, %v6054
      %v6119 = vand.u32 2147483647, %v6055
      %v6120 = vand.u32 2147483647, %v6056
      %v6121 = vand.u32 2147483647, %v6057
      %v6122 = vand.u32 2147483647, %v6058
      %v6123 = vand.u32 2147483647, %v6059
      %v6124 = vand.u32 2147483647, %v6060
      %v6125 = vand.u32 2147483647, %v6061
      %v6126 = vand.u32 2147483647, %v6062
      %v6127 = vand.u32 2147483647, %v6063
      %v6128 = vand.u32 2147483647, %v6064
      %v6129 = vand.u32 2147483647, %v6065
      %v6130 = vand.u32 2147483647, %v6066
      %v6131 = vand.u32 2147483647, %v6067
      %v6132 = vand.u32 2147483647, %v6068
      %v6133 = vand.u32 2147483647, %v6069
      %v6134 = vand.u32 2147483647, %v6070
      %v6135 = vand.u32 2147483647, %v6071
      %v6136 = vand.u32 2147483647, %v6072
      %v6137 = vand.u32 2147483647, %v6073
      %v6138 = vand.u32 2147483647, %v6074
      %v6139 = vand.u32 2147483647, %v6075
      %v6140 = vand.u32 2147483647, %v6076
      %v6141 = vand.u32 2147483647, %v6077
      %v6142 = vand.u32 2147483647, %v6078
      %v6143 = vand.u32 2147483647, %v6079
      %v6144 = vand.u32 2147483647, %v6080
      %v6145 = vand.u32 2147483647, %v6081
      %v6146 = vand.u32 2147483647, %v6082
      %v6147 = vand.u32 2147483647, %v6083
      %v6148 = vand.u32 2147483647, %v6084
      %v6149 = vand.u32 2147483647, %v6085
      %v6150 = vand.u32 2147483647, %v6086
      %v6151 = vand.u32 2147483647, %v6087
      %v6152 = vand.u32 2147483647, %v6088
      %v6153 = vand.u32 2147483647, %v6089
      %v6154 = vand.u32 2147483647, %v6090
      %v6155 = vand.u32 2147483647, %v6091
      %v6156 = vand.u32 2147483647, %v6092
      %v6157 = vand.u32 2147483647, %v6093
      %v6158 = vand.u32 2147483647, %v6094
      %v6159 = vand.u32 2147483647, %v6095
      %v6160 = vand.u32 2147483647, %v6096
      %v6161 = vand.u32 2147483647, %v6097
      %v6162 = vand.u32 2147483647, %v6098
      %v6163 = vand.u32 2147483647, %v6099
      %v6164 = vand.u32 2147483647, %v6100
      %v6165 = vmul.f32 %v6101, 0.3275911
      %v6166 = vmul.f32 %v6102, 0.3275911
      %v6167 = vmul.f32 %v6103, 0.3275911
      %v6168 = vmul.f32 %v6104, 0.3275911
      %v6169 = vmul.f32 %v6105, 0.3275911
      %v6170 = vmul.f32 %v6106, 0.3275911
      %v6171 = vmul.f32 %v6107, 0.3275911
      %v6172 = vmul.f32 %v6108, 0.3275911
      %v6173 = vmul.f32 %v6109, 0.3275911
      %v6174 = vmul.f32 %v6110, 0.3275911
      %v6175 = vmul.f32 %v6111, 0.3275911
      %v6176 = vmul.f32 %v6112, 0.3275911
      %v6177 = vmul.f32 %v6113, 0.3275911
      %v6178 = vmul.f32 %v6114, 0.3275911
      %v6179 = vmul.f32 %v6115, 0.3275911
      %v6180 = vmul.f32 %v6116, 0.3275911
      %v6181 = vmul.f32 %v6117, 0.3275911
      %v6182 = vmul.f32 %v6118, 0.3275911
      %v6183 = vmul.f32 %v6119, 0.3275911
      %v6184 = vmul.f32 %v6120, 0.3275911
      %v6185 = vmul.f32 %v6121, 0.3275911
      %v6186 = vmul.f32 %v6122, 0.3275911
      %v6187 = vmul.f32 %v6123, 0.3275911
      %v6188 = vmul.f32 %v6124, 0.3275911
      %v6189 = vmul.f32 %v6125, 0.3275911
      %v6190 = vmul.f32 %v6126, 0.3275911
      %v6191 = vmul.f32 %v6127, 0.3275911
      %v6192 = vmul.f32 %v6128, 0.3275911
      %v6193 = vmul.f32 %v6129, 0.3275911
      %v6194 = vmul.f32 %v6130, 0.3275911
      %v6195 = vmul.f32 %v6131, 0.3275911
      %v6196 = vmul.f32 %v6132, 0.3275911
      %v6197 = vmul.f32 %v6133, 0.3275911
      %v6198 = vmul.f32 %v6134, 0.3275911
      %v6199 = vmul.f32 %v6135, 0.3275911
      %v6200 = vmul.f32 %v6136, 0.3275911
      %v6201 = vmul.f32 %v6137, 0.3275911
      %v6202 = vmul.f32 %v6138, 0.3275911
      %v6203 = vmul.f32 %v6139, 0.3275911
      %v6204 = vmul.f32 %v6140, 0.3275911
      %v6205 = vmul.f32 %v6141, 0.3275911
      %v6206 = vmul.f32 %v6142, 0.3275911
      %v6207 = vmul.f32 %v6143, 0.3275911
      %v6208 = vmul.f32 %v6144, 0.3275911
      %v6209 = vmul.f32 %v6145, 0.3275911
      %v6210 = vmul.f32 %v6146, 0.3275911
      %v6211 = vmul.f32 %v6147, 0.3275911
      %v6212 = vmul.f32 %v6148, 0.3275911
      %v6213 = vmul.f32 %v6149, 0.3275911
      %v6214 = vmul.f32 %v6150, 0.3275911
      %v6215 = vmul.f32 %v6151, 0.3275911
      %v6216 = vmul.f32 %v6152, 0.3275911
      %v6217 = vmul.f32 %v6153, 0.3275911
      %v6218 = vmul.f32 %v6154, 0.3275911
      %v6219 = vmul.f32 %v6155, 0.3275911
      %v6220 = vmul.f32 %v6156, 0.3275911
      %v6221 = vmul.f32 %v6157, 0.3275911
      %v6222 = vmul.f32 %v6158, 0.3275911
      %v6223 = vmul.f32 %v6159, 0.3275911
      %v6224 = vmul.f32 %v6160, 0.3275911
      %v6225 = vmul.f32 %v6161, 0.3275911
      %v6226 = vmul.f32 %v6162, 0.3275911
      %v6227 = vmul.f32 %v6163, 0.3275911
      %v6228 = vmul.f32 %v6164, 0.3275911
      %v6229 = vadd.f32 %v6165, 1.0
      %v6230 = vadd.f32 %v6166, 1.0
      %v6231 = vadd.f32 %v6167, 1.0
      %v6232 = vadd.f32 %v6168, 1.0
      %v6233 = vadd.f32 %v6169, 1.0
      %v6234 = vadd.f32 %v6170, 1.0
      %v6235 = vadd.f32 %v6171, 1.0
      %v6236 = vadd.f32 %v6172, 1.0
      %v6237 = vadd.f32 %v6173, 1.0
      %v6238 = vadd.f32 %v6174, 1.0
      %v6239 = vadd.f32 %v6175, 1.0
      %v6240 = vadd.f32 %v6176, 1.0
      %v6241 = vadd.f32 %v6177, 1.0
      %v6242 = vadd.f32 %v6178, 1.0
      %v6243 = vadd.f32 %v6179, 1.0
      %v6244 = vadd.f32 %v6180, 1.0
      %v6245 = vadd.f32 %v6181, 1.0
      %v6246 = vadd.f32 %v6182, 1.0
      %v6247 = vadd.f32 %v6183, 1.0
      %v6248 = vadd.f32 %v6184, 1.0
      %v6249 = vadd.f32 %v6185, 1.0
      %v6250 = vadd.f32 %v6186, 1.0
      %v6251 = vadd.f32 %v6187, 1.0
      %v6252 = vadd.f32 %v6188, 1.0
      %v6253 = vadd.f32 %v6189, 1.0
      %v6254 = vadd.f32 %v6190, 1.0
      %v6255 = vadd.f32 %v6191, 1.0
      %v6256 = vadd.f32 %v6192, 1.0
      %v6257 = vadd.f32 %v6193, 1.0
      %v6258 = vadd.f32 %v6194, 1.0
      %v6259 = vadd.f32 %v6195, 1.0
      %v6260 = vadd.f32 %v6196, 1.0
      %v6261 = vadd.f32 %v6197, 1.0
      %v6262 = vadd.f32 %v6198, 1.0
      %v6263 = vadd.f32 %v6199, 1.0
      %v6264 = vadd.f32 %v6200, 1.0
      %v6265 = vadd.f32 %v6201, 1.0
      %v6266 = vadd.f32 %v6202, 1.0
      %v6267 = vadd.f32 %v6203, 1.0
      %v6268 = vadd.f32 %v6204, 1.0
      %v6269 = vadd.f32 %v6205, 1.0
      %v6270 = vadd.f32 %v6206, 1.0
      %v6271 = vadd.f32 %v6207, 1.0
      %v6272 = vadd.f32 %v6208, 1.0
      %v6273 = vadd.f32 %v6209, 1.0
      %v6274 = vadd.f32 %v6210, 1.0
      %v6275 = vadd.f32 %v6211, 1.0
      %v6276 = vadd.f32 %v6212, 1.0
      %v6277 = vadd.f32 %v6213, 1.0
      %v6278 = vadd.f32 %v6214, 1.0
      %v6279 = vadd.f32 %v6215, 1.0
      %v6280 = vadd.f32 %v6216, 1.0
      %v6281 = vadd.f32 %v6217, 1.0
      %v6282 = vadd.f32 %v6218, 1.0
      %v6283 = vadd.f32 %v6219, 1.0
      %v6284 = vadd.f32 %v6220, 1.0
      %v6285 = vadd.f32 %v6221, 1.0
      %v6286 = vadd.f32 %v6222, 1.0
      %v6287 = vadd.f32 %v6223, 1.0
      %v6288 = vadd.f32 %v6224, 1.0
      %v6289 = vadd.f32 %v6225, 1.0
      %v6290 = vadd.f32 %v6226, 1.0
      %v6291 = vadd.f32 %v6227, 1.0
      %v6292 = vadd.f32 %v6228, 1.0
      %v6293 = vrcp.pop %v6229
      %v6294 = vmul.f32 1.0, %v6293
      %v6295 = vrcp.pop %v6230
      %v6296 = vmul.f32 1.0, %v6295
      %v6297 = vrcp.pop %v6231
      %v6298 = vmul.f32 1.0, %v6297
      %v6299 = vrcp.pop %v6232
      %v6300 = vmul.f32 1.0, %v6299
      %v6301 = vrcp.pop %v6233
      %v6302 = vmul.f32 1.0, %v6301
      %v6303 = vrcp.pop %v6234
      %v6304 = vmul.f32 1.0, %v6303
      %v6305 = vrcp.pop %v6235
      %v6306 = vmul.f32 1.0, %v6305
      %v6307 = vrcp.pop %v6236
      %v6308 = vmul.f32 1.0, %v6307
      %v6309 = vrcp.pop %v6237
      %v6310 = vmul.f32 1.0, %v6309
      %v6311 = vrcp.pop %v6238
      %v6312 = vmul.f32 1.0, %v6311
      %v6313 = vrcp.pop %v6239
      %v6314 = vmul.f32 1.0, %v6313
      %v6315 = vrcp.pop %v6240
      %v6316 = vmul.f32 1.0, %v6315
      %v6317 = vrcp.pop %v6241
      %v6318 = vmul.f32 1.0, %v6317
      %v6319 = vrcp.pop %v6242
      %v6320 = vmul.f32 1.0, %v6319
      %v6321 = vrcp.pop %v6243
      %v6322 = vmul.f32 1.0, %v6321
      %v6323 = vrcp.pop %v6244
      %v6324 = vmul.f32 1.0, %v6323
      %v6325 = vrcp.pop %v6245
      %v6326 = vmul.f32 1.0, %v6325
      %v6327 = vrcp.pop %v6246
      %v6328 = vmul.f32 1.0, %v6327
      %v6329 = vrcp.pop %v6247
      %v6330 = vmul.f32 1.0, %v6329
      %v6331 = vrcp.pop %v6248
      %v6332 = vmul.f32 1.0, %v6331
      %v6333 = vrcp.pop %v6249
      %v6334 = vmul.f32 1.0, %v6333
      %v6335 = vrcp.pop %v6250
      %v6336 = vmul.f32 1.0, %v6335
      %v6337 = vrcp.pop %v6251
      %v6338 = vmul.f32 1.0, %v6337
      %v6339 = vrcp.pop %v6252
      %v6340 = vmul.f32 1.0, %v6339
      %v6341 = vrcp.pop %v6253
      %v6342 = vmul.f32 1.0, %v6341
      %v6343 = vrcp.pop %v6254
      %v6344 = vmul.f32 1.0, %v6343
      %v6345 = vrcp.pop %v6255
      %v6346 = vmul.f32 1.0, %v6345
      %v6347 = vrcp.pop %v6256
      %v6348 = vmul.f32 1.0, %v6347
      %v6349 = vrcp.pop %v6257
      %v6350 = vmul.f32 1.0, %v6349
      %v6351 = vrcp.pop %v6258
      %v6352 = vmul.f32 1.0, %v6351
      %v6353 = vrcp.pop %v6259
      %v6354 = vmul.f32 1.0, %v6353
      %v6355 = vrcp.pop %v6260
      %v6356 = vmul.f32 1.0, %v6355
      %v6357 = vrcp.pop %v6261
      %v6358 = vmul.f32 1.0, %v6357
      %v6359 = vrcp.pop %v6262
      %v6360 = vmul.f32 1.0, %v6359
      %v6361 = vrcp.pop %v6263
      %v6362 = vmul.f32 1.0, %v6361
      %v6363 = vrcp.pop %v6264
      %v6364 = vmul.f32 1.0, %v6363
      %v6365 = vrcp.pop %v6265
      %v6366 = vmul.f32 1.0, %v6365
      %v6367 = vrcp.pop %v6266
      %v6368 = vmul.f32 1.0, %v6367
      %v6369 = vrcp.pop %v6267
      %v6370 = vmul.f32 1.0, %v6369
      %v6371 = vrcp.pop %v6268
      %v6372 = vmul.f32 1.0, %v6371
      %v6373 = vrcp.pop %v6269
      %v6374 = vmul.f32 1.0, %v6373
      %v6375 = vrcp.pop %v6270
      %v6376 = vmul.f32 1.0, %v6375
      %v6377 = vrcp.pop %v6271
      %v6378 = vmul.f32 1.0, %v6377
      %v6379 = vrcp.pop %v6272
      %v6380 = vmul.f32 1.0, %v6379
      %v6381 = vrcp.pop %v6273
      %v6382 = vmul.f32 1.0, %v6381
      %v6383 = vrcp.pop %v6274
      %v6384 = vmul.f32 1.0, %v6383
      %v6385 = vrcp.pop %v6275
      %v6386 = vmul.f32 1.0, %v6385
      %v6387 = vrcp.pop %v6276
      %v6388 = vmul.f32 1.0, %v6387
      %v6389 = vrcp.pop %v6277
      %v6390 = vmul.f32 1.0, %v6389
      %v6391 = vrcp.pop %v6278
      %v6392 = vmul.f32 1.0, %v6391
      %v6393 = vrcp.pop %v6279
      %v6394 = vmul.f32 1.0, %v6393
      %v6395 = vrcp.pop %v6280
      %v6396 = vmul.f32 1.0, %v6395
      %v6397 = vrcp.pop %v6281
      %v6398 = vmul.f32 1.0, %v6397
      %v6399 = vrcp.pop %v6282
      %v6400 = vmul.f32 1.0, %v6399
      %v6401 = vrcp.pop %v6283
      %v6402 = vmul.f32 1.0, %v6401
      %v6403 = vrcp.pop %v6284
      %v6404 = vmul.f32 1.0, %v6403
      %v6405 = vrcp.pop %v6285
      %v6406 = vmul.f32 1.0, %v6405
      %v6407 = vrcp.pop %v6286
      %v6408 = vmul.f32 1.0, %v6407
      %v6409 = vrcp.pop %v6287
      %v6410 = vmul.f32 1.0, %v6409
      %v6411 = vrcp.pop %v6288
      %v6412 = vmul.f32 1.0, %v6411
      %v6413 = vrcp.pop %v6289
      %v6414 = vmul.f32 1.0, %v6413
      %v6415 = vrcp.pop %v6290
      %v6416 = vmul.f32 1.0, %v6415
      %v6417 = vrcp.pop %v6291
      %v6418 = vmul.f32 1.0, %v6417
      %v6419 = vrcp.pop %v6292
      %v6420 = vmul.f32 1.0, %v6419
      %v6421 = vmul.f32 %v6294, 1.0614054
      %v6422 = vmul.f32 %v6296, 1.0614054
      %v6423 = vmul.f32 %v6298, 1.0614054
      %v6424 = vmul.f32 %v6300, 1.0614054
      %v6425 = vmul.f32 %v6302, 1.0614054
      %v6426 = vmul.f32 %v6304, 1.0614054
      %v6427 = vmul.f32 %v6306, 1.0614054
      %v6428 = vmul.f32 %v6308, 1.0614054
      %v6429 = vmul.f32 %v6310, 1.0614054
      %v6430 = vmul.f32 %v6312, 1.0614054
      %v6431 = vmul.f32 %v6314, 1.0614054
      %v6432 = vmul.f32 %v6316, 1.0614054
      %v6433 = vmul.f32 %v6318, 1.0614054
      %v6434 = vmul.f32 %v6320, 1.0614054
      %v6435 = vmul.f32 %v6322, 1.0614054
      %v6436 = vmul.f32 %v6324, 1.0614054
      %v6437 = vmul.f32 %v6326, 1.0614054
      %v6438 = vmul.f32 %v6328, 1.0614054
      %v6439 = vmul.f32 %v6330, 1.0614054
      %v6440 = vmul.f32 %v6332, 1.0614054
      %v6441 = vmul.f32 %v6334, 1.0614054
      %v6442 = vmul.f32 %v6336, 1.0614054
      %v6443 = vmul.f32 %v6338, 1.0614054
      %v6444 = vmul.f32 %v6340, 1.0614054
      %v6445 = vmul.f32 %v6342, 1.0614054
      %v6446 = vmul.f32 %v6344, 1.0614054
      %v6447 = vmul.f32 %v6346, 1.0614054
      %v6448 = vmul.f32 %v6348, 1.0614054
      %v6449 = vmul.f32 %v6350, 1.0614054
      %v6450 = vmul.f32 %v6352, 1.0614054
      %v6451 = vmul.f32 %v6354, 1.0614054
      %v6452 = vmul.f32 %v6356, 1.0614054
      %v6453 = vmul.f32 %v6358, 1.0614054
      %v6454 = vmul.f32 %v6360, 1.0614054
      %v6455 = vmul.f32 %v6362, 1.0614054
      %v6456 = vmul.f32 %v6364, 1.0614054
      %v6457 = vmul.f32 %v6366, 1.0614054
      %v6458 = vmul.f32 %v6368, 1.0614054
      %v6459 = vmul.f32 %v6370, 1.0614054
      %v6460 = vmul.f32 %v6372, 1.0614054
      %v6461 = vmul.f32 %v6374, 1.0614054
      %v6462 = vmul.f32 %v6376, 1.0614054
      %v6463 = vmul.f32 %v6378, 1.0614054
      %v6464 = vmul.f32 %v6380, 1.0614054
      %v6465 = vmul.f32 %v6382, 1.0614054
      %v6466 = vmul.f32 %v6384, 1.0614054
      %v6467 = vmul.f32 %v6386, 1.0614054
      %v6468 = vmul.f32 %v6388, 1.0614054
      %v6469 = vmul.f32 %v6390, 1.0614054
      %v6470 = vmul.f32 %v6392, 1.0614054
      %v6471 = vmul.f32 %v6394, 1.0614054
      %v6472 = vmul.f32 %v6396, 1.0614054
      %v6473 = vmul.f32 %v6398, 1.0614054
      %v6474 = vmul.f32 %v6400, 1.0614054
      %v6475 = vmul.f32 %v6402, 1.0614054
      %v6476 = vmul.f32 %v6404, 1.0614054
      %v6477 = vmul.f32 %v6406, 1.0614054
      %v6478 = vmul.f32 %v6408, 1.0614054
      %v6479 = vmul.f32 %v6410, 1.0614054
      %v6480 = vmul.f32 %v6412, 1.0614054
      %v6481 = vmul.f32 %v6414, 1.0614054
      %v6482 = vmul.f32 %v6416, 1.0614054
      %v6483 = vmul.f32 %v6418, 1.0614054
      %v6484 = vmul.f32 %v6420, 1.0614054
      %v6485 = vadd.f32 %v6421, -1.4531521
      %v6486 = vadd.f32 %v6422, -1.4531521
      %v6487 = vadd.f32 %v6423, -1.4531521
      %v6488 = vadd.f32 %v6424, -1.4531521
      %v6489 = vadd.f32 %v6425, -1.4531521
      %v6490 = vadd.f32 %v6426, -1.4531521
      %v6491 = vadd.f32 %v6427, -1.4531521
      %v6492 = vadd.f32 %v6428, -1.4531521
      %v6493 = vadd.f32 %v6429, -1.4531521
      %v6494 = vadd.f32 %v6430, -1.4531521
      %v6495 = vadd.f32 %v6431, -1.4531521
      %v6496 = vadd.f32 %v6432, -1.4531521
      %v6497 = vadd.f32 %v6433, -1.4531521
      %v6498 = vadd.f32 %v6434, -1.4531521
      %v6499 = vadd.f32 %v6435, -1.4531521
      %v6500 = vadd.f32 %v6436, -1.4531521
      %v6501 = vadd.f32 %v6437, -1.4531521
      %v6502 = vadd.f32 %v6438, -1.4531521
      %v6503 = vadd.f32 %v6439, -1.4531521
      %v6504 = vadd.f32 %v6440, -1.4531521
      %v6505 = vadd.f32 %v6441, -1.4531521
      %v6506 = vadd.f32 %v6442, -1.4531521
      %v6507 = vadd.f32 %v6443, -1.4531521
      %v6508 = vadd.f32 %v6444, -1.4531521
      %v6509 = vadd.f32 %v6445, -1.4531521
      %v6510 = vadd.f32 %v6446, -1.4531521
      %v6511 = vadd.f32 %v6447, -1.4531521
      %v6512 = vadd.f32 %v6448, -1.4531521
      %v6513 = vadd.f32 %v6449, -1.4531521
      %v6514 = vadd.f32 %v6450, -1.4531521
      %v6515 = vadd.f32 %v6451, -1.4531521
      %v6516 = vadd.f32 %v6452, -1.4531521
      %v6517 = vadd.f32 %v6453, -1.4531521
      %v6518 = vadd.f32 %v6454, -1.4531521
      %v6519 = vadd.f32 %v6455, -1.4531521
      %v6520 = vadd.f32 %v6456, -1.4531521
      %v6521 = vadd.f32 %v6457, -1.4531521
      %v6522 = vadd.f32 %v6458, -1.4531521
      %v6523 = vadd.f32 %v6459, -1.4531521
      %v6524 = vadd.f32 %v6460, -1.4531521
      %v6525 = vadd.f32 %v6461, -1.4531521
      %v6526 = vadd.f32 %v6462, -1.4531521
      %v6527 = vadd.f32 %v6463, -1.4531521
      %v6528 = vadd.f32 %v6464, -1.4531521
      %v6529 = vadd.f32 %v6465, -1.4531521
      %v6530 = vadd.f32 %v6466, -1.4531521
      %v6531 = vadd.f32 %v6467, -1.4531521
      %v6532 = vadd.f32 %v6468, -1.4531521
      %v6533 = vadd.f32 %v6469, -1.4531521
      %v6534 = vadd.f32 %v6470, -1.4531521
      %v6535 = vadd.f32 %v6471, -1.4531521
      %v6536 = vadd.f32 %v6472, -1.4531521
      %v6537 = vadd.f32 %v6473, -1.4531521
      %v6538 = vadd.f32 %v6474, -1.4531521
      %v6539 = vadd.f32 %v6475, -1.4531521
      %v6540 = vadd.f32 %v6476, -1.4531521
      %v6541 = vadd.f32 %v6477, -1.4531521
      %v6542 = vadd.f32 %v6478, -1.4531521
      %v6543 = vadd.f32 %v6479, -1.4531521
      %v6544 = vadd.f32 %v6480, -1.4531521
      %v6545 = vadd.f32 %v6481, -1.4531521
      %v6546 = vadd.f32 %v6482, -1.4531521
      %v6547 = vadd.f32 %v6483, -1.4531521
      %v6548 = vadd.f32 %v6484, -1.4531521
      %v6549 = vmul.f32 %v6485, %v6294
      %v6550 = vmul.f32 %v6486, %v6296
      %v6551 = vmul.f32 %v6487, %v6298
      %v6552 = vmul.f32 %v6488, %v6300
      %v6553 = vmul.f32 %v6489, %v6302
      %v6554 = vmul.f32 %v6490, %v6304
      %v6555 = vmul.f32 %v6491, %v6306
      %v6556 = vmul.f32 %v6492, %v6308
      %v6557 = vmul.f32 %v6493, %v6310
      %v6558 = vmul.f32 %v6494, %v6312
      %v6559 = vmul.f32 %v6495, %v6314
      %v6560 = vmul.f32 %v6496, %v6316
      %v6561 = vmul.f32 %v6497, %v6318
      %v6562 = vmul.f32 %v6498, %v6320
      %v6563 = vmul.f32 %v6499, %v6322
      %v6564 = vmul.f32 %v6500, %v6324
      %v6565 = vmul.f32 %v6501, %v6326
      %v6566 = vmul.f32 %v6502, %v6328
      %v6567 = vmul.f32 %v6503, %v6330
      %v6568 = vmul.f32 %v6504, %v6332
      %v6569 = vmul.f32 %v6505, %v6334
      %v6570 = vmul.f32 %v6506, %v6336
      %v6571 = vmul.f32 %v6507, %v6338
      %v6572 = vmul.f32 %v6508, %v6340
      %v6573 = vmul.f32 %v6509, %v6342
      %v6574 = vmul.f32 %v6510, %v6344
      %v6575 = vmul.f32 %v6511, %v6346
      %v6576 = vmul.f32 %v6512, %v6348
      %v6577 = vmul.f32 %v6513, %v6350
      %v6578 = vmul.f32 %v6514, %v6352
      %v6579 = vmul.f32 %v6515, %v6354
      %v6580 = vmul.f32 %v6516, %v6356
      %v6581 = vmul.f32 %v6517, %v6358
      %v6582 = vmul.f32 %v6518, %v6360
      %v6583 = vmul.f32 %v6519, %v6362
      %v6584 = vmul.f32 %v6520, %v6364
      %v6585 = vmul.f32 %v6521, %v6366
      %v6586 = vmul.f32 %v6522, %v6368
      %v6587 = vmul.f32 %v6523, %v6370
      %v6588 = vmul.f32 %v6524, %v6372
      %v6589 = vmul.f32 %v6525, %v6374
      %v6590 = vmul.f32 %v6526, %v6376
      %v6591 = vmul.f32 %v6527, %v6378
      %v6592 = vmul.f32 %v6528, %v6380
      %v6593 = vmul.f32 %v6529, %v6382
      %v6594 = vmul.f32 %v6530, %v6384
      %v6595 = vmul.f32 %v6531, %v6386
      %v6596 = vmul.f32 %v6532, %v6388
      %v6597 = vmul.f32 %v6533, %v6390
      %v6598 = vmul.f32 %v6534, %v6392
      %v6599 = vmul.f32 %v6535, %v6394
      %v6600 = vmul.f32 %v6536, %v6396
      %v6601 = vmul.f32 %v6537, %v6398
      %v6602 = vmul.f32 %v6538, %v6400
      %v6603 = vmul.f32 %v6539, %v6402
      %v6604 = vmul.f32 %v6540, %v6404
      %v6605 = vmul.f32 %v6541, %v6406
      %v6606 = vmul.f32 %v6542, %v6408
      %v6607 = vmul.f32 %v6543, %v6410
      %v6608 = vmul.f32 %v6544, %v6412
      %v6609 = vmul.f32 %v6545, %v6414
      %v6610 = vmul.f32 %v6546, %v6416
      %v6611 = vmul.f32 %v6547, %v6418
      %v6612 = vmul.f32 %v6548, %v6420
      %v6613 = vadd.f32 %v6549, 1.4214138
      %v6614 = vadd.f32 %v6550, 1.4214138
      %v6615 = vadd.f32 %v6551, 1.4214138
      %v6616 = vadd.f32 %v6552, 1.4214138
      %v6617 = vadd.f32 %v6553, 1.4214138
      %v6618 = vadd.f32 %v6554, 1.4214138
      %v6619 = vadd.f32 %v6555, 1.4214138
      %v6620 = vadd.f32 %v6556, 1.4214138
      %v6621 = vadd.f32 %v6557, 1.4214138
      %v6622 = vadd.f32 %v6558, 1.4214138
      %v6623 = vadd.f32 %v6559, 1.4214138
      %v6624 = vadd.f32 %v6560, 1.4214138
      %v6625 = vadd.f32 %v6561, 1.4214138
      %v6626 = vadd.f32 %v6562, 1.4214138
      %v6627 = vadd.f32 %v6563, 1.4214138
      %v6628 = vadd.f32 %v6564, 1.4214138
      %v6629 = vadd.f32 %v6565, 1.4214138
      %v6630 = vadd.f32 %v6566, 1.4214138
      %v6631 = vadd.f32 %v6567, 1.4214138
      %v6632 = vadd.f32 %v6568, 1.4214138
      %v6633 = vadd.f32 %v6569, 1.4214138
      %v6634 = vadd.f32 %v6570, 1.4214138
      %v6635 = vadd.f32 %v6571, 1.4214138
      %v6636 = vadd.f32 %v6572, 1.4214138
      %v6637 = vadd.f32 %v6573, 1.4214138
      %v6638 = vadd.f32 %v6574, 1.4214138
      %v6639 = vadd.f32 %v6575, 1.4214138
      %v6640 = vadd.f32 %v6576, 1.4214138
      %v6641 = vadd.f32 %v6577, 1.4214138
      %v6642 = vadd.f32 %v6578, 1.4214138
      %v6643 = vadd.f32 %v6579, 1.4214138
      %v6644 = vadd.f32 %v6580, 1.4214138
      %v6645 = vadd.f32 %v6581, 1.4214138
      %v6646 = vadd.f32 %v6582, 1.4214138
      %v6647 = vadd.f32 %v6583, 1.4214138
      %v6648 = vadd.f32 %v6584, 1.4214138
      %v6649 = vadd.f32 %v6585, 1.4214138
      %v6650 = vadd.f32 %v6586, 1.4214138
      %v6651 = vadd.f32 %v6587, 1.4214138
      %v6652 = vadd.f32 %v6588, 1.4214138
      %v6653 = vadd.f32 %v6589, 1.4214138
      %v6654 = vadd.f32 %v6590, 1.4214138
      %v6655 = vadd.f32 %v6591, 1.4214138
      %v6656 = vadd.f32 %v6592, 1.4214138
      %v6657 = vadd.f32 %v6593, 1.4214138
      %v6658 = vadd.f32 %v6594, 1.4214138
      %v6659 = vadd.f32 %v6595, 1.4214138
      %v6660 = vadd.f32 %v6596, 1.4214138
      %v6661 = vadd.f32 %v6597, 1.4214138
      %v6662 = vadd.f32 %v6598, 1.4214138
      %v6663 = vadd.f32 %v6599, 1.4214138
      %v6664 = vadd.f32 %v6600, 1.4214138
      %v6665 = vadd.f32 %v6601, 1.4214138
      %v6666 = vadd.f32 %v6602, 1.4214138
      %v6667 = vadd.f32 %v6603, 1.4214138
      %v6668 = vadd.f32 %v6604, 1.4214138
      %v6669 = vadd.f32 %v6605, 1.4214138
      %v6670 = vadd.f32 %v6606, 1.4214138
      %v6671 = vadd.f32 %v6607, 1.4214138
      %v6672 = vadd.f32 %v6608, 1.4214138
      %v6673 = vadd.f32 %v6609, 1.4214138
      %v6674 = vadd.f32 %v6610, 1.4214138
      %v6675 = vadd.f32 %v6611, 1.4214138
      %v6676 = vadd.f32 %v6612, 1.4214138
      %v6677 = vmul.f32 %v6613, %v6294
      %v6678 = vmul.f32 %v6614, %v6296
      %v6679 = vmul.f32 %v6615, %v6298
      %v6680 = vmul.f32 %v6616, %v6300
      %v6681 = vmul.f32 %v6617, %v6302
      %v6682 = vmul.f32 %v6618, %v6304
      %v6683 = vmul.f32 %v6619, %v6306
      %v6684 = vmul.f32 %v6620, %v6308
      %v6685 = vmul.f32 %v6621, %v6310
      %v6686 = vmul.f32 %v6622, %v6312
      %v6687 = vmul.f32 %v6623, %v6314
      %v6688 = vmul.f32 %v6624, %v6316
      %v6689 = vmul.f32 %v6625, %v6318
      %v6690 = vmul.f32 %v6626, %v6320
      %v6691 = vmul.f32 %v6627, %v6322
      %v6692 = vmul.f32 %v6628, %v6324
      %v6693 = vmul.f32 %v6629, %v6326
      %v6694 = vmul.f32 %v6630, %v6328
      %v6695 = vmul.f32 %v6631, %v6330
      %v6696 = vmul.f32 %v6632, %v6332
      %v6697 = vmul.f32 %v6633, %v6334
      %v6698 = vmul.f32 %v6634, %v6336
      %v6699 = vmul.f32 %v6635, %v6338
      %v6700 = vmul.f32 %v6636, %v6340
      %v6701 = vmul.f32 %v6637, %v6342
      %v6702 = vmul.f32 %v6638, %v6344
      %v6703 = vmul.f32 %v6639, %v6346
      %v6704 = vmul.f32 %v6640, %v6348
      %v6705 = vmul.f32 %v6641, %v6350
      %v6706 = vmul.f32 %v6642, %v6352
      %v6707 = vmul.f32 %v6643, %v6354
      %v6708 = vmul.f32 %v6644, %v6356
      %v6709 = vmul.f32 %v6645, %v6358
      %v6710 = vmul.f32 %v6646, %v6360
      %v6711 = vmul.f32 %v6647, %v6362
      %v6712 = vmul.f32 %v6648, %v6364
      %v6713 = vmul.f32 %v6649, %v6366
      %v6714 = vmul.f32 %v6650, %v6368
      %v6715 = vmul.f32 %v6651, %v6370
      %v6716 = vmul.f32 %v6652, %v6372
      %v6717 = vmul.f32 %v6653, %v6374
      %v6718 = vmul.f32 %v6654, %v6376
      %v6719 = vmul.f32 %v6655, %v6378
      %v6720 = vmul.f32 %v6656, %v6380
      %v6721 = vmul.f32 %v6657, %v6382
      %v6722 = vmul.f32 %v6658, %v6384
      %v6723 = vmul.f32 %v6659, %v6386
      %v6724 = vmul.f32 %v6660, %v6388
      %v6725 = vmul.f32 %v6661, %v6390
      %v6726 = vmul.f32 %v6662, %v6392
      %v6727 = vmul.f32 %v6663, %v6394
      %v6728 = vmul.f32 %v6664, %v6396
      %v6729 = vmul.f32 %v6665, %v6398
      %v6730 = vmul.f32 %v6666, %v6400
      %v6731 = vmul.f32 %v6667, %v6402
      %v6732 = vmul.f32 %v6668, %v6404
      %v6733 = vmul.f32 %v6669, %v6406
      %v6734 = vmul.f32 %v6670, %v6408
      %v6735 = vmul.f32 %v6671, %v6410
      %v6736 = vmul.f32 %v6672, %v6412
      %v6737 = vmul.f32 %v6673, %v6414
      %v6738 = vmul.f32 %v6674, %v6416
      %v6739 = vmul.f32 %v6675, %v6418
      %v6740 = vmul.f32 %v6676, %v6420
      %v6741 = vadd.f32 %v6677, -0.28449672
      %v6742 = vadd.f32 %v6678, -0.28449672
      %v6743 = vadd.f32 %v6679, -0.28449672
      %v6744 = vadd.f32 %v6680, -0.28449672
      %v6745 = vadd.f32 %v6681, -0.28449672
      %v6746 = vadd.f32 %v6682, -0.28449672
      %v6747 = vadd.f32 %v6683, -0.28449672
      %v6748 = vadd.f32 %v6684, -0.28449672
      %v6749 = vadd.f32 %v6685, -0.28449672
      %v6750 = vadd.f32 %v6686, -0.28449672
      %v6751 = vadd.f32 %v6687, -0.28449672
      %v6752 = vadd.f32 %v6688, -0.28449672
      %v6753 = vadd.f32 %v6689, -0.28449672
      %v6754 = vadd.f32 %v6690, -0.28449672
      %v6755 = vadd.f32 %v6691, -0.28449672
      %v6756 = vadd.f32 %v6692, -0.28449672
      %v6757 = vadd.f32 %v6693, -0.28449672
      %v6758 = vadd.f32 %v6694, -0.28449672
      %v6759 = vadd.f32 %v6695, -0.28449672
      %v6760 = vadd.f32 %v6696, -0.28449672
      %v6761 = vadd.f32 %v6697, -0.28449672
      %v6762 = vadd.f32 %v6698, -0.28449672
      %v6763 = vadd.f32 %v6699, -0.28449672
      %v6764 = vadd.f32 %v6700, -0.28449672
      %v6765 = vadd.f32 %v6701, -0.28449672
      %v6766 = vadd.f32 %v6702, -0.28449672
      %v6767 = vadd.f32 %v6703, -0.28449672
      %v6768 = vadd.f32 %v6704, -0.28449672
      %v6769 = vadd.f32 %v6705, -0.28449672
      %v6770 = vadd.f32 %v6706, -0.28449672
      %v6771 = vadd.f32 %v6707, -0.28449672
      %v6772 = vadd.f32 %v6708, -0.28449672
      %v6773 = vadd.f32 %v6709, -0.28449672
      %v6774 = vadd.f32 %v6710, -0.28449672
      %v6775 = vadd.f32 %v6711, -0.28449672
      %v6776 = vadd.f32 %v6712, -0.28449672
      %v6777 = vadd.f32 %v6713, -0.28449672
      %v6778 = vadd.f32 %v6714, -0.28449672
      %v6779 = vadd.f32 %v6715, -0.28449672
      %v6780 = vadd.f32 %v6716, -0.28449672
      %v6781 = vadd.f32 %v6717, -0.28449672
      %v6782 = vadd.f32 %v6718, -0.28449672
      %v6783 = vadd.f32 %v6719, -0.28449672
      %v6784 = vadd.f32 %v6720, -0.28449672
      %v6785 = vadd.f32 %v6721, -0.28449672
      %v6786 = vadd.f32 %v6722, -0.28449672
      %v6787 = vadd.f32 %v6723, -0.28449672
      %v6788 = vadd.f32 %v6724, -0.28449672
      %v6789 = vadd.f32 %v6725, -0.28449672
      %v6790 = vadd.f32 %v6726, -0.28449672
      %v6791 = vadd.f32 %v6727, -0.28449672
      %v6792 = vadd.f32 %v6728, -0.28449672
      %v6793 = vadd.f32 %v6729, -0.28449672
      %v6794 = vadd.f32 %v6730, -0.28449672
      %v6795 = vadd.f32 %v6731, -0.28449672
      %v6796 = vadd.f32 %v6732, -0.28449672
      %v6797 = vadd.f32 %v6733, -0.28449672
      %v6798 = vadd.f32 %v6734, -0.28449672
      %v6799 = vadd.f32 %v6735, -0.28449672
      %v6800 = vadd.f32 %v6736, -0.28449672
      %v6801 = vadd.f32 %v6737, -0.28449672
      %v6802 = vadd.f32 %v6738, -0.28449672
      %v6803 = vadd.f32 %v6739, -0.28449672
      %v6804 = vadd.f32 %v6740, -0.28449672
      %v6805 = vmul.f32 %v6741, %v6294
      %v6806 = vmul.f32 %v6742, %v6296
      %v6807 = vmul.f32 %v6743, %v6298
      %v6808 = vmul.f32 %v6744, %v6300
      %v6809 = vmul.f32 %v6745, %v6302
      %v6810 = vmul.f32 %v6746, %v6304
      %v6811 = vmul.f32 %v6747, %v6306
      %v6812 = vmul.f32 %v6748, %v6308
      %v6813 = vmul.f32 %v6749, %v6310
      %v6814 = vmul.f32 %v6750, %v6312
      %v6815 = vmul.f32 %v6751, %v6314
      %v6816 = vmul.f32 %v6752, %v6316
      %v6817 = vmul.f32 %v6753, %v6318
      %v6818 = vmul.f32 %v6754, %v6320
      %v6819 = vmul.f32 %v6755, %v6322
      %v6820 = vmul.f32 %v6756, %v6324
      %v6821 = vmul.f32 %v6757, %v6326
      %v6822 = vmul.f32 %v6758, %v6328
      %v6823 = vmul.f32 %v6759, %v6330
      %v6824 = vmul.f32 %v6760, %v6332
      %v6825 = vmul.f32 %v6761, %v6334
      %v6826 = vmul.f32 %v6762, %v6336
      %v6827 = vmul.f32 %v6763, %v6338
      %v6828 = vmul.f32 %v6764, %v6340
      %v6829 = vmul.f32 %v6765, %v6342
      %v6830 = vmul.f32 %v6766, %v6344
      %v6831 = vmul.f32 %v6767, %v6346
      %v6832 = vmul.f32 %v6768, %v6348
      %v6833 = vmul.f32 %v6769, %v6350
      %v6834 = vmul.f32 %v6770, %v6352
      %v6835 = vmul.f32 %v6771, %v6354
      %v6836 = vmul.f32 %v6772, %v6356
      %v6837 = vmul.f32 %v6773, %v6358
      %v6838 = vmul.f32 %v6774, %v6360
      %v6839 = vmul.f32 %v6775, %v6362
      %v6840 = vmul.f32 %v6776, %v6364
      %v6841 = vmul.f32 %v6777, %v6366
      %v6842 = vmul.f32 %v6778, %v6368
      %v6843 = vmul.f32 %v6779, %v6370
      %v6844 = vmul.f32 %v6780, %v6372
      %v6845 = vmul.f32 %v6781, %v6374
      %v6846 = vmul.f32 %v6782, %v6376
      %v6847 = vmul.f32 %v6783, %v6378
      %v6848 = vmul.f32 %v6784, %v6380
      %v6849 = vmul.f32 %v6785, %v6382
      %v6850 = vmul.f32 %v6786, %v6384
      %v6851 = vmul.f32 %v6787, %v6386
      %v6852 = vmul.f32 %v6788, %v6388
      %v6853 = vmul.f32 %v6789, %v6390
      %v6854 = vmul.f32 %v6790, %v6392
      %v6855 = vmul.f32 %v6791, %v6394
      %v6856 = vmul.f32 %v6792, %v6396
      %v6857 = vmul.f32 %v6793, %v6398
      %v6858 = vmul.f32 %v6794, %v6400
      %v6859 = vmul.f32 %v6795, %v6402
      %v6860 = vmul.f32 %v6796, %v6404
      %v6861 = vmul.f32 %v6797, %v6406
      %v6862 = vmul.f32 %v6798, %v6408
      %v6863 = vmul.f32 %v6799, %v6410
      %v6864 = vmul.f32 %v6800, %v6412
      %v6865 = vmul.f32 %v6801, %v6414
      %v6866 = vmul.f32 %v6802, %v6416
      %v6867 = vmul.f32 %v6803, %v6418
      %v6868 = vmul.f32 %v6804, %v6420
      %v6869 = vadd.f32 %v6805, 0.2548296
      %v6870 = vadd.f32 %v6806, 0.2548296
      %v6871 = vadd.f32 %v6807, 0.2548296
      %v6872 = vadd.f32 %v6808, 0.2548296
      %v6873 = vadd.f32 %v6809, 0.2548296
      %v6874 = vadd.f32 %v6810, 0.2548296
      %v6875 = vadd.f32 %v6811, 0.2548296
      %v6876 = vadd.f32 %v6812, 0.2548296
      %v6877 = vadd.f32 %v6813, 0.2548296
      %v6878 = vadd.f32 %v6814, 0.2548296
      %v6879 = vadd.f32 %v6815, 0.2548296
      %v6880 = vadd.f32 %v6816, 0.2548296
      %v6881 = vadd.f32 %v6817, 0.2548296
      %v6882 = vadd.f32 %v6818, 0.2548296
      %v6883 = vadd.f32 %v6819, 0.2548296
      %v6884 = vadd.f32 %v6820, 0.2548296
      %v6885 = vadd.f32 %v6821, 0.2548296
      %v6886 = vadd.f32 %v6822, 0.2548296
      %v6887 = vadd.f32 %v6823, 0.2548296
      %v6888 = vadd.f32 %v6824, 0.2548296
      %v6889 = vadd.f32 %v6825, 0.2548296
      %v6890 = vadd.f32 %v6826, 0.2548296
      %v6891 = vadd.f32 %v6827, 0.2548296
      %v6892 = vadd.f32 %v6828, 0.2548296
      %v6893 = vadd.f32 %v6829, 0.2548296
      %v6894 = vadd.f32 %v6830, 0.2548296
      %v6895 = vadd.f32 %v6831, 0.2548296
      %v6896 = vadd.f32 %v6832, 0.2548296
      %v6897 = vadd.f32 %v6833, 0.2548296
      %v6898 = vadd.f32 %v6834, 0.2548296
      %v6899 = vadd.f32 %v6835, 0.2548296
      %v6900 = vadd.f32 %v6836, 0.2548296
      %v6901 = vadd.f32 %v6837, 0.2548296
      %v6902 = vadd.f32 %v6838, 0.2548296
      %v6903 = vadd.f32 %v6839, 0.2548296
      %v6904 = vadd.f32 %v6840, 0.2548296
      %v6905 = vadd.f32 %v6841, 0.2548296
      %v6906 = vadd.f32 %v6842, 0.2548296
      %v6907 = vadd.f32 %v6843, 0.2548296
      %v6908 = vadd.f32 %v6844, 0.2548296
      %v6909 = vadd.f32 %v6845, 0.2548296
      %v6910 = vadd.f32 %v6846, 0.2548296
      %v6911 = vadd.f32 %v6847, 0.2548296
      %v6912 = vadd.f32 %v6848, 0.2548296
      %v6913 = vadd.f32 %v6849, 0.2548296
      %v6914 = vadd.f32 %v6850, 0.2548296
      %v6915 = vadd.f32 %v6851, 0.2548296
      %v6916 = vadd.f32 %v6852, 0.2548296
      %v6917 = vadd.f32 %v6853, 0.2548296
      %v6918 = vadd.f32 %v6854, 0.2548296
      %v6919 = vadd.f32 %v6855, 0.2548296
      %v6920 = vadd.f32 %v6856, 0.2548296
      %v6921 = vadd.f32 %v6857, 0.2548296
      %v6922 = vadd.f32 %v6858, 0.2548296
      %v6923 = vadd.f32 %v6859, 0.2548296
      %v6924 = vadd.f32 %v6860, 0.2548296
      %v6925 = vadd.f32 %v6861, 0.2548296
      %v6926 = vadd.f32 %v6862, 0.2548296
      %v6927 = vadd.f32 %v6863, 0.2548296
      %v6928 = vadd.f32 %v6864, 0.2548296
      %v6929 = vadd.f32 %v6865, 0.2548296
      %v6930 = vadd.f32 %v6866, 0.2548296
      %v6931 = vadd.f32 %v6867, 0.2548296
      %v6932 = vadd.f32 %v6868, 0.2548296
      %v6933 = vmul.f32 %v6869, %v6294
      %v6934 = vmul.f32 %v6870, %v6296
      %v6935 = vmul.f32 %v6871, %v6298
      %v6936 = vmul.f32 %v6872, %v6300
      %v6937 = vmul.f32 %v6873, %v6302
      %v6938 = vmul.f32 %v6874, %v6304
      %v6939 = vmul.f32 %v6875, %v6306
      %v6940 = vmul.f32 %v6876, %v6308
      %v6941 = vmul.f32 %v6877, %v6310
      %v6942 = vmul.f32 %v6878, %v6312
      %v6943 = vmul.f32 %v6879, %v6314
      %v6944 = vmul.f32 %v6880, %v6316
      %v6945 = vmul.f32 %v6881, %v6318
      %v6946 = vmul.f32 %v6882, %v6320
      %v6947 = vmul.f32 %v6883, %v6322
      %v6948 = vmul.f32 %v6884, %v6324
      %v6949 = vmul.f32 %v6885, %v6326
      %v6950 = vmul.f32 %v6886, %v6328
      %v6951 = vmul.f32 %v6887, %v6330
      %v6952 = vmul.f32 %v6888, %v6332
      %v6953 = vmul.f32 %v6889, %v6334
      %v6954 = vmul.f32 %v6890, %v6336
      %v6955 = vmul.f32 %v6891, %v6338
      %v6956 = vmul.f32 %v6892, %v6340
      %v6957 = vmul.f32 %v6893, %v6342
      %v6958 = vmul.f32 %v6894, %v6344
      %v6959 = vmul.f32 %v6895, %v6346
      %v6960 = vmul.f32 %v6896, %v6348
      %v6961 = vmul.f32 %v6897, %v6350
      %v6962 = vmul.f32 %v6898, %v6352
      %v6963 = vmul.f32 %v6899, %v6354
      %v6964 = vmul.f32 %v6900, %v6356
      %v6965 = vmul.f32 %v6901, %v6358
      %v6966 = vmul.f32 %v6902, %v6360
      %v6967 = vmul.f32 %v6903, %v6362
      %v6968 = vmul.f32 %v6904, %v6364
      %v6969 = vmul.f32 %v6905, %v6366
      %v6970 = vmul.f32 %v6906, %v6368
      %v6971 = vmul.f32 %v6907, %v6370
      %v6972 = vmul.f32 %v6908, %v6372
      %v6973 = vmul.f32 %v6909, %v6374
      %v6974 = vmul.f32 %v6910, %v6376
      %v6975 = vmul.f32 %v6911, %v6378
      %v6976 = vmul.f32 %v6912, %v6380
      %v6977 = vmul.f32 %v6913, %v6382
      %v6978 = vmul.f32 %v6914, %v6384
      %v6979 = vmul.f32 %v6915, %v6386
      %v6980 = vmul.f32 %v6916, %v6388
      %v6981 = vmul.f32 %v6917, %v6390
      %v6982 = vmul.f32 %v6918, %v6392
      %v6983 = vmul.f32 %v6919, %v6394
      %v6984 = vmul.f32 %v6920, %v6396
      %v6985 = vmul.f32 %v6921, %v6398
      %v6986 = vmul.f32 %v6922, %v6400
      %v6987 = vmul.f32 %v6923, %v6402
      %v6988 = vmul.f32 %v6924, %v6404
      %v6989 = vmul.f32 %v6925, %v6406
      %v6990 = vmul.f32 %v6926, %v6408
      %v6991 = vmul.f32 %v6927, %v6410
      %v6992 = vmul.f32 %v6928, %v6412
      %v6993 = vmul.f32 %v6929, %v6414
      %v6994 = vmul.f32 %v6930, %v6416
      %v6995 = vmul.f32 %v6931, %v6418
      %v6996 = vmul.f32 %v6932, %v6420
      %v6997 = vsub.f32 0.0, %v6101
      %v6998 = vsub.f32 0.0, %v6102
      %v6999 = vsub.f32 0.0, %v6103
      %v7000 = vsub.f32 0.0, %v6104
      %v7001 = vsub.f32 0.0, %v6105
      %v7002 = vsub.f32 0.0, %v6106
      %v7003 = vsub.f32 0.0, %v6107
      %v7004 = vsub.f32 0.0, %v6108
      %v7005 = vsub.f32 0.0, %v6109
      %v7006 = vsub.f32 0.0, %v6110
      %v7007 = vsub.f32 0.0, %v6111
      %v7008 = vsub.f32 0.0, %v6112
      %v7009 = vsub.f32 0.0, %v6113
      %v7010 = vsub.f32 0.0, %v6114
      %v7011 = vsub.f32 0.0, %v6115
      %v7012 = vsub.f32 0.0, %v6116
      %v7013 = vsub.f32 0.0, %v6117
      %v7014 = vsub.f32 0.0, %v6118
      %v7015 = vsub.f32 0.0, %v6119
      %v7016 = vsub.f32 0.0, %v6120
      %v7017 = vsub.f32 0.0, %v6121
      %v7018 = vsub.f32 0.0, %v6122
      %v7019 = vsub.f32 0.0, %v6123
      %v7020 = vsub.f32 0.0, %v6124
      %v7021 = vsub.f32 0.0, %v6125
      %v7022 = vsub.f32 0.0, %v6126
      %v7023 = vsub.f32 0.0, %v6127
      %v7024 = vsub.f32 0.0, %v6128
      %v7025 = vsub.f32 0.0, %v6129
      %v7026 = vsub.f32 0.0, %v6130
      %v7027 = vsub.f32 0.0, %v6131
      %v7028 = vsub.f32 0.0, %v6132
      %v7029 = vsub.f32 0.0, %v6133
      %v7030 = vsub.f32 0.0, %v6134
      %v7031 = vsub.f32 0.0, %v6135
      %v7032 = vsub.f32 0.0, %v6136
      %v7033 = vsub.f32 0.0, %v6137
      %v7034 = vsub.f32 0.0, %v6138
      %v7035 = vsub.f32 0.0, %v6139
      %v7036 = vsub.f32 0.0, %v6140
      %v7037 = vsub.f32 0.0, %v6141
      %v7038 = vsub.f32 0.0, %v6142
      %v7039 = vsub.f32 0.0, %v6143
      %v7040 = vsub.f32 0.0, %v6144
      %v7041 = vsub.f32 0.0, %v6145
      %v7042 = vsub.f32 0.0, %v6146
      %v7043 = vsub.f32 0.0, %v6147
      %v7044 = vsub.f32 0.0, %v6148
      %v7045 = vsub.f32 0.0, %v6149
      %v7046 = vsub.f32 0.0, %v6150
      %v7047 = vsub.f32 0.0, %v6151
      %v7048 = vsub.f32 0.0, %v6152
      %v7049 = vsub.f32 0.0, %v6153
      %v7050 = vsub.f32 0.0, %v6154
      %v7051 = vsub.f32 0.0, %v6155
      %v7052 = vsub.f32 0.0, %v6156
      %v7053 = vsub.f32 0.0, %v6157
      %v7054 = vsub.f32 0.0, %v6158
      %v7055 = vsub.f32 0.0, %v6159
      %v7056 = vsub.f32 0.0, %v6160
      %v7057 = vsub.f32 0.0, %v6161
      %v7058 = vsub.f32 0.0, %v6162
      %v7059 = vsub.f32 0.0, %v6163
      %v7060 = vsub.f32 0.0, %v6164
      %v7061 = vmul.f32 %v6997, %v6101
      %v7062 = vmul.f32 %v6998, %v6102
      %v7063 = vmul.f32 %v6999, %v6103
      %v7064 = vmul.f32 %v7000, %v6104
      %v7065 = vmul.f32 %v7001, %v6105
      %v7066 = vmul.f32 %v7002, %v6106
      %v7067 = vmul.f32 %v7003, %v6107
      %v7068 = vmul.f32 %v7004, %v6108
      %v7069 = vmul.f32 %v7005, %v6109
      %v7070 = vmul.f32 %v7006, %v6110
      %v7071 = vmul.f32 %v7007, %v6111
      %v7072 = vmul.f32 %v7008, %v6112
      %v7073 = vmul.f32 %v7009, %v6113
      %v7074 = vmul.f32 %v7010, %v6114
      %v7075 = vmul.f32 %v7011, %v6115
      %v7076 = vmul.f32 %v7012, %v6116
      %v7077 = vmul.f32 %v7013, %v6117
      %v7078 = vmul.f32 %v7014, %v6118
      %v7079 = vmul.f32 %v7015, %v6119
      %v7080 = vmul.f32 %v7016, %v6120
      %v7081 = vmul.f32 %v7017, %v6121
      %v7082 = vmul.f32 %v7018, %v6122
      %v7083 = vmul.f32 %v7019, %v6123
      %v7084 = vmul.f32 %v7020, %v6124
      %v7085 = vmul.f32 %v7021, %v6125
      %v7086 = vmul.f32 %v7022, %v6126
      %v7087 = vmul.f32 %v7023, %v6127
      %v7088 = vmul.f32 %v7024, %v6128
      %v7089 = vmul.f32 %v7025, %v6129
      %v7090 = vmul.f32 %v7026, %v6130
      %v7091 = vmul.f32 %v7027, %v6131
      %v7092 = vmul.f32 %v7028, %v6132
      %v7093 = vmul.f32 %v7029, %v6133
      %v7094 = vmul.f32 %v7030, %v6134
      %v7095 = vmul.f32 %v7031, %v6135
      %v7096 = vmul.f32 %v7032, %v6136
      %v7097 = vmul.f32 %v7033, %v6137
      %v7098 = vmul.f32 %v7034, %v6138
      %v7099 = vmul.f32 %v7035, %v6139
      %v7100 = vmul.f32 %v7036, %v6140
      %v7101 = vmul.f32 %v7037, %v6141
      %v7102 = vmul.f32 %v7038, %v6142
      %v7103 = vmul.f32 %v7039, %v6143
      %v7104 = vmul.f32 %v7040, %v6144
      %v7105 = vmul.f32 %v7041, %v6145
      %v7106 = vmul.f32 %v7042, %v6146
      %v7107 = vmul.f32 %v7043, %v6147
      %v7108 = vmul.f32 %v7044, %v6148
      %v7109 = vmul.f32 %v7045, %v6149
      %v7110 = vmul.f32 %v7046, %v6150
      %v7111 = vmul.f32 %v7047, %v6151
      %v7112 = vmul.f32 %v7048, %v6152
      %v7113 = vmul.f32 %v7049, %v6153
      %v7114 = vmul.f32 %v7050, %v6154
      %v7115 = vmul.f32 %v7051, %v6155
      %v7116 = vmul.f32 %v7052, %v6156
      %v7117 = vmul.f32 %v7053, %v6157
      %v7118 = vmul.f32 %v7054, %v6158
      %v7119 = vmul.f32 %v7055, %v6159
      %v7120 = vmul.f32 %v7056, %v6160
      %v7121 = vmul.f32 %v7057, %v6161
      %v7122 = vmul.f32 %v7058, %v6162
      %v7123 = vmul.f32 %v7059, %v6163
      %v7124 = vmul.f32 %v7060, %v6164
      %v7125 = vmul.f32 %v7061, 1.442695
      %v7126 = vpow.pop %v7125
      %v7127 = vmul.f32 %v7062, 1.442695
      %v7128 = vpow.pop %v7127
      %v7129 = vmul.f32 %v7063, 1.442695
      %v7130 = vpow.pop %v7129
      %v7131 = vmul.f32 %v7064, 1.442695
      %v7132 = vpow.pop %v7131
      %v7133 = vmul.f32 %v7065, 1.442695
      %v7134 = vpow.pop %v7133
      %v7135 = vmul.f32 %v7066, 1.442695
      %v7136 = vpow.pop %v7135
      %v7137 = vmul.f32 %v7067, 1.442695
      %v7138 = vpow.pop %v7137
      %v7139 = vmul.f32 %v7068, 1.442695
      %v7140 = vpow.pop %v7139
      %v7141 = vmul.f32 %v7069, 1.442695
      %v7142 = vpow.pop %v7141
      %v7143 = vmul.f32 %v7070, 1.442695
      %v7144 = vpow.pop %v7143
      %v7145 = vmul.f32 %v7071, 1.442695
      %v7146 = vpow.pop %v7145
      %v7147 = vmul.f32 %v7072, 1.442695
      %v7148 = vpow.pop %v7147
      %v7149 = vmul.f32 %v7073, 1.442695
      %v7150 = vpow.pop %v7149
      %v7151 = vmul.f32 %v7074, 1.442695
      %v7152 = vpow.pop %v7151
      %v7153 = vmul.f32 %v7075, 1.442695
      %v7154 = vpow.pop %v7153
      %v7155 = vmul.f32 %v7076, 1.442695
      %v7156 = vpow.pop %v7155
      %v7157 = vmul.f32 %v7077, 1.442695
      %v7158 = vpow.pop %v7157
      %v7159 = vmul.f32 %v7078, 1.442695
      %v7160 = vpow.pop %v7159
      %v7161 = vmul.f32 %v7079, 1.442695
      %v7162 = vpow.pop %v7161
      %v7163 = vmul.f32 %v7080, 1.442695
      %v7164 = vpow.pop %v7163
      %v7165 = vmul.f32 %v7081, 1.442695
      %v7166 = vpow.pop %v7165
      %v7167 = vmul.f32 %v7082, 1.442695
      %v7168 = vpow.pop %v7167
      %v7169 = vmul.f32 %v7083, 1.442695
      %v7170 = vpow.pop %v7169
      %v7171 = vmul.f32 %v7084, 1.442695
      %v7172 = vpow.pop %v7171
      %v7173 = vmul.f32 %v7085, 1.442695
      %v7174 = vpow.pop %v7173
      %v7175 = vmul.f32 %v7086, 1.442695
      %v7176 = vpow.pop %v7175
      %v7177 = vmul.f32 %v7087, 1.442695
      %v7178 = vpow.pop %v7177
      %v7179 = vmul.f32 %v7088, 1.442695
      %v7180 = vpow.pop %v7179
      %v7181 = vmul.f32 %v7089, 1.442695
      %v7182 = vpow.pop %v7181
      %v7183 = vmul.f32 %v7090, 1.442695
      %v7184 = vpow.pop %v7183
      %v7185 = vmul.f32 %v7091, 1.442695
      %v7186 = vpow.pop %v7185
      %v7187 = vmul.f32 %v7092, 1.442695
      %v7188 = vpow.pop %v7187
      %v7189 = vmul.f32 %v7093, 1.442695
      %v7190 = vpow.pop %v7189
      %v7191 = vmul.f32 %v7094, 1.442695
      %v7192 = vpow.pop %v7191
      %v7193 = vmul.f32 %v7095, 1.442695
      %v7194 = vpow.pop %v7193
      %v7195 = vmul.f32 %v7096, 1.442695
      %v7196 = vpow.pop %v7195
      %v7197 = vmul.f32 %v7097, 1.442695
      %v7198 = vpow.pop %v7197
      %v7199 = vmul.f32 %v7098, 1.442695
      %v7200 = vpow.pop %v7199
      %v7201 = vmul.f32 %v7099, 1.442695
      %v7202 = vpow.pop %v7201
      %v7203 = vmul.f32 %v7100, 1.442695
      %v7204 = vpow.pop %v7203
      %v7205 = vmul.f32 %v7101, 1.442695
      %v7206 = vpow.pop %v7205
      %v7207 = vmul.f32 %v7102, 1.442695
      %v7208 = vpow.pop %v7207
      %v7209 = vmul.f32 %v7103, 1.442695
      %v7210 = vpow.pop %v7209
      %v7211 = vmul.f32 %v7104, 1.442695
      %v7212 = vpow.pop %v7211
      %v7213 = vmul.f32 %v7105, 1.442695
      %v7214 = vpow.pop %v7213
      %v7215 = vmul.f32 %v7106, 1.442695
      %v7216 = vpow.pop %v7215
      %v7217 = vmul.f32 %v7107, 1.442695
      %v7218 = vpow.pop %v7217
      %v7219 = vmul.f32 %v7108, 1.442695
      %v7220 = vpow.pop %v7219
      %v7221 = vmul.f32 %v7109, 1.442695
      %v7222 = vpow.pop %v7221
      %v7223 = vmul.f32 %v7110, 1.442695
      %v7224 = vpow.pop %v7223
      %v7225 = vmul.f32 %v7111, 1.442695
      %v7226 = vpow.pop %v7225
      %v7227 = vmul.f32 %v7112, 1.442695
      %v7228 = vpow.pop %v7227
      %v7229 = vmul.f32 %v7113, 1.442695
      %v7230 = vpow.pop %v7229
      %v7231 = vmul.f32 %v7114, 1.442695
      %v7232 = vpow.pop %v7231
      %v7233 = vmul.f32 %v7115, 1.442695
      %v7234 = vpow.pop %v7233
      %v7235 = vmul.f32 %v7116, 1.442695
      %v7236 = vpow.pop %v7235
      %v7237 = vmul.f32 %v7117, 1.442695
      %v7238 = vpow.pop %v7237
      %v7239 = vmul.f32 %v7118, 1.442695
      %v7240 = vpow.pop %v7239
      %v7241 = vmul.f32 %v7119, 1.442695
      %v7242 = vpow.pop %v7241
      %v7243 = vmul.f32 %v7120, 1.442695
      %v7244 = vpow.pop %v7243
      %v7245 = vmul.f32 %v7121, 1.442695
      %v7246 = vpow.pop %v7245
      %v7247 = vmul.f32 %v7122, 1.442695
      %v7248 = vpow.pop %v7247
      %v7249 = vmul.f32 %v7123, 1.442695
      %v7250 = vpow.pop %v7249
      %v7251 = vmul.f32 %v7124, 1.442695
      %v7252 = vpow.pop %v7251
      %v7253 = vmul.f32 %v6933, %v7126
      %v7254 = vmul.f32 %v6934, %v7128
      %v7255 = vmul.f32 %v6935, %v7130
      %v7256 = vmul.f32 %v6936, %v7132
      %v7257 = vmul.f32 %v6937, %v7134
      %v7258 = vmul.f32 %v6938, %v7136
      %v7259 = vmul.f32 %v6939, %v7138
      %v7260 = vmul.f32 %v6940, %v7140
      %v7261 = vmul.f32 %v6941, %v7142
      %v7262 = vmul.f32 %v6942, %v7144
      %v7263 = vmul.f32 %v6943, %v7146
      %v7264 = vmul.f32 %v6944, %v7148
      %v7265 = vmul.f32 %v6945, %v7150
      %v7266 = vmul.f32 %v6946, %v7152
      %v7267 = vmul.f32 %v6947, %v7154
      %v7268 = vmul.f32 %v6948, %v7156
      %v7269 = vmul.f32 %v6949, %v7158
      %v7270 = vmul.f32 %v6950, %v7160
      %v7271 = vmul.f32 %v6951, %v7162
      %v7272 = vmul.f32 %v6952, %v7164
      %v7273 = vmul.f32 %v6953, %v7166
      %v7274 = vmul.f32 %v6954, %v7168
      %v7275 = vmul.f32 %v6955, %v7170
      %v7276 = vmul.f32 %v6956, %v7172
      %v7277 = vmul.f32 %v6957, %v7174
      %v7278 = vmul.f32 %v6958, %v7176
      %v7279 = vmul.f32 %v6959, %v7178
      %v7280 = vmul.f32 %v6960, %v7180
      %v7281 = vmul.f32 %v6961, %v7182
      %v7282 = vmul.f32 %v6962, %v7184
      %v7283 = vmul.f32 %v6963, %v7186
      %v7284 = vmul.f32 %v6964, %v7188
      %v7285 = vmul.f32 %v6965, %v7190
      %v7286 = vmul.f32 %v6966, %v7192
      %v7287 = vmul.f32 %v6967, %v7194
      %v7288 = vmul.f32 %v6968, %v7196
      %v7289 = vmul.f32 %v6969, %v7198
      %v7290 = vmul.f32 %v6970, %v7200
      %v7291 = vmul.f32 %v6971, %v7202
      %v7292 = vmul.f32 %v6972, %v7204
      %v7293 = vmul.f32 %v6973, %v7206
      %v7294 = vmul.f32 %v6974, %v7208
      %v7295 = vmul.f32 %v6975, %v7210
      %v7296 = vmul.f32 %v6976, %v7212
      %v7297 = vmul.f32 %v6977, %v7214
      %v7298 = vmul.f32 %v6978, %v7216
      %v7299 = vmul.f32 %v6979, %v7218
      %v7300 = vmul.f32 %v6980, %v7220
      %v7301 = vmul.f32 %v6981, %v7222
      %v7302 = vmul.f32 %v6982, %v7224
      %v7303 = vmul.f32 %v6983, %v7226
      %v7304 = vmul.f32 %v6984, %v7228
      %v7305 = vmul.f32 %v6985, %v7230
      %v7306 = vmul.f32 %v6986, %v7232
      %v7307 = vmul.f32 %v6987, %v7234
      %v7308 = vmul.f32 %v6988, %v7236
      %v7309 = vmul.f32 %v6989, %v7238
      %v7310 = vmul.f32 %v6990, %v7240
      %v7311 = vmul.f32 %v6991, %v7242
      %v7312 = vmul.f32 %v6992, %v7244
      %v7313 = vmul.f32 %v6993, %v7246
      %v7314 = vmul.f32 %v6994, %v7248
      %v7315 = vmul.f32 %v6995, %v7250
      %v7316 = vmul.f32 %v6996, %v7252
      %v7317 = vsub.f32 1.0, %v7253
      %v7318 = vsub.f32 1.0, %v7254
      %v7319 = vsub.f32 1.0, %v7255
      %v7320 = vsub.f32 1.0, %v7256
      %v7321 = vsub.f32 1.0, %v7257
      %v7322 = vsub.f32 1.0, %v7258
      %v7323 = vsub.f32 1.0, %v7259
      %v7324 = vsub.f32 1.0, %v7260
      %v7325 = vsub.f32 1.0, %v7261
      %v7326 = vsub.f32 1.0, %v7262
      %v7327 = vsub.f32 1.0, %v7263
      %v7328 = vsub.f32 1.0, %v7264
      %v7329 = vsub.f32 1.0, %v7265
      %v7330 = vsub.f32 1.0, %v7266
      %v7331 = vsub.f32 1.0, %v7267
      %v7332 = vsub.f32 1.0, %v7268
      %v7333 = vsub.f32 1.0, %v7269
      %v7334 = vsub.f32 1.0, %v7270
      %v7335 = vsub.f32 1.0, %v7271
      %v7336 = vsub.f32 1.0, %v7272
      %v7337 = vsub.f32 1.0, %v7273
      %v7338 = vsub.f32 1.0, %v7274
      %v7339 = vsub.f32 1.0, %v7275
      %v7340 = vsub.f32 1.0, %v7276
      %v7341 = vsub.f32 1.0, %v7277
      %v7342 = vsub.f32 1.0, %v7278
      %v7343 = vsub.f32 1.0, %v7279
      %v7344 = vsub.f32 1.0, %v7280
      %v7345 = vsub.f32 1.0, %v7281
      %v7346 = vsub.f32 1.0, %v7282
      %v7347 = vsub.f32 1.0, %v7283
      %v7348 = vsub.f32 1.0, %v7284
      %v7349 = vsub.f32 1.0, %v7285
      %v7350 = vsub.f32 1.0, %v7286
      %v7351 = vsub.f32 1.0, %v7287
      %v7352 = vsub.f32 1.0, %v7288
      %v7353 = vsub.f32 1.0, %v7289
      %v7354 = vsub.f32 1.0, %v7290
      %v7355 = vsub.f32 1.0, %v7291
      %v7356 = vsub.f32 1.0, %v7292
      %v7357 = vsub.f32 1.0, %v7293
      %v7358 = vsub.f32 1.0, %v7294
      %v7359 = vsub.f32 1.0, %v7295
      %v7360 = vsub.f32 1.0, %v7296
      %v7361 = vsub.f32 1.0, %v7297
      %v7362 = vsub.f32 1.0, %v7298
      %v7363 = vsub.f32 1.0, %v7299
      %v7364 = vsub.f32 1.0, %v7300
      %v7365 = vsub.f32 1.0, %v7301
      %v7366 = vsub.f32 1.0, %v7302
      %v7367 = vsub.f32 1.0, %v7303
      %v7368 = vsub.f32 1.0, %v7304
      %v7369 = vsub.f32 1.0, %v7305
      %v7370 = vsub.f32 1.0, %v7306
      %v7371 = vsub.f32 1.0, %v7307
      %v7372 = vsub.f32 1.0, %v7308
      %v7373 = vsub.f32 1.0, %v7309
      %v7374 = vsub.f32 1.0, %v7310
      %v7375 = vsub.f32 1.0, %v7311
      %v7376 = vsub.f32 1.0, %v7312
      %v7377 = vsub.f32 1.0, %v7313
      %v7378 = vsub.f32 1.0, %v7314
      %v7379 = vsub.f32 1.0, %v7315
      %v7380 = vsub.f32 1.0, %v7316
      %vm7381 = vcmp.ge.f32.partialorder %v6037, 0.0
      %vm7382 = vcmp.ge.f32.partialorder %v6038, 0.0
      %vm7383 = vcmp.ge.f32.partialorder %v6039, 0.0
      %vm7384 = vcmp.ge.f32.partialorder %v6040, 0.0
      %vm7385 = vcmp.ge.f32.partialorder %v6041, 0.0
      %vm7386 = vcmp.ge.f32.partialorder %v6042, 0.0
      %vm7387 = vcmp.ge.f32.partialorder %v6043, 0.0
      %vm7388 = vcmp.ge.f32.partialorder %v6044, 0.0
      %vm7389 = vcmp.ge.f32.partialorder %v6045, 0.0
      %vm7390 = vcmp.ge.f32.partialorder %v6046, 0.0
      %vm7391 = vcmp.ge.f32.partialorder %v6047, 0.0
      %vm7392 = vcmp.ge.f32.partialorder %v6048, 0.0
      %vm7393 = vcmp.ge.f32.partialorder %v6049, 0.0
      %vm7394 = vcmp.ge.f32.partialorder %v6050, 0.0
      %vm7395 = vcmp.ge.f32.partialorder %v6051, 0.0
      %vm7396 = vcmp.ge.f32.partialorder %v6052, 0.0
      %vm7397 = vcmp.ge.f32.partialorder %v6053, 0.0
      %vm7398 = vcmp.ge.f32.partialorder %v6054, 0.0
      %vm7399 = vcmp.ge.f32.partialorder %v6055, 0.0
      %vm7400 = vcmp.ge.f32.partialorder %v6056, 0.0
      %vm7401 = vcmp.ge.f32.partialorder %v6057, 0.0
      %vm7402 = vcmp.ge.f32.partialorder %v6058, 0.0
      %vm7403 = vcmp.ge.f32.partialorder %v6059, 0.0
      %vm7404 = vcmp.ge.f32.partialorder %v6060, 0.0
      %vm7405 = vcmp.ge.f32.partialorder %v6061, 0.0
      %vm7406 = vcmp.ge.f32.partialorder %v6062, 0.0
      %vm7407 = vcmp.ge.f32.partialorder %v6063, 0.0
      %vm7408 = vcmp.ge.f32.partialorder %v6064, 0.0
      %vm7409 = vcmp.ge.f32.partialorder %v6065, 0.0
      %vm7410 = vcmp.ge.f32.partialorder %v6066, 0.0
      %vm7411 = vcmp.ge.f32.partialorder %v6067, 0.0
      %vm7412 = vcmp.ge.f32.partialorder %v6068, 0.0
      %vm7413 = vcmp.ge.f32.partialorder %v6069, 0.0
      %vm7414 = vcmp.ge.f32.partialorder %v6070, 0.0
      %vm7415 = vcmp.ge.f32.partialorder %v6071, 0.0
      %vm7416 = vcmp.ge.f32.partialorder %v6072, 0.0
      %vm7417 = vcmp.ge.f32.partialorder %v6073, 0.0
      %vm7418 = vcmp.ge.f32.partialorder %v6074, 0.0
      %vm7419 = vcmp.ge.f32.partialorder %v6075, 0.0
      %vm7420 = vcmp.ge.f32.partialorder %v6076, 0.0
      %vm7421 = vcmp.ge.f32.partialorder %v6077, 0.0
      %vm7422 = vcmp.ge.f32.partialorder %v6078, 0.0
      %vm7423 = vcmp.ge.f32.partialorder %v6079, 0.0
      %vm7424 = vcmp.ge.f32.partialorder %v6080, 0.0
      %vm7425 = vcmp.ge.f32.partialorder %v6081, 0.0
      %vm7426 = vcmp.ge.f32.partialorder %v6082, 0.0
      %vm7427 = vcmp.ge.f32.partialorder %v6083, 0.0
      %vm7428 = vcmp.ge.f32.partialorder %v6084, 0.0
      %vm7429 = vcmp.ge.f32.partialorder %v6085, 0.0
      %vm7430 = vcmp.ge.f32.partialorder %v6086, 0.0
      %vm7431 = vcmp.ge.f32.partialorder %v6087, 0.0
      %vm7432 = vcmp.ge.f32.partialorder %v6088, 0.0
      %vm7433 = vcmp.ge.f32.partialorder %v6089, 0.0
      %vm7434 = vcmp.ge.f32.partialorder %v6090, 0.0
      %vm7435 = vcmp.ge.f32.partialorder %v6091, 0.0
      %vm7436 = vcmp.ge.f32.partialorder %v6092, 0.0
      %vm7437 = vcmp.ge.f32.partialorder %v6093, 0.0
      %vm7438 = vcmp.ge.f32.partialorder %v6094, 0.0
      %vm7439 = vcmp.ge.f32.partialorder %v6095, 0.0
      %vm7440 = vcmp.ge.f32.partialorder %v6096, 0.0
      %vm7441 = vcmp.ge.f32.partialorder %v6097, 0.0
      %vm7442 = vcmp.ge.f32.partialorder %v6098, 0.0
      %vm7443 = vcmp.ge.f32.partialorder %v6099, 0.0
      %vm7444 = vcmp.ge.f32.partialorder %v6100, 0.0
      %v7445 = vsub.f32 0.0, %v7317
      %v7446 = vsub.f32 0.0, %v7318
      %v7447 = vsub.f32 0.0, %v7319
      %v7448 = vsub.f32 0.0, %v7320
      %v7449 = vsub.f32 0.0, %v7321
      %v7450 = vsub.f32 0.0, %v7322
      %v7451 = vsub.f32 0.0, %v7323
      %v7452 = vsub.f32 0.0, %v7324
      %v7453 = vsub.f32 0.0, %v7325
      %v7454 = vsub.f32 0.0, %v7326
      %v7455 = vsub.f32 0.0, %v7327
      %v7456 = vsub.f32 0.0, %v7328
      %v7457 = vsub.f32 0.0, %v7329
      %v7458 = vsub.f32 0.0, %v7330
      %v7459 = vsub.f32 0.0, %v7331
      %v7460 = vsub.f32 0.0, %v7332
      %v7461 = vsub.f32 0.0, %v7333
      %v7462 = vsub.f32 0.0, %v7334
      %v7463 = vsub.f32 0.0, %v7335
      %v7464 = vsub.f32 0.0, %v7336
      %v7465 = vsub.f32 0.0, %v7337
      %v7466 = vsub.f32 0.0, %v7338
      %v7467 = vsub.f32 0.0, %v7339
      %v7468 = vsub.f32 0.0, %v7340
      %v7469 = vsub.f32 0.0, %v7341
      %v7470 = vsub.f32 0.0, %v7342
      %v7471 = vsub.f32 0.0, %v7343
      %v7472 = vsub.f32 0.0, %v7344
      %v7473 = vsub.f32 0.0, %v7345
      %v7474 = vsub.f32 0.0, %v7346
      %v7475 = vsub.f32 0.0, %v7347
      %v7476 = vsub.f32 0.0, %v7348
      %v7477 = vsub.f32 0.0, %v7349
      %v7478 = vsub.f32 0.0, %v7350
      %v7479 = vsub.f32 0.0, %v7351
      %v7480 = vsub.f32 0.0, %v7352
      %v7481 = vsub.f32 0.0, %v7353
      %v7482 = vsub.f32 0.0, %v7354
      %v7483 = vsub.f32 0.0, %v7355
      %v7484 = vsub.f32 0.0, %v7356
      %v7485 = vsub.f32 0.0, %v7357
      %v7486 = vsub.f32 0.0, %v7358
      %v7487 = vsub.f32 0.0, %v7359
      %v7488 = vsub.f32 0.0, %v7360
      %v7489 = vsub.f32 0.0, %v7361
      %v7490 = vsub.f32 0.0, %v7362
      %v7491 = vsub.f32 0.0, %v7363
      %v7492 = vsub.f32 0.0, %v7364
      %v7493 = vsub.f32 0.0, %v7365
      %v7494 = vsub.f32 0.0, %v7366
      %v7495 = vsub.f32 0.0, %v7367
      %v7496 = vsub.f32 0.0, %v7368
      %v7497 = vsub.f32 0.0, %v7369
      %v7498 = vsub.f32 0.0, %v7370
      %v7499 = vsub.f32 0.0, %v7371
      %v7500 = vsub.f32 0.0, %v7372
      %v7501 = vsub.f32 0.0, %v7373
      %v7502 = vsub.f32 0.0, %v7374
      %v7503 = vsub.f32 0.0, %v7375
      %v7504 = vsub.f32 0.0, %v7376
      %v7505 = vsub.f32 0.0, %v7377
      %v7506 = vsub.f32 0.0, %v7378
      %v7507 = vsub.f32 0.0, %v7379
      %v7508 = vsub.f32 0.0, %v7380
      %v7509 = vsel %vm7381, %v7317, %v7445
      %v7510 = vsel %vm7382, %v7318, %v7446
      %v7511 = vsel %vm7383, %v7319, %v7447
      %v7512 = vsel %vm7384, %v7320, %v7448
      %v7513 = vsel %vm7385, %v7321, %v7449
      %v7514 = vsel %vm7386, %v7322, %v7450
      %v7515 = vsel %vm7387, %v7323, %v7451
      %v7516 = vsel %vm7388, %v7324, %v7452
      %v7517 = vsel %vm7389, %v7325, %v7453
      %v7518 = vsel %vm7390, %v7326, %v7454
      %v7519 = vsel %vm7391, %v7327, %v7455
      %v7520 = vsel %vm7392, %v7328, %v7456
      %v7521 = vsel %vm7393, %v7329, %v7457
      %v7522 = vsel %vm7394, %v7330, %v7458
      %v7523 = vsel %vm7395, %v7331, %v7459
      %v7524 = vsel %vm7396, %v7332, %v7460
      %v7525 = vsel %vm7397, %v7333, %v7461
      %v7526 = vsel %vm7398, %v7334, %v7462
      %v7527 = vsel %vm7399, %v7335, %v7463
      %v7528 = vsel %vm7400, %v7336, %v7464
      %v7529 = vsel %vm7401, %v7337, %v7465
      %v7530 = vsel %vm7402, %v7338, %v7466
      %v7531 = vsel %vm7403, %v7339, %v7467
      %v7532 = vsel %vm7404, %v7340, %v7468
      %v7533 = vsel %vm7405, %v7341, %v7469
      %v7534 = vsel %vm7406, %v7342, %v7470
      %v7535 = vsel %vm7407, %v7343, %v7471
      %v7536 = vsel %vm7408, %v7344, %v7472
      %v7537 = vsel %vm7409, %v7345, %v7473
      %v7538 = vsel %vm7410, %v7346, %v7474
      %v7539 = vsel %vm7411, %v7347, %v7475
      %v7540 = vsel %vm7412, %v7348, %v7476
      %v7541 = vsel %vm7413, %v7349, %v7477
      %v7542 = vsel %vm7414, %v7350, %v7478
      %v7543 = vsel %vm7415, %v7351, %v7479
      %v7544 = vsel %vm7416, %v7352, %v7480
      %v7545 = vsel %vm7417, %v7353, %v7481
      %v7546 = vsel %vm7418, %v7354, %v7482
      %v7547 = vsel %vm7419, %v7355, %v7483
      %v7548 = vsel %vm7420, %v7356, %v7484
      %v7549 = vsel %vm7421, %v7357, %v7485
      %v7550 = vsel %vm7422, %v7358, %v7486
      %v7551 = vsel %vm7423, %v7359, %v7487
      %v7552 = vsel %vm7424, %v7360, %v7488
      %v7553 = vsel %vm7425, %v7361, %v7489
      %v7554 = vsel %vm7426, %v7362, %v7490
      %v7555 = vsel %vm7427, %v7363, %v7491
      %v7556 = vsel %vm7428, %v7364, %v7492
      %v7557 = vsel %vm7429, %v7365, %v7493
      %v7558 = vsel %vm7430, %v7366, %v7494
      %v7559 = vsel %vm7431, %v7367, %v7495
      %v7560 = vsel %vm7432, %v7368, %v7496
      %v7561 = vsel %vm7433, %v7369, %v7497
      %v7562 = vsel %vm7434, %v7370, %v7498
      %v7563 = vsel %vm7435, %v7371, %v7499
      %v7564 = vsel %vm7436, %v7372, %v7500
      %v7565 = vsel %vm7437, %v7373, %v7501
      %v7566 = vsel %vm7438, %v7374, %v7502
      %v7567 = vsel %vm7439, %v7375, %v7503
      %v7568 = vsel %vm7440, %v7376, %v7504
      %v7569 = vsel %vm7441, %v7377, %v7505
      %v7570 = vsel %vm7442, %v7378, %v7506
      %v7571 = vsel %vm7443, %v7379, %v7507
      %v7572 = vsel %vm7444, %v7380, %v7508
      %v7573 = vadd.f32 %v7509, 1.0
      %v7574 = vadd.f32 %v7510, 1.0
      %v7575 = vadd.f32 %v7511, 1.0
      %v7576 = vadd.f32 %v7512, 1.0
      %v7577 = vadd.f32 %v7513, 1.0
      %v7578 = vadd.f32 %v7514, 1.0
      %v7579 = vadd.f32 %v7515, 1.0
      %v7580 = vadd.f32 %v7516, 1.0
      %v7581 = vadd.f32 %v7517, 1.0
      %v7582 = vadd.f32 %v7518, 1.0
      %v7583 = vadd.f32 %v7519, 1.0
      %v7584 = vadd.f32 %v7520, 1.0
      %v7585 = vadd.f32 %v7521, 1.0
      %v7586 = vadd.f32 %v7522, 1.0
      %v7587 = vadd.f32 %v7523, 1.0
      %v7588 = vadd.f32 %v7524, 1.0
      %v7589 = vadd.f32 %v7525, 1.0
      %v7590 = vadd.f32 %v7526, 1.0
      %v7591 = vadd.f32 %v7527, 1.0
      %v7592 = vadd.f32 %v7528, 1.0
      %v7593 = vadd.f32 %v7529, 1.0
      %v7594 = vadd.f32 %v7530, 1.0
      %v7595 = vadd.f32 %v7531, 1.0
      %v7596 = vadd.f32 %v7532, 1.0
      %v7597 = vadd.f32 %v7533, 1.0
      %v7598 = vadd.f32 %v7534, 1.0
      %v7599 = vadd.f32 %v7535, 1.0
      %v7600 = vadd.f32 %v7536, 1.0
      %v7601 = vadd.f32 %v7537, 1.0
      %v7602 = vadd.f32 %v7538, 1.0
      %v7603 = vadd.f32 %v7539, 1.0
      %v7604 = vadd.f32 %v7540, 1.0
      %v7605 = vadd.f32 %v7541, 1.0
      %v7606 = vadd.f32 %v7542, 1.0
      %v7607 = vadd.f32 %v7543, 1.0
      %v7608 = vadd.f32 %v7544, 1.0
      %v7609 = vadd.f32 %v7545, 1.0
      %v7610 = vadd.f32 %v7546, 1.0
      %v7611 = vadd.f32 %v7547, 1.0
      %v7612 = vadd.f32 %v7548, 1.0
      %v7613 = vadd.f32 %v7549, 1.0
      %v7614 = vadd.f32 %v7550, 1.0
      %v7615 = vadd.f32 %v7551, 1.0
      %v7616 = vadd.f32 %v7552, 1.0
      %v7617 = vadd.f32 %v7553, 1.0
      %v7618 = vadd.f32 %v7554, 1.0
      %v7619 = vadd.f32 %v7555, 1.0
      %v7620 = vadd.f32 %v7556, 1.0
      %v7621 = vadd.f32 %v7557, 1.0
      %v7622 = vadd.f32 %v7558, 1.0
      %v7623 = vadd.f32 %v7559, 1.0
      %v7624 = vadd.f32 %v7560, 1.0
      %v7625 = vadd.f32 %v7561, 1.0
      %v7626 = vadd.f32 %v7562, 1.0
      %v7627 = vadd.f32 %v7563, 1.0
      %v7628 = vadd.f32 %v7564, 1.0
      %v7629 = vadd.f32 %v7565, 1.0
      %v7630 = vadd.f32 %v7566, 1.0
      %v7631 = vadd.f32 %v7567, 1.0
      %v7632 = vadd.f32 %v7568, 1.0
      %v7633 = vadd.f32 %v7569, 1.0
      %v7634 = vadd.f32 %v7570, 1.0
      %v7635 = vadd.f32 %v7571, 1.0
      %v7636 = vadd.f32 %v7572, 1.0
      %v7637 = vmul.f32 %v5973, %v7573
      %v7638 = vmul.f32 %v5974, %v7574
      %v7639 = vmul.f32 %v5975, %v7575
      %v7640 = vmul.f32 %v5976, %v7576
      %v7641 = vmul.f32 %v5977, %v7577
      %v7642 = vmul.f32 %v5978, %v7578
      %v7643 = vmul.f32 %v5979, %v7579
      %v7644 = vmul.f32 %v5980, %v7580
      %v7645 = vmul.f32 %v5981, %v7581
      %v7646 = vmul.f32 %v5982, %v7582
      %v7647 = vmul.f32 %v5983, %v7583
      %v7648 = vmul.f32 %v5984, %v7584
      %v7649 = vmul.f32 %v5985, %v7585
      %v7650 = vmul.f32 %v5986, %v7586
      %v7651 = vmul.f32 %v5987, %v7587
      %v7652 = vmul.f32 %v5988, %v7588
      %v7653 = vmul.f32 %v5989, %v7589
      %v7654 = vmul.f32 %v5990, %v7590
      %v7655 = vmul.f32 %v5991, %v7591
      %v7656 = vmul.f32 %v5992, %v7592
      %v7657 = vmul.f32 %v5993, %v7593
      %v7658 = vmul.f32 %v5994, %v7594
      %v7659 = vmul.f32 %v5995, %v7595
      %v7660 = vmul.f32 %v5996, %v7596
      %v7661 = vmul.f32 %v5997, %v7597
      %v7662 = vmul.f32 %v5998, %v7598
      %v7663 = vmul.f32 %v5999, %v7599
      %v7664 = vmul.f32 %v6000, %v7600
      %v7665 = vmul.f32 %v6001, %v7601
      %v7666 = vmul.f32 %v6002, %v7602
      %v7667 = vmul.f32 %v6003, %v7603
      %v7668 = vmul.f32 %v6004, %v7604
      %v7669 = vmul.f32 %v6005, %v7605
      %v7670 = vmul.f32 %v6006, %v7606
      %v7671 = vmul.f32 %v6007, %v7607
      %v7672 = vmul.f32 %v6008, %v7608
      %v7673 = vmul.f32 %v6009, %v7609
      %v7674 = vmul.f32 %v6010, %v7610
      %v7675 = vmul.f32 %v6011, %v7611
      %v7676 = vmul.f32 %v6012, %v7612
      %v7677 = vmul.f32 %v6013, %v7613
      %v7678 = vmul.f32 %v6014, %v7614
      %v7679 = vmul.f32 %v6015, %v7615
      %v7680 = vmul.f32 %v6016, %v7616
      %v7681 = vmul.f32 %v6017, %v7617
      %v7682 = vmul.f32 %v6018, %v7618
      %v7683 = vmul.f32 %v6019, %v7619
      %v7684 = vmul.f32 %v6020, %v7620
      %v7685 = vmul.f32 %v6021, %v7621
      %v7686 = vmul.f32 %v6022, %v7622
      %v7687 = vmul.f32 %v6023, %v7623
      %v7688 = vmul.f32 %v6024, %v7624
      %v7689 = vmul.f32 %v6025, %v7625
      %v7690 = vmul.f32 %v6026, %v7626
      %v7691 = vmul.f32 %v6027, %v7627
      %v7692 = vmul.f32 %v6028, %v7628
      %v7693 = vmul.f32 %v6029, %v7629
      %v7694 = vmul.f32 %v6030, %v7630
      %v7695 = vmul.f32 %v6031, %v7631
      %v7696 = vmul.f32 %v6032, %v7632
      %v7697 = vmul.f32 %v6033, %v7633
      %v7698 = vmul.f32 %v6034, %v7634
      %v7699 = vmul.f32 %v6035, %v7635
      %v7700 = vmul.f32 %v6036, %v7636
      %v7701 = vld [vmem:[%s7] sm:$0xff]
      %v7702 = vld [vmem:[%s7 + $0x8] sm:$0xff]
      %v7703 = vld [vmem:[%s7 + $0x10] sm:$0xff]
      %v7704 = vld [vmem:[%s7 + $0x18] sm:$0xff]
      %v7705 = vld [vmem:[%s7 + $0x20] sm:$0xff]
      %v7706 = vld [vmem:[%s7 + $0x28] sm:$0xff]
      %v7707 = vld [vmem:[%s7 + $0x30] sm:$0xff]
      %v7708 = vld [vmem:[%s7 + $0x38] sm:$0xff]
      %v7709 = vld [vmem:[%s7 + $0x40] sm:$0xff]
      %v7710 = vld [vmem:[%s7 + $0x48] sm:$0xff]
      %v7711 = vld [vmem:[%s7 + $0x50] sm:$0xff]
      %v7712 = vld [vmem:[%s7 + $0x58] sm:$0xff]
      %v7713 = vld [vmem:[%s7 + $0x60] sm:$0xff]
      %v7714 = vld [vmem:[%s7 + $0x68] sm:$0xff]
      %v7715 = vld [vmem:[%s7 + $0x70] sm:$0xff]
      %v7716 = vld [vmem:[%s7 + $0x78] sm:$0xff]
      %v7717 = vld [vmem:[%s7 + $0x80] sm:$0xff]
      %v7718 = vld [vmem:[%s7 + $0x88] sm:$0xff]
      %v7719 = vld [vmem:[%s7 + $0x90] sm:$0xff]
      %v7720 = vld [vmem:[%s7 + $0x98] sm:$0xff]
      %v7721 = vld [vmem:[%s7 + $0xa0] sm:$0xff]
      %v7722 = vld [vmem:[%s7 + $0xa8] sm:$0xff]
      %v7723 = vld [vmem:[%s7 + $0xb0] sm:$0xff]
      %v7724 = vld [vmem:[%s7 + $0xb8] sm:$0xff]
      %v7725 = vld [vmem:[%s7 + $0xc0] sm:$0xff]
      %v7726 = vld [vmem:[%s7 + $0xc8] sm:$0xff]
      %v7727 = vld [vmem:[%s7 + $0xd0] sm:$0xff]
      %v7728 = vld [vmem:[%s7 + $0xd8] sm:$0xff]
      %v7729 = vld [vmem:[%s7 + $0xe0] sm:$0xff]
      %v7730 = vld [vmem:[%s7 + $0xe8] sm:$0xff]
      %v7731 = vld [vmem:[%s7 + $0xf0] sm:$0xff]
      %v7732 = vld [vmem:[%s7 + $0xf8] sm:$0xff]
      %v7733 = vld [vmem:[%s8] sm:$0x1]
      %v7735 = vlaneseq
      %v7736 = vshrl.u32 %v7735, 7
      %v7737 = vsub.s32 0, %v7736
      %v7738 = vrot.slane %v7733, %v7737
      %7740 = vmatprep.subr.mxu0 0.0
      %7741 = vmatpush1.msra.mxu0 %v7716
      %7742 = vmatprep.subr.mxu0 0.0
      %7743 = vmatpush1.msra.mxu0 %v7715
      %7744 = vmatprep.subr.mxu0 0.0
      %7745 = vmatpush1.msra.mxu0 %v7714
      %7746 = vmatprep.subr.mxu0 0.0
      %7747 = vmatpush1.msra.mxu0 %v7713
      %7748 = vmatprep.subr.mxu0 0.0
      %7749 = vmatpush1.msra.mxu0 %v7712
      %7750 = vmatprep.subr.mxu0 0.0
      %7751 = vmatpush1.msra.mxu0 %v7711
      %7752 = vmatprep.subr.mxu0 0.0
      %7753 = vmatpush1.msra.mxu0 %v7710
      %7754 = vmatprep.subr.mxu0 0.0
      %7755 = vmatpush1.msra.mxu0 %v7709
      %7756 = vmatprep.subr.mxu0 0.0
      %7757 = vmatpush1.msra.mxu0 %v7708
      %7758 = vmatprep.subr.mxu0 0.0
      %7759 = vmatpush1.msra.mxu0 %v7707
      %7760 = vmatprep.subr.mxu0 0.0
      %7761 = vmatpush1.msra.mxu0 %v7706
      %7762 = vmatprep.subr.mxu0 0.0
      %7763 = vmatpush1.msra.mxu0 %v7705
      %7764 = vmatprep.subr.mxu0 0.0
      %7765 = vmatpush1.msra.mxu0 %v7704
      %7766 = vmatprep.subr.mxu0 0.0
      %7767 = vmatpush1.msra.mxu0 %v7703
      %7768 = vmatprep.subr.mxu0 0.0
      %7769 = vmatpush1.msra.mxu0 %v7702
      %7770 = vmatprep.subr.mxu0 0.0
      %7771 = vmatpush1.msra.mxu0 %v7701
      %7772 = vmatprep.subr.mxu0 0.0
      %7773 = vmatpush2.msra.mxu0 %v7732
      %7774 = vmatprep.subr.mxu0 0.0
      %7775 = vmatpush2.msra.mxu0 %v7731
      %7776 = vmatprep.subr.mxu0 0.0
      %7777 = vmatpush2.msra.mxu0 %v7730
      %7778 = vmatprep.subr.mxu0 0.0
      %7779 = vmatpush2.msra.mxu0 %v7729
      %7780 = vmatprep.subr.mxu0 0.0
      %7781 = vmatpush2.msra.mxu0 %v7728
      %7782 = vmatprep.subr.mxu0 0.0
      %7783 = vmatpush2.msra.mxu0 %v7727
      %7784 = vmatprep.subr.mxu0 0.0
      %7785 = vmatpush2.msra.mxu0 %v7726
      %7786 = vmatprep.subr.mxu0 0.0
      %7787 = vmatpush2.msra.mxu0 %v7725
      %7788 = vmatprep.subr.mxu0 0.0
      %7789 = vmatpush2.msra.mxu0 %v7724
      %7790 = vmatprep.subr.mxu0 0.0
      %7791 = vmatpush2.msra.mxu0 %v7723
      %7792 = vmatprep.subr.mxu0 0.0
      %7793 = vmatpush2.msra.mxu0 %v7722
      %7794 = vmatprep.subr.mxu0 0.0
      %7795 = vmatpush2.msra.mxu0 %v7721
      %7796 = vmatprep.subr.mxu0 0.0
      %7797 = vmatpush2.msra.mxu0 %v7720
      %7798 = vmatprep.subr.mxu0 0.0
      %7799 = vmatpush2.msra.mxu0 %v7719
      %7800 = vmatprep.subr.mxu0 0.0
      %7801 = vmatpush2.msra.mxu0 %v7718
      %7802 = vmatprep.subr.mxu0 0.0
      %7803 = vmatpush2.msra.mxu0 %v7717
      %7804 = vmatprep.mubr.f32.mxu0 %v7638
      %7805 = vmatmul.mubr.f32.gmra.mxu0 %v7637
      %v7806 = vpop.f32.mrf.mxu0
      %v7807 = vadd.f32 %v7738, %v7806
      %v7808 = vpop.f32.mrf.mxu0
      %7809 = vmatprep.mubr.f32.mxu0 %v7640
      %7810 = vmatmul.mubr.f32.gmra.mxu0 %v7639
      %v7811 = vpop.f32.mrf.mxu0
      %v7812 = vadd.f32 %v7738, %v7811
      %v7813 = vpop.f32.mrf.mxu0
      %7814 = vmatprep.mubr.f32.mxu0 %v7642
      %7815 = vmatmul.mubr.f32.gmra.mxu0 %v7641
      %v7816 = vpop.f32.mrf.mxu0
      %v7817 = vadd.f32 %v7738, %v7816
      %v7818 = vpop.f32.mrf.mxu0
      %7819 = vmatprep.mubr.f32.mxu0 %v7644
      %7820 = vmatmul.mubr.f32.gmra.mxu0 %v7643
      %v7821 = vpop.f32.mrf.mxu0
      %v7822 = vadd.f32 %v7738, %v7821
      %v7823 = vpop.f32.mrf.mxu0
      %7824 = vmatprep.mubr.f32.mxu0 %v7646
      %7825 = vmatmul.mubr.f32.gmra.mxu0 %v7645
      %v7826 = vpop.f32.mrf.mxu0
      %v7827 = vadd.f32 %v7738, %v7826
      %v7828 = vpop.f32.mrf.mxu0
      %7829 = vmatprep.mubr.f32.mxu0 %v7648
      %7830 = vmatmul.mubr.f32.gmra.mxu0 %v7647
      %v7831 = vpop.f32.mrf.mxu0
      %v7832 = vadd.f32 %v7738, %v7831
      %v7833 = vpop.f32.mrf.mxu0
      %7834 = vmatprep.mubr.f32.mxu0 %v7650
      %7835 = vmatmul.mubr.f32.gmra.mxu0 %v7649
      %v7836 = vpop.f32.mrf.mxu0
      %v7837 = vadd.f32 %v7738, %v7836
      %v7838 = vpop.f32.mrf.mxu0
      %7839 = vmatprep.mubr.f32.mxu0 %v7652
      %7840 = vmatmul.mubr.f32.gmra.mxu0 %v7651
      %v7841 = vpop.f32.mrf.mxu0
      %v7842 = vadd.f32 %v7738, %v7841
      %v7843 = vpop.f32.mrf.mxu0
      %7844 = vmatprep.mubr.f32.mxu0 %v7654
      %7845 = vmatmul.mubr.f32.gmra.mxu0 %v7653
      %v7846 = vpop.f32.mrf.mxu0
      %v7847 = vadd.f32 %v7738, %v7846
      %v7848 = vpop.f32.mrf.mxu0
      %7849 = vmatprep.mubr.f32.mxu0 %v7656
      %7850 = vmatmul.mubr.f32.gmra.mxu0 %v7655
      %v7851 = vpop.f32.mrf.mxu0
      %v7852 = vadd.f32 %v7738, %v7851
      %v7853 = vpop.f32.mrf.mxu0
      %7854 = vmatprep.mubr.f32.mxu0 %v7658
      %7855 = vmatmul.mubr.f32.gmra.mxu0 %v7657
      %v7856 = vpop.f32.mrf.mxu0
      %v7857 = vadd.f32 %v7738, %v7856
      %v7858 = vpop.f32.mrf.mxu0
      %7859 = vmatprep.mubr.f32.mxu0 %v7660
      %7860 = vmatmul.mubr.f32.gmra.mxu0 %v7659
      %v7861 = vpop.f32.mrf.mxu0
      %v7862 = vadd.f32 %v7738, %v7861
      %v7863 = vpop.f32.mrf.mxu0
      %7864 = vmatprep.mubr.f32.mxu0 %v7662
      %7865 = vmatmul.mubr.f32.gmra.mxu0 %v7661
      %v7866 = vpop.f32.mrf.mxu0
      %v7867 = vadd.f32 %v7738, %v7866
      %v7868 = vpop.f32.mrf.mxu0
      %7869 = vmatprep.mubr.f32.mxu0 %v7664
      %7870 = vmatmul.mubr.f32.gmra.mxu0 %v7663
      %v7871 = vpop.f32.mrf.mxu0
      %v7872 = vadd.f32 %v7738, %v7871
      %v7873 = vpop.f32.mrf.mxu0
      %7874 = vmatprep.mubr.f32.mxu0 %v7666
      %7875 = vmatmul.mubr.f32.gmra.mxu0 %v7665
      %v7876 = vpop.f32.mrf.mxu0
      %v7877 = vadd.f32 %v7738, %v7876
      %v7878 = vpop.f32.mrf.mxu0
      %7879 = vmatprep.mubr.f32.mxu0 %v7668
      %7880 = vmatmul.mubr.f32.gmra.mxu0 %v7667
      %v7881 = vpop.f32.mrf.mxu0
      %v7882 = vadd.f32 %v7738, %v7881
      %v7883 = vpop.f32.mrf.mxu0
      %7884 = vmatprep.mubr.f32.mxu0 %v7670
      %7885 = vmatmul.mubr.f32.gmra.mxu0 %v7669
      %v7886 = vpop.f32.mrf.mxu0
      %v7887 = vadd.f32 %v7738, %v7886
      %v7888 = vpop.f32.mrf.mxu0
      %7889 = vmatprep.mubr.f32.mxu0 %v7672
      %7890 = vmatmul.mubr.f32.gmra.mxu0 %v7671
      %v7891 = vpop.f32.mrf.mxu0
      %v7892 = vadd.f32 %v7738, %v7891
      %v7893 = vpop.f32.mrf.mxu0
      %7894 = vmatprep.mubr.f32.mxu0 %v7674
      %7895 = vmatmul.mubr.f32.gmra.mxu0 %v7673
      %v7896 = vpop.f32.mrf.mxu0
      %v7897 = vadd.f32 %v7738, %v7896
      %v7898 = vpop.f32.mrf.mxu0
      %7899 = vmatprep.mubr.f32.mxu0 %v7676
      %7900 = vmatmul.mubr.f32.gmra.mxu0 %v7675
      %v7901 = vpop.f32.mrf.mxu0
      %v7902 = vadd.f32 %v7738, %v7901
      %v7903 = vpop.f32.mrf.mxu0
      %7904 = vmatprep.mubr.f32.mxu0 %v7678
      %7905 = vmatmul.mubr.f32.gmra.mxu0 %v7677
      %v7906 = vpop.f32.mrf.mxu0
      %v7907 = vadd.f32 %v7738, %v7906
      %v7908 = vpop.f32.mrf.mxu0
      %7909 = vmatprep.mubr.f32.mxu0 %v7680
      %7910 = vmatmul.mubr.f32.gmra.mxu0 %v7679
      %v7911 = vpop.f32.mrf.mxu0
      %v7912 = vadd.f32 %v7738, %v7911
      %v7913 = vpop.f32.mrf.mxu0
      %7914 = vmatprep.mubr.f32.mxu0 %v7682
      %7915 = vmatmul.mubr.f32.gmra.mxu0 %v7681
      %v7916 = vpop.f32.mrf.mxu0
      %v7917 = vadd.f32 %v7738, %v7916
      %v7918 = vpop.f32.mrf.mxu0
      %7919 = vmatprep.mubr.f32.mxu0 %v7684
      %7920 = vmatmul.mubr.f32.gmra.mxu0 %v7683
      %v7921 = vpop.f32.mrf.mxu0
      %v7922 = vadd.f32 %v7738, %v7921
      %v7923 = vpop.f32.mrf.mxu0
      %7924 = vmatprep.mubr.f32.mxu0 %v7686
      %7925 = vmatmul.mubr.f32.gmra.mxu0 %v7685
      %v7926 = vpop.f32.mrf.mxu0
      %v7927 = vadd.f32 %v7738, %v7926
      %v7928 = vpop.f32.mrf.mxu0
      %7929 = vmatprep.mubr.f32.mxu0 %v7688
      %7930 = vmatmul.mubr.f32.gmra.mxu0 %v7687
      %v7931 = vpop.f32.mrf.mxu0
      %v7932 = vadd.f32 %v7738, %v7931
      %v7933 = vpop.f32.mrf.mxu0
      %7934 = vmatprep.mubr.f32.mxu0 %v7690
      %7935 = vmatmul.mubr.f32.gmra.mxu0 %v7689
      %v7936 = vpop.f32.mrf.mxu0
      %v7937 = vadd.f32 %v7738, %v7936
      %v7938 = vpop.f32.mrf.mxu0
      %7939 = vmatprep.mubr.f32.mxu0 %v7692
      %7940 = vmatmul.mubr.f32.gmra.mxu0 %v7691
      %v7941 = vpop.f32.mrf.mxu0
      %v7942 = vadd.f32 %v7738, %v7941
      %v7943 = vpop.f32.mrf.mxu0
      %7944 = vmatprep.mubr.f32.mxu0 %v7694
      %7945 = vmatmul.mubr.f32.gmra.mxu0 %v7693
      %v7946 = vpop.f32.mrf.mxu0
      %v7947 = vadd.f32 %v7738, %v7946
      %v7948 = vpop.f32.mrf.mxu0
      %7949 = vmatprep.mubr.f32.mxu0 %v7696
      %7950 = vmatmul.mubr.f32.gmra.mxu0 %v7695
      %v7951 = vpop.f32.mrf.mxu0
      %v7952 = vadd.f32 %v7738, %v7951
      %v7953 = vpop.f32.mrf.mxu0
      %7954 = vmatprep.mubr.f32.mxu0 %v7698
      %7955 = vmatmul.mubr.f32.gmra.mxu0 %v7697
      %v7956 = vpop.f32.mrf.mxu0
      %v7957 = vadd.f32 %v7738, %v7956
      %v7958 = vpop.f32.mrf.mxu0
      %7959 = vmatprep.mubr.f32.mxu0 %v7700
      %7960 = vmatmul.mubr.f32.gmra.mxu0 %v7699
      %v7961 = vpop.f32.mrf.mxu0
      %v7962 = vadd.f32 %v7738, %v7961
      %v7963 = vpop.f32.mrf.mxu0
      %7964 = vdwg.mxu0
      %7965 = vst.msk [vmem:[%s332] sm:$0xff] %vm393, %v7807
      %7966 = vst.msk [vmem:[%s332 + $0x8] sm:$0xff] %vm393, %v7812
      %7967 = vst.msk [vmem:[%s332 + $0x10] sm:$0xff] %vm393, %v7817
      %7968 = vst.msk [vmem:[%s332 + $0x18] sm:$0xff] %vm393, %v7822
      %7969 = vst.msk [vmem:[%s332 + $0x20] sm:$0xff] %vm393, %v7827
      %7970 = vst.msk [vmem:[%s332 + $0x28] sm:$0xff] %vm393, %v7832
      %7971 = vst.msk [vmem:[%s332 + $0x30] sm:$0xff] %vm393, %v7837
      %7972 = vst.msk [vmem:[%s332 + $0x38] sm:$0xff] %vm393, %v7842
      %7973 = vst.msk [vmem:[%s332 + $0x40] sm:$0xff] %vm393, %v7847
      %7974 = vst.msk [vmem:[%s332 + $0x48] sm:$0xff] %vm393, %v7852
      %7975 = vst.msk [vmem:[%s332 + $0x50] sm:$0xff] %vm393, %v7857
      %7976 = vst.msk [vmem:[%s332 + $0x58] sm:$0xff] %vm393, %v7862
      %7977 = vst.msk [vmem:[%s332 + $0x60] sm:$0xff] %vm393, %v7867
      %7978 = vst.msk [vmem:[%s332 + $0x68] sm:$0xff] %vm393, %v7872
      %7979 = vst.msk [vmem:[%s332 + $0x70] sm:$0xff] %vm393, %v7877
      %7980 = vst.msk [vmem:[%s332 + $0x78] sm:$0xff] %vm393, %v7882
      %7981 = vst.msk [vmem:[%s332 + $0x80] sm:$0xff] %vm393, %v7887
      %7982 = vst.msk [vmem:[%s332 + $0x88] sm:$0xff] %vm393, %v7892
      %7983 = vst.msk [vmem:[%s332 + $0x90] sm:$0xff] %vm393, %v7897
      %7984 = vst.msk [vmem:[%s332 + $0x98] sm:$0xff] %vm393, %v7902
      %7985 = vst.msk [vmem:[%s332 + $0xa0] sm:$0xff] %vm393, %v7907
      %7986 = vst.msk [vmem:[%s332 + $0xa8] sm:$0xff] %vm393, %v7912
      %7987 = vst.msk [vmem:[%s332 + $0xb0] sm:$0xff] %vm393, %v7917
      %7988 = vst.msk [vmem:[%s332 + $0xb8] sm:$0xff] %vm393, %v7922
      %7989 = vst.msk [vmem:[%s332 + $0xc0] sm:$0xff] %vm393, %v7927
      %7990 = vst.msk [vmem:[%s332 + $0xc8] sm:$0xff] %vm393, %v7932
      %7991 = vst.msk [vmem:[%s332 + $0xd0] sm:$0xff] %vm393, %v7937
      %7992 = vst.msk [vmem:[%s332 + $0xd8] sm:$0xff] %vm393, %v7942
      %7993 = vst.msk [vmem:[%s332 + $0xe0] sm:$0xff] %vm393, %v7947
      %7994 = vst.msk [vmem:[%s332 + $0xe8] sm:$0xff] %vm393, %v7952
      %7995 = vst.msk [vmem:[%s332 + $0xf0] sm:$0xff] %vm393, %v7957
      %7996 = vst.msk [vmem:[%s332 + $0xf8] sm:$0xff] %vm393, %v7962
      %p7997 = scmp.lt.s32.totalorder %s20, 1
      %s7998 = scalar_select %p7997, %s20, 1
      %s7999 = smul.addr %s7998, 32
      %s8000 = smul.addr %s7999, 8
      %s8001 = scalar_lea.vmem %s9, %s8000
      // Predicated region
      $region57: #{tpu_custom_call.1} parent=55 // pred_check
        %p8002 = pneg %p232
      $region58: #{tpu_custom_call.1} parent=55 // pred_check_branch
        %8004 = sbr.rel (%p8002) target = $region60
      $region59: #{tpu_custom_call.1} parent=55 // pred_region
        _
      $region60: #{tpu_custom_call.1} parent=55 // pred_fallthru
        _
    $region56: #{tpu_custom_call.1} parent=5 // pred_fallthru
      _
    %p8005 = scmp.le.s32.totalorder 2, %s15
    // Predicated region
    $region61: #{tpu_custom_call.1} parent=5 // pred_check
      %p8006 = pneg %p8005
    $region62: #{tpu_custom_call.1} parent=5 // pred_check_branch
      %8008 = sbr.rel (%p8006) target = $region64
    $region63: #{tpu_custom_call.1} parent=5 // pred_region
      %s8009 = ssub.s32 %s15, 2
      // Predicated region
      $region65: #{tpu_custom_call.1} parent=63 // pred_check
        %p8010 = pneg %p238
      $region66: #{tpu_custom_call.1} parent=63 // pred_check_branch
        %8012 = sbr.rel (%p8010) target = $region68
      $region67: #{tpu_custom_call.1} parent=63 // pred_region
        %p8013 = scmp.lt.s32.totalorder %s21, 1
        %s8014 = scalar_select %p8013, %s21, 1
        %s8015 = smul.addr %s8014, 32
        %s8016 = smul.addr %s8015, 8
        %s8017 = scalar_lea.vmem %s9, %s8016
      $region68: #{tpu_custom_call.1} parent=63 // pred_fallthru
        _
    $region64: #{tpu_custom_call.1} parent=5 // pred_fallthru
      _
  $region6: #{tpu_custom_call.1} parent=0 // loop_footer
    %s19 = sadd.s32 1, %s15
  $region7: #{tpu_custom_call.1} parent=0 // loop_footer_branch
    %14 = sbr.rel target = $region3
  $region8: #{tpu_custom_call.1} parent=0 // loop_exit
    _

</llo_original>
